<compile_context>
chip_gen: v7x
topology: tpu7x:2x2x1
jax: 0.10.0
libtpu: 0.0.40
codegen_flags: <defaults>
</compile_context>

<pallas_src>
import functools

import jax
import jax.numpy as jnp
from jax.experimental import pallas as pl
from jax.experimental.pallas import tpu as pltpu

LANE = 128


def _round_up(x, m):
    return ((x + m - 1) // m) * m


# ----------------------------- Pallas kernels ------------------------------- #

def _conv_mm_kernel(a_ref, b_ref, bias_ref, o_ref):
    """Single-block matmul + bias + ReLU.  bf16 operands, f32 accumulate, bf16 out."""
    out = jnp.dot(a_ref[...], b_ref[...], preferred_element_type=jnp.float32)
    out = jnp.maximum(out + bias_ref[...], 0.0)
    o_ref[...] = out.astype(o_ref.dtype)


def _fc_fused_kernel(a_ref, w1_ref, b1_ref, w2_ref, b2_ref, o_ref, acc_ref):
    """K-tiled FC1 (bf16 x bf16 -> f32 acc) with FC2 fused in the epilogue:
       out = relu(a @ w1 + b1) @ w2 + b2."""
    k = pl.program_id(0)

    @pl.when(k == 0)
    def _init():
        acc_ref[...] = jnp.zeros_like(acc_ref)

    acc_ref[...] += jnp.dot(a_ref[...], w1_ref[...],
                            preferred_element_type=jnp.float32)

    @pl.when(k == pl.num_programs(0) - 1)
    def _finalize():
        h = jnp.maximum(acc_ref[...] + b1_ref[...], 0.0)
        out = jnp.dot(h, w2_ref[...], preferred_element_type=jnp.float32)
        o_ref[...] = (out + b2_ref[...]).astype(o_ref.dtype)


# ----------------------------- Pallas wrappers ------------------------------ #

def matmul_bias_relu(a, b, bias):
    """relu(a @ b + bias) as one full-block pallas_call (grid=(1,)).

    a: (M, K) bf16;  b: (K, Np) bf16 with Np a lane multiple;  bias: (1, Np) f32.
    Returns (Mp, Np) bf16 (Mp = M rounded up to 8)."""
    M, K = a.shape
    Kb, Np = b.shape
    assert K == Kb and bias.shape == (1, Np)

    Mp = _round_up(M, 8)
    if Mp != M:
        a = jnp.pad(a, ((0, Mp - M), (0, 0)))

    return pl.pallas_call(
        _conv_mm_kernel,
        out_shape=jax.ShapeDtypeStruct((Mp, Np), jnp.bfloat16),
        grid_spec=pltpu.PrefetchScalarGridSpec(
            num_scalar_prefetch=0,
            grid=(1,),
            in_specs=[
                pl.BlockSpec((Mp, K), lambda i: (0, 0)),
                pl.BlockSpec((K, Np), lambda i: (0, 0)),
                pl.BlockSpec((1, Np), lambda i: (0, 0)),
            ],
            out_specs=pl.BlockSpec((Mp, Np), lambda i: (0, 0)),
        ),
        compiler_params=pltpu.CompilerParams(
            dimension_semantics=("arbitrary",)),
    )(a, b, bias)


def fc_fused(a, w1, b1, w2, b2, *, tk):
    """relu(a @ w1 + b1) @ w2 + b2 with a K-tiled f32 accumulator and FC2 fused
    into the last-K epilogue.  a/w1 bf16, w2/biases f32, output f32."""
    M, K = a.shape
    K1, N1 = w1.shape
    N1b, N2 = w2.shape
    assert K == K1 and N1 == N1b and K % tk == 0
    assert b1.shape == (1, N1) and b2.shape == (1, N2)

    return pl.pallas_call(
        _fc_fused_kernel,
        out_shape=jax.ShapeDtypeStruct((M, N2), jnp.float32),
        grid_spec=pltpu.PrefetchScalarGridSpec(
            num_scalar_prefetch=0,
            grid=(K // tk,),
            in_specs=[
                pl.BlockSpec((M, tk), lambda k: (0, k)),
                pl.BlockSpec((tk, N1), lambda k: (k, 0)),
                pl.BlockSpec((1, N1), lambda k: (0, 0)),
                pl.BlockSpec((N1, N2), lambda k: (0, 0)),
                pl.BlockSpec((1, N2), lambda k: (0, 0)),
            ],
            out_specs=pl.BlockSpec((M, N2), lambda k: (0, 0)),
            scratch_shapes=[pltpu.VMEM((M, N1), jnp.float32)],
        ),
        compiler_params=pltpu.CompilerParams(
            dimension_semantics=("arbitrary",)),
    )(a, w1, b1, w2, b2)


# ----------------------------- Conv via im2col ------------------------------ #

def conv2d_pallas(x_nhwc, w_mat, b_pad, c_out, *, kh, kw, stride):
    """x_nhwc: (N,H,W,C) bf16; w_mat: (C*kh*kw, Np) pre-transposed/padded bf16."""
    n, h, w, c = x_nhwc.shape
    ho = (h - kh) // stride + 1
    wo = (w - kw) // stride + 1

    cols = []
    for i in range(kh):
        for j in range(kw):
            cols.append(x_nhwc[:, i:i + stride * (ho - 1) + 1:stride,
                                  j:j + stride * (wo - 1) + 1:stride, :])
    # feature index = c*(kh*kw) + (i*kw + j)  == torch weight.reshape(C_out,-1)
    patches = jnp.stack(cols, axis=-1).reshape(n * ho * wo, c * kh * kw)

    out = matmul_bias_relu(patches, w_mat, b_pad)           # bf16 (Mp, 128)
    return out[:n * ho * wo, :c_out].reshape(n, ho, wo, c_out)


# ------------------------------ Params ------------------------------------- #

def init_params(key, in_channels, actions_space):
    def uinit(k, shape, fan_in):
        bound = 1.0 / jnp.sqrt(float(fan_in))
        return jax.random.uniform(k, shape, jnp.float32, -bound, bound)

    ks = jax.random.split(key, 10)
    p = {}
    p["w1"] = uinit(ks[0], (32, in_channels, 8, 8), in_channels * 64)
    p["b1"] = uinit(ks[1], (32,), in_channels * 64)
    p["w2"] = uinit(ks[2], (64, 32, 4, 4), 32 * 16)
    p["b2"] = uinit(ks[3], (64,), 32 * 16)
    p["w3"] = uinit(ks[4], (64, 64, 3, 3), 64 * 9)
    p["b3"] = uinit(ks[5], (64,), 64 * 9)
    p["wl1"] = uinit(ks[6], (500, 5376), 5376)
    p["bl1"] = uinit(ks[7], (500,), 5376)
    p["wl2"] = uinit(ks[8], (actions_space, 500), 500)
    p["bl2"] = uinit(ks[9], (actions_space,), 500)
    return p


def prepare_params(p, actions_space, *, conv_out_hw=(7, 12)):
    """One-time reshape/transpose/pad/cast of all weights into kernel-ready layout."""
    def conv_mat(w, b):
        c_out = w.shape[0]
        k = w.shape[1] * w.shape[2] * w.shape[3]
        npad = _round_up(c_out, LANE)
        w_mat = jnp.pad(w.reshape(c_out, k).T,
                        ((0, 0), (0, npad - c_out))).astype(jnp.bfloat16)
        b_pad = jnp.pad(b.reshape(1, -1), ((0, 0), (0, npad - c_out)))  # f32
        return w_mat, b_pad

    pp = {}
    pp["w1_mat"], pp["b1_pad"] = conv_mat(p["w1"], p["b1"])
    pp["w2_mat"], pp["b2_pad"] = conv_mat(p["w2"], p["b2"])
    pp["w3_mat"], pp["b3_pad"] = conv_mat(p["w3"], p["b3"])

    # FC1: fold the NHWC-flatten -> torch NCHW .view() permutation into the weight
    # rows, transpose to (K, N), pad N 500 -> 512 (zero cols -> exactly 0 after
    # ReLU), cast to bf16 (f32 accumulation stays in-kernel).
    h3, w3 = conv_out_hw
    c3 = p["w3"].shape[0]                                  # 64
    kfc = h3 * w3 * c3                                     # 5376
    assert p["wl1"].shape[1] == kfc
    i = jnp.arange(kfc)                                    # NHWC flatten index
    s, c = i // c3, i % c3
    hh, ww = s // w3, s % w3
    perm = c * (h3 * w3) + hh * w3 + ww                    # -> torch NCHW feature idx
    n1 = _round_up(p["wl1"].shape[0], LANE)                # 512
    wl1_t = p["wl1"].T[perm]                               # (5376, 500) NHWC row order
    pp["wl1_mat"] = jnp.pad(wl1_t, ((0, 0), (0, n1 - 500))).astype(jnp.bfloat16)
    pp["bl1_pad"] = jnp.pad(p["bl1"].reshape(1, -1), ((0, 0), (0, n1 - 500)))

    # FC2: (A,500) -> (512,128) f32; padded K rows multiply FC1's zero padded
    # (post-ReLU) columns, so they are inert; padded output cols are sliced away.
    n2 = _round_up(actions_space, LANE)                    # 128
    pp["wl2_mat"] = jnp.pad(p["wl2"].T,
                            ((0, n1 - 500), (0, n2 - actions_space)))
    pp["bl2_pad"] = jnp.pad(p["bl2"].reshape(1, -1),
                            ((0, 0), (0, n2 - actions_space)))
    return pp


# ------------------------------ Model forward ------------------------------- #

def cnn_forward(pp, x_nchw, *, actions_space):
    n = x_nchw.shape[0]
    # NCHW -> NHWC once, cast to bf16 once (all conv math is bf16-in / f32-acc).
    x = jnp.transpose(x_nchw, (0, 2, 3, 1)).astype(jnp.bfloat16)

    x = conv2d_pallas(x, pp["w1_mat"], pp["b1_pad"], 32, kh=8, kw=8, stride=4)
    x = conv2d_pallas(x, pp["w2_mat"], pp["b2_pad"], 64, kh=4, kw=4, stride=2)
    # Sequential ends with Conv2d; forward applies F.relu right after -> fused here.
    x = conv2d_pallas(x, pp["w3_mat"], pp["b3_pad"], 64, kh=3, kw=3, stride=1)

    # NHWC flatten only (no transpose): the torch .view(N,-1) NCHW order is folded
    # into wl1_mat's row permutation in prepare_params().
    x = x.reshape(n, -1)                                        # (n, 5376) bf16
    mp = _round_up(n, 8)
    x = jnp.pad(x, ((0, mp - n), (0, 0)))                       # (8, 5376) bf16

    # FC1 (K tiled, tk=2688 -> 2 steps, bf16 weight stream) with FC2 fused into
    # the last-K epilogue -> one pallas_call, no (8,512) intermediate.
    out = fc_fused(x, pp["wl1_mat"], pp["bl1_pad"],
                   pp["wl2_mat"], pp["bl2_pad"], tk=2688)       # (8, 128) f32
    return out[:n, :actions_space]


# Independent pure-JAX/XLA reference (direct conv, f32 everywhere).
def _ref_forward(params, x_nchw):
    def conv(x, w, b, stride):
        out = jax.lax.conv_general_dilated(
            x, w, window_strides=(stride, stride), padding="VALID",
            dimension_numbers=("NCHW", "OIHW", "NCHW"))
        return out + b.reshape(1, -1, 1, 1)

    x = jnp.maximum(conv(x_nchw, params["w1"], params["b1"], 4), 0.0)
    x = jnp.maximum(conv(x, params["w2"], params["b2"], 2), 0.0)
    x = jnp.maximum(conv(x, params["w3"], params["b3"], 1), 0.0)
    x = x.reshape(x.shape[0], -1)
    x = jnp.maximum(x @ params["wl1"].T + params["bl1"], 0.0)
    return x @ params["wl2"].T + params["bl2"]


if __name__ == "__main__":
    # Spatial dims chosen so the flatten size is exactly 5376 (= 64 * 7 * 12),
    # as required by the hard-coded nn.Linear(5376, 500).
    batch, in_channels, H, W = 2, 4, 84, 124
    actions_space = 6

    key = jax.random.PRNGKey(0)
    k_param, k_x = jax.random.split(key)
    params = init_params(k_param, in_channels, actions_space)
    prepped = prepare_params(params, actions_space)        # one-time weight prep
    x = jax.random.normal(k_x, (batch, in_channels, H, W), dtype=jnp.float32)

    fwd = jax.jit(functools.partial(cnn_forward, actions_space=actions_space))
    out = jax.block_until_ready(fwd(prepped, x))
    assert out.shape == (batch, actions_space), out.shape
    assert bool(jnp.all(jnp.isfinite(out)))

    ref = jax.block_until_ready(jax.jit(_ref_forward)(params, x))
    assert jnp.allclose(out, ref, rtol=5e-2, atol=5e-2), \
        float(jnp.max(jnp.abs(out - ref)))

    print("KERNEL_OK")
</pallas_src>

<mosaic_0001>
module attributes {stable_mosaic.version = 11 : i64} {
  func.func @_conv_mm_kernel(%arg0: i32, %arg1: memref<1200x256xbf16, #tpu.memory_space<vmem>>, %arg2: memref<256x128xbf16, #tpu.memory_space<vmem>>, %arg3: memref<1x128xf32, #tpu.memory_space<vmem>>, %arg4: memref<1200x128xbf16, #tpu.memory_space<vmem>>) attributes {dimension_semantics = [#tpu.dimension_semantics<arbitrary>], iteration_bounds = array<i64: 1>, scalar_prefetch = 0 : i64, scratch_operands = 0 : i64, tpu.core_type = #tpu.core_type<tc>, window_params = [{pipeline_mode = #tpu.pipeline_mode<synchronous>, transform_indices = @transform_0, window_bounds = array<i64: 1200, 256>}, {pipeline_mode = #tpu.pipeline_mode<synchronous>, transform_indices = @transform_1, window_bounds = array<i64: 256, 128>}, {pipeline_mode = #tpu.pipeline_mode<synchronous>, transform_indices = @transform_2, window_bounds = array<i64: 1, 128>}, {pipeline_mode = #tpu.pipeline_mode<synchronous>, transform_indices = @transform_3, window_bounds = array<i64: 1200, 128>}]} {
    %c0 = arith.constant 0 : index
    %c0_0 = arith.constant 0 : index
    %0 = vector.load %arg1[%c0, %c0_0] : memref<1200x256xbf16, #tpu.memory_space<vmem>>, vector<1200x256xbf16>
    %c0_1 = arith.constant 0 : index
    %c0_2 = arith.constant 0 : index
    %1 = vector.load %arg2[%c0_1, %c0_2] : memref<256x128xbf16, #tpu.memory_space<vmem>>, vector<256x128xbf16>
    %cst = arith.constant dense<0.000000e+00> : vector<1200x128xf32>
    %2 = tpu.matmul %0, %1, %cst {dimension_numbers = #tpu.dot_dimension_numbers<[1], [0], [0], [1], [0, 0, 1, 1], [], []>} : vector<1200x256xbf16>, vector<256x128xbf16>, vector<1200x128xf32> -> vector<1200x128xf32>
    %c0_3 = arith.constant 0 : index
    %c0_4 = arith.constant 0 : index
    %3 = vector.load %arg3[%c0_3, %c0_4] : memref<1x128xf32, #tpu.memory_space<vmem>>, vector<1x128xf32>
    %4 = vector.broadcast %3 : vector<1x128xf32> to vector<1200x128xf32>
    %5 = arith.addf %2, %4 : vector<1200x128xf32>
    %cst_5 = arith.constant 0.000000e+00 : f32
    %6 = vector.broadcast %cst_5 : f32 to vector<1200x128xf32>
    %7 = arith.maximumf %5, %6 : vector<1200x128xf32>
    %8 = arith.truncf %7 : vector<1200x128xf32> to vector<1200x128xbf16>
    %c0_6 = arith.constant 0 : index
    %c0_7 = arith.constant 0 : index
    %9 = vector.load %arg4[%c0_6, %c0_7] : memref<1200x128xbf16, #tpu.memory_space<vmem>>, vector<1200x128xbf16>
    tpu.vector_store %arg4[%c0_6, %c0_7], %8 {strides = array<i32>} : memref<1200x128xbf16, #tpu.memory_space<vmem>>, vector<1200x128xbf16>,
    return
  }
  func.func @transform_0(%arg0: i32) -> (i32, i32) {
    %c0_i32 = arith.constant 0 : i32
    %c0_i32_0 = arith.constant 0 : i32
    %c0_i32_1 = arith.constant 0 : i32
    return %c0_i32, %c0_i32_0 : i32, i32
  }
  func.func @transform_1(%arg0: i32) -> (i32, i32) {
    %c0_i32 = arith.constant 0 : i32
    %c0_i32_0 = arith.constant 0 : i32
    %c0_i32_1 = arith.constant 0 : i32
    return %c0_i32, %c0_i32_0 : i32, i32
  }
  func.func @transform_2(%arg0: i32) -> (i32, i32) {
    %c0_i32 = arith.constant 0 : i32
    %c0_i32_0 = arith.constant 0 : i32
    %c0_i32_1 = arith.constant 0 : i32
    return %c0_i32, %c0_i32_0 : i32, i32
  }
  func.func @transform_3(%arg0: i32) -> (i32, i32) {
    %c0_i32 = arith.constant 0 : i32
    %c0_i32_0 = arith.constant 0 : i32
    %c0_i32_1 = arith.constant 0 : i32
    return %c0_i32, %c0_i32_0 : i32, i32
  }
}

module attributes {stable_mosaic.version = 11 : i64} {
  func.func @_conv_mm_kernel(%arg0: i32, %arg1: memref<256x512xbf16, #tpu.memory_space<vmem>>, %arg2: memref<512x128xbf16, #tpu.memory_space<vmem>>, %arg3: memref<1x128xf32, #tpu.memory_space<vmem>>, %arg4: memref<256x128xbf16, #tpu.memory_space<vmem>>) attributes {dimension_semantics = [#tpu.dimension_semantics<arbitrary>], iteration_bounds = array<i64: 1>, scalar_prefetch = 0 : i64, scratch_operands = 0 : i64, tpu.core_type = #tpu.core_type<tc>, window_params = [{pipeline_mode = #tpu.pipeline_mode<synchronous>, transform_indices = @transform_0, window_bounds = array<i64: 256, 512>}, {pipeline_mode = #tpu.pipeline_mode<synchronous>, transform_indices = @transform_1, window_bounds = array<i64: 512, 128>}, {pipeline_mode = #tpu.pipeline_mode<synchronous>, transform_indices = @transform_2, window_bounds = array<i64: 1, 128>}, {pipeline_mode = #tpu.pipeline_mode<synchronous>, transform_indices = @transform_3, window_bounds = array<i64: 256, 128>}]} {
    %c0 = arith.constant 0 : index
    %c0_0 = arith.constant 0 : index
    %0 = vector.load %arg1[%c0, %c0_0] : memref<256x512xbf16, #tpu.memory_space<vmem>>, vector<256x512xbf16>
    %c0_1 = arith.constant 0 : index
    %c0_2 = arith.constant 0 : index
    %1 = vector.load %arg2[%c0_1, %c0_2] : memref<512x128xbf16, #tpu.memory_space<vmem>>, vector<512x128xbf16>
    %cst = arith.constant dense<0.000000e+00> : vector<256x128xf32>
    %2 = tpu.matmul %0, %1, %cst {dimension_numbers = #tpu.dot_dimension_numbers<[1], [0], [0], [1], [0, 0, 1, 1], [], []>} : vector<256x512xbf16>, vector<512x128xbf16>, vector<256x128xf32> -> vector<256x128xf32>
    %c0_3 = arith.constant 0 : index
    %c0_4 = arith.constant 0 : index
    %3 = vector.load %arg3[%c0_3, %c0_4] : memref<1x128xf32, #tpu.memory_space<vmem>>, vector<1x128xf32>
    %4 = vector.broadcast %3 : vector<1x128xf32> to vector<256x128xf32>
    %5 = arith.addf %2, %4 : vector<256x128xf32>
    %cst_5 = arith.constant 0.000000e+00 : f32
    %6 = vector.broadcast %cst_5 : f32 to vector<256x128xf32>
    %7 = arith.maximumf %5, %6 : vector<256x128xf32>
    %8 = arith.truncf %7 : vector<256x128xf32> to vector<256x128xbf16>
    %c0_6 = arith.constant 0 : index
    %c0_7 = arith.constant 0 : index
    %9 = vector.load %arg4[%c0_6, %c0_7] : memref<256x128xbf16, #tpu.memory_space<vmem>>, vector<256x128xbf16>
    tpu.vector_store %arg4[%c0_6, %c0_7], %8 {strides = array<i32>} : memref<256x128xbf16, #tpu.memory_space<vmem>>, vector<256x128xbf16>,
    return
  }
  func.func @transform_0(%arg0: i32) -> (i32, i32) {
    %c0_i32 = arith.constant 0 : i32
    %c0_i32_0 = arith.constant 0 : i32
    %c0_i32_1 = arith.constant 0 : i32
    return %c0_i32, %c0_i32_0 : i32, i32
  }
  func.func @transform_1(%arg0: i32) -> (i32, i32) {
    %c0_i32 = arith.constant 0 : i32
    %c0_i32_0 = arith.constant 0 : i32
    %c0_i32_1 = arith.constant 0 : i32
    return %c0_i32, %c0_i32_0 : i32, i32
  }
  func.func @transform_2(%arg0: i32) -> (i32, i32) {
    %c0_i32 = arith.constant 0 : i32
    %c0_i32_0 = arith.constant 0 : i32
    %c0_i32_1 = arith.constant 0 : i32
    return %c0_i32, %c0_i32_0 : i32, i32
  }
  func.func @transform_3(%arg0: i32) -> (i32, i32) {
    %c0_i32 = arith.constant 0 : i32
    %c0_i32_0 = arith.constant 0 : i32
    %c0_i32_1 = arith.constant 0 : i32
    return %c0_i32, %c0_i32_0 : i32, i32
  }
}

module attributes {stable_mosaic.version = 11 : i64} {
  func.func @_conv_mm_kernel(%arg0: i32, %arg1: memref<168x576xbf16, #tpu.memory_space<vmem>>, %arg2: memref<576x128xbf16, #tpu.memory_space<vmem>>, %arg3: memref<1x128xf32, #tpu.memory_space<vmem>>, %arg4: memref<168x128xbf16, #tpu.memory_space<vmem>>) attributes {dimension_semantics = [#tpu.dimension_semantics<arbitrary>], iteration_bounds = array<i64: 1>, scalar_prefetch = 0 : i64, scratch_operands = 0 : i64, tpu.core_type = #tpu.core_type<tc>, window_params = [{pipeline_mode = #tpu.pipeline_mode<synchronous>, transform_indices = @transform_0, window_bounds = array<i64: 168, 576>}, {pipeline_mode = #tpu.pipeline_mode<synchronous>, transform_indices = @transform_1, window_bounds = array<i64: 576, 128>}, {pipeline_mode = #tpu.pipeline_mode<synchronous>, transform_indices = @transform_2, window_bounds = array<i64: 1, 128>}, {pipeline_mode = #tpu.pipeline_mode<synchronous>, transform_indices = @transform_3, window_bounds = array<i64: 168, 128>}]} {
    %c0 = arith.constant 0 : index
    %c0_0 = arith.constant 0 : index
    %0 = vector.load %arg1[%c0, %c0_0] : memref<168x576xbf16, #tpu.memory_space<vmem>>, vector<168x576xbf16>
    %c0_1 = arith.constant 0 : index
    %c0_2 = arith.constant 0 : index
    %1 = vector.load %arg2[%c0_1, %c0_2] : memref<576x128xbf16, #tpu.memory_space<vmem>>, vector<576x128xbf16>
    %cst = arith.constant dense<0.000000e+00> : vector<168x128xf32>
    %2 = tpu.matmul %0, %1, %cst {dimension_numbers = #tpu.dot_dimension_numbers<[1], [0], [0], [1], [0, 0, 1, 1], [], []>} : vector<168x576xbf16>, vector<576x128xbf16>, vector<168x128xf32> -> vector<168x128xf32>
    %c0_3 = arith.constant 0 : index
    %c0_4 = arith.constant 0 : index
    %3 = vector.load %arg3[%c0_3, %c0_4] : memref<1x128xf32, #tpu.memory_space<vmem>>, vector<1x128xf32>
    %4 = vector.broadcast %3 : vector<1x128xf32> to vector<168x128xf32>
    %5 = arith.addf %2, %4 : vector<168x128xf32>
    %cst_5 = arith.constant 0.000000e+00 : f32
    %6 = vector.broadcast %cst_5 : f32 to vector<168x128xf32>
    %7 = arith.maximumf %5, %6 : vector<168x128xf32>
    %8 = arith.truncf %7 : vector<168x128xf32> to vector<168x128xbf16>
    %c0_6 = arith.constant 0 : index
    %c0_7 = arith.constant 0 : index
    %9 = vector.load %arg4[%c0_6, %c0_7] : memref<168x128xbf16, #tpu.memory_space<vmem>>, vector<168x128xbf16>
    tpu.vector_store %arg4[%c0_6, %c0_7], %8 {strides = array<i32>} : memref<168x128xbf16, #tpu.memory_space<vmem>>, vector<168x128xbf16>,
    return
  }
  func.func @transform_0(%arg0: i32) -> (i32, i32) {
    %c0_i32 = arith.constant 0 : i32
    %c0_i32_0 = arith.constant 0 : i32
    %c0_i32_1 = arith.constant 0 : i32
    return %c0_i32, %c0_i32_0 : i32, i32
  }
  func.func @transform_1(%arg0: i32) -> (i32, i32) {
    %c0_i32 = arith.constant 0 : i32
    %c0_i32_0 = arith.constant 0 : i32
    %c0_i32_1 = arith.constant 0 : i32
    return %c0_i32, %c0_i32_0 : i32, i32
  }
  func.func @transform_2(%arg0: i32) -> (i32, i32) {
    %c0_i32 = arith.constant 0 : i32
    %c0_i32_0 = arith.constant 0 : i32
    %c0_i32_1 = arith.constant 0 : i32
    return %c0_i32, %c0_i32_0 : i32, i32
  }
  func.func @transform_3(%arg0: i32) -> (i32, i32) {
    %c0_i32 = arith.constant 0 : i32
    %c0_i32_0 = arith.constant 0 : i32
    %c0_i32_1 = arith.constant 0 : i32
    return %c0_i32, %c0_i32_0 : i32, i32
  }
}

module attributes {stable_mosaic.version = 11 : i64} {
  func.func @_fc_fused_kernel(%arg0: i32, %arg1: memref<8x2688xbf16, #tpu.memory_space<vmem>>, %arg2: memref<2688x512xbf16, #tpu.memory_space<vmem>>, %arg3: memref<1x512xf32, #tpu.memory_space<vmem>>, %arg4: memref<512x128xf32, #tpu.memory_space<vmem>>, %arg5: memref<1x128xf32, #tpu.memory_space<vmem>>, %arg6: memref<8x128xf32, #tpu.memory_space<vmem>>, %arg7: memref<8x512xf32, #tpu.memory_space<vmem>>) attributes {dimension_semantics = [#tpu.dimension_semantics<arbitrary>], iteration_bounds = array<i64: 2>, scalar_prefetch = 0 : i64, scratch_operands = 1 : i64, tpu.core_type = #tpu.core_type<tc>, window_params = [{transform_indices = @transform_0, window_bounds = array<i64: 8, 2688>}, {transform_indices = @transform_1, window_bounds = array<i64: 2688, 512>}, {pipeline_mode = #tpu.pipeline_mode<synchronous>, transform_indices = @transform_2, window_bounds = array<i64: 1, 512>}, {pipeline_mode = #tpu.pipeline_mode<synchronous>, transform_indices = @transform_3, window_bounds = array<i64: 512, 128>}, {pipeline_mode = #tpu.pipeline_mode<synchronous>, transform_indices = @transform_4, window_bounds = array<i64: 1, 128>}, {pipeline_mode = #tpu.pipeline_mode<synchronous>, transform_indices = @transform_5, window_bounds = array<i64: 8, 128>}]} {
    %c0_i32 = arith.constant 0 : i32
    %0 = arith.cmpi eq, %arg0, %c0_i32 : i32
    %1 = arith.extui %0 : i1 to i32
    %c0_i32_0 = arith.constant 0 : i32
    %2 = arith.cmpi ne, %1, %c0_i32_0 : i32
    scf.if %2 {
      %cst_9 = arith.constant 0.000000e+00 : f32
      %12 = vector.broadcast %cst_9 : f32 to vector<8x512xf32>
      %c0_10 = arith.constant 0 : index
      %c0_11 = arith.constant 0 : index
      %13 = vector.load %arg7[%c0_10, %c0_11] : memref<8x512xf32, #tpu.memory_space<vmem>>, vector<8x512xf32>
      tpu.vector_store %arg7[%c0_10, %c0_11], %12 {strides = array<i32>} : memref<8x512xf32, #tpu.memory_space<vmem>>, vector<8x512xf32>,
    } else {
    }
    %c0 = arith.constant 0 : index
    %c0_1 = arith.constant 0 : index
    %3 = vector.load %arg7[%c0, %c0_1] : memref<8x512xf32, #tpu.memory_space<vmem>>, vector<8x512xf32>
    %c0_2 = arith.constant 0 : index
    %c0_3 = arith.constant 0 : index
    %4 = vector.load %arg1[%c0_2, %c0_3] : memref<8x2688xbf16, #tpu.memory_space<vmem>>, vector<8x2688xbf16>
    %c0_4 = arith.constant 0 : index
    %c0_5 = arith.constant 0 : index
    %5 = vector.load %arg2[%c0_4, %c0_5] : memref<2688x512xbf16, #tpu.memory_space<vmem>>, vector<2688x512xbf16>
    %cst = arith.constant dense<0.000000e+00> : vector<8x512xf32>
    %6 = tpu.matmul %4, %5, %cst {dimension_numbers = #tpu.dot_dimension_numbers<[1], [0], [0], [1], [0, 0, 1, 1], [], []>} : vector<8x2688xbf16>, vector<2688x512xbf16>, vector<8x512xf32> -> vector<8x512xf32>
    %7 = arith.addf %3, %6 : vector<8x512xf32>
    %c0_6 = arith.constant 0 : index
    %c0_7 = arith.constant 0 : index
    %8 = vector.load %arg7[%c0_6, %c0_7] : memref<8x512xf32, #tpu.memory_space<vmem>>, vector<8x512xf32>
    tpu.vector_store %arg7[%c0_6, %c0_7], %7 {strides = array<i32>} : memref<8x512xf32, #tpu.memory_space<vmem>>, vector<8x512xf32>,
    %c1_i32 = arith.constant 1 : i32
    %9 = arith.cmpi eq, %arg0, %c1_i32 : i32
    %10 = arith.extui %9 : i1 to i32
    %c0_i32_8 = arith.constant 0 : i32
    %11 = arith.cmpi ne, %10, %c0_i32_8 : i32
    scf.if %11 {
      %c0_9 = arith.constant 0 : index
      %c0_10 = arith.constant 0 : index
      %12 = vector.load %arg7[%c0_9, %c0_10] : memref<8x512xf32, #tpu.memory_space<vmem>>, vector<8x512xf32>
      %c0_11 = arith.constant 0 : index
      %c0_12 = arith.constant 0 : index
      %13 = vector.load %arg3[%c0_11, %c0_12] : memref<1x512xf32, #tpu.memory_space<vmem>>, vector<1x512xf32>
      %14 = vector.broadcast %13 : vector<1x512xf32> to vector<8x512xf32>
      %15 = arith.addf %12, %14 : vector<8x512xf32>
      %cst_13 = arith.constant 0.000000e+00 : f32
      %16 = vector.broadcast %cst_13 : f32 to vector<8x512xf32>
      %17 = arith.maximumf %15, %16 : vector<8x512xf32>
      %c0_14 = arith.constant 0 : index
      %c0_15 = arith.constant 0 : index
      %18 = vector.load %arg4[%c0_14, %c0_15] : memref<512x128xf32, #tpu.memory_space<vmem>>, vector<512x128xf32>
      %cst_16 = arith.constant dense<0.000000e+00> : vector<8x128xf32>
      %19 = tpu.matmul %17, %18, %cst_16 {dimension_numbers = #tpu.dot_dimension_numbers<[1], [0], [0], [1], [0, 0, 1, 1], [], []>} : vector<8x512xf32>, vector<512x128xf32>, vector<8x128xf32> -> vector<8x128xf32>
      %c0_17 = arith.constant 0 : index
      %c0_18 = arith.constant 0 : index
      %20 = vector.load %arg5[%c0_17, %c0_18] : memref<1x128xf32, #tpu.memory_space<vmem>>, vector<1x128xf32>
      %21 = vector.broadcast %20 : vector<1x128xf32> to vector<8x128xf32>
      %22 = arith.addf %19, %21 : vector<8x128xf32>
      %c0_19 = arith.constant 0 : index
      %c0_20 = arith.constant 0 : index
      %23 = vector.load %arg6[%c0_19, %c0_20] : memref<8x128xf32, #tpu.memory_space<vmem>>, vector<8x128xf32>
      tpu.vector_store %arg6[%c0_19, %c0_20], %22 {strides = array<i32>} : memref<8x128xf32, #tpu.memory_space<vmem>>, vector<8x128xf32>,
    } else {
    }
    return
  }
  func.func @transform_0(%arg0: i32) -> (i32, i32) {
    %c0_i32 = arith.constant 0 : i32
    %c0_i32_0 = arith.constant 0 : i32
    return %c0_i32, %arg0 : i32, i32
  }
  func.func @transform_1(%arg0: i32) -> (i32, i32) {
    %c0_i32 = arith.constant 0 : i32
    %c0_i32_0 = arith.constant 0 : i32
    return %arg0, %c0_i32 : i32, i32
  }
  func.func @transform_2(%arg0: i32) -> (i32, i32) {
    %c0_i32 = arith.constant 0 : i32
    %c0_i32_0 = arith.constant 0 : i32
    %c0_i32_1 = arith.constant 0 : i32
    return %c0_i32, %c0_i32_0 : i32, i32
  }
  func.func @transform_3(%arg0: i32) -> (i32, i32) {
    %c0_i32 = arith.constant 0 : i32
    %c0_i32_0 = arith.constant 0 : i32
    %c0_i32_1 = arith.constant 0 : i32
    return %c0_i32, %c0_i32_0 : i32, i32
  }
  func.func @transform_4(%arg0: i32) -> (i32, i32) {
    %c0_i32 = arith.constant 0 : i32
    %c0_i32_0 = arith.constant 0 : i32
    %c0_i32_1 = arith.constant 0 : i32
    return %c0_i32, %c0_i32_0 : i32, i32
  }
  func.func @transform_5(%arg0: i32) -> (i32, i32) {
    %c0_i32 = arith.constant 0 : i32
    %c0_i32_0 = arith.constant 0 : i32
    %c0_i32_1 = arith.constant 0 : i32
    return %c0_i32, %c0_i32_0 : i32, i32
  }
}

</mosaic_0001>

<llo_original>
// kernel: cnn_forward.4
$region0: #{cnn_forward.4}
  #allocation0 [shape = 'u32[]', space=smem, size = 0x4, offset = 0x4, fixed_abs, tag = 'smem constant byte address 0x4 - core index']
  #allocation1 [shape = 'u32[144,128]{1,0:T(1,128)}', space=vmem, size = 0x12000, scoped, tag = 'internal scratch']
  %s0 = inlined_call_operand.vmem [shape: bf16[1200,256], index: 0, kind: input, shape index: {}]
  %s1 = inlined_call_operand.vmem [shape: bf16[256,128], index: 1, kind: input, shape index: {}]
  %s2 = inlined_call_operand.vmem [shape: f32[1,128], index: 2, kind: input, shape index: {}]
  %s3 = inlined_call_operand.vmem [shape: bf16[1200,128], index: 3, kind: output, shape index: {}]
  %s4 = sld [smem:[#allocation0]]
  $region22: #{cnn_forward.4} parent=0
    _
  %s6 = ssub.s32 1, %s4
  %s7 = scalar_select 0, %s6, %s4
  // Predicated region
  $region2: #{cnn_forward.4} parent=0 // pred_check
    _
  $region3: #{cnn_forward.4} parent=0 // pred_check_branch
    %9 = sbr.rel (0) target = $region5
  $region4: #{cnn_forward.4} parent=0 // pred_region
    _
  $region5: #{cnn_forward.4} parent=0 // pred_fallthru
    _
  // Predicated region
  $region6: #{cnn_forward.4} parent=0 // pred_check
    _
  $region7: #{cnn_forward.4} parent=0 // pred_check_branch
    %11 = sbr.rel (0) target = $region9
  $region8: #{cnn_forward.4} parent=0 // pred_region
    _
  $region9: #{cnn_forward.4} parent=0 // pred_fallthru
    _
  // Predicated region
  $region10: #{cnn_forward.4} parent=0 // pred_check
    _
  $region11: #{cnn_forward.4} parent=0 // pred_check_branch
    %13 = sbr.rel (0) target = $region13
  $region12: #{cnn_forward.4} parent=0 // pred_region
    _
  $region13: #{cnn_forward.4} parent=0 // pred_fallthru
    _
  %v15 = vld [vmem:[%s0] sm:$0xff]
  %v16 = vld [vmem:[%s0 + $0x8] sm:$0xff]
  %v17 = vld [vmem:[%s0 + $0x10] sm:$0xff]
  %v18 = vld [vmem:[%s0 + $0x18] sm:$0xff]
  %v19 = vld [vmem:[%s0 + $0x20] sm:$0xff]
  %v20 = vld [vmem:[%s0 + $0x28] sm:$0xff]
  %v21 = vld [vmem:[%s0 + $0x30] sm:$0xff]
  %v22 = vld [vmem:[%s0 + $0x38] sm:$0xff]
  %v23 = vld [vmem:[%s0 + $0x40] sm:$0xff]
  %v24 = vld [vmem:[%s0 + $0x48] sm:$0xff]
  %v25 = vld [vmem:[%s0 + $0x50] sm:$0xff]
  %v26 = vld [vmem:[%s0 + $0x58] sm:$0xff]
  %v27 = vld [vmem:[%s0 + $0x60] sm:$0xff]
  %v28 = vld [vmem:[%s0 + $0x68] sm:$0xff]
  %v29 = vld [vmem:[%s0 + $0x70] sm:$0xff]
  %v30 = vld [vmem:[%s0 + $0x78] sm:$0xff]
  %v31 = vld [vmem:[%s0 + $0x80] sm:$0xff]
  %v32 = vld [vmem:[%s0 + $0x88] sm:$0xff]
  %v33 = vld [vmem:[%s0 + $0x90] sm:$0xff]
  %v34 = vld [vmem:[%s0 + $0x98] sm:$0xff]
  %v35 = vld [vmem:[%s0 + $0xa0] sm:$0xff]
  %v36 = vld [vmem:[%s0 + $0xa8] sm:$0xff]
  %v37 = vld [vmem:[%s0 + $0xb0] sm:$0xff]
  %v38 = vld [vmem:[%s0 + $0xb8] sm:$0xff]
  %v39 = vld [vmem:[%s0 + $0xc0] sm:$0xff]
  %v40 = vld [vmem:[%s0 + $0xc8] sm:$0xff]
  %v41 = vld [vmem:[%s0 + $0xd0] sm:$0xff]
  %v42 = vld [vmem:[%s0 + $0xd8] sm:$0xff]
  %v43 = vld [vmem:[%s0 + $0xe0] sm:$0xff]
  %v44 = vld [vmem:[%s0 + $0xe8] sm:$0xff]
  %v45 = vld [vmem:[%s0 + $0xf0] sm:$0xff]
  %v46 = vld [vmem:[%s0 + $0xf8] sm:$0xff]
  %v47 = vld [vmem:[%s0 + $0x100] sm:$0xff]
  %v48 = vld [vmem:[%s0 + $0x108] sm:$0xff]
  %v49 = vld [vmem:[%s0 + $0x110] sm:$0xff]
  %v50 = vld [vmem:[%s0 + $0x118] sm:$0xff]
  %v51 = vld [vmem:[%s0 + $0x120] sm:$0xff]
  %v52 = vld [vmem:[%s0 + $0x128] sm:$0xff]
  %v53 = vld [vmem:[%s0 + $0x130] sm:$0xff]
  %v54 = vld [vmem:[%s0 + $0x138] sm:$0xff]
  %v55 = vld [vmem:[%s0 + $0x140] sm:$0xff]
  %v56 = vld [vmem:[%s0 + $0x148] sm:$0xff]
  %v57 = vld [vmem:[%s0 + $0x150] sm:$0xff]
  %v58 = vld [vmem:[%s0 + $0x158] sm:$0xff]
  %v59 = vld [vmem:[%s0 + $0x160] sm:$0xff]
  %v60 = vld [vmem:[%s0 + $0x168] sm:$0xff]
  %v61 = vld [vmem:[%s0 + $0x170] sm:$0xff]
  %v62 = vld [vmem:[%s0 + $0x178] sm:$0xff]
  %v63 = vld [vmem:[%s0 + $0x180] sm:$0xff]
  %v64 = vld [vmem:[%s0 + $0x188] sm:$0xff]
  %v65 = vld [vmem:[%s0 + $0x190] sm:$0xff]
  %v66 = vld [vmem:[%s0 + $0x198] sm:$0xff]
  %v67 = vld [vmem:[%s0 + $0x1a0] sm:$0xff]
  %v68 = vld [vmem:[%s0 + $0x1a8] sm:$0xff]
  %v69 = vld [vmem:[%s0 + $0x1b0] sm:$0xff]
  %v70 = vld [vmem:[%s0 + $0x1b8] sm:$0xff]
  %v71 = vld [vmem:[%s0 + $0x1c0] sm:$0xff]
  %v72 = vld [vmem:[%s0 + $0x1c8] sm:$0xff]
  %v73 = vld [vmem:[%s0 + $0x1d0] sm:$0xff]
  %v74 = vld [vmem:[%s0 + $0x1d8] sm:$0xff]
  %v75 = vld [vmem:[%s0 + $0x1e0] sm:$0xff]
  %v76 = vld [vmem:[%s0 + $0x1e8] sm:$0xff]
  %v77 = vld [vmem:[%s0 + $0x1f0] sm:$0xff]
  %v78 = vld [vmem:[%s0 + $0x1f8] sm:$0xff]
  %v79 = vld [vmem:[%s0 + $0x200] sm:$0xff]
  %v80 = vld [vmem:[%s0 + $0x208] sm:$0xff]
  %v81 = vld [vmem:[%s0 + $0x210] sm:$0xff]
  %v82 = vld [vmem:[%s0 + $0x218] sm:$0xff]
  %v83 = vld [vmem:[%s0 + $0x220] sm:$0xff]
  %v84 = vld [vmem:[%s0 + $0x228] sm:$0xff]
  %v85 = vld [vmem:[%s0 + $0x230] sm:$0xff]
  %v86 = vld [vmem:[%s0 + $0x238] sm:$0xff]
  %v87 = vld [vmem:[%s0 + $0x240] sm:$0xff]
  %v88 = vld [vmem:[%s0 + $0x248] sm:$0xff]
  %v89 = vld [vmem:[%s0 + $0x250] sm:$0xff]
  %v90 = vld [vmem:[%s0 + $0x258] sm:$0xff]
  %v91 = vld [vmem:[%s0 + $0x260] sm:$0xff]
  %v92 = vld [vmem:[%s0 + $0x268] sm:$0xff]
  %v93 = vld [vmem:[%s0 + $0x270] sm:$0xff]
  %v94 = vld [vmem:[%s0 + $0x278] sm:$0xff]
  %v95 = vld [vmem:[%s0 + $0x280] sm:$0xff]
  %v96 = vld [vmem:[%s0 + $0x288] sm:$0xff]
  %v97 = vld [vmem:[%s0 + $0x290] sm:$0xff]
  %v98 = vld [vmem:[%s0 + $0x298] sm:$0xff]
  %v99 = vld [vmem:[%s0 + $0x2a0] sm:$0xff]
  %v100 = vld [vmem:[%s0 + $0x2a8] sm:$0xff]
  %v101 = vld [vmem:[%s0 + $0x2b0] sm:$0xff]
  %v102 = vld [vmem:[%s0 + $0x2b8] sm:$0xff]
  %v103 = vld [vmem:[%s0 + $0x2c0] sm:$0xff]
  %v104 = vld [vmem:[%s0 + $0x2c8] sm:$0xff]
  %v105 = vld [vmem:[%s0 + $0x2d0] sm:$0xff]
  %v106 = vld [vmem:[%s0 + $0x2d8] sm:$0xff]
  %v107 = vld [vmem:[%s0 + $0x2e0] sm:$0xff]
  %v108 = vld [vmem:[%s0 + $0x2e8] sm:$0xff]
  %v109 = vld [vmem:[%s0 + $0x2f0] sm:$0xff]
  %v110 = vld [vmem:[%s0 + $0x2f8] sm:$0xff]
  %v111 = vld [vmem:[%s0 + $0x300] sm:$0xff]
  %v112 = vld [vmem:[%s0 + $0x308] sm:$0xff]
  %v113 = vld [vmem:[%s0 + $0x310] sm:$0xff]
  %v114 = vld [vmem:[%s0 + $0x318] sm:$0xff]
  %v115 = vld [vmem:[%s0 + $0x320] sm:$0xff]
  %v116 = vld [vmem:[%s0 + $0x328] sm:$0xff]
  %v117 = vld [vmem:[%s0 + $0x330] sm:$0xff]
  %v118 = vld [vmem:[%s0 + $0x338] sm:$0xff]
  %v119 = vld [vmem:[%s0 + $0x340] sm:$0xff]
  %v120 = vld [vmem:[%s0 + $0x348] sm:$0xff]
  %v121 = vld [vmem:[%s0 + $0x350] sm:$0xff]
  %v122 = vld [vmem:[%s0 + $0x358] sm:$0xff]
  %v123 = vld [vmem:[%s0 + $0x360] sm:$0xff]
  %v124 = vld [vmem:[%s0 + $0x368] sm:$0xff]
  %v125 = vld [vmem:[%s0 + $0x370] sm:$0xff]
  %v126 = vld [vmem:[%s0 + $0x378] sm:$0xff]
  %v127 = vld [vmem:[%s0 + $0x380] sm:$0xff]
  %v128 = vld [vmem:[%s0 + $0x388] sm:$0xff]
  %v129 = vld [vmem:[%s0 + $0x390] sm:$0xff]
  %v130 = vld [vmem:[%s0 + $0x398] sm:$0xff]
  %v131 = vld [vmem:[%s0 + $0x3a0] sm:$0xff]
  %v132 = vld [vmem:[%s0 + $0x3a8] sm:$0xff]
  %v133 = vld [vmem:[%s0 + $0x3b0] sm:$0xff]
  %v134 = vld [vmem:[%s0 + $0x3b8] sm:$0xff]
  %v135 = vld [vmem:[%s0 + $0x3c0] sm:$0xff]
  %v136 = vld [vmem:[%s0 + $0x3c8] sm:$0xff]
  %v137 = vld [vmem:[%s0 + $0x3d0] sm:$0xff]
  %v138 = vld [vmem:[%s0 + $0x3d8] sm:$0xff]
  %v139 = vld [vmem:[%s0 + $0x3e0] sm:$0xff]
  %v140 = vld [vmem:[%s0 + $0x3e8] sm:$0xff]
  %v141 = vld [vmem:[%s0 + $0x3f0] sm:$0xff]
  %v142 = vld [vmem:[%s0 + $0x3f8] sm:$0xff]
  %v143 = vld [vmem:[%s0 + $0x400] sm:$0xff]
  %v144 = vld [vmem:[%s0 + $0x408] sm:$0xff]
  %v145 = vld [vmem:[%s0 + $0x410] sm:$0xff]
  %v146 = vld [vmem:[%s0 + $0x418] sm:$0xff]
  %v147 = vld [vmem:[%s0 + $0x420] sm:$0xff]
  %v148 = vld [vmem:[%s0 + $0x428] sm:$0xff]
  %v149 = vld [vmem:[%s0 + $0x430] sm:$0xff]
  %v150 = vld [vmem:[%s0 + $0x438] sm:$0xff]
  %v151 = vld [vmem:[%s0 + $0x440] sm:$0xff]
  %v152 = vld [vmem:[%s0 + $0x448] sm:$0xff]
  %v153 = vld [vmem:[%s0 + $0x450] sm:$0xff]
  %v154 = vld [vmem:[%s0 + $0x458] sm:$0xff]
  %v155 = vld [vmem:[%s0 + $0x460] sm:$0xff]
  %v156 = vld [vmem:[%s0 + $0x468] sm:$0xff]
  %v157 = vld [vmem:[%s0 + $0x470] sm:$0xff]
  %v158 = vld [vmem:[%s0 + $0x478] sm:$0xff]
  %v159 = vld [vmem:[%s0 + $0x480] sm:$0xff]
  %v160 = vld [vmem:[%s0 + $0x488] sm:$0xff]
  %v161 = vld [vmem:[%s0 + $0x490] sm:$0xff]
  %v162 = vld [vmem:[%s0 + $0x498] sm:$0xff]
  %v163 = vld [vmem:[%s0 + $0x4a0] sm:$0xff]
  %v164 = vld [vmem:[%s0 + $0x4a8] sm:$0xff]
  %v165 = vld [vmem:[%s1] sm:$0xf]
  %v166 = vld [vmem:[%s1 + $0x4] sm:$0xf]
  %v167 = vld [vmem:[%s1 + $0x8] sm:$0xf]
  %v168 = vld [vmem:[%s1 + $0xc] sm:$0xf]
  %v169 = vld [vmem:[%s1 + $0x10] sm:$0xf]
  %v170 = vld [vmem:[%s1 + $0x14] sm:$0xf]
  %v171 = vld [vmem:[%s1 + $0x18] sm:$0xf]
  %v172 = vld [vmem:[%s1 + $0x1c] sm:$0xf]
  %v173 = vld [vmem:[%s1 + $0x20] sm:$0xf]
  %v174 = vld [vmem:[%s1 + $0x24] sm:$0xf]
  %v175 = vld [vmem:[%s1 + $0x28] sm:$0xf]
  %v176 = vld [vmem:[%s1 + $0x2c] sm:$0xf]
  %v177 = vld [vmem:[%s1 + $0x30] sm:$0xf]
  %v178 = vld [vmem:[%s1 + $0x34] sm:$0xf]
  %v179 = vld [vmem:[%s1 + $0x38] sm:$0xf]
  %v180 = vld [vmem:[%s1 + $0x3c] sm:$0xf]
  %v181 = vld [vmem:[%s1 + $0x40] sm:$0xf]
  %v182 = vld [vmem:[%s1 + $0x44] sm:$0xf]
  %v183 = vld [vmem:[%s1 + $0x48] sm:$0xf]
  %v184 = vld [vmem:[%s1 + $0x4c] sm:$0xf]
  %v185 = vld [vmem:[%s1 + $0x50] sm:$0xf]
  %v186 = vld [vmem:[%s1 + $0x54] sm:$0xf]
  %v187 = vld [vmem:[%s1 + $0x58] sm:$0xf]
  %v188 = vld [vmem:[%s1 + $0x5c] sm:$0xf]
  %v189 = vld [vmem:[%s1 + $0x60] sm:$0xf]
  %v190 = vld [vmem:[%s1 + $0x64] sm:$0xf]
  %v191 = vld [vmem:[%s1 + $0x68] sm:$0xf]
  %v192 = vld [vmem:[%s1 + $0x6c] sm:$0xf]
  %v193 = vld [vmem:[%s1 + $0x70] sm:$0xf]
  %v194 = vld [vmem:[%s1 + $0x74] sm:$0xf]
  %v195 = vld [vmem:[%s1 + $0x78] sm:$0xf]
  %v196 = vld [vmem:[%s1 + $0x7c] sm:$0xf]
  %v197 = vld [vmem:[%s2] sm:$0x1]
  %v199 = vlaneseq
  %v200 = vshrl.u32 %v199, 7
  %v201 = vsub.s32 0, %v200
  %v202 = vrot.slane %v197, %v201
  %v354 = vunpack.c.l.b16 %v15
  %v355 = vunpack.c.h.b16 %v15
  %v356 = vunpack.c.l.b16 %v16
  %v357 = vunpack.c.h.b16 %v16
  %v358 = vunpack.c.l.b16 %v17
  %v359 = vunpack.c.h.b16 %v17
  %v360 = vunpack.c.l.b16 %v18
  %v361 = vunpack.c.h.b16 %v18
  %v362 = vunpack.c.l.b16 %v19
  %v363 = vunpack.c.h.b16 %v19
  %v364 = vunpack.c.l.b16 %v20
  %v365 = vunpack.c.h.b16 %v20
  %v366 = vunpack.c.l.b16 %v21
  %v367 = vunpack.c.h.b16 %v21
  %v368 = vunpack.c.l.b16 %v22
  %v369 = vunpack.c.h.b16 %v22
  %v370 = vunpack.c.l.b16 %v23
  %v371 = vunpack.c.h.b16 %v23
  %v372 = vunpack.c.l.b16 %v24
  %v373 = vunpack.c.h.b16 %v24
  %v374 = vunpack.c.l.b16 %v25
  %v375 = vunpack.c.h.b16 %v25
  %v376 = vunpack.c.l.b16 %v26
  %v377 = vunpack.c.h.b16 %v26
  %v378 = vunpack.c.l.b16 %v27
  %v379 = vunpack.c.h.b16 %v27
  %v380 = vunpack.c.l.b16 %v28
  %v381 = vunpack.c.h.b16 %v28
  %v382 = vunpack.c.l.b16 %v29
  %v383 = vunpack.c.h.b16 %v29
  %v384 = vunpack.c.l.b16 %v30
  %v385 = vunpack.c.h.b16 %v30
  %v386 = vunpack.c.l.b16 %v31
  %v387 = vunpack.c.h.b16 %v31
  %v388 = vunpack.c.l.b16 %v32
  %v389 = vunpack.c.h.b16 %v32
  %v390 = vunpack.c.l.b16 %v33
  %v391 = vunpack.c.h.b16 %v33
  %v392 = vunpack.c.l.b16 %v34
  %v393 = vunpack.c.h.b16 %v34
  %v394 = vunpack.c.l.b16 %v35
  %v395 = vunpack.c.h.b16 %v35
  %v396 = vunpack.c.l.b16 %v36
  %v397 = vunpack.c.h.b16 %v36
  %v398 = vunpack.c.l.b16 %v37
  %v399 = vunpack.c.h.b16 %v37
  %v400 = vunpack.c.l.b16 %v38
  %v401 = vunpack.c.h.b16 %v38
  %v402 = vunpack.c.l.b16 %v39
  %v403 = vunpack.c.h.b16 %v39
  %v404 = vunpack.c.l.b16 %v40
  %v405 = vunpack.c.h.b16 %v40
  %v406 = vunpack.c.l.b16 %v41
  %v407 = vunpack.c.h.b16 %v41
  %v408 = vunpack.c.l.b16 %v42
  %v409 = vunpack.c.h.b16 %v42
  %v410 = vunpack.c.l.b16 %v43
  %v411 = vunpack.c.h.b16 %v43
  %v412 = vunpack.c.l.b16 %v44
  %v413 = vunpack.c.h.b16 %v44
  %v414 = vunpack.c.l.b16 %v45
  %v415 = vunpack.c.h.b16 %v45
  %v416 = vunpack.c.l.b16 %v46
  %v417 = vunpack.c.h.b16 %v46
  %v418 = vunpack.c.l.b16 %v47
  %v419 = vunpack.c.h.b16 %v47
  %v420 = vunpack.c.l.b16 %v48
  %v421 = vunpack.c.h.b16 %v48
  %v422 = vunpack.c.l.b16 %v49
  %v423 = vunpack.c.h.b16 %v49
  %v424 = vunpack.c.l.b16 %v50
  %v425 = vunpack.c.h.b16 %v50
  %v426 = vunpack.c.l.b16 %v51
  %v427 = vunpack.c.h.b16 %v51
  %v428 = vunpack.c.l.b16 %v52
  %v429 = vunpack.c.h.b16 %v52
  %v430 = vunpack.c.l.b16 %v53
  %v431 = vunpack.c.h.b16 %v53
  %v432 = vunpack.c.l.b16 %v54
  %v433 = vunpack.c.h.b16 %v54
  %v434 = vunpack.c.l.b16 %v55
  %v435 = vunpack.c.h.b16 %v55
  %v436 = vunpack.c.l.b16 %v56
  %v437 = vunpack.c.h.b16 %v56
  %v438 = vunpack.c.l.b16 %v57
  %v439 = vunpack.c.h.b16 %v57
  %v440 = vunpack.c.l.b16 %v58
  %v441 = vunpack.c.h.b16 %v58
  %v442 = vunpack.c.l.b16 %v59
  %v443 = vunpack.c.h.b16 %v59
  %v444 = vunpack.c.l.b16 %v60
  %v445 = vunpack.c.h.b16 %v60
  %v446 = vunpack.c.l.b16 %v61
  %v447 = vunpack.c.h.b16 %v61
  %v448 = vunpack.c.l.b16 %v62
  %v449 = vunpack.c.h.b16 %v62
  %v450 = vunpack.c.l.b16 %v63
  %v451 = vunpack.c.h.b16 %v63
  %v452 = vunpack.c.l.b16 %v64
  %v453 = vunpack.c.h.b16 %v64
  %v454 = vunpack.c.l.b16 %v65
  %v455 = vunpack.c.h.b16 %v65
  %v456 = vunpack.c.l.b16 %v66
  %v457 = vunpack.c.h.b16 %v66
  %v458 = vunpack.c.l.b16 %v67
  %v459 = vunpack.c.h.b16 %v67
  %v460 = vunpack.c.l.b16 %v68
  %v461 = vunpack.c.h.b16 %v68
  %v462 = vunpack.c.l.b16 %v69
  %v463 = vunpack.c.h.b16 %v69
  %v464 = vunpack.c.l.b16 %v70
  %v465 = vunpack.c.h.b16 %v70
  %v466 = vunpack.c.l.b16 %v71
  %v467 = vunpack.c.h.b16 %v71
  %v468 = vunpack.c.l.b16 %v72
  %v469 = vunpack.c.h.b16 %v72
  %v470 = vunpack.c.l.b16 %v73
  %v471 = vunpack.c.h.b16 %v73
  %v472 = vunpack.c.l.b16 %v74
  %v473 = vunpack.c.h.b16 %v74
  %v474 = vunpack.c.l.b16 %v75
  %v475 = vunpack.c.h.b16 %v75
  %v476 = vunpack.c.l.b16 %v76
  %v477 = vunpack.c.h.b16 %v76
  %v478 = vunpack.c.l.b16 %v77
  %v479 = vunpack.c.h.b16 %v77
  %v480 = vunpack.c.l.b16 %v78
  %v481 = vunpack.c.h.b16 %v78
  %v482 = vunpack.c.l.b16 %v79
  %v483 = vunpack.c.h.b16 %v79
  %v484 = vunpack.c.l.b16 %v80
  %v485 = vunpack.c.h.b16 %v80
  %v486 = vunpack.c.l.b16 %v81
  %v487 = vunpack.c.h.b16 %v81
  %v488 = vunpack.c.l.b16 %v82
  %v489 = vunpack.c.h.b16 %v82
  %v490 = vunpack.c.l.b16 %v83
  %v491 = vunpack.c.h.b16 %v83
  %v492 = vunpack.c.l.b16 %v84
  %v493 = vunpack.c.h.b16 %v84
  %v494 = vunpack.c.l.b16 %v85
  %v495 = vunpack.c.h.b16 %v85
  %v496 = vunpack.c.l.b16 %v86
  %v497 = vunpack.c.h.b16 %v86
  %v498 = vunpack.c.l.b16 %v87
  %v499 = vunpack.c.h.b16 %v87
  %v500 = vunpack.c.l.b16 %v88
  %v501 = vunpack.c.h.b16 %v88
  %v502 = vunpack.c.l.b16 %v89
  %v503 = vunpack.c.h.b16 %v89
  %v504 = vunpack.c.l.b16 %v90
  %v505 = vunpack.c.h.b16 %v90
  %v506 = vunpack.c.l.b16 %v91
  %v507 = vunpack.c.h.b16 %v91
  %v508 = vunpack.c.l.b16 %v92
  %v509 = vunpack.c.h.b16 %v92
  %v510 = vunpack.c.l.b16 %v93
  %v511 = vunpack.c.h.b16 %v93
  %v512 = vunpack.c.l.b16 %v94
  %v513 = vunpack.c.h.b16 %v94
  %v514 = vunpack.c.l.b16 %v95
  %v515 = vunpack.c.h.b16 %v95
  %v516 = vunpack.c.l.b16 %v96
  %v517 = vunpack.c.h.b16 %v96
  %v518 = vunpack.c.l.b16 %v97
  %v519 = vunpack.c.h.b16 %v97
  %v520 = vunpack.c.l.b16 %v98
  %v521 = vunpack.c.h.b16 %v98
  %v522 = vunpack.c.l.b16 %v99
  %v523 = vunpack.c.h.b16 %v99
  %v524 = vunpack.c.l.b16 %v100
  %v525 = vunpack.c.h.b16 %v100
  %v526 = vunpack.c.l.b16 %v101
  %v527 = vunpack.c.h.b16 %v101
  %v528 = vunpack.c.l.b16 %v102
  %v529 = vunpack.c.h.b16 %v102
  %v530 = vunpack.c.l.b16 %v103
  %v531 = vunpack.c.h.b16 %v103
  %v532 = vunpack.c.l.b16 %v104
  %v533 = vunpack.c.h.b16 %v104
  %v534 = vunpack.c.l.b16 %v105
  %v535 = vunpack.c.h.b16 %v105
  %v536 = vunpack.c.l.b16 %v106
  %v537 = vunpack.c.h.b16 %v106
  %v538 = vunpack.c.l.b16 %v107
  %v539 = vunpack.c.h.b16 %v107
  %v540 = vunpack.c.l.b16 %v108
  %v541 = vunpack.c.h.b16 %v108
  %v542 = vunpack.c.l.b16 %v109
  %v543 = vunpack.c.h.b16 %v109
  %v544 = vunpack.c.l.b16 %v110
  %v545 = vunpack.c.h.b16 %v110
  %v546 = vunpack.c.l.b16 %v111
  %v547 = vunpack.c.h.b16 %v111
  %v548 = vunpack.c.l.b16 %v112
  %v549 = vunpack.c.h.b16 %v112
  %v550 = vunpack.c.l.b16 %v113
  %v551 = vunpack.c.h.b16 %v113
  %v552 = vunpack.c.l.b16 %v114
  %v553 = vunpack.c.h.b16 %v114
  %v554 = vunpack.c.l.b16 %v115
  %v555 = vunpack.c.h.b16 %v115
  %v556 = vunpack.c.l.b16 %v116
  %v557 = vunpack.c.h.b16 %v116
  %v558 = vunpack.c.l.b16 %v117
  %v559 = vunpack.c.h.b16 %v117
  %v560 = vunpack.c.l.b16 %v118
  %v561 = vunpack.c.h.b16 %v118
  %v562 = vunpack.c.l.b16 %v119
  %v563 = vunpack.c.h.b16 %v119
  %v564 = vunpack.c.l.b16 %v120
  %v565 = vunpack.c.h.b16 %v120
  %v566 = vunpack.c.l.b16 %v121
  %v567 = vunpack.c.h.b16 %v121
  %v568 = vunpack.c.l.b16 %v122
  %v569 = vunpack.c.h.b16 %v122
  %v570 = vunpack.c.l.b16 %v123
  %v571 = vunpack.c.h.b16 %v123
  %v572 = vunpack.c.l.b16 %v124
  %v573 = vunpack.c.h.b16 %v124
  %v574 = vunpack.c.l.b16 %v125
  %v575 = vunpack.c.h.b16 %v125
  %v576 = vunpack.c.l.b16 %v126
  %v577 = vunpack.c.h.b16 %v126
  %v578 = vunpack.c.l.b16 %v127
  %v579 = vunpack.c.h.b16 %v127
  %v580 = vunpack.c.l.b16 %v128
  %v581 = vunpack.c.h.b16 %v128
  %v582 = vunpack.c.l.b16 %v129
  %v583 = vunpack.c.h.b16 %v129
  %v584 = vunpack.c.l.b16 %v130
  %v585 = vunpack.c.h.b16 %v130
  %v586 = vunpack.c.l.b16 %v131
  %v587 = vunpack.c.h.b16 %v131
  %v588 = vunpack.c.l.b16 %v132
  %v589 = vunpack.c.h.b16 %v132
  %v590 = vunpack.c.l.b16 %v133
  %v591 = vunpack.c.h.b16 %v133
  %v592 = vunpack.c.l.b16 %v134
  %v593 = vunpack.c.h.b16 %v134
  %v594 = vunpack.c.l.b16 %v135
  %v595 = vunpack.c.h.b16 %v135
  %v596 = vunpack.c.l.b16 %v136
  %v597 = vunpack.c.h.b16 %v136
  %v598 = vunpack.c.l.b16 %v137
  %v599 = vunpack.c.h.b16 %v137
  %v600 = vunpack.c.l.b16 %v138
  %v601 = vunpack.c.h.b16 %v138
  %v602 = vunpack.c.l.b16 %v139
  %v603 = vunpack.c.h.b16 %v139
  %v604 = vunpack.c.l.b16 %v140
  %v605 = vunpack.c.h.b16 %v140
  %v606 = vunpack.c.l.b16 %v141
  %v607 = vunpack.c.h.b16 %v141
  %v608 = vunpack.c.l.b16 %v142
  %v609 = vunpack.c.h.b16 %v142
  %v610 = vunpack.c.l.b16 %v143
  %v611 = vunpack.c.h.b16 %v143
  %v612 = vunpack.c.l.b16 %v144
  %v613 = vunpack.c.h.b16 %v144
  %v614 = vunpack.c.l.b16 %v145
  %v615 = vunpack.c.h.b16 %v145
  %v616 = vunpack.c.l.b16 %v146
  %v617 = vunpack.c.h.b16 %v146
  %v618 = vunpack.c.l.b16 %v147
  %v619 = vunpack.c.h.b16 %v147
  %v620 = vunpack.c.l.b16 %v148
  %v621 = vunpack.c.h.b16 %v148
  %v622 = vunpack.c.l.b16 %v149
  %v623 = vunpack.c.h.b16 %v149
  %v624 = vunpack.c.l.b16 %v150
  %v625 = vunpack.c.h.b16 %v150
  %v626 = vunpack.c.l.b16 %v151
  %v627 = vunpack.c.h.b16 %v151
  %v628 = vunpack.c.l.b16 %v152
  %v629 = vunpack.c.h.b16 %v152
  %v630 = vunpack.c.l.b16 %v153
  %v631 = vunpack.c.h.b16 %v153
  %v632 = vunpack.c.l.b16 %v154
  %v633 = vunpack.c.h.b16 %v154
  %v634 = vunpack.c.l.b16 %v155
  %v635 = vunpack.c.h.b16 %v155
  %v636 = vunpack.c.l.b16 %v156
  %v637 = vunpack.c.h.b16 %v156
  %v638 = vunpack.c.l.b16 %v157
  %v639 = vunpack.c.h.b16 %v157
  %v640 = vunpack.c.l.b16 %v158
  %v641 = vunpack.c.h.b16 %v158
  %v642 = vunpack.c.l.b16 %v159
  %v643 = vunpack.c.h.b16 %v159
  %v644 = vunpack.c.l.b16 %v160
  %v645 = vunpack.c.h.b16 %v160
  %v646 = vunpack.c.l.b16 %v161
  %v647 = vunpack.c.h.b16 %v161
  %v648 = vunpack.c.l.b16 %v162
  %v649 = vunpack.c.h.b16 %v162
  %v650 = vunpack.c.l.b16 %v163
  %v651 = vunpack.c.h.b16 %v163
  %v652 = vunpack.c.l.b16 %v164
  %v653 = vunpack.c.h.b16 %v164
  %v654 = vpack.c.b16 %v356, %v354
  %v655 = vpack.c.b16 %v357, %v355
  %v656 = vpack.c.b16 %v360, %v358
  %v657 = vpack.c.b16 %v361, %v359
  %v658 = vpack.c.b16 %v364, %v362
  %v659 = vpack.c.b16 %v365, %v363
  %v660 = vpack.c.b16 %v368, %v366
  %v661 = vpack.c.b16 %v369, %v367
  %v662 = vpack.c.b16 %v372, %v370
  %v663 = vpack.c.b16 %v373, %v371
  %v664 = vpack.c.b16 %v376, %v374
  %v665 = vpack.c.b16 %v377, %v375
  %v666 = vpack.c.b16 %v380, %v378
  %v667 = vpack.c.b16 %v381, %v379
  %v668 = vpack.c.b16 %v384, %v382
  %v669 = vpack.c.b16 %v385, %v383
  %v670 = vpack.c.b16 %v388, %v386
  %v671 = vpack.c.b16 %v389, %v387
  %v672 = vpack.c.b16 %v392, %v390
  %v673 = vpack.c.b16 %v393, %v391
  %v674 = vpack.c.b16 %v396, %v394
  %v675 = vpack.c.b16 %v397, %v395
  %v676 = vpack.c.b16 %v400, %v398
  %v677 = vpack.c.b16 %v401, %v399
  %v678 = vpack.c.b16 %v404, %v402
  %v679 = vpack.c.b16 %v405, %v403
  %v680 = vpack.c.b16 %v408, %v406
  %v681 = vpack.c.b16 %v409, %v407
  %v682 = vpack.c.b16 %v412, %v410
  %v683 = vpack.c.b16 %v413, %v411
  %v684 = vpack.c.b16 %v416, %v414
  %v685 = vpack.c.b16 %v417, %v415
  %v686 = vpack.c.b16 %v420, %v418
  %v687 = vpack.c.b16 %v421, %v419
  %v688 = vpack.c.b16 %v424, %v422
  %v689 = vpack.c.b16 %v425, %v423
  %v690 = vpack.c.b16 %v428, %v426
  %v691 = vpack.c.b16 %v429, %v427
  %v692 = vpack.c.b16 %v432, %v430
  %v693 = vpack.c.b16 %v433, %v431
  %v694 = vpack.c.b16 %v436, %v434
  %v695 = vpack.c.b16 %v437, %v435
  %v696 = vpack.c.b16 %v440, %v438
  %v697 = vpack.c.b16 %v441, %v439
  %v698 = vpack.c.b16 %v444, %v442
  %v699 = vpack.c.b16 %v445, %v443
  %v700 = vpack.c.b16 %v448, %v446
  %v701 = vpack.c.b16 %v449, %v447
  %v702 = vpack.c.b16 %v452, %v450
  %v703 = vpack.c.b16 %v453, %v451
  %v704 = vpack.c.b16 %v456, %v454
  %v705 = vpack.c.b16 %v457, %v455
  %v706 = vpack.c.b16 %v460, %v458
  %v707 = vpack.c.b16 %v461, %v459
  %v708 = vpack.c.b16 %v464, %v462
  %v709 = vpack.c.b16 %v465, %v463
  %v710 = vpack.c.b16 %v468, %v466
  %v711 = vpack.c.b16 %v469, %v467
  %v712 = vpack.c.b16 %v472, %v470
  %v713 = vpack.c.b16 %v473, %v471
  %v714 = vpack.c.b16 %v476, %v474
  %v715 = vpack.c.b16 %v477, %v475
  %v716 = vpack.c.b16 %v480, %v478
  %v717 = vpack.c.b16 %v481, %v479
  %v718 = vpack.c.b16 %v484, %v482
  %v719 = vpack.c.b16 %v485, %v483
  %v720 = vpack.c.b16 %v488, %v486
  %v721 = vpack.c.b16 %v489, %v487
  %v722 = vpack.c.b16 %v492, %v490
  %v723 = vpack.c.b16 %v493, %v491
  %v724 = vpack.c.b16 %v496, %v494
  %v725 = vpack.c.b16 %v497, %v495
  %v726 = vpack.c.b16 %v500, %v498
  %v727 = vpack.c.b16 %v501, %v499
  %v728 = vpack.c.b16 %v504, %v502
  %v729 = vpack.c.b16 %v505, %v503
  %v730 = vpack.c.b16 %v508, %v506
  %v731 = vpack.c.b16 %v509, %v507
  %v732 = vpack.c.b16 %v512, %v510
  %v733 = vpack.c.b16 %v513, %v511
  %v734 = vpack.c.b16 %v516, %v514
  %v735 = vpack.c.b16 %v517, %v515
  %v736 = vpack.c.b16 %v520, %v518
  %v737 = vpack.c.b16 %v521, %v519
  %v738 = vpack.c.b16 %v524, %v522
  %v739 = vpack.c.b16 %v525, %v523
  %v740 = vpack.c.b16 %v528, %v526
  %v741 = vpack.c.b16 %v529, %v527
  %v742 = vpack.c.b16 %v532, %v530
  %v743 = vpack.c.b16 %v533, %v531
  %v744 = vpack.c.b16 %v536, %v534
  %v745 = vpack.c.b16 %v537, %v535
  %v746 = vpack.c.b16 %v540, %v538
  %v747 = vpack.c.b16 %v541, %v539
  %v748 = vpack.c.b16 %v544, %v542
  %v749 = vpack.c.b16 %v545, %v543
  %v750 = vpack.c.b16 %v548, %v546
  %v751 = vpack.c.b16 %v549, %v547
  %v752 = vpack.c.b16 %v552, %v550
  %v753 = vpack.c.b16 %v553, %v551
  %v754 = vpack.c.b16 %v556, %v554
  %v755 = vpack.c.b16 %v557, %v555
  %v756 = vpack.c.b16 %v560, %v558
  %v757 = vpack.c.b16 %v561, %v559
  %v758 = vpack.c.b16 %v564, %v562
  %v759 = vpack.c.b16 %v565, %v563
  %v760 = vpack.c.b16 %v568, %v566
  %v761 = vpack.c.b16 %v569, %v567
  %v762 = vpack.c.b16 %v572, %v570
  %v763 = vpack.c.b16 %v573, %v571
  %v764 = vpack.c.b16 %v576, %v574
  %v765 = vpack.c.b16 %v577, %v575
  %v766 = vpack.c.b16 %v580, %v578
  %v767 = vpack.c.b16 %v581, %v579
  %v768 = vpack.c.b16 %v584, %v582
  %v769 = vpack.c.b16 %v585, %v583
  %v770 = vpack.c.b16 %v588, %v586
  %v771 = vpack.c.b16 %v589, %v587
  %v772 = vpack.c.b16 %v592, %v590
  %v773 = vpack.c.b16 %v593, %v591
  %v774 = vpack.c.b16 %v596, %v594
  %v775 = vpack.c.b16 %v597, %v595
  %v776 = vpack.c.b16 %v600, %v598
  %v777 = vpack.c.b16 %v601, %v599
  %v778 = vpack.c.b16 %v604, %v602
  %v779 = vpack.c.b16 %v605, %v603
  %v780 = vpack.c.b16 %v608, %v606
  %v781 = vpack.c.b16 %v609, %v607
  %v782 = vpack.c.b16 %v612, %v610
  %v783 = vpack.c.b16 %v613, %v611
  %v784 = vpack.c.b16 %v616, %v614
  %v785 = vpack.c.b16 %v617, %v615
  %v786 = vpack.c.b16 %v620, %v618
  %v787 = vpack.c.b16 %v621, %v619
  %v788 = vpack.c.b16 %v624, %v622
  %v789 = vpack.c.b16 %v625, %v623
  %v790 = vpack.c.b16 %v628, %v626
  %v791 = vpack.c.b16 %v629, %v627
  %v792 = vpack.c.b16 %v632, %v630
  %v793 = vpack.c.b16 %v633, %v631
  %v794 = vpack.c.b16 %v636, %v634
  %v795 = vpack.c.b16 %v637, %v635
  %v796 = vpack.c.b16 %v640, %v638
  %v797 = vpack.c.b16 %v641, %v639
  %v798 = vpack.c.b16 %v644, %v642
  %v799 = vpack.c.b16 %v645, %v643
  %v800 = vpack.c.b16 %v648, %v646
  %v801 = vpack.c.b16 %v649, %v647
  %v802 = vpack.c.b16 %v652, %v650
  %v803 = vpack.c.b16 %v653, %v651
  %v986 = vunpack.c.l.b16 %v165
  %v987 = vunpack.c.l.b16 %v166
  %v988 = vunpack.c.l.b16 %v167
  %v989 = vunpack.c.l.b16 %v168
  %v990 = vunpack.c.l.b16 %v169
  %v991 = vunpack.c.l.b16 %v170
  %v992 = vunpack.c.l.b16 %v171
  %v993 = vunpack.c.l.b16 %v172
  %v994 = vunpack.c.l.b16 %v173
  %v995 = vunpack.c.l.b16 %v174
  %v996 = vunpack.c.l.b16 %v175
  %v997 = vunpack.c.l.b16 %v176
  %v998 = vunpack.c.l.b16 %v177
  %v999 = vunpack.c.l.b16 %v178
  %v1000 = vunpack.c.l.b16 %v179
  %v1001 = vunpack.c.l.b16 %v180
  %v1002 = vunpack.c.l.b16 %v181
  %v1003 = vunpack.c.l.b16 %v182
  %v1004 = vunpack.c.l.b16 %v183
  %v1005 = vunpack.c.l.b16 %v184
  %v1006 = vunpack.c.l.b16 %v185
  %v1007 = vunpack.c.l.b16 %v186
  %v1008 = vunpack.c.l.b16 %v187
  %v1009 = vunpack.c.l.b16 %v188
  %v1010 = vunpack.c.l.b16 %v189
  %v1011 = vunpack.c.l.b16 %v190
  %v1012 = vunpack.c.l.b16 %v191
  %v1013 = vunpack.c.l.b16 %v192
  %v1014 = vunpack.c.l.b16 %v193
  %v1015 = vunpack.c.l.b16 %v194
  %v1016 = vunpack.c.l.b16 %v195
  %v1017 = vunpack.c.l.b16 %v196
  %v1018 = vpack.c.b16 %v987, %v986
  %v1019 = vpack.c.b16 %v989, %v988
  %v1020 = vpack.c.b16 %v991, %v990
  %v1021 = vpack.c.b16 %v993, %v992
  %v1022 = vpack.c.b16 %v995, %v994
  %v1023 = vpack.c.b16 %v997, %v996
  %v1024 = vpack.c.b16 %v999, %v998
  %v1025 = vpack.c.b16 %v1001, %v1000
  %v1026 = vpack.c.b16 %v1003, %v1002
  %v1027 = vpack.c.b16 %v1005, %v1004
  %v1028 = vpack.c.b16 %v1007, %v1006
  %v1029 = vpack.c.b16 %v1009, %v1008
  %v1030 = vpack.c.b16 %v1011, %v1010
  %v1031 = vpack.c.b16 %v1013, %v1012
  %v1032 = vpack.c.b16 %v1015, %v1014
  %v1033 = vpack.c.b16 %v1017, %v1016
  %1050 = vmatprep.subr.bf16.mxu0 0
  %1051 = vmatpush1.bf16.msra.mxu0 %v1018
  %1052 = vmatprep.subr.bf16.mxu0 0
  %1053 = vmatpush1.bf16.msra.mxu0 %v1019
  %1054 = vmatprep.subr.bf16.mxu0 0
  %1055 = vmatpush1.bf16.msra.mxu0 %v1020
  %1056 = vmatprep.subr.bf16.mxu0 0
  %1057 = vmatpush1.bf16.msra.mxu0 %v1021
  %1058 = vmatprep.subr.bf16.mxu0 0
  %1059 = vmatpush1.bf16.msra.mxu0 %v1022
  %1060 = vmatprep.subr.bf16.mxu0 0
  %1061 = vmatpush1.bf16.msra.mxu0 %v1023
  %1062 = vmatprep.subr.bf16.mxu0 0
  %1063 = vmatpush1.bf16.msra.mxu0 %v1024
  %1064 = vmatprep.subr.bf16.mxu0 0
  %1065 = vmatpush1.bf16.msra.mxu0 %v1025
  %1066 = vmatprep.subr.bf16.mxu0 0
  %1067 = vmatpush1.bf16.msra.mxu0 %v1026
  %1068 = vmatprep.subr.bf16.mxu0 0
  %1069 = vmatpush1.bf16.msra.mxu0 %v1027
  %1070 = vmatprep.subr.bf16.mxu0 0
  %1071 = vmatpush1.bf16.msra.mxu0 %v1028
  %1072 = vmatprep.subr.bf16.mxu0 0
  %1073 = vmatpush1.bf16.msra.mxu0 %v1029
  %1074 = vmatprep.subr.bf16.mxu0 0
  %1075 = vmatpush1.bf16.msra.mxu0 %v1030
  %1076 = vmatprep.subr.bf16.mxu0 0
  %1077 = vmatpush1.bf16.msra.mxu0 %v1031
  %1078 = vmatprep.subr.bf16.mxu0 0
  %1079 = vmatpush1.bf16.msra.mxu0 %v1032
  %1080 = vmatprep.subr.bf16.mxu0 0
  %1081 = vmatpush1.bf16.msra.mxu0 %v1033
  %1082 = vmatprep.mubr.bf16.mxu0 %v655
  %1083 = vmatmul.mubr.bf16.gmra.mrb[0].mxu0 %v654
  %v1084 = vpop.f32.mrb[0].mxu0
  %v1085 = vadd.f32 %v202, %v1084
  %v1086 = vpop.f32.mrb[0].mxu0
  %v1087 = vpop.f32.mrb[0].mxu0
  %v1088 = vadd.f32 %v202, %v1087
  %v1089 = vpop.f32.mrb[0].mxu0
  %1090 = vmatprep.mubr.bf16.mxu0 %v657
  %1091 = vmatmul.mubr.bf16.gmra.mrb[0].mxu0 %v656
  %v1092 = vpop.f32.mrb[0].mxu0
  %v1093 = vadd.f32 %v202, %v1092
  %v1094 = vpop.f32.mrb[0].mxu0
  %v1095 = vpop.f32.mrb[0].mxu0
  %v1096 = vadd.f32 %v202, %v1095
  %v1097 = vpop.f32.mrb[0].mxu0
  %1098 = vmatprep.mubr.bf16.mxu0 %v659
  %1099 = vmatmul.mubr.bf16.gmra.mrb[0].mxu0 %v658
  %v1100 = vpop.f32.mrb[0].mxu0
  %v1101 = vadd.f32 %v202, %v1100
  %v1102 = vpop.f32.mrb[0].mxu0
  %v1103 = vpop.f32.mrb[0].mxu0
  %v1104 = vadd.f32 %v202, %v1103
  %v1105 = vpop.f32.mrb[0].mxu0
  %1106 = vmatprep.mubr.bf16.mxu0 %v661
  %1107 = vmatmul.mubr.bf16.gmra.mrb[0].mxu0 %v660
  %v1108 = vpop.f32.mrb[0].mxu0
  %v1109 = vadd.f32 %v202, %v1108
  %v1110 = vpop.f32.mrb[0].mxu0
  %v1111 = vpop.f32.mrb[0].mxu0
  %v1112 = vadd.f32 %v202, %v1111
  %v1113 = vpop.f32.mrb[0].mxu0
  %1114 = vmatprep.mubr.bf16.mxu0 %v663
  %1115 = vmatmul.mubr.bf16.gmra.mrb[0].mxu0 %v662
  %v1116 = vpop.f32.mrb[0].mxu0
  %v1117 = vadd.f32 %v202, %v1116
  %v1118 = vpop.f32.mrb[0].mxu0
  %v1119 = vpop.f32.mrb[0].mxu0
  %v1120 = vadd.f32 %v202, %v1119
  %v1121 = vpop.f32.mrb[0].mxu0
  %1122 = vmatprep.mubr.bf16.mxu0 %v665
  %1123 = vmatmul.mubr.bf16.gmra.mrb[0].mxu0 %v664
  %v1124 = vpop.f32.mrb[0].mxu0
  %v1125 = vadd.f32 %v202, %v1124
  %v1126 = vpop.f32.mrb[0].mxu0
  %v1127 = vpop.f32.mrb[0].mxu0
  %v1128 = vadd.f32 %v202, %v1127
  %v1129 = vpop.f32.mrb[0].mxu0
  %1130 = vmatprep.mubr.bf16.mxu0 %v667
  %1131 = vmatmul.mubr.bf16.gmra.mrb[0].mxu0 %v666
  %v1132 = vpop.f32.mrb[0].mxu0
  %v1133 = vadd.f32 %v202, %v1132
  %v1134 = vpop.f32.mrb[0].mxu0
  %v1135 = vpop.f32.mrb[0].mxu0
  %v1136 = vadd.f32 %v202, %v1135
  %v1137 = vpop.f32.mrb[0].mxu0
  %1138 = vmatprep.mubr.bf16.mxu0 %v669
  %1139 = vmatmul.mubr.bf16.gmra.mrb[0].mxu0 %v668
  %v1140 = vpop.f32.mrb[0].mxu0
  %v1141 = vadd.f32 %v202, %v1140
  %v1142 = vpop.f32.mrb[0].mxu0
  %v1143 = vpop.f32.mrb[0].mxu0
  %v1144 = vadd.f32 %v202, %v1143
  %v1145 = vpop.f32.mrb[0].mxu0
  %1146 = vmatprep.mubr.bf16.mxu0 %v671
  %1147 = vmatmul.mubr.bf16.gmra.mrb[0].mxu0 %v670
  %v1148 = vpop.f32.mrb[0].mxu0
  %v1149 = vadd.f32 %v202, %v1148
  %v1150 = vpop.f32.mrb[0].mxu0
  %v1151 = vpop.f32.mrb[0].mxu0
  %v1152 = vadd.f32 %v202, %v1151
  %v1153 = vpop.f32.mrb[0].mxu0
  %1154 = vmatprep.mubr.bf16.mxu0 %v673
  %1155 = vmatmul.mubr.bf16.gmra.mrb[0].mxu0 %v672
  %v1156 = vpop.f32.mrb[0].mxu0
  %v1157 = vadd.f32 %v202, %v1156
  %v1158 = vpop.f32.mrb[0].mxu0
  %v1159 = vpop.f32.mrb[0].mxu0
  %v1160 = vadd.f32 %v202, %v1159
  %v1161 = vpop.f32.mrb[0].mxu0
  %1162 = vmatprep.mubr.bf16.mxu0 %v675
  %1163 = vmatmul.mubr.bf16.gmra.mrb[0].mxu0 %v674
  %v1164 = vpop.f32.mrb[0].mxu0
  %v1165 = vadd.f32 %v202, %v1164
  %v1166 = vpop.f32.mrb[0].mxu0
  %v1167 = vpop.f32.mrb[0].mxu0
  %v1168 = vadd.f32 %v202, %v1167
  %v1169 = vpop.f32.mrb[0].mxu0
  %1170 = vmatprep.mubr.bf16.mxu0 %v677
  %1171 = vmatmul.mubr.bf16.gmra.mrb[0].mxu0 %v676
  %v1172 = vpop.f32.mrb[0].mxu0
  %v1173 = vadd.f32 %v202, %v1172
  %v1174 = vpop.f32.mrb[0].mxu0
  %v1175 = vpop.f32.mrb[0].mxu0
  %v1176 = vadd.f32 %v202, %v1175
  %v1177 = vpop.f32.mrb[0].mxu0
  %1178 = vmatprep.mubr.bf16.mxu0 %v679
  %1179 = vmatmul.mubr.bf16.gmra.mrb[0].mxu0 %v678
  %v1180 = vpop.f32.mrb[0].mxu0
  %v1181 = vadd.f32 %v202, %v1180
  %v1182 = vpop.f32.mrb[0].mxu0
  %v1183 = vpop.f32.mrb[0].mxu0
  %v1184 = vadd.f32 %v202, %v1183
  %v1185 = vpop.f32.mrb[0].mxu0
  %1186 = vmatprep.mubr.bf16.mxu0 %v681
  %1187 = vmatmul.mubr.bf16.gmra.mrb[0].mxu0 %v680
  %v1188 = vpop.f32.mrb[0].mxu0
  %v1189 = vadd.f32 %v202, %v1188
  %v1190 = vpop.f32.mrb[0].mxu0
  %v1191 = vpop.f32.mrb[0].mxu0
  %v1192 = vadd.f32 %v202, %v1191
  %v1193 = vpop.f32.mrb[0].mxu0
  %1194 = vmatprep.mubr.bf16.mxu0 %v683
  %1195 = vmatmul.mubr.bf16.gmra.mrb[0].mxu0 %v682
  %v1196 = vpop.f32.mrb[0].mxu0
  %v1197 = vadd.f32 %v202, %v1196
  %v1198 = vpop.f32.mrb[0].mxu0
  %v1199 = vpop.f32.mrb[0].mxu0
  %v1200 = vadd.f32 %v202, %v1199
  %v1201 = vpop.f32.mrb[0].mxu0
  %1202 = vmatprep.mubr.bf16.mxu0 %v685
  %1203 = vmatmul.mubr.bf16.gmra.mrb[0].mxu0 %v684
  %v1204 = vpop.f32.mrb[0].mxu0
  %v1205 = vadd.f32 %v202, %v1204
  %v1206 = vpop.f32.mrb[0].mxu0
  %v1207 = vpop.f32.mrb[0].mxu0
  %v1208 = vadd.f32 %v202, %v1207
  %v1209 = vpop.f32.mrb[0].mxu0
  %1210 = vmatprep.mubr.bf16.mxu0 %v687
  %1211 = vmatmul.mubr.bf16.gmra.mrb[0].mxu0 %v686
  %v1212 = vpop.f32.mrb[0].mxu0
  %v1213 = vadd.f32 %v202, %v1212
  %v1214 = vpop.f32.mrb[0].mxu0
  %v1215 = vpop.f32.mrb[0].mxu0
  %v1216 = vadd.f32 %v202, %v1215
  %v1217 = vpop.f32.mrb[0].mxu0
  %1218 = vmatprep.mubr.bf16.mxu0 %v689
  %1219 = vmatmul.mubr.bf16.gmra.mrb[0].mxu0 %v688
  %v1220 = vpop.f32.mrb[0].mxu0
  %v1221 = vadd.f32 %v202, %v1220
  %v1222 = vpop.f32.mrb[0].mxu0
  %v1223 = vpop.f32.mrb[0].mxu0
  %v1224 = vadd.f32 %v202, %v1223
  %v1225 = vpop.f32.mrb[0].mxu0
  %1226 = vmatprep.mubr.bf16.mxu0 %v691
  %1227 = vmatmul.mubr.bf16.gmra.mrb[0].mxu0 %v690
  %v1228 = vpop.f32.mrb[0].mxu0
  %v1229 = vadd.f32 %v202, %v1228
  %v1230 = vpop.f32.mrb[0].mxu0
  %v1231 = vpop.f32.mrb[0].mxu0
  %v1232 = vadd.f32 %v202, %v1231
  %v1233 = vpop.f32.mrb[0].mxu0
  %1234 = vmatprep.mubr.bf16.mxu0 %v693
  %1235 = vmatmul.mubr.bf16.gmra.mrb[0].mxu0 %v692
  %v1236 = vpop.f32.mrb[0].mxu0
  %v1237 = vadd.f32 %v202, %v1236
  %v1238 = vpop.f32.mrb[0].mxu0
  %v1239 = vpop.f32.mrb[0].mxu0
  %v1240 = vadd.f32 %v202, %v1239
  %v1241 = vpop.f32.mrb[0].mxu0
  %1242 = vmatprep.mubr.bf16.mxu0 %v695
  %1243 = vmatmul.mubr.bf16.gmra.mrb[0].mxu0 %v694
  %v1244 = vpop.f32.mrb[0].mxu0
  %v1245 = vadd.f32 %v202, %v1244
  %v1246 = vpop.f32.mrb[0].mxu0
  %v1247 = vpop.f32.mrb[0].mxu0
  %v1248 = vadd.f32 %v202, %v1247
  %v1249 = vpop.f32.mrb[0].mxu0
  %1250 = vmatprep.mubr.bf16.mxu0 %v697
  %1251 = vmatmul.mubr.bf16.gmra.mrb[0].mxu0 %v696
  %v1252 = vpop.f32.mrb[0].mxu0
  %v1253 = vadd.f32 %v202, %v1252
  %v1254 = vpop.f32.mrb[0].mxu0
  %v1255 = vpop.f32.mrb[0].mxu0
  %v1256 = vadd.f32 %v202, %v1255
  %v1257 = vpop.f32.mrb[0].mxu0
  %1258 = vmatprep.mubr.bf16.mxu0 %v699
  %1259 = vmatmul.mubr.bf16.gmra.mrb[0].mxu0 %v698
  %v1260 = vpop.f32.mrb[0].mxu0
  %v1261 = vadd.f32 %v202, %v1260
  %v1262 = vpop.f32.mrb[0].mxu0
  %v1263 = vpop.f32.mrb[0].mxu0
  %v1264 = vadd.f32 %v202, %v1263
  %v1265 = vpop.f32.mrb[0].mxu0
  %1266 = vmatprep.mubr.bf16.mxu0 %v701
  %1267 = vmatmul.mubr.bf16.gmra.mrb[0].mxu0 %v700
  %v1268 = vpop.f32.mrb[0].mxu0
  %v1269 = vadd.f32 %v202, %v1268
  %v1270 = vpop.f32.mrb[0].mxu0
  %v1271 = vpop.f32.mrb[0].mxu0
  %v1272 = vadd.f32 %v202, %v1271
  %v1273 = vpop.f32.mrb[0].mxu0
  %1274 = vmatprep.mubr.bf16.mxu0 %v703
  %1275 = vmatmul.mubr.bf16.gmra.mrb[0].mxu0 %v702
  %v1276 = vpop.f32.mrb[0].mxu0
  %v1277 = vadd.f32 %v202, %v1276
  %v1278 = vpop.f32.mrb[0].mxu0
  %v1279 = vpop.f32.mrb[0].mxu0
  %v1280 = vadd.f32 %v202, %v1279
  %v1281 = vpop.f32.mrb[0].mxu0
  %1282 = vmatprep.mubr.bf16.mxu0 %v705
  %1283 = vmatmul.mubr.bf16.gmra.mrb[0].mxu0 %v704
  %v1284 = vpop.f32.mrb[0].mxu0
  %v1285 = vadd.f32 %v202, %v1284
  %v1286 = vpop.f32.mrb[0].mxu0
  %v1287 = vpop.f32.mrb[0].mxu0
  %v1288 = vadd.f32 %v202, %v1287
  %v1289 = vpop.f32.mrb[0].mxu0
  %1290 = vmatprep.mubr.bf16.mxu0 %v707
  %1291 = vmatmul.mubr.bf16.gmra.mrb[0].mxu0 %v706
  %v1292 = vpop.f32.mrb[0].mxu0
  %v1293 = vadd.f32 %v202, %v1292
  %v1294 = vpop.f32.mrb[0].mxu0
  %v1295 = vpop.f32.mrb[0].mxu0
  %v1296 = vadd.f32 %v202, %v1295
  %v1297 = vpop.f32.mrb[0].mxu0
  %1298 = vmatprep.mubr.bf16.mxu0 %v709
  %1299 = vmatmul.mubr.bf16.gmra.mrb[0].mxu0 %v708
  %v1300 = vpop.f32.mrb[0].mxu0
  %v1301 = vadd.f32 %v202, %v1300
  %v1302 = vpop.f32.mrb[0].mxu0
  %v1303 = vpop.f32.mrb[0].mxu0
  %v1304 = vadd.f32 %v202, %v1303
  %v1305 = vpop.f32.mrb[0].mxu0
  %1306 = vmatprep.mubr.bf16.mxu0 %v711
  %1307 = vmatmul.mubr.bf16.gmra.mrb[0].mxu0 %v710
  %v1308 = vpop.f32.mrb[0].mxu0
  %v1309 = vadd.f32 %v202, %v1308
  %v1310 = vpop.f32.mrb[0].mxu0
  %v1311 = vpop.f32.mrb[0].mxu0
  %v1312 = vadd.f32 %v202, %v1311
  %v1313 = vpop.f32.mrb[0].mxu0
  %1314 = vmatprep.mubr.bf16.mxu0 %v713
  %1315 = vmatmul.mubr.bf16.gmra.mrb[0].mxu0 %v712
  %v1316 = vpop.f32.mrb[0].mxu0
  %v1317 = vadd.f32 %v202, %v1316
  %v1318 = vpop.f32.mrb[0].mxu0
  %v1319 = vpop.f32.mrb[0].mxu0
  %v1320 = vadd.f32 %v202, %v1319
  %v1321 = vpop.f32.mrb[0].mxu0
  %1322 = vmatprep.mubr.bf16.mxu0 %v715
  %1323 = vmatmul.mubr.bf16.gmra.mrb[0].mxu0 %v714
  %v1324 = vpop.f32.mrb[0].mxu0
  %v1325 = vadd.f32 %v202, %v1324
  %v1326 = vpop.f32.mrb[0].mxu0
  %v1327 = vpop.f32.mrb[0].mxu0
  %v1328 = vadd.f32 %v202, %v1327
  %v1329 = vpop.f32.mrb[0].mxu0
  %1330 = vmatprep.mubr.bf16.mxu0 %v717
  %1331 = vmatmul.mubr.bf16.gmra.mrb[0].mxu0 %v716
  %v1332 = vpop.f32.mrb[0].mxu0
  %v1333 = vadd.f32 %v202, %v1332
  %v1334 = vpop.f32.mrb[0].mxu0
  %v1335 = vpop.f32.mrb[0].mxu0
  %v1336 = vadd.f32 %v202, %v1335
  %v1337 = vpop.f32.mrb[0].mxu0
  %1338 = vmatprep.mubr.bf16.mxu0 %v719
  %1339 = vmatmul.mubr.bf16.gmra.mrb[0].mxu0 %v718
  %v1340 = vpop.f32.mrb[0].mxu0
  %v1341 = vadd.f32 %v202, %v1340
  %v1342 = vpop.f32.mrb[0].mxu0
  %v1343 = vpop.f32.mrb[0].mxu0
  %v1344 = vadd.f32 %v202, %v1343
  %v1345 = vpop.f32.mrb[0].mxu0
  %1346 = vmatprep.mubr.bf16.mxu0 %v721
  %1347 = vmatmul.mubr.bf16.gmra.mrb[0].mxu0 %v720
  %v1348 = vpop.f32.mrb[0].mxu0
  %v1349 = vadd.f32 %v202, %v1348
  %v1350 = vpop.f32.mrb[0].mxu0
  %v1351 = vpop.f32.mrb[0].mxu0
  %v1352 = vadd.f32 %v202, %v1351
  %v1353 = vpop.f32.mrb[0].mxu0
  %1354 = vmatprep.mubr.bf16.mxu0 %v723
  %1355 = vmatmul.mubr.bf16.gmra.mrb[0].mxu0 %v722
  %v1356 = vpop.f32.mrb[0].mxu0
  %v1357 = vadd.f32 %v202, %v1356
  %v1358 = vpop.f32.mrb[0].mxu0
  %v1359 = vpop.f32.mrb[0].mxu0
  %v1360 = vadd.f32 %v202, %v1359
  %v1361 = vpop.f32.mrb[0].mxu0
  %1362 = vmatprep.mubr.bf16.mxu0 %v725
  %1363 = vmatmul.mubr.bf16.gmra.mrb[0].mxu0 %v724
  %v1364 = vpop.f32.mrb[0].mxu0
  %v1365 = vadd.f32 %v202, %v1364
  %v1366 = vpop.f32.mrb[0].mxu0
  %v1367 = vpop.f32.mrb[0].mxu0
  %v1368 = vadd.f32 %v202, %v1367
  %v1369 = vpop.f32.mrb[0].mxu0
  %1370 = vmatprep.mubr.bf16.mxu0 %v727
  %1371 = vmatmul.mubr.bf16.gmra.mrb[0].mxu0 %v726
  %v1372 = vpop.f32.mrb[0].mxu0
  %v1373 = vadd.f32 %v202, %v1372
  %v1374 = vpop.f32.mrb[0].mxu0
  %v1375 = vpop.f32.mrb[0].mxu0
  %v1376 = vadd.f32 %v202, %v1375
  %v1377 = vpop.f32.mrb[0].mxu0
  %1378 = vmatprep.mubr.bf16.mxu0 %v729
  %1379 = vmatmul.mubr.bf16.gmra.mrb[0].mxu0 %v728
  %v1380 = vpop.f32.mrb[0].mxu0
  %v1381 = vadd.f32 %v202, %v1380
  %v1382 = vpop.f32.mrb[0].mxu0
  %v1383 = vpop.f32.mrb[0].mxu0
  %v1384 = vadd.f32 %v202, %v1383
  %v1385 = vpop.f32.mrb[0].mxu0
  %1386 = vmatprep.mubr.bf16.mxu0 %v731
  %1387 = vmatmul.mubr.bf16.gmra.mrb[0].mxu0 %v730
  %v1388 = vpop.f32.mrb[0].mxu0
  %v1389 = vadd.f32 %v202, %v1388
  %v1390 = vpop.f32.mrb[0].mxu0
  %v1391 = vpop.f32.mrb[0].mxu0
  %v1392 = vadd.f32 %v202, %v1391
  %v1393 = vpop.f32.mrb[0].mxu0
  %1394 = vmatprep.mubr.bf16.mxu0 %v733
  %1395 = vmatmul.mubr.bf16.gmra.mrb[0].mxu0 %v732
  %v1396 = vpop.f32.mrb[0].mxu0
  %v1397 = vadd.f32 %v202, %v1396
  %v1398 = vpop.f32.mrb[0].mxu0
  %v1399 = vpop.f32.mrb[0].mxu0
  %v1400 = vadd.f32 %v202, %v1399
  %v1401 = vpop.f32.mrb[0].mxu0
  %1402 = vmatprep.mubr.bf16.mxu0 %v735
  %1403 = vmatmul.mubr.bf16.gmra.mrb[0].mxu0 %v734
  %v1404 = vpop.f32.mrb[0].mxu0
  %v1405 = vadd.f32 %v202, %v1404
  %v1406 = vpop.f32.mrb[0].mxu0
  %v1407 = vpop.f32.mrb[0].mxu0
  %v1408 = vadd.f32 %v202, %v1407
  %v1409 = vpop.f32.mrb[0].mxu0
  %1410 = vmatprep.mubr.bf16.mxu0 %v737
  %1411 = vmatmul.mubr.bf16.gmra.mrb[0].mxu0 %v736
  %v1412 = vpop.f32.mrb[0].mxu0
  %v1413 = vadd.f32 %v202, %v1412
  %v1414 = vpop.f32.mrb[0].mxu0
  %v1415 = vpop.f32.mrb[0].mxu0
  %v1416 = vadd.f32 %v202, %v1415
  %v1417 = vpop.f32.mrb[0].mxu0
  %1418 = vmatprep.mubr.bf16.mxu0 %v739
  %1419 = vmatmul.mubr.bf16.gmra.mrb[0].mxu0 %v738
  %v1420 = vpop.f32.mrb[0].mxu0
  %v1421 = vadd.f32 %v202, %v1420
  %v1422 = vpop.f32.mrb[0].mxu0
  %v1423 = vpop.f32.mrb[0].mxu0
  %v1424 = vadd.f32 %v202, %v1423
  %v1425 = vpop.f32.mrb[0].mxu0
  %1426 = vmatprep.mubr.bf16.mxu0 %v741
  %1427 = vmatmul.mubr.bf16.gmra.mrb[0].mxu0 %v740
  %v1428 = vpop.f32.mrb[0].mxu0
  %v1429 = vadd.f32 %v202, %v1428
  %v1430 = vpop.f32.mrb[0].mxu0
  %v1431 = vpop.f32.mrb[0].mxu0
  %v1432 = vadd.f32 %v202, %v1431
  %v1433 = vpop.f32.mrb[0].mxu0
  %1434 = vmatprep.mubr.bf16.mxu0 %v743
  %1435 = vmatmul.mubr.bf16.gmra.mrb[0].mxu0 %v742
  %v1436 = vpop.f32.mrb[0].mxu0
  %v1437 = vadd.f32 %v202, %v1436
  %v1438 = vpop.f32.mrb[0].mxu0
  %v1439 = vpop.f32.mrb[0].mxu0
  %v1440 = vadd.f32 %v202, %v1439
  %v1441 = vpop.f32.mrb[0].mxu0
  %1442 = vmatprep.mubr.bf16.mxu0 %v745
  %1443 = vmatmul.mubr.bf16.gmra.mrb[0].mxu0 %v744
  %v1444 = vpop.f32.mrb[0].mxu0
  %v1445 = vadd.f32 %v202, %v1444
  %v1446 = vpop.f32.mrb[0].mxu0
  %v1447 = vpop.f32.mrb[0].mxu0
  %v1448 = vadd.f32 %v202, %v1447
  %v1449 = vpop.f32.mrb[0].mxu0
  %1450 = vmatprep.mubr.bf16.mxu0 %v747
  %1451 = vmatmul.mubr.bf16.gmra.mrb[0].mxu0 %v746
  %v1452 = vpop.f32.mrb[0].mxu0
  %v1453 = vadd.f32 %v202, %v1452
  %v1454 = vpop.f32.mrb[0].mxu0
  %v1455 = vpop.f32.mrb[0].mxu0
  %v1456 = vadd.f32 %v202, %v1455
  %v1457 = vpop.f32.mrb[0].mxu0
  %1458 = vmatprep.mubr.bf16.mxu0 %v749
  %1459 = vmatmul.mubr.bf16.gmra.mrb[0].mxu0 %v748
  %v1460 = vpop.f32.mrb[0].mxu0
  %v1461 = vadd.f32 %v202, %v1460
  %v1462 = vpop.f32.mrb[0].mxu0
  %v1463 = vpop.f32.mrb[0].mxu0
  %v1464 = vadd.f32 %v202, %v1463
  %v1465 = vpop.f32.mrb[0].mxu0
  %1466 = vmatprep.mubr.bf16.mxu0 %v751
  %1467 = vmatmul.mubr.bf16.gmra.mrb[0].mxu0 %v750
  %v1468 = vpop.f32.mrb[0].mxu0
  %v1469 = vadd.f32 %v202, %v1468
  %v1470 = vpop.f32.mrb[0].mxu0
  %v1471 = vpop.f32.mrb[0].mxu0
  %v1472 = vadd.f32 %v202, %v1471
  %v1473 = vpop.f32.mrb[0].mxu0
  %1474 = vmatprep.mubr.bf16.mxu0 %v753
  %1475 = vmatmul.mubr.bf16.gmra.mrb[0].mxu0 %v752
  %v1476 = vpop.f32.mrb[0].mxu0
  %v1477 = vadd.f32 %v202, %v1476
  %v1478 = vpop.f32.mrb[0].mxu0
  %v1479 = vpop.f32.mrb[0].mxu0
  %v1480 = vadd.f32 %v202, %v1479
  %v1481 = vpop.f32.mrb[0].mxu0
  %1482 = vmatprep.mubr.bf16.mxu0 %v755
  %1483 = vmatmul.mubr.bf16.gmra.mrb[0].mxu0 %v754
  %v1484 = vpop.f32.mrb[0].mxu0
  %v1485 = vadd.f32 %v202, %v1484
  %v1486 = vpop.f32.mrb[0].mxu0
  %v1487 = vpop.f32.mrb[0].mxu0
  %v1488 = vadd.f32 %v202, %v1487
  %v1489 = vpop.f32.mrb[0].mxu0
  %1490 = vmatprep.mubr.bf16.mxu0 %v757
  %1491 = vmatmul.mubr.bf16.gmra.mrb[0].mxu0 %v756
  %v1492 = vpop.f32.mrb[0].mxu0
  %v1493 = vadd.f32 %v202, %v1492
  %v1494 = vpop.f32.mrb[0].mxu0
  %v1495 = vpop.f32.mrb[0].mxu0
  %v1496 = vadd.f32 %v202, %v1495
  %v1497 = vpop.f32.mrb[0].mxu0
  %1498 = vmatprep.mubr.bf16.mxu0 %v759
  %1499 = vmatmul.mubr.bf16.gmra.mrb[0].mxu0 %v758
  %v1500 = vpop.f32.mrb[0].mxu0
  %v1501 = vadd.f32 %v202, %v1500
  %v1502 = vpop.f32.mrb[0].mxu0
  %v1503 = vpop.f32.mrb[0].mxu0
  %v1504 = vadd.f32 %v202, %v1503
  %v1505 = vpop.f32.mrb[0].mxu0
  %1506 = vmatprep.mubr.bf16.mxu0 %v761
  %1507 = vmatmul.mubr.bf16.gmra.mrb[0].mxu0 %v760
  %v1508 = vpop.f32.mrb[0].mxu0
  %v1509 = vadd.f32 %v202, %v1508
  %v1510 = vpop.f32.mrb[0].mxu0
  %v1511 = vpop.f32.mrb[0].mxu0
  %v1512 = vadd.f32 %v202, %v1511
  %v1513 = vpop.f32.mrb[0].mxu0
  %1514 = vmatprep.mubr.bf16.mxu0 %v763
  %1515 = vmatmul.mubr.bf16.gmra.mrb[0].mxu0 %v762
  %v1516 = vpop.f32.mrb[0].mxu0
  %v1517 = vadd.f32 %v202, %v1516
  %v1518 = vpop.f32.mrb[0].mxu0
  %v1519 = vpop.f32.mrb[0].mxu0
  %v1520 = vadd.f32 %v202, %v1519
  %v1521 = vpop.f32.mrb[0].mxu0
  %1522 = vmatprep.mubr.bf16.mxu0 %v765
  %1523 = vmatmul.mubr.bf16.gmra.mrb[0].mxu0 %v764
  %v1524 = vpop.f32.mrb[0].mxu0
  %v1525 = vadd.f32 %v202, %v1524
  %v1526 = vpop.f32.mrb[0].mxu0
  %v1527 = vpop.f32.mrb[0].mxu0
  %v1528 = vadd.f32 %v202, %v1527
  %v1529 = vpop.f32.mrb[0].mxu0
  %1530 = vmatprep.mubr.bf16.mxu0 %v767
  %1531 = vmatmul.mubr.bf16.gmra.mrb[0].mxu0 %v766
  %v1532 = vpop.f32.mrb[0].mxu0
  %v1533 = vadd.f32 %v202, %v1532
  %v1534 = vpop.f32.mrb[0].mxu0
  %v1535 = vpop.f32.mrb[0].mxu0
  %v1536 = vadd.f32 %v202, %v1535
  %v1537 = vpop.f32.mrb[0].mxu0
  %1538 = vmatprep.mubr.bf16.mxu0 %v769
  %1539 = vmatmul.mubr.bf16.gmra.mrb[0].mxu0 %v768
  %v1540 = vpop.f32.mrb[0].mxu0
  %v1541 = vadd.f32 %v202, %v1540
  %v1542 = vpop.f32.mrb[0].mxu0
  %v1543 = vpop.f32.mrb[0].mxu0
  %v1544 = vadd.f32 %v202, %v1543
  %v1545 = vpop.f32.mrb[0].mxu0
  %1546 = vmatprep.mubr.bf16.mxu0 %v771
  %1547 = vmatmul.mubr.bf16.gmra.mrb[0].mxu0 %v770
  %v1548 = vpop.f32.mrb[0].mxu0
  %v1549 = vadd.f32 %v202, %v1548
  %v1550 = vpop.f32.mrb[0].mxu0
  %v1551 = vpop.f32.mrb[0].mxu0
  %v1552 = vadd.f32 %v202, %v1551
  %v1553 = vpop.f32.mrb[0].mxu0
  %1554 = vmatprep.mubr.bf16.mxu0 %v773
  %1555 = vmatmul.mubr.bf16.gmra.mrb[0].mxu0 %v772
  %v1556 = vpop.f32.mrb[0].mxu0
  %v1557 = vadd.f32 %v202, %v1556
  %v1558 = vpop.f32.mrb[0].mxu0
  %v1559 = vpop.f32.mrb[0].mxu0
  %v1560 = vadd.f32 %v202, %v1559
  %v1561 = vpop.f32.mrb[0].mxu0
  %1562 = vmatprep.mubr.bf16.mxu0 %v775
  %1563 = vmatmul.mubr.bf16.gmra.mrb[0].mxu0 %v774
  %v1564 = vpop.f32.mrb[0].mxu0
  %v1565 = vadd.f32 %v202, %v1564
  %v1566 = vpop.f32.mrb[0].mxu0
  %v1567 = vpop.f32.mrb[0].mxu0
  %v1568 = vadd.f32 %v202, %v1567
  %v1569 = vpop.f32.mrb[0].mxu0
  %1570 = vmatprep.mubr.bf16.mxu0 %v777
  %1571 = vmatmul.mubr.bf16.gmra.mrb[0].mxu0 %v776
  %v1572 = vpop.f32.mrb[0].mxu0
  %v1573 = vadd.f32 %v202, %v1572
  %v1574 = vpop.f32.mrb[0].mxu0
  %v1575 = vpop.f32.mrb[0].mxu0
  %v1576 = vadd.f32 %v202, %v1575
  %v1577 = vpop.f32.mrb[0].mxu0
  %1578 = vmatprep.mubr.bf16.mxu0 %v779
  %1579 = vmatmul.mubr.bf16.gmra.mrb[0].mxu0 %v778
  %v1580 = vpop.f32.mrb[0].mxu0
  %v1581 = vadd.f32 %v202, %v1580
  %v1582 = vpop.f32.mrb[0].mxu0
  %v1583 = vpop.f32.mrb[0].mxu0
  %v1584 = vadd.f32 %v202, %v1583
  %v1585 = vpop.f32.mrb[0].mxu0
  %1586 = vmatprep.mubr.bf16.mxu0 %v781
  %1587 = vmatmul.mubr.bf16.gmra.mrb[0].mxu0 %v780
  %v1588 = vpop.f32.mrb[0].mxu0
  %v1589 = vadd.f32 %v202, %v1588
  %v1590 = vpop.f32.mrb[0].mxu0
  %v1591 = vpop.f32.mrb[0].mxu0
  %v1592 = vadd.f32 %v202, %v1591
  %v1593 = vpop.f32.mrb[0].mxu0
  %1594 = vmatprep.mubr.bf16.mxu0 %v783
  %1595 = vmatmul.mubr.bf16.gmra.mrb[0].mxu0 %v782
  %v1596 = vpop.f32.mrb[0].mxu0
  %v1597 = vadd.f32 %v202, %v1596
  %v1598 = vpop.f32.mrb[0].mxu0
  %v1599 = vpop.f32.mrb[0].mxu0
  %v1600 = vadd.f32 %v202, %v1599
  %v1601 = vpop.f32.mrb[0].mxu0
  %1602 = vmatprep.mubr.bf16.mxu0 %v785
  %1603 = vmatmul.mubr.bf16.gmra.mrb[0].mxu0 %v784
  %v1604 = vpop.f32.mrb[0].mxu0
  %v1605 = vadd.f32 %v202, %v1604
  %v1606 = vpop.f32.mrb[0].mxu0
  %v1607 = vpop.f32.mrb[0].mxu0
  %v1608 = vadd.f32 %v202, %v1607
  %v1609 = vpop.f32.mrb[0].mxu0
  %1610 = vmatprep.mubr.bf16.mxu0 %v787
  %1611 = vmatmul.mubr.bf16.gmra.mrb[0].mxu0 %v786
  %v1612 = vpop.f32.mrb[0].mxu0
  %v1613 = vadd.f32 %v202, %v1612
  %v1614 = vpop.f32.mrb[0].mxu0
  %v1615 = vpop.f32.mrb[0].mxu0
  %v1616 = vadd.f32 %v202, %v1615
  %v1617 = vpop.f32.mrb[0].mxu0
  %1618 = vmatprep.mubr.bf16.mxu0 %v789
  %1619 = vmatmul.mubr.bf16.gmra.mrb[0].mxu0 %v788
  %v1620 = vpop.f32.mrb[0].mxu0
  %v1621 = vadd.f32 %v202, %v1620
  %v1622 = vpop.f32.mrb[0].mxu0
  %v1623 = vpop.f32.mrb[0].mxu0
  %v1624 = vadd.f32 %v202, %v1623
  %v1625 = vpop.f32.mrb[0].mxu0
  %1626 = vmatprep.mubr.bf16.mxu0 %v791
  %1627 = vmatmul.mubr.bf16.gmra.mrb[0].mxu0 %v790
  %v1628 = vpop.f32.mrb[0].mxu0
  %v1629 = vadd.f32 %v202, %v1628
  %v1630 = vpop.f32.mrb[0].mxu0
  %v1631 = vpop.f32.mrb[0].mxu0
  %v1632 = vadd.f32 %v202, %v1631
  %v1633 = vpop.f32.mrb[0].mxu0
  %1634 = vmatprep.mubr.bf16.mxu0 %v793
  %1635 = vmatmul.mubr.bf16.gmra.mrb[0].mxu0 %v792
  %v1636 = vpop.f32.mrb[0].mxu0
  %v1637 = vadd.f32 %v202, %v1636
  %v1638 = vpop.f32.mrb[0].mxu0
  %v1639 = vpop.f32.mrb[0].mxu0
  %v1640 = vadd.f32 %v202, %v1639
  %v1641 = vpop.f32.mrb[0].mxu0
  %1642 = vmatprep.mubr.bf16.mxu0 %v795
  %1643 = vmatmul.mubr.bf16.gmra.mrb[0].mxu0 %v794
  %v1644 = vpop.f32.mrb[0].mxu0
  %v1645 = vadd.f32 %v202, %v1644
  %v1646 = vpop.f32.mrb[0].mxu0
  %v1647 = vpop.f32.mrb[0].mxu0
  %v1648 = vadd.f32 %v202, %v1647
  %v1649 = vpop.f32.mrb[0].mxu0
  %1650 = vmatprep.mubr.bf16.mxu0 %v797
  %1651 = vmatmul.mubr.bf16.gmra.mrb[0].mxu0 %v796
  %v1652 = vpop.f32.mrb[0].mxu0
  %v1653 = vadd.f32 %v202, %v1652
  %v1654 = vpop.f32.mrb[0].mxu0
  %v1655 = vpop.f32.mrb[0].mxu0
  %v1656 = vadd.f32 %v202, %v1655
  %v1657 = vpop.f32.mrb[0].mxu0
  %1658 = vmatprep.mubr.bf16.mxu0 %v799
  %1659 = vmatmul.mubr.bf16.gmra.mrb[0].mxu0 %v798
  %v1660 = vpop.f32.mrb[0].mxu0
  %v1661 = vadd.f32 %v202, %v1660
  %v1662 = vpop.f32.mrb[0].mxu0
  %v1663 = vpop.f32.mrb[0].mxu0
  %v1664 = vadd.f32 %v202, %v1663
  %v1665 = vpop.f32.mrb[0].mxu0
  %1666 = vmatprep.mubr.bf16.mxu0 %v801
  %1667 = vmatmul.mubr.bf16.gmra.mrb[0].mxu0 %v800
  %v1668 = vpop.f32.mrb[0].mxu0
  %v1669 = vadd.f32 %v202, %v1668
  %v1670 = vpop.f32.mrb[0].mxu0
  %v1671 = vpop.f32.mrb[0].mxu0
  %v1672 = vadd.f32 %v202, %v1671
  %v1673 = vpop.f32.mrb[0].mxu0
  %1674 = vmatprep.mubr.bf16.mxu0 %v803
  %1675 = vmatmul.mubr.bf16.gmra.mrb[0].mxu0 %v802
  %v1676 = vpop.f32.mrb[0].mxu0
  %v1677 = vadd.f32 %v202, %v1676
  %v1678 = vpop.f32.mrb[0].mxu0
  %v1679 = vpop.f32.mrb[0].mxu0
  %v1680 = vadd.f32 %v202, %v1679
  %v1681 = vpop.f32.mrb[0].mxu0
  %1682 = vdwg.mxu0
  %v1683 = vmax.f32 %v1085, 0.0
  %v1684 = vmax.f32 %v1088, 0.0
  %v1685 = vmax.f32 %v1093, 0.0
  %v1686 = vmax.f32 %v1096, 0.0
  %v1687 = vmax.f32 %v1101, 0.0
  %v1688 = vmax.f32 %v1104, 0.0
  %v1689 = vmax.f32 %v1109, 0.0
  %v1690 = vmax.f32 %v1112, 0.0
  %v1691 = vmax.f32 %v1117, 0.0
  %v1692 = vmax.f32 %v1120, 0.0
  %v1693 = vmax.f32 %v1125, 0.0
  %v1694 = vmax.f32 %v1128, 0.0
  %v1695 = vmax.f32 %v1133, 0.0
  %v1696 = vmax.f32 %v1136, 0.0
  %v1697 = vmax.f32 %v1141, 0.0
  %v1698 = vmax.f32 %v1144, 0.0
  %v1699 = vmax.f32 %v1149, 0.0
  %v1700 = vmax.f32 %v1152, 0.0
  %v1701 = vmax.f32 %v1157, 0.0
  %v1702 = vmax.f32 %v1160, 0.0
  %v1703 = vmax.f32 %v1165, 0.0
  %v1704 = vmax.f32 %v1168, 0.0
  %v1705 = vmax.f32 %v1173, 0.0
  %v1706 = vmax.f32 %v1176, 0.0
  %v1707 = vmax.f32 %v1181, 0.0
  %v1708 = vmax.f32 %v1184, 0.0
  %v1709 = vmax.f32 %v1189, 0.0
  %v1710 = vmax.f32 %v1192, 0.0
  %v1711 = vmax.f32 %v1197, 0.0
  %v1712 = vmax.f32 %v1200, 0.0
  %v1713 = vmax.f32 %v1205, 0.0
  %v1714 = vmax.f32 %v1208, 0.0
  %v1715 = vmax.f32 %v1213, 0.0
  %v1716 = vmax.f32 %v1216, 0.0
  %v1717 = vmax.f32 %v1221, 0.0
  %v1718 = vmax.f32 %v1224, 0.0
  %v1719 = vmax.f32 %v1229, 0.0
  %v1720 = vmax.f32 %v1232, 0.0
  %v1721 = vmax.f32 %v1237, 0.0
  %v1722 = vmax.f32 %v1240, 0.0
  %v1723 = vmax.f32 %v1245, 0.0
  %v1724 = vmax.f32 %v1248, 0.0
  %v1725 = vmax.f32 %v1253, 0.0
  %v1726 = vmax.f32 %v1256, 0.0
  %v1727 = vmax.f32 %v1261, 0.0
  %v1728 = vmax.f32 %v1264, 0.0
  %v1729 = vmax.f32 %v1269, 0.0
  %v1730 = vmax.f32 %v1272, 0.0
  %v1731 = vmax.f32 %v1277, 0.0
  %v1732 = vmax.f32 %v1280, 0.0
  %v1733 = vmax.f32 %v1285, 0.0
  %v1734 = vmax.f32 %v1288, 0.0
  %v1735 = vmax.f32 %v1293, 0.0
  %v1736 = vmax.f32 %v1296, 0.0
  %v1737 = vmax.f32 %v1301, 0.0
  %v1738 = vmax.f32 %v1304, 0.0
  %v1739 = vmax.f32 %v1309, 0.0
  %v1740 = vmax.f32 %v1312, 0.0
  %v1741 = vmax.f32 %v1317, 0.0
  %v1742 = vmax.f32 %v1320, 0.0
  %v1743 = vmax.f32 %v1325, 0.0
  %v1744 = vmax.f32 %v1328, 0.0
  %v1745 = vmax.f32 %v1333, 0.0
  %v1746 = vmax.f32 %v1336, 0.0
  %v1747 = vmax.f32 %v1341, 0.0
  %v1748 = vmax.f32 %v1344, 0.0
  %v1749 = vmax.f32 %v1349, 0.0
  %v1750 = vmax.f32 %v1352, 0.0
  %v1751 = vmax.f32 %v1357, 0.0
  %v1752 = vmax.f32 %v1360, 0.0
  %v1753 = vmax.f32 %v1365, 0.0
  %v1754 = vmax.f32 %v1368, 0.0
  %v1755 = vmax.f32 %v1373, 0.0
  %v1756 = vmax.f32 %v1376, 0.0
  %v1757 = vmax.f32 %v1381, 0.0
  %v1758 = vmax.f32 %v1384, 0.0
  %v1759 = vmax.f32 %v1389, 0.0
  %v1760 = vmax.f32 %v1392, 0.0
  %v1761 = vmax.f32 %v1397, 0.0
  %v1762 = vmax.f32 %v1400, 0.0
  %v1763 = vmax.f32 %v1405, 0.0
  %v1764 = vmax.f32 %v1408, 0.0
  %v1765 = vmax.f32 %v1413, 0.0
  %v1766 = vmax.f32 %v1416, 0.0
  %v1767 = vmax.f32 %v1421, 0.0
  %v1768 = vmax.f32 %v1424, 0.0
  %v1769 = vmax.f32 %v1429, 0.0
  %v1770 = vmax.f32 %v1432, 0.0
  %v1771 = vmax.f32 %v1437, 0.0
  %v1772 = vmax.f32 %v1440, 0.0
  %v1773 = vmax.f32 %v1445, 0.0
  %v1774 = vmax.f32 %v1448, 0.0
  %v1775 = vmax.f32 %v1453, 0.0
  %v1776 = vmax.f32 %v1456, 0.0
  %v1777 = vmax.f32 %v1461, 0.0
  %v1778 = vmax.f32 %v1464, 0.0
  %v1779 = vmax.f32 %v1469, 0.0
  %v1780 = vmax.f32 %v1472, 0.0
  %v1781 = vmax.f32 %v1477, 0.0
  %v1782 = vmax.f32 %v1480, 0.0
  %v1783 = vmax.f32 %v1485, 0.0
  %v1784 = vmax.f32 %v1488, 0.0
  %v1785 = vmax.f32 %v1493, 0.0
  %v1786 = vmax.f32 %v1496, 0.0
  %v1787 = vmax.f32 %v1501, 0.0
  %v1788 = vmax.f32 %v1504, 0.0
  %v1789 = vmax.f32 %v1509, 0.0
  %v1790 = vmax.f32 %v1512, 0.0
  %v1791 = vmax.f32 %v1517, 0.0
  %v1792 = vmax.f32 %v1520, 0.0
  %v1793 = vmax.f32 %v1525, 0.0
  %v1794 = vmax.f32 %v1528, 0.0
  %v1795 = vmax.f32 %v1533, 0.0
  %v1796 = vmax.f32 %v1536, 0.0
  %v1797 = vmax.f32 %v1541, 0.0
  %v1798 = vmax.f32 %v1544, 0.0
  %v1799 = vmax.f32 %v1549, 0.0
  %v1800 = vmax.f32 %v1552, 0.0
  %v1801 = vmax.f32 %v1557, 0.0
  %v1802 = vmax.f32 %v1560, 0.0
  %v1803 = vmax.f32 %v1565, 0.0
  %v1804 = vmax.f32 %v1568, 0.0
  %v1805 = vmax.f32 %v1573, 0.0
  %v1806 = vmax.f32 %v1576, 0.0
  %v1807 = vmax.f32 %v1581, 0.0
  %v1808 = vmax.f32 %v1584, 0.0
  %v1809 = vmax.f32 %v1589, 0.0
  %v1810 = vmax.f32 %v1592, 0.0
  %v1811 = vmax.f32 %v1597, 0.0
  %v1812 = vmax.f32 %v1600, 0.0
  %v1813 = vmax.f32 %v1605, 0.0
  %v1814 = vmax.f32 %v1608, 0.0
  %v1815 = vmax.f32 %v1613, 0.0
  %v1816 = vmax.f32 %v1616, 0.0
  %v1817 = vmax.f32 %v1621, 0.0
  %v1818 = vmax.f32 %v1624, 0.0
  %v1819 = vmax.f32 %v1629, 0.0
  %v1820 = vmax.f32 %v1632, 0.0
  %v1821 = vmax.f32 %v1637, 0.0
  %v1822 = vmax.f32 %v1640, 0.0
  %v1823 = vmax.f32 %v1645, 0.0
  %v1824 = vmax.f32 %v1648, 0.0
  %v1825 = vmax.f32 %v1653, 0.0
  %v1826 = vmax.f32 %v1656, 0.0
  %v1827 = vmax.f32 %v1661, 0.0
  %v1828 = vmax.f32 %v1664, 0.0
  %v1829 = vmax.f32 %v1669, 0.0
  %v1830 = vmax.f32 %v1672, 0.0
  %v1831 = vmax.f32 %v1677, 0.0
  %v1832 = vmax.f32 %v1680, 0.0
  %v1833 = vpack.c.bf16 %v1684, %v1683
  %v1834 = vpack.c.bf16 %v1686, %v1685
  %v1835 = vpack.c.bf16 %v1688, %v1687
  %v1836 = vpack.c.bf16 %v1690, %v1689
  %v1837 = vpack.c.bf16 %v1692, %v1691
  %v1838 = vpack.c.bf16 %v1694, %v1693
  %v1839 = vpack.c.bf16 %v1696, %v1695
  %v1840 = vpack.c.bf16 %v1698, %v1697
  %v1841 = vpack.c.bf16 %v1700, %v1699
  %v1842 = vpack.c.bf16 %v1702, %v1701
  %v1843 = vpack.c.bf16 %v1704, %v1703
  %v1844 = vpack.c.bf16 %v1706, %v1705
  %v1845 = vpack.c.bf16 %v1708, %v1707
  %v1846 = vpack.c.bf16 %v1710, %v1709
  %v1847 = vpack.c.bf16 %v1712, %v1711
  %v1848 = vpack.c.bf16 %v1714, %v1713
  %v1849 = vpack.c.bf16 %v1716, %v1715
  %v1850 = vpack.c.bf16 %v1718, %v1717
  %v1851 = vpack.c.bf16 %v1720, %v1719
  %v1852 = vpack.c.bf16 %v1722, %v1721
  %v1853 = vpack.c.bf16 %v1724, %v1723
  %v1854 = vpack.c.bf16 %v1726, %v1725
  %v1855 = vpack.c.bf16 %v1728, %v1727
  %v1856 = vpack.c.bf16 %v1730, %v1729
  %v1857 = vpack.c.bf16 %v1732, %v1731
  %v1858 = vpack.c.bf16 %v1734, %v1733
  %v1859 = vpack.c.bf16 %v1736, %v1735
  %v1860 = vpack.c.bf16 %v1738, %v1737
  %v1861 = vpack.c.bf16 %v1740, %v1739
  %v1862 = vpack.c.bf16 %v1742, %v1741
  %v1863 = vpack.c.bf16 %v1744, %v1743
  %v1864 = vpack.c.bf16 %v1746, %v1745
  %v1865 = vpack.c.bf16 %v1748, %v1747
  %v1866 = vpack.c.bf16 %v1750, %v1749
  %v1867 = vpack.c.bf16 %v1752, %v1751
  %v1868 = vpack.c.bf16 %v1754, %v1753
  %v1869 = vpack.c.bf16 %v1756, %v1755
  %v1870 = vpack.c.bf16 %v1758, %v1757
  %v1871 = vpack.c.bf16 %v1760, %v1759
  %v1872 = vpack.c.bf16 %v1762, %v1761
  %v1873 = vpack.c.bf16 %v1764, %v1763
  %v1874 = vpack.c.bf16 %v1766, %v1765
  %v1875 = vpack.c.bf16 %v1768, %v1767
  %v1876 = vpack.c.bf16 %v1770, %v1769
  %v1877 = vpack.c.bf16 %v1772, %v1771
  %v1878 = vpack.c.bf16 %v1774, %v1773
  %v1879 = vpack.c.bf16 %v1776, %v1775
  %v1880 = vpack.c.bf16 %v1778, %v1777
  %v1881 = vpack.c.bf16 %v1780, %v1779
  %v1882 = vpack.c.bf16 %v1782, %v1781
  %v1883 = vpack.c.bf16 %v1784, %v1783
  %v1884 = vpack.c.bf16 %v1786, %v1785
  %v1885 = vpack.c.bf16 %v1788, %v1787
  %v1886 = vpack.c.bf16 %v1790, %v1789
  %v1887 = vpack.c.bf16 %v1792, %v1791
  %v1888 = vpack.c.bf16 %v1794, %v1793
  %v1889 = vpack.c.bf16 %v1796, %v1795
  %v1890 = vpack.c.bf16 %v1798, %v1797
  %v1891 = vpack.c.bf16 %v1800, %v1799
  %v1892 = vpack.c.bf16 %v1802, %v1801
  %v1893 = vpack.c.bf16 %v1804, %v1803
  %v1894 = vpack.c.bf16 %v1806, %v1805
  %v1895 = vpack.c.bf16 %v1808, %v1807
  %v1896 = vpack.c.bf16 %v1810, %v1809
  %v1897 = vpack.c.bf16 %v1812, %v1811
  %v1898 = vpack.c.bf16 %v1814, %v1813
  %v1899 = vpack.c.bf16 %v1816, %v1815
  %v1900 = vpack.c.bf16 %v1818, %v1817
  %v1901 = vpack.c.bf16 %v1820, %v1819
  %v1902 = vpack.c.bf16 %v1822, %v1821
  %v1903 = vpack.c.bf16 %v1824, %v1823
  %v1904 = vpack.c.bf16 %v1826, %v1825
  %v1905 = vpack.c.bf16 %v1828, %v1827
  %v1906 = vpack.c.bf16 %v1830, %v1829
  %v1907 = vpack.c.bf16 %v1832, %v1831
  %v1983 = vunpack.c.l.b16 %v1833
  %v1984 = vunpack.c.h.b16 %v1833
  %v1985 = vunpack.c.l.b16 %v1834
  %v1986 = vunpack.c.h.b16 %v1834
  %v1987 = vunpack.c.l.b16 %v1835
  %v1988 = vunpack.c.h.b16 %v1835
  %v1989 = vunpack.c.l.b16 %v1836
  %v1990 = vunpack.c.h.b16 %v1836
  %v1991 = vunpack.c.l.b16 %v1837
  %v1992 = vunpack.c.h.b16 %v1837
  %v1993 = vunpack.c.l.b16 %v1838
  %v1994 = vunpack.c.h.b16 %v1838
  %v1995 = vunpack.c.l.b16 %v1839
  %v1996 = vunpack.c.h.b16 %v1839
  %v1997 = vunpack.c.l.b16 %v1840
  %v1998 = vunpack.c.h.b16 %v1840
  %v1999 = vunpack.c.l.b16 %v1841
  %v2000 = vunpack.c.h.b16 %v1841
  %v2001 = vunpack.c.l.b16 %v1842
  %v2002 = vunpack.c.h.b16 %v1842
  %v2003 = vunpack.c.l.b16 %v1843
  %v2004 = vunpack.c.h.b16 %v1843
  %v2005 = vunpack.c.l.b16 %v1844
  %v2006 = vunpack.c.h.b16 %v1844
  %v2007 = vunpack.c.l.b16 %v1845
  %v2008 = vunpack.c.h.b16 %v1845
  %v2009 = vunpack.c.l.b16 %v1846
  %v2010 = vunpack.c.h.b16 %v1846
  %v2011 = vunpack.c.l.b16 %v1847
  %v2012 = vunpack.c.h.b16 %v1847
  %v2013 = vunpack.c.l.b16 %v1848
  %v2014 = vunpack.c.h.b16 %v1848
  %v2015 = vunpack.c.l.b16 %v1849
  %v2016 = vunpack.c.h.b16 %v1849
  %v2017 = vunpack.c.l.b16 %v1850
  %v2018 = vunpack.c.h.b16 %v1850
  %v2019 = vunpack.c.l.b16 %v1851
  %v2020 = vunpack.c.h.b16 %v1851
  %v2021 = vunpack.c.l.b16 %v1852
  %v2022 = vunpack.c.h.b16 %v1852
  %v2023 = vunpack.c.l.b16 %v1853
  %v2024 = vunpack.c.h.b16 %v1853
  %v2025 = vunpack.c.l.b16 %v1854
  %v2026 = vunpack.c.h.b16 %v1854
  %v2027 = vunpack.c.l.b16 %v1855
  %v2028 = vunpack.c.h.b16 %v1855
  %v2029 = vunpack.c.l.b16 %v1856
  %v2030 = vunpack.c.h.b16 %v1856
  %v2031 = vunpack.c.l.b16 %v1857
  %v2032 = vunpack.c.h.b16 %v1857
  %v2033 = vunpack.c.l.b16 %v1858
  %v2034 = vunpack.c.h.b16 %v1858
  %v2035 = vunpack.c.l.b16 %v1859
  %v2036 = vunpack.c.h.b16 %v1859
  %v2037 = vunpack.c.l.b16 %v1860
  %v2038 = vunpack.c.h.b16 %v1860
  %v2039 = vunpack.c.l.b16 %v1861
  %v2040 = vunpack.c.h.b16 %v1861
  %v2041 = vunpack.c.l.b16 %v1862
  %v2042 = vunpack.c.h.b16 %v1862
  %v2043 = vunpack.c.l.b16 %v1863
  %v2044 = vunpack.c.h.b16 %v1863
  %v2045 = vunpack.c.l.b16 %v1864
  %v2046 = vunpack.c.h.b16 %v1864
  %v2047 = vunpack.c.l.b16 %v1865
  %v2048 = vunpack.c.h.b16 %v1865
  %v2049 = vunpack.c.l.b16 %v1866
  %v2050 = vunpack.c.h.b16 %v1866
  %v2051 = vunpack.c.l.b16 %v1867
  %v2052 = vunpack.c.h.b16 %v1867
  %v2053 = vunpack.c.l.b16 %v1868
  %v2054 = vunpack.c.h.b16 %v1868
  %v2055 = vunpack.c.l.b16 %v1869
  %v2056 = vunpack.c.h.b16 %v1869
  %v2057 = vunpack.c.l.b16 %v1870
  %v2058 = vunpack.c.h.b16 %v1870
  %v2059 = vunpack.c.l.b16 %v1871
  %v2060 = vunpack.c.h.b16 %v1871
  %v2061 = vunpack.c.l.b16 %v1872
  %v2062 = vunpack.c.h.b16 %v1872
  %v2063 = vunpack.c.l.b16 %v1873
  %v2064 = vunpack.c.h.b16 %v1873
  %v2065 = vunpack.c.l.b16 %v1874
  %v2066 = vunpack.c.h.b16 %v1874
  %v2067 = vunpack.c.l.b16 %v1875
  %v2068 = vunpack.c.h.b16 %v1875
  %v2069 = vunpack.c.l.b16 %v1876
  %v2070 = vunpack.c.h.b16 %v1876
  %v2071 = vunpack.c.l.b16 %v1877
  %v2072 = vunpack.c.h.b16 %v1877
  %v2073 = vunpack.c.l.b16 %v1878
  %v2074 = vunpack.c.h.b16 %v1878
  %v2075 = vunpack.c.l.b16 %v1879
  %v2076 = vunpack.c.h.b16 %v1879
  %v2077 = vunpack.c.l.b16 %v1880
  %v2078 = vunpack.c.h.b16 %v1880
  %v2079 = vunpack.c.l.b16 %v1881
  %v2080 = vunpack.c.h.b16 %v1881
  %v2081 = vunpack.c.l.b16 %v1882
  %v2082 = vunpack.c.h.b16 %v1882
  %v2083 = vunpack.c.l.b16 %v1883
  %v2084 = vunpack.c.h.b16 %v1883
  %v2085 = vunpack.c.l.b16 %v1884
  %v2086 = vunpack.c.h.b16 %v1884
  %v2087 = vunpack.c.l.b16 %v1885
  %v2088 = vunpack.c.h.b16 %v1885
  %v2089 = vunpack.c.l.b16 %v1886
  %v2090 = vunpack.c.h.b16 %v1886
  %v2091 = vunpack.c.l.b16 %v1887
  %v2092 = vunpack.c.h.b16 %v1887
  %v2093 = vunpack.c.l.b16 %v1888
  %v2094 = vunpack.c.h.b16 %v1888
  %v2095 = vunpack.c.l.b16 %v1889
  %v2096 = vunpack.c.h.b16 %v1889
  %v2097 = vunpack.c.l.b16 %v1890
  %v2098 = vunpack.c.h.b16 %v1890
  %v2099 = vunpack.c.l.b16 %v1891
  %v2100 = vunpack.c.h.b16 %v1891
  %v2101 = vunpack.c.l.b16 %v1892
  %v2102 = vunpack.c.h.b16 %v1892
  %v2103 = vunpack.c.l.b16 %v1893
  %v2104 = vunpack.c.h.b16 %v1893
  %v2105 = vunpack.c.l.b16 %v1894
  %v2106 = vunpack.c.h.b16 %v1894
  %v2107 = vunpack.c.l.b16 %v1895
  %v2108 = vunpack.c.h.b16 %v1895
  %v2109 = vunpack.c.l.b16 %v1896
  %v2110 = vunpack.c.h.b16 %v1896
  %v2111 = vunpack.c.l.b16 %v1897
  %v2112 = vunpack.c.h.b16 %v1897
  %v2113 = vunpack.c.l.b16 %v1898
  %v2114 = vunpack.c.h.b16 %v1898
  %v2115 = vunpack.c.l.b16 %v1899
  %v2116 = vunpack.c.h.b16 %v1899
  %v2117 = vunpack.c.l.b16 %v1900
  %v2118 = vunpack.c.h.b16 %v1900
  %v2119 = vunpack.c.l.b16 %v1901
  %v2120 = vunpack.c.h.b16 %v1901
  %v2121 = vunpack.c.l.b16 %v1902
  %v2122 = vunpack.c.h.b16 %v1902
  %v2123 = vunpack.c.l.b16 %v1903
  %v2124 = vunpack.c.h.b16 %v1903
  %v2125 = vunpack.c.l.b16 %v1904
  %v2126 = vunpack.c.h.b16 %v1904
  %v2127 = vunpack.c.l.b16 %v1905
  %v2128 = vunpack.c.h.b16 %v1905
  %v2129 = vunpack.c.l.b16 %v1906
  %v2130 = vunpack.c.h.b16 %v1906
  %v2131 = vunpack.c.l.b16 %v1907
  %v2132 = vunpack.c.h.b16 %v1907
  %v2133 = vpack.c.b16 %v1983, %v1983
  %v2134 = vpack.c.b16 %v1984, %v1984
  %v2135 = vpack.c.b16 %v1985, %v1985
  %v2136 = vpack.c.b16 %v1986, %v1986
  %v2137 = vpack.c.b16 %v1987, %v1987
  %v2138 = vpack.c.b16 %v1988, %v1988
  %v2139 = vpack.c.b16 %v1989, %v1989
  %v2140 = vpack.c.b16 %v1990, %v1990
  %v2141 = vpack.c.b16 %v1991, %v1991
  %v2142 = vpack.c.b16 %v1992, %v1992
  %v2143 = vpack.c.b16 %v1993, %v1993
  %v2144 = vpack.c.b16 %v1994, %v1994
  %v2145 = vpack.c.b16 %v1995, %v1995
  %v2146 = vpack.c.b16 %v1996, %v1996
  %v2147 = vpack.c.b16 %v1997, %v1997
  %v2148 = vpack.c.b16 %v1998, %v1998
  %v2149 = vpack.c.b16 %v1999, %v1999
  %v2150 = vpack.c.b16 %v2000, %v2000
  %v2151 = vpack.c.b16 %v2001, %v2001
  %v2152 = vpack.c.b16 %v2002, %v2002
  %v2153 = vpack.c.b16 %v2003, %v2003
  %v2154 = vpack.c.b16 %v2004, %v2004
  %v2155 = vpack.c.b16 %v2005, %v2005
  %v2156 = vpack.c.b16 %v2006, %v2006
  %v2157 = vpack.c.b16 %v2007, %v2007
  %v2158 = vpack.c.b16 %v2008, %v2008
  %v2159 = vpack.c.b16 %v2009, %v2009
  %v2160 = vpack.c.b16 %v2010, %v2010
  %v2161 = vpack.c.b16 %v2011, %v2011
  %v2162 = vpack.c.b16 %v2012, %v2012
  %v2163 = vpack.c.b16 %v2013, %v2013
  %v2164 = vpack.c.b16 %v2014, %v2014
  %v2165 = vpack.c.b16 %v2015, %v2015
  %v2166 = vpack.c.b16 %v2016, %v2016
  %v2167 = vpack.c.b16 %v2017, %v2017
  %v2168 = vpack.c.b16 %v2018, %v2018
  %v2169 = vpack.c.b16 %v2019, %v2019
  %v2170 = vpack.c.b16 %v2020, %v2020
  %v2171 = vpack.c.b16 %v2021, %v2021
  %v2172 = vpack.c.b16 %v2022, %v2022
  %v2173 = vpack.c.b16 %v2023, %v2023
  %v2174 = vpack.c.b16 %v2024, %v2024
  %v2175 = vpack.c.b16 %v2025, %v2025
  %v2176 = vpack.c.b16 %v2026, %v2026
  %v2177 = vpack.c.b16 %v2027, %v2027
  %v2178 = vpack.c.b16 %v2028, %v2028
  %v2179 = vpack.c.b16 %v2029, %v2029
  %v2180 = vpack.c.b16 %v2030, %v2030
  %v2181 = vpack.c.b16 %v2031, %v2031
  %v2182 = vpack.c.b16 %v2032, %v2032
  %v2183 = vpack.c.b16 %v2033, %v2033
  %v2184 = vpack.c.b16 %v2034, %v2034
  %v2185 = vpack.c.b16 %v2035, %v2035
  %v2186 = vpack.c.b16 %v2036, %v2036
  %v2187 = vpack.c.b16 %v2037, %v2037
  %v2188 = vpack.c.b16 %v2038, %v2038
  %v2189 = vpack.c.b16 %v2039, %v2039
  %v2190 = vpack.c.b16 %v2040, %v2040
  %v2191 = vpack.c.b16 %v2041, %v2041
  %v2192 = vpack.c.b16 %v2042, %v2042
  %v2193 = vpack.c.b16 %v2043, %v2043
  %v2194 = vpack.c.b16 %v2044, %v2044
  %v2195 = vpack.c.b16 %v2045, %v2045
  %v2196 = vpack.c.b16 %v2046, %v2046
  %v2197 = vpack.c.b16 %v2047, %v2047
  %v2198 = vpack.c.b16 %v2048, %v2048
  %v2199 = vpack.c.b16 %v2049, %v2049
  %v2200 = vpack.c.b16 %v2050, %v2050
  %v2201 = vpack.c.b16 %v2051, %v2051
  %v2202 = vpack.c.b16 %v2052, %v2052
  %v2203 = vpack.c.b16 %v2053, %v2053
  %v2204 = vpack.c.b16 %v2054, %v2054
  %v2205 = vpack.c.b16 %v2055, %v2055
  %v2206 = vpack.c.b16 %v2056, %v2056
  %v2207 = vpack.c.b16 %v2057, %v2057
  %v2208 = vpack.c.b16 %v2058, %v2058
  %v2209 = vpack.c.b16 %v2059, %v2059
  %v2210 = vpack.c.b16 %v2060, %v2060
  %v2211 = vpack.c.b16 %v2061, %v2061
  %v2212 = vpack.c.b16 %v2062, %v2062
  %v2213 = vpack.c.b16 %v2063, %v2063
  %v2214 = vpack.c.b16 %v2064, %v2064
  %v2215 = vpack.c.b16 %v2065, %v2065
  %v2216 = vpack.c.b16 %v2066, %v2066
  %v2217 = vpack.c.b16 %v2067, %v2067
  %v2218 = vpack.c.b16 %v2068, %v2068
  %v2219 = vpack.c.b16 %v2069, %v2069
  %v2220 = vpack.c.b16 %v2070, %v2070
  %v2221 = vpack.c.b16 %v2071, %v2071
  %v2222 = vpack.c.b16 %v2072, %v2072
  %v2223 = vpack.c.b16 %v2073, %v2073
  %v2224 = vpack.c.b16 %v2074, %v2074
  %v2225 = vpack.c.b16 %v2075, %v2075
  %v2226 = vpack.c.b16 %v2076, %v2076
  %v2227 = vpack.c.b16 %v2077, %v2077
  %v2228 = vpack.c.b16 %v2078, %v2078
  %v2229 = vpack.c.b16 %v2079, %v2079
  %v2230 = vpack.c.b16 %v2080, %v2080
  %v2231 = vpack.c.b16 %v2081, %v2081
  %v2232 = vpack.c.b16 %v2082, %v2082
  %v2233 = vpack.c.b16 %v2083, %v2083
  %v2234 = vpack.c.b16 %v2084, %v2084
  %v2235 = vpack.c.b16 %v2085, %v2085
  %v2236 = vpack.c.b16 %v2086, %v2086
  %v2237 = vpack.c.b16 %v2087, %v2087
  %v2238 = vpack.c.b16 %v2088, %v2088
  %v2239 = vpack.c.b16 %v2089, %v2089
  %v2240 = vpack.c.b16 %v2090, %v2090
  %v2241 = vpack.c.b16 %v2091, %v2091
  %v2242 = vpack.c.b16 %v2092, %v2092
  %v2243 = vpack.c.b16 %v2093, %v2093
  %v2244 = vpack.c.b16 %v2094, %v2094
  %v2245 = vpack.c.b16 %v2095, %v2095
  %v2246 = vpack.c.b16 %v2096, %v2096
  %v2247 = vpack.c.b16 %v2097, %v2097
  %v2248 = vpack.c.b16 %v2098, %v2098
  %v2249 = vpack.c.b16 %v2099, %v2099
  %v2250 = vpack.c.b16 %v2100, %v2100
  %v2251 = vpack.c.b16 %v2101, %v2101
  %v2252 = vpack.c.b16 %v2102, %v2102
  %v2253 = vpack.c.b16 %v2103, %v2103
  %v2254 = vpack.c.b16 %v2104, %v2104
  %v2255 = vpack.c.b16 %v2105, %v2105
  %v2256 = vpack.c.b16 %v2106, %v2106
  %v2257 = vpack.c.b16 %v2107, %v2107
  %v2258 = vpack.c.b16 %v2108, %v2108
  %v2259 = vpack.c.b16 %v2109, %v2109
  %v2260 = vpack.c.b16 %v2110, %v2110
  %v2261 = vpack.c.b16 %v2111, %v2111
  %v2262 = vpack.c.b16 %v2112, %v2112
  %v2263 = vpack.c.b16 %v2113, %v2113
  %v2264 = vpack.c.b16 %v2114, %v2114
  %v2265 = vpack.c.b16 %v2115, %v2115
  %v2266 = vpack.c.b16 %v2116, %v2116
  %v2267 = vpack.c.b16 %v2117, %v2117
  %v2268 = vpack.c.b16 %v2118, %v2118
  %v2269 = vpack.c.b16 %v2119, %v2119
  %v2270 = vpack.c.b16 %v2120, %v2120
  %v2271 = vpack.c.b16 %v2121, %v2121
  %v2272 = vpack.c.b16 %v2122, %v2122
  %v2273 = vpack.c.b16 %v2123, %v2123
  %v2274 = vpack.c.b16 %v2124, %v2124
  %v2275 = vpack.c.b16 %v2125, %v2125
  %v2276 = vpack.c.b16 %v2126, %v2126
  %v2277 = vpack.c.b16 %v2127, %v2127
  %v2278 = vpack.c.b16 %v2128, %v2128
  %v2279 = vpack.c.b16 %v2129, %v2129
  %v2280 = vpack.c.b16 %v2130, %v2130
  %v2281 = vpack.c.b16 %v2131, %v2131
  %v2282 = vpack.c.b16 %v2132, %v2132
  %2433 = vst [vmem:[%s3] sm:$0xf] %v2133
  %2434 = vst [vmem:[%s3 + $0x4] sm:$0xf] %v2134
  %2435 = vst [vmem:[%s3 + $0x8] sm:$0xf] %v2135
  %2436 = vst [vmem:[%s3 + $0xc] sm:$0xf] %v2136
  %2437 = vst [vmem:[%s3 + $0x10] sm:$0xf] %v2137
  %2438 = vst [vmem:[%s3 + $0x14] sm:$0xf] %v2138
  %2439 = vst [vmem:[%s3 + $0x18] sm:$0xf] %v2139
  %2440 = vst [vmem:[%s3 + $0x1c] sm:$0xf] %v2140
  %2441 = vst [vmem:[%s3 + $0x20] sm:$0xf] %v2141
  %2442 = vst [vmem:[%s3 + $0x24] sm:$0xf] %v2142
  %2443 = vst [vmem:[%s3 + $0x28] sm:$0xf] %v2143
  %2444 = vst [vmem:[%s3 + $0x2c] sm:$0xf] %v2144
  %2445 = vst [vmem:[%s3 + $0x30] sm:$0xf] %v2145
  %2446 = vst [vmem:[%s3 + $0x34] sm:$0xf] %v2146
  %2447 = vst [vmem:[%s3 + $0x38] sm:$0xf] %v2147
  %2448 = vst [vmem:[%s3 + $0x3c] sm:$0xf] %v2148
  %2449 = vst [vmem:[%s3 + $0x40] sm:$0xf] %v2149
  %2450 = vst [vmem:[%s3 + $0x44] sm:$0xf] %v2150
  %2451 = vst [vmem:[%s3 + $0x48] sm:$0xf] %v2151
  %2452 = vst [vmem:[%s3 + $0x4c] sm:$0xf] %v2152
  %2453 = vst [vmem:[%s3 + $0x50] sm:$0xf] %v2153
  %2454 = vst [vmem:[%s3 + $0x54] sm:$0xf] %v2154
  %2455 = vst [vmem:[%s3 + $0x58] sm:$0xf] %v2155
  %2456 = vst [vmem:[%s3 + $0x5c] sm:$0xf] %v2156
  %2457 = vst [vmem:[%s3 + $0x60] sm:$0xf] %v2157
  %2458 = vst [vmem:[%s3 + $0x64] sm:$0xf] %v2158
  %2459 = vst [vmem:[%s3 + $0x68] sm:$0xf] %v2159
  %2460 = vst [vmem:[%s3 + $0x6c] sm:$0xf] %v2160
  %2461 = vst [vmem:[%s3 + $0x70] sm:$0xf] %v2161
  %2462 = vst [vmem:[%s3 + $0x74] sm:$0xf] %v2162
  %2463 = vst [vmem:[%s3 + $0x78] sm:$0xf] %v2163
  %2464 = vst [vmem:[%s3 + $0x7c] sm:$0xf] %v2164
  %2465 = vst [vmem:[%s3 + $0x80] sm:$0xf] %v2165
  %2466 = vst [vmem:[%s3 + $0x84] sm:$0xf] %v2166
  %2467 = vst [vmem:[%s3 + $0x88] sm:$0xf] %v2167
  %2468 = vst [vmem:[%s3 + $0x8c] sm:$0xf] %v2168
  %2469 = vst [vmem:[%s3 + $0x90] sm:$0xf] %v2169
  %2470 = vst [vmem:[%s3 + $0x94] sm:$0xf] %v2170
  %2471 = vst [vmem:[%s3 + $0x98] sm:$0xf] %v2171
  %2472 = vst [vmem:[%s3 + $0x9c] sm:$0xf] %v2172
  %2473 = vst [vmem:[%s3 + $0xa0] sm:$0xf] %v2173
  %2474 = vst [vmem:[%s3 + $0xa4] sm:$0xf] %v2174
  %2475 = vst [vmem:[%s3 + $0xa8] sm:$0xf] %v2175
  %2476 = vst [vmem:[%s3 + $0xac] sm:$0xf] %v2176
  %2477 = vst [vmem:[%s3 + $0xb0] sm:$0xf] %v2177
  %2478 = vst [vmem:[%s3 + $0xb4] sm:$0xf] %v2178
  %2479 = vst [vmem:[%s3 + $0xb8] sm:$0xf] %v2179
  %2480 = vst [vmem:[%s3 + $0xbc] sm:$0xf] %v2180
  %2481 = vst [vmem:[%s3 + $0xc0] sm:$0xf] %v2181
  %2482 = vst [vmem:[%s3 + $0xc4] sm:$0xf] %v2182
  %2483 = vst [vmem:[%s3 + $0xc8] sm:$0xf] %v2183
  %2484 = vst [vmem:[%s3 + $0xcc] sm:$0xf] %v2184
  %2485 = vst [vmem:[%s3 + $0xd0] sm:$0xf] %v2185
  %2486 = vst [vmem:[%s3 + $0xd4] sm:$0xf] %v2186
  %2487 = vst [vmem:[%s3 + $0xd8] sm:$0xf] %v2187
  %2488 = vst [vmem:[%s3 + $0xdc] sm:$0xf] %v2188
  %2489 = vst [vmem:[%s3 + $0xe0] sm:$0xf] %v2189
  %2490 = vst [vmem:[%s3 + $0xe4] sm:$0xf] %v2190
  %2491 = vst [vmem:[%s3 + $0xe8] sm:$0xf] %v2191
  %2492 = vst [vmem:[%s3 + $0xec] sm:$0xf] %v2192
  %2493 = vst [vmem:[%s3 + $0xf0] sm:$0xf] %v2193
  %2494 = vst [vmem:[%s3 + $0xf4] sm:$0xf] %v2194
  %2495 = vst [vmem:[%s3 + $0xf8] sm:$0xf] %v2195
  %2496 = vst [vmem:[%s3 + $0xfc] sm:$0xf] %v2196
  %2497 = vst [vmem:[%s3 + $0x100] sm:$0xf] %v2197
  %2498 = vst [vmem:[%s3 + $0x104] sm:$0xf] %v2198
  %2499 = vst [vmem:[%s3 + $0x108] sm:$0xf] %v2199
  %2500 = vst [vmem:[%s3 + $0x10c] sm:$0xf] %v2200
  %2501 = vst [vmem:[%s3 + $0x110] sm:$0xf] %v2201
  %2502 = vst [vmem:[%s3 + $0x114] sm:$0xf] %v2202
  %2503 = vst [vmem:[%s3 + $0x118] sm:$0xf] %v2203
  %2504 = vst [vmem:[%s3 + $0x11c] sm:$0xf] %v2204
  %2505 = vst [vmem:[%s3 + $0x120] sm:$0xf] %v2205
  %2506 = vst [vmem:[%s3 + $0x124] sm:$0xf] %v2206
  %2507 = vst [vmem:[%s3 + $0x128] sm:$0xf] %v2207
  %2508 = vst [vmem:[%s3 + $0x12c] sm:$0xf] %v2208
  %2509 = vst [vmem:[%s3 + $0x130] sm:$0xf] %v2209
  %2510 = vst [vmem:[%s3 + $0x134] sm:$0xf] %v2210
  %2511 = vst [vmem:[%s3 + $0x138] sm:$0xf] %v2211
  %2512 = vst [vmem:[%s3 + $0x13c] sm:$0xf] %v2212
  %2513 = vst [vmem:[%s3 + $0x140] sm:$0xf] %v2213
  %2514 = vst [vmem:[%s3 + $0x144] sm:$0xf] %v2214
  %2515 = vst [vmem:[%s3 + $0x148] sm:$0xf] %v2215
  %2516 = vst [vmem:[%s3 + $0x14c] sm:$0xf] %v2216
  %2517 = vst [vmem:[%s3 + $0x150] sm:$0xf] %v2217
  %2518 = vst [vmem:[%s3 + $0x154] sm:$0xf] %v2218
  %2519 = vst [vmem:[%s3 + $0x158] sm:$0xf] %v2219
  %2520 = vst [vmem:[%s3 + $0x15c] sm:$0xf] %v2220
  %2521 = vst [vmem:[%s3 + $0x160] sm:$0xf] %v2221
  %2522 = vst [vmem:[%s3 + $0x164] sm:$0xf] %v2222
  %2523 = vst [vmem:[%s3 + $0x168] sm:$0xf] %v2223
  %2524 = vst [vmem:[%s3 + $0x16c] sm:$0xf] %v2224
  %2525 = vst [vmem:[%s3 + $0x170] sm:$0xf] %v2225
  %2526 = vst [vmem:[%s3 + $0x174] sm:$0xf] %v2226
  %2527 = vst [vmem:[%s3 + $0x178] sm:$0xf] %v2227
  %2528 = vst [vmem:[%s3 + $0x17c] sm:$0xf] %v2228
  %2529 = vst [vmem:[%s3 + $0x180] sm:$0xf] %v2229
  %2530 = vst [vmem:[%s3 + $0x184] sm:$0xf] %v2230
  %2531 = vst [vmem:[%s3 + $0x188] sm:$0xf] %v2231
  %2532 = vst [vmem:[%s3 + $0x18c] sm:$0xf] %v2232
  %2533 = vst [vmem:[%s3 + $0x190] sm:$0xf] %v2233
  %2534 = vst [vmem:[%s3 + $0x194] sm:$0xf] %v2234
  %2535 = vst [vmem:[%s3 + $0x198] sm:$0xf] %v2235
  %2536 = vst [vmem:[%s3 + $0x19c] sm:$0xf] %v2236
  %2537 = vst [vmem:[%s3 + $0x1a0] sm:$0xf] %v2237
  %2538 = vst [vmem:[%s3 + $0x1a4] sm:$0xf] %v2238
  %2539 = vst [vmem:[%s3 + $0x1a8] sm:$0xf] %v2239
  %2540 = vst [vmem:[%s3 + $0x1ac] sm:$0xf] %v2240
  %2541 = vst [vmem:[%s3 + $0x1b0] sm:$0xf] %v2241
  %2542 = vst [vmem:[%s3 + $0x1b4] sm:$0xf] %v2242
  %2543 = vst [vmem:[%s3 + $0x1b8] sm:$0xf] %v2243
  %2544 = vst [vmem:[%s3 + $0x1bc] sm:$0xf] %v2244
  %2545 = vst [vmem:[%s3 + $0x1c0] sm:$0xf] %v2245
  %2546 = vst [vmem:[%s3 + $0x1c4] sm:$0xf] %v2246
  %2547 = vst [vmem:[%s3 + $0x1c8] sm:$0xf] %v2247
  %2548 = vst [vmem:[%s3 + $0x1cc] sm:$0xf] %v2248
  %2549 = vst [vmem:[%s3 + $0x1d0] sm:$0xf] %v2249
  %2550 = vst [vmem:[%s3 + $0x1d4] sm:$0xf] %v2250
  %2551 = vst [vmem:[%s3 + $0x1d8] sm:$0xf] %v2251
  %2552 = vst [vmem:[%s3 + $0x1dc] sm:$0xf] %v2252
  %2553 = vst [vmem:[%s3 + $0x1e0] sm:$0xf] %v2253
  %2554 = vst [vmem:[%s3 + $0x1e4] sm:$0xf] %v2254
  %2555 = vst [vmem:[%s3 + $0x1e8] sm:$0xf] %v2255
  %2556 = vst [vmem:[%s3 + $0x1ec] sm:$0xf] %v2256
  %2557 = vst [vmem:[%s3 + $0x1f0] sm:$0xf] %v2257
  %2558 = vst [vmem:[%s3 + $0x1f4] sm:$0xf] %v2258
  %2559 = vst [vmem:[%s3 + $0x1f8] sm:$0xf] %v2259
  %2560 = vst [vmem:[%s3 + $0x1fc] sm:$0xf] %v2260
  %2561 = vst [vmem:[%s3 + $0x200] sm:$0xf] %v2261
  %2562 = vst [vmem:[%s3 + $0x204] sm:$0xf] %v2262
  %2563 = vst [vmem:[%s3 + $0x208] sm:$0xf] %v2263
  %2564 = vst [vmem:[%s3 + $0x20c] sm:$0xf] %v2264
  %2565 = vst [vmem:[%s3 + $0x210] sm:$0xf] %v2265
  %2566 = vst [vmem:[%s3 + $0x214] sm:$0xf] %v2266
  %2567 = vst [vmem:[%s3 + $0x218] sm:$0xf] %v2267
  %2568 = vst [vmem:[%s3 + $0x21c] sm:$0xf] %v2268
  %2569 = vst [vmem:[%s3 + $0x220] sm:$0xf] %v2269
  %2570 = vst [vmem:[%s3 + $0x224] sm:$0xf] %v2270
  %2571 = vst [vmem:[%s3 + $0x228] sm:$0xf] %v2271
  %2572 = vst [vmem:[%s3 + $0x22c] sm:$0xf] %v2272
  %2573 = vst [vmem:[%s3 + $0x230] sm:$0xf] %v2273
  %2574 = vst [vmem:[%s3 + $0x234] sm:$0xf] %v2274
  %2575 = vst [vmem:[%s3 + $0x238] sm:$0xf] %v2275
  %2576 = vst [vmem:[%s3 + $0x23c] sm:$0xf] %v2276
  %2577 = vst [vmem:[%s3 + $0x240] sm:$0xf] %v2277
  %2578 = vst [vmem:[%s3 + $0x244] sm:$0xf] %v2278
  %2579 = vst [vmem:[%s3 + $0x248] sm:$0xf] %v2279
  %2580 = vst [vmem:[%s3 + $0x24c] sm:$0xf] %v2280
  %2581 = vst [vmem:[%s3 + $0x250] sm:$0xf] %v2281
  %2582 = vst [vmem:[%s3 + $0x254] sm:$0xf] %v2282
  // Predicated region
  $region14: #{cnn_forward.4} parent=0 // pred_check
    _
  $region15: #{cnn_forward.4} parent=0 // pred_check_branch
    %2584 = sbr.rel (0) target = $region17
  $region16: #{cnn_forward.4} parent=0 // pred_region
    _
  $region17: #{cnn_forward.4} parent=0 // pred_fallthru
    _
  // Predicated region
  $region18: #{cnn_forward.4} parent=0 // pred_check
    _
  $region19: #{cnn_forward.4} parent=0 // pred_check_branch
    %2586 = sbr.rel (0) target = $region21
  $region20: #{cnn_forward.4} parent=0 // pred_region
    _
  $region21: #{cnn_forward.4} parent=0 // pred_fallthru
    _

// kernel: cnn_forward.5
$region0: #{cnn_forward.5}
  #allocation0 [shape = 'u32[]', space=smem, size = 0x4, offset = 0x4, fixed_abs, tag = 'smem constant byte address 0x4 - core index']
  #allocation1 [shape = 'u32[144,128]{1,0:T(1,128)}', space=vmem, size = 0x12000, scoped, tag = 'internal scratch']
  %s0 = inlined_call_operand.vmem [shape: bf16[256,512], index: 0, kind: input, shape index: {}]
  %s1 = inlined_call_operand.vmem [shape: bf16[512,128], index: 1, kind: input, shape index: {}]
  %s2 = inlined_call_operand.vmem [shape: f32[1,128], index: 2, kind: input, shape index: {}]
  %s3 = inlined_call_operand.vmem [shape: bf16[256,128], index: 3, kind: output, shape index: {}]
  %s4 = sld [smem:[#allocation0]]
  $region22: #{cnn_forward.5} parent=0
    _
  %s6 = ssub.s32 1, %s4
  %s7 = scalar_select 0, %s6, %s4
  // Predicated region
  $region2: #{cnn_forward.5} parent=0 // pred_check
    _
  $region3: #{cnn_forward.5} parent=0 // pred_check_branch
    %9 = sbr.rel (0) target = $region5
  $region4: #{cnn_forward.5} parent=0 // pred_region
    _
  $region5: #{cnn_forward.5} parent=0 // pred_fallthru
    _
  // Predicated region
  $region6: #{cnn_forward.5} parent=0 // pred_check
    _
  $region7: #{cnn_forward.5} parent=0 // pred_check_branch
    %11 = sbr.rel (0) target = $region9
  $region8: #{cnn_forward.5} parent=0 // pred_region
    _
  $region9: #{cnn_forward.5} parent=0 // pred_fallthru
    _
  // Predicated region
  $region10: #{cnn_forward.5} parent=0 // pred_check
    _
  $region11: #{cnn_forward.5} parent=0 // pred_check_branch
    %13 = sbr.rel (0) target = $region13
  $region12: #{cnn_forward.5} parent=0 // pred_region
    _
  $region13: #{cnn_forward.5} parent=0 // pred_fallthru
    _
  %v15 = vld [vmem:[%s0] sm:$0xff]
  %v16 = vld [vmem:[%s0 + $0x8] sm:$0xff]
  %v17 = vld [vmem:[%s0 + $0x10] sm:$0xff]
  %v18 = vld [vmem:[%s0 + $0x18] sm:$0xff]
  %v19 = vld [vmem:[%s0 + $0x20] sm:$0xff]
  %v20 = vld [vmem:[%s0 + $0x28] sm:$0xff]
  %v21 = vld [vmem:[%s0 + $0x30] sm:$0xff]
  %v22 = vld [vmem:[%s0 + $0x38] sm:$0xff]
  %v23 = vld [vmem:[%s0 + $0x40] sm:$0xff]
  %v24 = vld [vmem:[%s0 + $0x48] sm:$0xff]
  %v25 = vld [vmem:[%s0 + $0x50] sm:$0xff]
  %v26 = vld [vmem:[%s0 + $0x58] sm:$0xff]
  %v27 = vld [vmem:[%s0 + $0x60] sm:$0xff]
  %v28 = vld [vmem:[%s0 + $0x68] sm:$0xff]
  %v29 = vld [vmem:[%s0 + $0x70] sm:$0xff]
  %v30 = vld [vmem:[%s0 + $0x78] sm:$0xff]
  %v31 = vld [vmem:[%s0 + $0x80] sm:$0xff]
  %v32 = vld [vmem:[%s0 + $0x88] sm:$0xff]
  %v33 = vld [vmem:[%s0 + $0x90] sm:$0xff]
  %v34 = vld [vmem:[%s0 + $0x98] sm:$0xff]
  %v35 = vld [vmem:[%s0 + $0xa0] sm:$0xff]
  %v36 = vld [vmem:[%s0 + $0xa8] sm:$0xff]
  %v37 = vld [vmem:[%s0 + $0xb0] sm:$0xff]
  %v38 = vld [vmem:[%s0 + $0xb8] sm:$0xff]
  %v39 = vld [vmem:[%s0 + $0xc0] sm:$0xff]
  %v40 = vld [vmem:[%s0 + $0xc8] sm:$0xff]
  %v41 = vld [vmem:[%s0 + $0xd0] sm:$0xff]
  %v42 = vld [vmem:[%s0 + $0xd8] sm:$0xff]
  %v43 = vld [vmem:[%s0 + $0xe0] sm:$0xff]
  %v44 = vld [vmem:[%s0 + $0xe8] sm:$0xff]
  %v45 = vld [vmem:[%s0 + $0xf0] sm:$0xff]
  %v46 = vld [vmem:[%s0 + $0xf8] sm:$0xff]
  %v47 = vld [vmem:[%s0 + $0x100] sm:$0xff]
  %v48 = vld [vmem:[%s0 + $0x108] sm:$0xff]
  %v49 = vld [vmem:[%s0 + $0x110] sm:$0xff]
  %v50 = vld [vmem:[%s0 + $0x118] sm:$0xff]
  %v51 = vld [vmem:[%s0 + $0x120] sm:$0xff]
  %v52 = vld [vmem:[%s0 + $0x128] sm:$0xff]
  %v53 = vld [vmem:[%s0 + $0x130] sm:$0xff]
  %v54 = vld [vmem:[%s0 + $0x138] sm:$0xff]
  %v55 = vld [vmem:[%s0 + $0x140] sm:$0xff]
  %v56 = vld [vmem:[%s0 + $0x148] sm:$0xff]
  %v57 = vld [vmem:[%s0 + $0x150] sm:$0xff]
  %v58 = vld [vmem:[%s0 + $0x158] sm:$0xff]
  %v59 = vld [vmem:[%s0 + $0x160] sm:$0xff]
  %v60 = vld [vmem:[%s0 + $0x168] sm:$0xff]
  %v61 = vld [vmem:[%s0 + $0x170] sm:$0xff]
  %v62 = vld [vmem:[%s0 + $0x178] sm:$0xff]
  %v63 = vld [vmem:[%s0 + $0x180] sm:$0xff]
  %v64 = vld [vmem:[%s0 + $0x188] sm:$0xff]
  %v65 = vld [vmem:[%s0 + $0x190] sm:$0xff]
  %v66 = vld [vmem:[%s0 + $0x198] sm:$0xff]
  %v67 = vld [vmem:[%s0 + $0x1a0] sm:$0xff]
  %v68 = vld [vmem:[%s0 + $0x1a8] sm:$0xff]
  %v69 = vld [vmem:[%s0 + $0x1b0] sm:$0xff]
  %v70 = vld [vmem:[%s0 + $0x1b8] sm:$0xff]
  %v71 = vld [vmem:[%s0 + $0x1c0] sm:$0xff]
  %v72 = vld [vmem:[%s0 + $0x1c8] sm:$0xff]
  %v73 = vld [vmem:[%s0 + $0x1d0] sm:$0xff]
  %v74 = vld [vmem:[%s0 + $0x1d8] sm:$0xff]
  %v75 = vld [vmem:[%s0 + $0x1e0] sm:$0xff]
  %v76 = vld [vmem:[%s0 + $0x1e8] sm:$0xff]
  %v77 = vld [vmem:[%s0 + $0x1f0] sm:$0xff]
  %v78 = vld [vmem:[%s0 + $0x1f8] sm:$0xff]
  %v79 = vld [vmem:[%s1] sm:$0xf]
  %v80 = vld [vmem:[%s1 + $0x4] sm:$0xf]
  %v81 = vld [vmem:[%s1 + $0x8] sm:$0xf]
  %v82 = vld [vmem:[%s1 + $0xc] sm:$0xf]
  %v83 = vld [vmem:[%s1 + $0x10] sm:$0xf]
  %v84 = vld [vmem:[%s1 + $0x14] sm:$0xf]
  %v85 = vld [vmem:[%s1 + $0x18] sm:$0xf]
  %v86 = vld [vmem:[%s1 + $0x1c] sm:$0xf]
  %v87 = vld [vmem:[%s1 + $0x20] sm:$0xf]
  %v88 = vld [vmem:[%s1 + $0x24] sm:$0xf]
  %v89 = vld [vmem:[%s1 + $0x28] sm:$0xf]
  %v90 = vld [vmem:[%s1 + $0x2c] sm:$0xf]
  %v91 = vld [vmem:[%s1 + $0x30] sm:$0xf]
  %v92 = vld [vmem:[%s1 + $0x34] sm:$0xf]
  %v93 = vld [vmem:[%s1 + $0x38] sm:$0xf]
  %v94 = vld [vmem:[%s1 + $0x3c] sm:$0xf]
  %v95 = vld [vmem:[%s1 + $0x40] sm:$0xf]
  %v96 = vld [vmem:[%s1 + $0x44] sm:$0xf]
  %v97 = vld [vmem:[%s1 + $0x48] sm:$0xf]
  %v98 = vld [vmem:[%s1 + $0x4c] sm:$0xf]
  %v99 = vld [vmem:[%s1 + $0x50] sm:$0xf]
  %v100 = vld [vmem:[%s1 + $0x54] sm:$0xf]
  %v101 = vld [vmem:[%s1 + $0x58] sm:$0xf]
  %v102 = vld [vmem:[%s1 + $0x5c] sm:$0xf]
  %v103 = vld [vmem:[%s1 + $0x60] sm:$0xf]
  %v104 = vld [vmem:[%s1 + $0x64] sm:$0xf]
  %v105 = vld [vmem:[%s1 + $0x68] sm:$0xf]
  %v106 = vld [vmem:[%s1 + $0x6c] sm:$0xf]
  %v107 = vld [vmem:[%s1 + $0x70] sm:$0xf]
  %v108 = vld [vmem:[%s1 + $0x74] sm:$0xf]
  %v109 = vld [vmem:[%s1 + $0x78] sm:$0xf]
  %v110 = vld [vmem:[%s1 + $0x7c] sm:$0xf]
  %v111 = vld [vmem:[%s1 + $0x80] sm:$0xf]
  %v112 = vld [vmem:[%s1 + $0x84] sm:$0xf]
  %v113 = vld [vmem:[%s1 + $0x88] sm:$0xf]
  %v114 = vld [vmem:[%s1 + $0x8c] sm:$0xf]
  %v115 = vld [vmem:[%s1 + $0x90] sm:$0xf]
  %v116 = vld [vmem:[%s1 + $0x94] sm:$0xf]
  %v117 = vld [vmem:[%s1 + $0x98] sm:$0xf]
  %v118 = vld [vmem:[%s1 + $0x9c] sm:$0xf]
  %v119 = vld [vmem:[%s1 + $0xa0] sm:$0xf]
  %v120 = vld [vmem:[%s1 + $0xa4] sm:$0xf]
  %v121 = vld [vmem:[%s1 + $0xa8] sm:$0xf]
  %v122 = vld [vmem:[%s1 + $0xac] sm:$0xf]
  %v123 = vld [vmem:[%s1 + $0xb0] sm:$0xf]
  %v124 = vld [vmem:[%s1 + $0xb4] sm:$0xf]
  %v125 = vld [vmem:[%s1 + $0xb8] sm:$0xf]
  %v126 = vld [vmem:[%s1 + $0xbc] sm:$0xf]
  %v127 = vld [vmem:[%s1 + $0xc0] sm:$0xf]
  %v128 = vld [vmem:[%s1 + $0xc4] sm:$0xf]
  %v129 = vld [vmem:[%s1 + $0xc8] sm:$0xf]
  %v130 = vld [vmem:[%s1 + $0xcc] sm:$0xf]
  %v131 = vld [vmem:[%s1 + $0xd0] sm:$0xf]
  %v132 = vld [vmem:[%s1 + $0xd4] sm:$0xf]
  %v133 = vld [vmem:[%s1 + $0xd8] sm:$0xf]
  %v134 = vld [vmem:[%s1 + $0xdc] sm:$0xf]
  %v135 = vld [vmem:[%s1 + $0xe0] sm:$0xf]
  %v136 = vld [vmem:[%s1 + $0xe4] sm:$0xf]
  %v137 = vld [vmem:[%s1 + $0xe8] sm:$0xf]
  %v138 = vld [vmem:[%s1 + $0xec] sm:$0xf]
  %v139 = vld [vmem:[%s1 + $0xf0] sm:$0xf]
  %v140 = vld [vmem:[%s1 + $0xf4] sm:$0xf]
  %v141 = vld [vmem:[%s1 + $0xf8] sm:$0xf]
  %v142 = vld [vmem:[%s1 + $0xfc] sm:$0xf]
  %v143 = vld [vmem:[%s2] sm:$0x1]
  %v145 = vlaneseq
  %v146 = vshrl.u32 %v145, 7
  %v147 = vsub.s32 0, %v146
  %v148 = vrot.slane %v143, %v147
  %v214 = vunpack.c.l.b16 %v15
  %v215 = vunpack.c.h.b16 %v15
  %v216 = vunpack.c.l.b16 %v16
  %v217 = vunpack.c.h.b16 %v16
  %v218 = vunpack.c.l.b16 %v17
  %v219 = vunpack.c.h.b16 %v17
  %v220 = vunpack.c.l.b16 %v18
  %v221 = vunpack.c.h.b16 %v18
  %v222 = vunpack.c.l.b16 %v19
  %v223 = vunpack.c.h.b16 %v19
  %v224 = vunpack.c.l.b16 %v20
  %v225 = vunpack.c.h.b16 %v20
  %v226 = vunpack.c.l.b16 %v21
  %v227 = vunpack.c.h.b16 %v21
  %v228 = vunpack.c.l.b16 %v22
  %v229 = vunpack.c.h.b16 %v22
  %v230 = vunpack.c.l.b16 %v23
  %v231 = vunpack.c.h.b16 %v23
  %v232 = vunpack.c.l.b16 %v24
  %v233 = vunpack.c.h.b16 %v24
  %v234 = vunpack.c.l.b16 %v25
  %v235 = vunpack.c.h.b16 %v25
  %v236 = vunpack.c.l.b16 %v26
  %v237 = vunpack.c.h.b16 %v26
  %v238 = vunpack.c.l.b16 %v27
  %v239 = vunpack.c.h.b16 %v27
  %v240 = vunpack.c.l.b16 %v28
  %v241 = vunpack.c.h.b16 %v28
  %v242 = vunpack.c.l.b16 %v29
  %v243 = vunpack.c.h.b16 %v29
  %v244 = vunpack.c.l.b16 %v30
  %v245 = vunpack.c.h.b16 %v30
  %v246 = vunpack.c.l.b16 %v31
  %v247 = vunpack.c.h.b16 %v31
  %v248 = vunpack.c.l.b16 %v32
  %v249 = vunpack.c.h.b16 %v32
  %v250 = vunpack.c.l.b16 %v33
  %v251 = vunpack.c.h.b16 %v33
  %v252 = vunpack.c.l.b16 %v34
  %v253 = vunpack.c.h.b16 %v34
  %v254 = vunpack.c.l.b16 %v35
  %v255 = vunpack.c.h.b16 %v35
  %v256 = vunpack.c.l.b16 %v36
  %v257 = vunpack.c.h.b16 %v36
  %v258 = vunpack.c.l.b16 %v37
  %v259 = vunpack.c.h.b16 %v37
  %v260 = vunpack.c.l.b16 %v38
  %v261 = vunpack.c.h.b16 %v38
  %v262 = vunpack.c.l.b16 %v39
  %v263 = vunpack.c.h.b16 %v39
  %v264 = vunpack.c.l.b16 %v40
  %v265 = vunpack.c.h.b16 %v40
  %v266 = vunpack.c.l.b16 %v41
  %v267 = vunpack.c.h.b16 %v41
  %v268 = vunpack.c.l.b16 %v42
  %v269 = vunpack.c.h.b16 %v42
  %v270 = vunpack.c.l.b16 %v43
  %v271 = vunpack.c.h.b16 %v43
  %v272 = vunpack.c.l.b16 %v44
  %v273 = vunpack.c.h.b16 %v44
  %v274 = vunpack.c.l.b16 %v45
  %v275 = vunpack.c.h.b16 %v45
  %v276 = vunpack.c.l.b16 %v46
  %v277 = vunpack.c.h.b16 %v46
  %v278 = vunpack.c.l.b16 %v47
  %v279 = vunpack.c.h.b16 %v47
  %v280 = vunpack.c.l.b16 %v48
  %v281 = vunpack.c.h.b16 %v48
  %v282 = vunpack.c.l.b16 %v49
  %v283 = vunpack.c.h.b16 %v49
  %v284 = vunpack.c.l.b16 %v50
  %v285 = vunpack.c.h.b16 %v50
  %v286 = vunpack.c.l.b16 %v51
  %v287 = vunpack.c.h.b16 %v51
  %v288 = vunpack.c.l.b16 %v52
  %v289 = vunpack.c.h.b16 %v52
  %v290 = vunpack.c.l.b16 %v53
  %v291 = vunpack.c.h.b16 %v53
  %v292 = vunpack.c.l.b16 %v54
  %v293 = vunpack.c.h.b16 %v54
  %v294 = vunpack.c.l.b16 %v55
  %v295 = vunpack.c.h.b16 %v55
  %v296 = vunpack.c.l.b16 %v56
  %v297 = vunpack.c.h.b16 %v56
  %v298 = vunpack.c.l.b16 %v57
  %v299 = vunpack.c.h.b16 %v57
  %v300 = vunpack.c.l.b16 %v58
  %v301 = vunpack.c.h.b16 %v58
  %v302 = vunpack.c.l.b16 %v59
  %v303 = vunpack.c.h.b16 %v59
  %v304 = vunpack.c.l.b16 %v60
  %v305 = vunpack.c.h.b16 %v60
  %v306 = vunpack.c.l.b16 %v61
  %v307 = vunpack.c.h.b16 %v61
  %v308 = vunpack.c.l.b16 %v62
  %v309 = vunpack.c.h.b16 %v62
  %v310 = vunpack.c.l.b16 %v63
  %v311 = vunpack.c.h.b16 %v63
  %v312 = vunpack.c.l.b16 %v64
  %v313 = vunpack.c.h.b16 %v64
  %v314 = vunpack.c.l.b16 %v65
  %v315 = vunpack.c.h.b16 %v65
  %v316 = vunpack.c.l.b16 %v66
  %v317 = vunpack.c.h.b16 %v66
  %v318 = vunpack.c.l.b16 %v67
  %v319 = vunpack.c.h.b16 %v67
  %v320 = vunpack.c.l.b16 %v68
  %v321 = vunpack.c.h.b16 %v68
  %v322 = vunpack.c.l.b16 %v69
  %v323 = vunpack.c.h.b16 %v69
  %v324 = vunpack.c.l.b16 %v70
  %v325 = vunpack.c.h.b16 %v70
  %v326 = vunpack.c.l.b16 %v71
  %v327 = vunpack.c.h.b16 %v71
  %v328 = vunpack.c.l.b16 %v72
  %v329 = vunpack.c.h.b16 %v72
  %v330 = vunpack.c.l.b16 %v73
  %v331 = vunpack.c.h.b16 %v73
  %v332 = vunpack.c.l.b16 %v74
  %v333 = vunpack.c.h.b16 %v74
  %v334 = vunpack.c.l.b16 %v75
  %v335 = vunpack.c.h.b16 %v75
  %v336 = vunpack.c.l.b16 %v76
  %v337 = vunpack.c.h.b16 %v76
  %v338 = vunpack.c.l.b16 %v77
  %v339 = vunpack.c.h.b16 %v77
  %v340 = vunpack.c.l.b16 %v78
  %v341 = vunpack.c.h.b16 %v78
  %v342 = vpack.c.b16 %v218, %v214
  %v343 = vpack.c.b16 %v219, %v215
  %v344 = vpack.c.b16 %v220, %v216
  %v345 = vpack.c.b16 %v221, %v217
  %v346 = vpack.c.b16 %v226, %v222
  %v347 = vpack.c.b16 %v227, %v223
  %v348 = vpack.c.b16 %v228, %v224
  %v349 = vpack.c.b16 %v229, %v225
  %v350 = vpack.c.b16 %v234, %v230
  %v351 = vpack.c.b16 %v235, %v231
  %v352 = vpack.c.b16 %v236, %v232
  %v353 = vpack.c.b16 %v237, %v233
  %v354 = vpack.c.b16 %v242, %v238
  %v355 = vpack.c.b16 %v243, %v239
  %v356 = vpack.c.b16 %v244, %v240
  %v357 = vpack.c.b16 %v245, %v241
  %v358 = vpack.c.b16 %v250, %v246
  %v359 = vpack.c.b16 %v251, %v247
  %v360 = vpack.c.b16 %v252, %v248
  %v361 = vpack.c.b16 %v253, %v249
  %v362 = vpack.c.b16 %v258, %v254
  %v363 = vpack.c.b16 %v259, %v255
  %v364 = vpack.c.b16 %v260, %v256
  %v365 = vpack.c.b16 %v261, %v257
  %v366 = vpack.c.b16 %v266, %v262
  %v367 = vpack.c.b16 %v267, %v263
  %v368 = vpack.c.b16 %v268, %v264
  %v369 = vpack.c.b16 %v269, %v265
  %v370 = vpack.c.b16 %v274, %v270
  %v371 = vpack.c.b16 %v275, %v271
  %v372 = vpack.c.b16 %v276, %v272
  %v373 = vpack.c.b16 %v277, %v273
  %v374 = vpack.c.b16 %v282, %v278
  %v375 = vpack.c.b16 %v283, %v279
  %v376 = vpack.c.b16 %v284, %v280
  %v377 = vpack.c.b16 %v285, %v281
  %v378 = vpack.c.b16 %v290, %v286
  %v379 = vpack.c.b16 %v291, %v287
  %v380 = vpack.c.b16 %v292, %v288
  %v381 = vpack.c.b16 %v293, %v289
  %v382 = vpack.c.b16 %v298, %v294
  %v383 = vpack.c.b16 %v299, %v295
  %v384 = vpack.c.b16 %v300, %v296
  %v385 = vpack.c.b16 %v301, %v297
  %v386 = vpack.c.b16 %v306, %v302
  %v387 = vpack.c.b16 %v307, %v303
  %v388 = vpack.c.b16 %v308, %v304
  %v389 = vpack.c.b16 %v309, %v305
  %v390 = vpack.c.b16 %v314, %v310
  %v391 = vpack.c.b16 %v315, %v311
  %v392 = vpack.c.b16 %v316, %v312
  %v393 = vpack.c.b16 %v317, %v313
  %v394 = vpack.c.b16 %v322, %v318
  %v395 = vpack.c.b16 %v323, %v319
  %v396 = vpack.c.b16 %v324, %v320
  %v397 = vpack.c.b16 %v325, %v321
  %v398 = vpack.c.b16 %v330, %v326
  %v399 = vpack.c.b16 %v331, %v327
  %v400 = vpack.c.b16 %v332, %v328
  %v401 = vpack.c.b16 %v333, %v329
  %v402 = vpack.c.b16 %v338, %v334
  %v403 = vpack.c.b16 %v339, %v335
  %v404 = vpack.c.b16 %v340, %v336
  %v405 = vpack.c.b16 %v341, %v337
  %v534 = vunpack.c.l.b16 %v79
  %v535 = vunpack.c.l.b16 %v80
  %v536 = vunpack.c.l.b16 %v81
  %v537 = vunpack.c.l.b16 %v82
  %v538 = vunpack.c.l.b16 %v83
  %v539 = vunpack.c.l.b16 %v84
  %v540 = vunpack.c.l.b16 %v85
  %v541 = vunpack.c.l.b16 %v86
  %v542 = vunpack.c.l.b16 %v87
  %v543 = vunpack.c.l.b16 %v88
  %v544 = vunpack.c.l.b16 %v89
  %v545 = vunpack.c.l.b16 %v90
  %v546 = vunpack.c.l.b16 %v91
  %v547 = vunpack.c.l.b16 %v92
  %v548 = vunpack.c.l.b16 %v93
  %v549 = vunpack.c.l.b16 %v94
  %v550 = vunpack.c.l.b16 %v95
  %v551 = vunpack.c.l.b16 %v96
  %v552 = vunpack.c.l.b16 %v97
  %v553 = vunpack.c.l.b16 %v98
  %v554 = vunpack.c.l.b16 %v99
  %v555 = vunpack.c.l.b16 %v100
  %v556 = vunpack.c.l.b16 %v101
  %v557 = vunpack.c.l.b16 %v102
  %v558 = vunpack.c.l.b16 %v103
  %v559 = vunpack.c.l.b16 %v104
  %v560 = vunpack.c.l.b16 %v105
  %v561 = vunpack.c.l.b16 %v106
  %v562 = vunpack.c.l.b16 %v107
  %v563 = vunpack.c.l.b16 %v108
  %v564 = vunpack.c.l.b16 %v109
  %v565 = vunpack.c.l.b16 %v110
  %v566 = vunpack.c.l.b16 %v111
  %v567 = vunpack.c.l.b16 %v112
  %v568 = vunpack.c.l.b16 %v113
  %v569 = vunpack.c.l.b16 %v114
  %v570 = vunpack.c.l.b16 %v115
  %v571 = vunpack.c.l.b16 %v116
  %v572 = vunpack.c.l.b16 %v117
  %v573 = vunpack.c.l.b16 %v118
  %v574 = vunpack.c.l.b16 %v119
  %v575 = vunpack.c.l.b16 %v120
  %v576 = vunpack.c.l.b16 %v121
  %v577 = vunpack.c.l.b16 %v122
  %v578 = vunpack.c.l.b16 %v123
  %v579 = vunpack.c.l.b16 %v124
  %v580 = vunpack.c.l.b16 %v125
  %v581 = vunpack.c.l.b16 %v126
  %v582 = vunpack.c.l.b16 %v127
  %v583 = vunpack.c.l.b16 %v128
  %v584 = vunpack.c.l.b16 %v129
  %v585 = vunpack.c.l.b16 %v130
  %v586 = vunpack.c.l.b16 %v131
  %v587 = vunpack.c.l.b16 %v132
  %v588 = vunpack.c.l.b16 %v133
  %v589 = vunpack.c.l.b16 %v134
  %v590 = vunpack.c.l.b16 %v135
  %v591 = vunpack.c.l.b16 %v136
  %v592 = vunpack.c.l.b16 %v137
  %v593 = vunpack.c.l.b16 %v138
  %v594 = vunpack.c.l.b16 %v139
  %v595 = vunpack.c.l.b16 %v140
  %v596 = vunpack.c.l.b16 %v141
  %v597 = vunpack.c.l.b16 %v142
  %v598 = vpack.c.b16 %v535, %v534
  %v599 = vpack.c.b16 %v537, %v536
  %v600 = vpack.c.b16 %v539, %v538
  %v601 = vpack.c.b16 %v541, %v540
  %v602 = vpack.c.b16 %v543, %v542
  %v603 = vpack.c.b16 %v545, %v544
  %v604 = vpack.c.b16 %v547, %v546
  %v605 = vpack.c.b16 %v549, %v548
  %v606 = vpack.c.b16 %v551, %v550
  %v607 = vpack.c.b16 %v553, %v552
  %v608 = vpack.c.b16 %v555, %v554
  %v609 = vpack.c.b16 %v557, %v556
  %v610 = vpack.c.b16 %v559, %v558
  %v611 = vpack.c.b16 %v561, %v560
  %v612 = vpack.c.b16 %v563, %v562
  %v613 = vpack.c.b16 %v565, %v564
  %v614 = vpack.c.b16 %v567, %v566
  %v615 = vpack.c.b16 %v569, %v568
  %v616 = vpack.c.b16 %v571, %v570
  %v617 = vpack.c.b16 %v573, %v572
  %v618 = vpack.c.b16 %v575, %v574
  %v619 = vpack.c.b16 %v577, %v576
  %v620 = vpack.c.b16 %v579, %v578
  %v621 = vpack.c.b16 %v581, %v580
  %v622 = vpack.c.b16 %v583, %v582
  %v623 = vpack.c.b16 %v585, %v584
  %v624 = vpack.c.b16 %v587, %v586
  %v625 = vpack.c.b16 %v589, %v588
  %v626 = vpack.c.b16 %v591, %v590
  %v627 = vpack.c.b16 %v593, %v592
  %v628 = vpack.c.b16 %v595, %v594
  %v629 = vpack.c.b16 %v597, %v596
  %662 = vmatprep.subr.bf16.mxu0 0
  %663 = vmatpush1.bf16.msra.mxu0 %v598
  %664 = vmatprep.subr.bf16.mxu0 0
  %665 = vmatpush1.bf16.msra.mxu0 %v599
  %666 = vmatprep.subr.bf16.mxu0 0
  %667 = vmatpush1.bf16.msra.mxu0 %v600
  %668 = vmatprep.subr.bf16.mxu0 0
  %669 = vmatpush1.bf16.msra.mxu0 %v601
  %670 = vmatprep.subr.bf16.mxu0 0
  %671 = vmatpush1.bf16.msra.mxu0 %v602
  %672 = vmatprep.subr.bf16.mxu0 0
  %673 = vmatpush1.bf16.msra.mxu0 %v603
  %674 = vmatprep.subr.bf16.mxu0 0
  %675 = vmatpush1.bf16.msra.mxu0 %v604
  %676 = vmatprep.subr.bf16.mxu0 0
  %677 = vmatpush1.bf16.msra.mxu0 %v605
  %678 = vmatprep.subr.bf16.mxu0 0
  %679 = vmatpush1.bf16.msra.mxu0 %v606
  %680 = vmatprep.subr.bf16.mxu0 0
  %681 = vmatpush1.bf16.msra.mxu0 %v607
  %682 = vmatprep.subr.bf16.mxu0 0
  %683 = vmatpush1.bf16.msra.mxu0 %v608
  %684 = vmatprep.subr.bf16.mxu0 0
  %685 = vmatpush1.bf16.msra.mxu0 %v609
  %686 = vmatprep.subr.bf16.mxu0 0
  %687 = vmatpush1.bf16.msra.mxu0 %v610
  %688 = vmatprep.subr.bf16.mxu0 0
  %689 = vmatpush1.bf16.msra.mxu0 %v611
  %690 = vmatprep.subr.bf16.mxu0 0
  %691 = vmatpush1.bf16.msra.mxu0 %v612
  %692 = vmatprep.subr.bf16.mxu0 0
  %693 = vmatpush1.bf16.msra.mxu0 %v613
  %694 = vmatprep.mubr.bf16.mxu0 %v343
  %695 = vmatmul.mubr.bf16.gmra.mrb[0].mxu0 %v342
  %v696 = vpop.f32.mrb[0].mxu0
  %v697 = vadd.f32 %v148, %v696
  %v698 = vpop.f32.mrb[0].mxu0
  %v699 = vpop.f32.mrb[0].mxu0
  %v700 = vadd.f32 %v148, %v699
  %v701 = vpop.f32.mrb[0].mxu0
  %702 = vmatprep.mubr.bf16.mxu0 %v347
  %703 = vmatmul.mubr.bf16.gmra.mrb[0].mxu0 %v346
  %v704 = vpop.f32.mrb[0].mxu0
  %v705 = vadd.f32 %v148, %v704
  %v706 = vpop.f32.mrb[0].mxu0
  %v707 = vpop.f32.mrb[0].mxu0
  %v708 = vadd.f32 %v148, %v707
  %v709 = vpop.f32.mrb[0].mxu0
  %710 = vmatprep.mubr.bf16.mxu0 %v351
  %711 = vmatmul.mubr.bf16.gmra.mrb[0].mxu0 %v350
  %v712 = vpop.f32.mrb[0].mxu0
  %v713 = vadd.f32 %v148, %v712
  %v714 = vpop.f32.mrb[0].mxu0
  %v715 = vpop.f32.mrb[0].mxu0
  %v716 = vadd.f32 %v148, %v715
  %v717 = vpop.f32.mrb[0].mxu0
  %718 = vmatprep.mubr.bf16.mxu0 %v355
  %719 = vmatmul.mubr.bf16.gmra.mrb[0].mxu0 %v354
  %v720 = vpop.f32.mrb[0].mxu0
  %v721 = vadd.f32 %v148, %v720
  %v722 = vpop.f32.mrb[0].mxu0
  %v723 = vpop.f32.mrb[0].mxu0
  %v724 = vadd.f32 %v148, %v723
  %v725 = vpop.f32.mrb[0].mxu0
  %726 = vmatprep.mubr.bf16.mxu0 %v359
  %727 = vmatmul.mubr.bf16.gmra.mrb[0].mxu0 %v358
  %v728 = vpop.f32.mrb[0].mxu0
  %v729 = vadd.f32 %v148, %v728
  %v730 = vpop.f32.mrb[0].mxu0
  %v731 = vpop.f32.mrb[0].mxu0
  %v732 = vadd.f32 %v148, %v731
  %v733 = vpop.f32.mrb[0].mxu0
  %734 = vmatprep.mubr.bf16.mxu0 %v363
  %735 = vmatmul.mubr.bf16.gmra.mrb[0].mxu0 %v362
  %v736 = vpop.f32.mrb[0].mxu0
  %v737 = vadd.f32 %v148, %v736
  %v738 = vpop.f32.mrb[0].mxu0
  %v739 = vpop.f32.mrb[0].mxu0
  %v740 = vadd.f32 %v148, %v739
  %v741 = vpop.f32.mrb[0].mxu0
  %742 = vmatprep.mubr.bf16.mxu0 %v367
  %743 = vmatmul.mubr.bf16.gmra.mrb[0].mxu0 %v366
  %v744 = vpop.f32.mrb[0].mxu0
  %v745 = vadd.f32 %v148, %v744
  %v746 = vpop.f32.mrb[0].mxu0
  %v747 = vpop.f32.mrb[0].mxu0
  %v748 = vadd.f32 %v148, %v747
  %v749 = vpop.f32.mrb[0].mxu0
  %750 = vmatprep.mubr.bf16.mxu0 %v371
  %751 = vmatmul.mubr.bf16.gmra.mrb[0].mxu0 %v370
  %v752 = vpop.f32.mrb[0].mxu0
  %v753 = vadd.f32 %v148, %v752
  %v754 = vpop.f32.mrb[0].mxu0
  %v755 = vpop.f32.mrb[0].mxu0
  %v756 = vadd.f32 %v148, %v755
  %v757 = vpop.f32.mrb[0].mxu0
  %758 = vmatprep.mubr.bf16.mxu0 %v375
  %759 = vmatmul.mubr.bf16.gmra.mrb[0].mxu0 %v374
  %v760 = vpop.f32.mrb[0].mxu0
  %v761 = vadd.f32 %v148, %v760
  %v762 = vpop.f32.mrb[0].mxu0
  %v763 = vpop.f32.mrb[0].mxu0
  %v764 = vadd.f32 %v148, %v763
  %v765 = vpop.f32.mrb[0].mxu0
  %766 = vmatprep.mubr.bf16.mxu0 %v379
  %767 = vmatmul.mubr.bf16.gmra.mrb[0].mxu0 %v378
  %v768 = vpop.f32.mrb[0].mxu0
  %v769 = vadd.f32 %v148, %v768
  %v770 = vpop.f32.mrb[0].mxu0
  %v771 = vpop.f32.mrb[0].mxu0
  %v772 = vadd.f32 %v148, %v771
  %v773 = vpop.f32.mrb[0].mxu0
  %774 = vmatprep.mubr.bf16.mxu0 %v383
  %775 = vmatmul.mubr.bf16.gmra.mrb[0].mxu0 %v382
  %v776 = vpop.f32.mrb[0].mxu0
  %v777 = vadd.f32 %v148, %v776
  %v778 = vpop.f32.mrb[0].mxu0
  %v779 = vpop.f32.mrb[0].mxu0
  %v780 = vadd.f32 %v148, %v779
  %v781 = vpop.f32.mrb[0].mxu0
  %782 = vmatprep.mubr.bf16.mxu0 %v387
  %783 = vmatmul.mubr.bf16.gmra.mrb[0].mxu0 %v386
  %v784 = vpop.f32.mrb[0].mxu0
  %v785 = vadd.f32 %v148, %v784
  %v786 = vpop.f32.mrb[0].mxu0
  %v787 = vpop.f32.mrb[0].mxu0
  %v788 = vadd.f32 %v148, %v787
  %v789 = vpop.f32.mrb[0].mxu0
  %790 = vmatprep.mubr.bf16.mxu0 %v391
  %791 = vmatmul.mubr.bf16.gmra.mrb[0].mxu0 %v390
  %v792 = vpop.f32.mrb[0].mxu0
  %v793 = vadd.f32 %v148, %v792
  %v794 = vpop.f32.mrb[0].mxu0
  %v795 = vpop.f32.mrb[0].mxu0
  %v796 = vadd.f32 %v148, %v795
  %v797 = vpop.f32.mrb[0].mxu0
  %798 = vmatprep.mubr.bf16.mxu0 %v395
  %799 = vmatmul.mubr.bf16.gmra.mrb[0].mxu0 %v394
  %v800 = vpop.f32.mrb[0].mxu0
  %v801 = vadd.f32 %v148, %v800
  %v802 = vpop.f32.mrb[0].mxu0
  %v803 = vpop.f32.mrb[0].mxu0
  %v804 = vadd.f32 %v148, %v803
  %v805 = vpop.f32.mrb[0].mxu0
  %806 = vmatprep.mubr.bf16.mxu0 %v399
  %807 = vmatmul.mubr.bf16.gmra.mrb[0].mxu0 %v398
  %v808 = vpop.f32.mrb[0].mxu0
  %v809 = vadd.f32 %v148, %v808
  %v810 = vpop.f32.mrb[0].mxu0
  %v811 = vpop.f32.mrb[0].mxu0
  %v812 = vadd.f32 %v148, %v811
  %v813 = vpop.f32.mrb[0].mxu0
  %814 = vmatprep.mubr.bf16.mxu0 %v403
  %815 = vmatmul.mubr.bf16.gmra.mrb[0].mxu0 %v402
  %v816 = vpop.f32.mrb[0].mxu0
  %v817 = vadd.f32 %v148, %v816
  %v818 = vpop.f32.mrb[0].mxu0
  %v819 = vpop.f32.mrb[0].mxu0
  %v820 = vadd.f32 %v148, %v819
  %v821 = vpop.f32.mrb[0].mxu0
  %822 = vdwg.mxu0
  %823 = vmatprep.subr.bf16.mxu0 0
  %824 = vmatpush1.bf16.msra.mxu0 %v614
  %825 = vmatprep.subr.bf16.mxu0 0
  %826 = vmatpush1.bf16.msra.mxu0 %v615
  %827 = vmatprep.subr.bf16.mxu0 0
  %828 = vmatpush1.bf16.msra.mxu0 %v616
  %829 = vmatprep.subr.bf16.mxu0 0
  %830 = vmatpush1.bf16.msra.mxu0 %v617
  %831 = vmatprep.subr.bf16.mxu0 0
  %832 = vmatpush1.bf16.msra.mxu0 %v618
  %833 = vmatprep.subr.bf16.mxu0 0
  %834 = vmatpush1.bf16.msra.mxu0 %v619
  %835 = vmatprep.subr.bf16.mxu0 0
  %836 = vmatpush1.bf16.msra.mxu0 %v620
  %837 = vmatprep.subr.bf16.mxu0 0
  %838 = vmatpush1.bf16.msra.mxu0 %v621
  %839 = vmatprep.subr.bf16.mxu0 0
  %840 = vmatpush1.bf16.msra.mxu0 %v622
  %841 = vmatprep.subr.bf16.mxu0 0
  %842 = vmatpush1.bf16.msra.mxu0 %v623
  %843 = vmatprep.subr.bf16.mxu0 0
  %844 = vmatpush1.bf16.msra.mxu0 %v624
  %845 = vmatprep.subr.bf16.mxu0 0
  %846 = vmatpush1.bf16.msra.mxu0 %v625
  %847 = vmatprep.subr.bf16.mxu0 0
  %848 = vmatpush1.bf16.msra.mxu0 %v626
  %849 = vmatprep.subr.bf16.mxu0 0
  %850 = vmatpush1.bf16.msra.mxu0 %v627
  %851 = vmatprep.subr.bf16.mxu0 0
  %852 = vmatpush1.bf16.msra.mxu0 %v628
  %853 = vmatprep.subr.bf16.mxu0 0
  %854 = vmatpush1.bf16.msra.mxu0 %v629
  %855 = vmatprep.mubr.bf16.mxu0 %v345
  %856 = vmatmul.mubr.bf16.gmra.mrb[0].mxu0 %v344
  %v857 = vpop.f32.mrb[0].mxu0
  %v858 = vadd.f32 %v697, %v857
  %v859 = vpop.f32.mrb[0].mxu0
  %v860 = vpop.f32.mrb[0].mxu0
  %v861 = vadd.f32 %v700, %v860
  %v862 = vpop.f32.mrb[0].mxu0
  %863 = vmatprep.mubr.bf16.mxu0 %v349
  %864 = vmatmul.mubr.bf16.gmra.mrb[0].mxu0 %v348
  %v865 = vpop.f32.mrb[0].mxu0
  %v866 = vadd.f32 %v705, %v865
  %v867 = vpop.f32.mrb[0].mxu0
  %v868 = vpop.f32.mrb[0].mxu0
  %v869 = vadd.f32 %v708, %v868
  %v870 = vpop.f32.mrb[0].mxu0
  %871 = vmatprep.mubr.bf16.mxu0 %v353
  %872 = vmatmul.mubr.bf16.gmra.mrb[0].mxu0 %v352
  %v873 = vpop.f32.mrb[0].mxu0
  %v874 = vadd.f32 %v713, %v873
  %v875 = vpop.f32.mrb[0].mxu0
  %v876 = vpop.f32.mrb[0].mxu0
  %v877 = vadd.f32 %v716, %v876
  %v878 = vpop.f32.mrb[0].mxu0
  %879 = vmatprep.mubr.bf16.mxu0 %v357
  %880 = vmatmul.mubr.bf16.gmra.mrb[0].mxu0 %v356
  %v881 = vpop.f32.mrb[0].mxu0
  %v882 = vadd.f32 %v721, %v881
  %v883 = vpop.f32.mrb[0].mxu0
  %v884 = vpop.f32.mrb[0].mxu0
  %v885 = vadd.f32 %v724, %v884
  %v886 = vpop.f32.mrb[0].mxu0
  %887 = vmatprep.mubr.bf16.mxu0 %v361
  %888 = vmatmul.mubr.bf16.gmra.mrb[0].mxu0 %v360
  %v889 = vpop.f32.mrb[0].mxu0
  %v890 = vadd.f32 %v729, %v889
  %v891 = vpop.f32.mrb[0].mxu0
  %v892 = vpop.f32.mrb[0].mxu0
  %v893 = vadd.f32 %v732, %v892
  %v894 = vpop.f32.mrb[0].mxu0
  %895 = vmatprep.mubr.bf16.mxu0 %v365
  %896 = vmatmul.mubr.bf16.gmra.mrb[0].mxu0 %v364
  %v897 = vpop.f32.mrb[0].mxu0
  %v898 = vadd.f32 %v737, %v897
  %v899 = vpop.f32.mrb[0].mxu0
  %v900 = vpop.f32.mrb[0].mxu0
  %v901 = vadd.f32 %v740, %v900
  %v902 = vpop.f32.mrb[0].mxu0
  %903 = vmatprep.mubr.bf16.mxu0 %v369
  %904 = vmatmul.mubr.bf16.gmra.mrb[0].mxu0 %v368
  %v905 = vpop.f32.mrb[0].mxu0
  %v906 = vadd.f32 %v745, %v905
  %v907 = vpop.f32.mrb[0].mxu0
  %v908 = vpop.f32.mrb[0].mxu0
  %v909 = vadd.f32 %v748, %v908
  %v910 = vpop.f32.mrb[0].mxu0
  %911 = vmatprep.mubr.bf16.mxu0 %v373
  %912 = vmatmul.mubr.bf16.gmra.mrb[0].mxu0 %v372
  %v913 = vpop.f32.mrb[0].mxu0
  %v914 = vadd.f32 %v753, %v913
  %v915 = vpop.f32.mrb[0].mxu0
  %v916 = vpop.f32.mrb[0].mxu0
  %v917 = vadd.f32 %v756, %v916
  %v918 = vpop.f32.mrb[0].mxu0
  %919 = vmatprep.mubr.bf16.mxu0 %v377
  %920 = vmatmul.mubr.bf16.gmra.mrb[0].mxu0 %v376
  %v921 = vpop.f32.mrb[0].mxu0
  %v922 = vadd.f32 %v761, %v921
  %v923 = vpop.f32.mrb[0].mxu0
  %v924 = vpop.f32.mrb[0].mxu0
  %v925 = vadd.f32 %v764, %v924
  %v926 = vpop.f32.mrb[0].mxu0
  %927 = vmatprep.mubr.bf16.mxu0 %v381
  %928 = vmatmul.mubr.bf16.gmra.mrb[0].mxu0 %v380
  %v929 = vpop.f32.mrb[0].mxu0
  %v930 = vadd.f32 %v769, %v929
  %v931 = vpop.f32.mrb[0].mxu0
  %v932 = vpop.f32.mrb[0].mxu0
  %v933 = vadd.f32 %v772, %v932
  %v934 = vpop.f32.mrb[0].mxu0
  %935 = vmatprep.mubr.bf16.mxu0 %v385
  %936 = vmatmul.mubr.bf16.gmra.mrb[0].mxu0 %v384
  %v937 = vpop.f32.mrb[0].mxu0
  %v938 = vadd.f32 %v777, %v937
  %v939 = vpop.f32.mrb[0].mxu0
  %v940 = vpop.f32.mrb[0].mxu0
  %v941 = vadd.f32 %v780, %v940
  %v942 = vpop.f32.mrb[0].mxu0
  %943 = vmatprep.mubr.bf16.mxu0 %v389
  %944 = vmatmul.mubr.bf16.gmra.mrb[0].mxu0 %v388
  %v945 = vpop.f32.mrb[0].mxu0
  %v946 = vadd.f32 %v785, %v945
  %v947 = vpop.f32.mrb[0].mxu0
  %v948 = vpop.f32.mrb[0].mxu0
  %v949 = vadd.f32 %v788, %v948
  %v950 = vpop.f32.mrb[0].mxu0
  %951 = vmatprep.mubr.bf16.mxu0 %v393
  %952 = vmatmul.mubr.bf16.gmra.mrb[0].mxu0 %v392
  %v953 = vpop.f32.mrb[0].mxu0
  %v954 = vadd.f32 %v793, %v953
  %v955 = vpop.f32.mrb[0].mxu0
  %v956 = vpop.f32.mrb[0].mxu0
  %v957 = vadd.f32 %v796, %v956
  %v958 = vpop.f32.mrb[0].mxu0
  %959 = vmatprep.mubr.bf16.mxu0 %v397
  %960 = vmatmul.mubr.bf16.gmra.mrb[0].mxu0 %v396
  %v961 = vpop.f32.mrb[0].mxu0
  %v962 = vadd.f32 %v801, %v961
  %v963 = vpop.f32.mrb[0].mxu0
  %v964 = vpop.f32.mrb[0].mxu0
  %v965 = vadd.f32 %v804, %v964
  %v966 = vpop.f32.mrb[0].mxu0
  %967 = vmatprep.mubr.bf16.mxu0 %v401
  %968 = vmatmul.mubr.bf16.gmra.mrb[0].mxu0 %v400
  %v969 = vpop.f32.mrb[0].mxu0
  %v970 = vadd.f32 %v809, %v969
  %v971 = vpop.f32.mrb[0].mxu0
  %v972 = vpop.f32.mrb[0].mxu0
  %v973 = vadd.f32 %v812, %v972
  %v974 = vpop.f32.mrb[0].mxu0
  %975 = vmatprep.mubr.bf16.mxu0 %v405
  %976 = vmatmul.mubr.bf16.gmra.mrb[0].mxu0 %v404
  %v977 = vpop.f32.mrb[0].mxu0
  %v978 = vadd.f32 %v817, %v977
  %v979 = vpop.f32.mrb[0].mxu0
  %v980 = vpop.f32.mrb[0].mxu0
  %v981 = vadd.f32 %v820, %v980
  %v982 = vpop.f32.mrb[0].mxu0
  %983 = vdwg.mxu0
  %v984 = vmax.f32 %v858, 0.0
  %v985 = vmax.f32 %v861, 0.0
  %v986 = vmax.f32 %v866, 0.0
  %v987 = vmax.f32 %v869, 0.0
  %v988 = vmax.f32 %v874, 0.0
  %v989 = vmax.f32 %v877, 0.0
  %v990 = vmax.f32 %v882, 0.0
  %v991 = vmax.f32 %v885, 0.0
  %v992 = vmax.f32 %v890, 0.0
  %v993 = vmax.f32 %v893, 0.0
  %v994 = vmax.f32 %v898, 0.0
  %v995 = vmax.f32 %v901, 0.0
  %v996 = vmax.f32 %v906, 0.0
  %v997 = vmax.f32 %v909, 0.0
  %v998 = vmax.f32 %v914, 0.0
  %v999 = vmax.f32 %v917, 0.0
  %v1000 = vmax.f32 %v922, 0.0
  %v1001 = vmax.f32 %v925, 0.0
  %v1002 = vmax.f32 %v930, 0.0
  %v1003 = vmax.f32 %v933, 0.0
  %v1004 = vmax.f32 %v938, 0.0
  %v1005 = vmax.f32 %v941, 0.0
  %v1006 = vmax.f32 %v946, 0.0
  %v1007 = vmax.f32 %v949, 0.0
  %v1008 = vmax.f32 %v954, 0.0
  %v1009 = vmax.f32 %v957, 0.0
  %v1010 = vmax.f32 %v962, 0.0
  %v1011 = vmax.f32 %v965, 0.0
  %v1012 = vmax.f32 %v970, 0.0
  %v1013 = vmax.f32 %v973, 0.0
  %v1014 = vmax.f32 %v978, 0.0
  %v1015 = vmax.f32 %v981, 0.0
  %v1016 = vpack.c.bf16 %v985, %v984
  %v1017 = vpack.c.bf16 %v987, %v986
  %v1018 = vpack.c.bf16 %v989, %v988
  %v1019 = vpack.c.bf16 %v991, %v990
  %v1020 = vpack.c.bf16 %v993, %v992
  %v1021 = vpack.c.bf16 %v995, %v994
  %v1022 = vpack.c.bf16 %v997, %v996
  %v1023 = vpack.c.bf16 %v999, %v998
  %v1024 = vpack.c.bf16 %v1001, %v1000
  %v1025 = vpack.c.bf16 %v1003, %v1002
  %v1026 = vpack.c.bf16 %v1005, %v1004
  %v1027 = vpack.c.bf16 %v1007, %v1006
  %v1028 = vpack.c.bf16 %v1009, %v1008
  %v1029 = vpack.c.bf16 %v1011, %v1010
  %v1030 = vpack.c.bf16 %v1013, %v1012
  %v1031 = vpack.c.bf16 %v1015, %v1014
  %v1048 = vunpack.c.l.b16 %v1016
  %v1049 = vunpack.c.h.b16 %v1016
  %v1050 = vunpack.c.l.b16 %v1017
  %v1051 = vunpack.c.h.b16 %v1017
  %v1052 = vunpack.c.l.b16 %v1018
  %v1053 = vunpack.c.h.b16 %v1018
  %v1054 = vunpack.c.l.b16 %v1019
  %v1055 = vunpack.c.h.b16 %v1019
  %v1056 = vunpack.c.l.b16 %v1020
  %v1057 = vunpack.c.h.b16 %v1020
  %v1058 = vunpack.c.l.b16 %v1021
  %v1059 = vunpack.c.h.b16 %v1021
  %v1060 = vunpack.c.l.b16 %v1022
  %v1061 = vunpack.c.h.b16 %v1022
  %v1062 = vunpack.c.l.b16 %v1023
  %v1063 = vunpack.c.h.b16 %v1023
  %v1064 = vunpack.c.l.b16 %v1024
  %v1065 = vunpack.c.h.b16 %v1024
  %v1066 = vunpack.c.l.b16 %v1025
  %v1067 = vunpack.c.h.b16 %v1025
  %v1068 = vunpack.c.l.b16 %v1026
  %v1069 = vunpack.c.h.b16 %v1026
  %v1070 = vunpack.c.l.b16 %v1027
  %v1071 = vunpack.c.h.b16 %v1027
  %v1072 = vunpack.c.l.b16 %v1028
  %v1073 = vunpack.c.h.b16 %v1028
  %v1074 = vunpack.c.l.b16 %v1029
  %v1075 = vunpack.c.h.b16 %v1029
  %v1076 = vunpack.c.l.b16 %v1030
  %v1077 = vunpack.c.h.b16 %v1030
  %v1078 = vunpack.c.l.b16 %v1031
  %v1079 = vunpack.c.h.b16 %v1031
  %v1080 = vpack.c.b16 %v1048, %v1048
  %v1081 = vpack.c.b16 %v1049, %v1049
  %v1082 = vpack.c.b16 %v1050, %v1050
  %v1083 = vpack.c.b16 %v1051, %v1051
  %v1084 = vpack.c.b16 %v1052, %v1052
  %v1085 = vpack.c.b16 %v1053, %v1053
  %v1086 = vpack.c.b16 %v1054, %v1054
  %v1087 = vpack.c.b16 %v1055, %v1055
  %v1088 = vpack.c.b16 %v1056, %v1056
  %v1089 = vpack.c.b16 %v1057, %v1057
  %v1090 = vpack.c.b16 %v1058, %v1058
  %v1091 = vpack.c.b16 %v1059, %v1059
  %v1092 = vpack.c.b16 %v1060, %v1060
  %v1093 = vpack.c.b16 %v1061, %v1061
  %v1094 = vpack.c.b16 %v1062, %v1062
  %v1095 = vpack.c.b16 %v1063, %v1063
  %v1096 = vpack.c.b16 %v1064, %v1064
  %v1097 = vpack.c.b16 %v1065, %v1065
  %v1098 = vpack.c.b16 %v1066, %v1066
  %v1099 = vpack.c.b16 %v1067, %v1067
  %v1100 = vpack.c.b16 %v1068, %v1068
  %v1101 = vpack.c.b16 %v1069, %v1069
  %v1102 = vpack.c.b16 %v1070, %v1070
  %v1103 = vpack.c.b16 %v1071, %v1071
  %v1104 = vpack.c.b16 %v1072, %v1072
  %v1105 = vpack.c.b16 %v1073, %v1073
  %v1106 = vpack.c.b16 %v1074, %v1074
  %v1107 = vpack.c.b16 %v1075, %v1075
  %v1108 = vpack.c.b16 %v1076, %v1076
  %v1109 = vpack.c.b16 %v1077, %v1077
  %v1110 = vpack.c.b16 %v1078, %v1078
  %v1111 = vpack.c.b16 %v1079, %v1079
  %1144 = vst [vmem:[%s3] sm:$0xf] %v1080
  %1145 = vst [vmem:[%s3 + $0x4] sm:$0xf] %v1081
  %1146 = vst [vmem:[%s3 + $0x8] sm:$0xf] %v1082
  %1147 = vst [vmem:[%s3 + $0xc] sm:$0xf] %v1083
  %1148 = vst [vmem:[%s3 + $0x10] sm:$0xf] %v1084
  %1149 = vst [vmem:[%s3 + $0x14] sm:$0xf] %v1085
  %1150 = vst [vmem:[%s3 + $0x18] sm:$0xf] %v1086
  %1151 = vst [vmem:[%s3 + $0x1c] sm:$0xf] %v1087
  %1152 = vst [vmem:[%s3 + $0x20] sm:$0xf] %v1088
  %1153 = vst [vmem:[%s3 + $0x24] sm:$0xf] %v1089
  %1154 = vst [vmem:[%s3 + $0x28] sm:$0xf] %v1090
  %1155 = vst [vmem:[%s3 + $0x2c] sm:$0xf] %v1091
  %1156 = vst [vmem:[%s3 + $0x30] sm:$0xf] %v1092
  %1157 = vst [vmem:[%s3 + $0x34] sm:$0xf] %v1093
  %1158 = vst [vmem:[%s3 + $0x38] sm:$0xf] %v1094
  %1159 = vst [vmem:[%s3 + $0x3c] sm:$0xf] %v1095
  %1160 = vst [vmem:[%s3 + $0x40] sm:$0xf] %v1096
  %1161 = vst [vmem:[%s3 + $0x44] sm:$0xf] %v1097
  %1162 = vst [vmem:[%s3 + $0x48] sm:$0xf] %v1098
  %1163 = vst [vmem:[%s3 + $0x4c] sm:$0xf] %v1099
  %1164 = vst [vmem:[%s3 + $0x50] sm:$0xf] %v1100
  %1165 = vst [vmem:[%s3 + $0x54] sm:$0xf] %v1101
  %1166 = vst [vmem:[%s3 + $0x58] sm:$0xf] %v1102
  %1167 = vst [vmem:[%s3 + $0x5c] sm:$0xf] %v1103
  %1168 = vst [vmem:[%s3 + $0x60] sm:$0xf] %v1104
  %1169 = vst [vmem:[%s3 + $0x64] sm:$0xf] %v1105
  %1170 = vst [vmem:[%s3 + $0x68] sm:$0xf] %v1106
  %1171 = vst [vmem:[%s3 + $0x6c] sm:$0xf] %v1107
  %1172 = vst [vmem:[%s3 + $0x70] sm:$0xf] %v1108
  %1173 = vst [vmem:[%s3 + $0x74] sm:$0xf] %v1109
  %1174 = vst [vmem:[%s3 + $0x78] sm:$0xf] %v1110
  %1175 = vst [vmem:[%s3 + $0x7c] sm:$0xf] %v1111
  // Predicated region
  $region14: #{cnn_forward.5} parent=0 // pred_check
    _
  $region15: #{cnn_forward.5} parent=0 // pred_check_branch
    %1177 = sbr.rel (0) target = $region17
  $region16: #{cnn_forward.5} parent=0 // pred_region
    _
  $region17: #{cnn_forward.5} parent=0 // pred_fallthru
    _
  // Predicated region
  $region18: #{cnn_forward.5} parent=0 // pred_check
    _
  $region19: #{cnn_forward.5} parent=0 // pred_check_branch
    %1179 = sbr.rel (0) target = $region21
  $region20: #{cnn_forward.5} parent=0 // pred_region
    _
  $region21: #{cnn_forward.5} parent=0 // pred_fallthru
    _

// kernel: cnn_forward.6
$region0: #{cnn_forward.6}
  #allocation0 [shape = 'u32[]', space=smem, size = 0x4, offset = 0x4, fixed_abs, tag = 'smem constant byte address 0x4 - core index']
  #allocation1 [shape = 'u32[144,128]{1,0:T(1,128)}', space=vmem, size = 0x12000, scoped, tag = 'internal scratch']
  %s0 = inlined_call_operand.vmem [shape: bf16[168,576], index: 0, kind: input, shape index: {}]
  %s1 = inlined_call_operand.vmem [shape: bf16[576,128], index: 1, kind: input, shape index: {}]
  %s2 = inlined_call_operand.vmem [shape: f32[1,128], index: 2, kind: input, shape index: {}]
  %s3 = inlined_call_operand.vmem [shape: bf16[168,128], index: 3, kind: output, shape index: {}]
  %s4 = sld [smem:[#allocation0]]
  $region22: #{cnn_forward.6} parent=0
    _
  %s6 = ssub.s32 1, %s4
  %s7 = scalar_select 0, %s6, %s4
  // Predicated region
  $region2: #{cnn_forward.6} parent=0 // pred_check
    _
  $region3: #{cnn_forward.6} parent=0 // pred_check_branch
    %9 = sbr.rel (0) target = $region5
  $region4: #{cnn_forward.6} parent=0 // pred_region
    _
  $region5: #{cnn_forward.6} parent=0 // pred_fallthru
    _
  // Predicated region
  $region6: #{cnn_forward.6} parent=0 // pred_check
    _
  $region7: #{cnn_forward.6} parent=0 // pred_check_branch
    %11 = sbr.rel (0) target = $region9
  $region8: #{cnn_forward.6} parent=0 // pred_region
    _
  $region9: #{cnn_forward.6} parent=0 // pred_fallthru
    _
  // Predicated region
  $region10: #{cnn_forward.6} parent=0 // pred_check
    _
  $region11: #{cnn_forward.6} parent=0 // pred_check_branch
    %13 = sbr.rel (0) target = $region13
  $region12: #{cnn_forward.6} parent=0 // pred_region
    _
  $region13: #{cnn_forward.6} parent=0 // pred_fallthru
    _
  %v15 = vld [vmem:[%s0] sm:$0xff]
  %v16 = vld [vmem:[%s0 + $0x8] sm:$0xff]
  %v17 = vld [vmem:[%s0 + $0x10] sm:$0xf]
  %v18 = vld [vmem:[%s0 + $0x14] sm:$0xff]
  %v19 = vld [vmem:[%s0 + $0x1c] sm:$0xff]
  %v20 = vld [vmem:[%s0 + $0x24] sm:$0xf]
  %v21 = vld [vmem:[%s0 + $0x28] sm:$0xff]
  %v22 = vld [vmem:[%s0 + $0x30] sm:$0xff]
  %v23 = vld [vmem:[%s0 + $0x38] sm:$0xf]
  %v24 = vld [vmem:[%s0 + $0x3c] sm:$0xff]
  %v25 = vld [vmem:[%s0 + $0x44] sm:$0xff]
  %v26 = vld [vmem:[%s0 + $0x4c] sm:$0xf]
  %v27 = vld [vmem:[%s0 + $0x50] sm:$0xff]
  %v28 = vld [vmem:[%s0 + $0x58] sm:$0xff]
  %v29 = vld [vmem:[%s0 + $0x60] sm:$0xf]
  %v30 = vld [vmem:[%s0 + $0x64] sm:$0xff]
  %v31 = vld [vmem:[%s0 + $0x6c] sm:$0xff]
  %v32 = vld [vmem:[%s0 + $0x74] sm:$0xf]
  %v33 = vld [vmem:[%s0 + $0x78] sm:$0xff]
  %v34 = vld [vmem:[%s0 + $0x80] sm:$0xff]
  %v35 = vld [vmem:[%s0 + $0x88] sm:$0xf]
  %v36 = vld [vmem:[%s0 + $0x8c] sm:$0xff]
  %v37 = vld [vmem:[%s0 + $0x94] sm:$0xff]
  %v38 = vld [vmem:[%s0 + $0x9c] sm:$0xf]
  %v39 = vld [vmem:[%s0 + $0xa0] sm:$0xff]
  %v40 = vld [vmem:[%s0 + $0xa8] sm:$0xff]
  %v41 = vld [vmem:[%s0 + $0xb0] sm:$0xf]
  %v42 = vld [vmem:[%s0 + $0xb4] sm:$0xff]
  %v43 = vld [vmem:[%s0 + $0xbc] sm:$0xff]
  %v44 = vld [vmem:[%s0 + $0xc4] sm:$0xf]
  %v45 = vld [vmem:[%s0 + $0xc8] sm:$0xff]
  %v46 = vld [vmem:[%s0 + $0xd0] sm:$0xff]
  %v47 = vld [vmem:[%s0 + $0xd8] sm:$0xf]
  %v48 = vld [vmem:[%s0 + $0xdc] sm:$0xff]
  %v49 = vld [vmem:[%s0 + $0xe4] sm:$0xff]
  %v50 = vld [vmem:[%s0 + $0xec] sm:$0xf]
  %v51 = vld [vmem:[%s0 + $0xf0] sm:$0xff]
  %v52 = vld [vmem:[%s0 + $0xf8] sm:$0xff]
  %v53 = vld [vmem:[%s0 + $0x100] sm:$0xf]
  %v54 = vld [vmem:[%s0 + $0x104] sm:$0xff]
  %v55 = vld [vmem:[%s0 + $0x10c] sm:$0xff]
  %v56 = vld [vmem:[%s0 + $0x114] sm:$0xf]
  %v57 = vld [vmem:[%s0 + $0x118] sm:$0xff]
  %v58 = vld [vmem:[%s0 + $0x120] sm:$0xff]
  %v59 = vld [vmem:[%s0 + $0x128] sm:$0xf]
  %v60 = vld [vmem:[%s0 + $0x12c] sm:$0xff]
  %v61 = vld [vmem:[%s0 + $0x134] sm:$0xff]
  %v62 = vld [vmem:[%s0 + $0x13c] sm:$0xf]
  %v63 = vld [vmem:[%s0 + $0x140] sm:$0xff]
  %v64 = vld [vmem:[%s0 + $0x148] sm:$0xff]
  %v65 = vld [vmem:[%s0 + $0x150] sm:$0xf]
  %v66 = vld [vmem:[%s0 + $0x154] sm:$0xff]
  %v67 = vld [vmem:[%s0 + $0x15c] sm:$0xff]
  %v68 = vld [vmem:[%s0 + $0x164] sm:$0xf]
  %v69 = vld [vmem:[%s0 + $0x168] sm:$0xff]
  %v70 = vld [vmem:[%s0 + $0x170] sm:$0xff]
  %v71 = vld [vmem:[%s0 + $0x178] sm:$0xf]
  %v72 = vld [vmem:[%s0 + $0x17c] sm:$0xff]
  %v73 = vld [vmem:[%s0 + $0x184] sm:$0xff]
  %v74 = vld [vmem:[%s0 + $0x18c] sm:$0xf]
  %v75 = vld [vmem:[%s0 + $0x190] sm:$0xff]
  %v76 = vld [vmem:[%s0 + $0x198] sm:$0xff]
  %v77 = vld [vmem:[%s0 + $0x1a0] sm:$0xf]
  %v78 = vld [vmem:[%s1] sm:$0xf]
  %v79 = vld [vmem:[%s1 + $0x4] sm:$0xf]
  %v80 = vld [vmem:[%s1 + $0x8] sm:$0xf]
  %v81 = vld [vmem:[%s1 + $0xc] sm:$0xf]
  %v82 = vld [vmem:[%s1 + $0x10] sm:$0xf]
  %v83 = vld [vmem:[%s1 + $0x14] sm:$0xf]
  %v84 = vld [vmem:[%s1 + $0x18] sm:$0xf]
  %v85 = vld [vmem:[%s1 + $0x1c] sm:$0xf]
  %v86 = vld [vmem:[%s1 + $0x20] sm:$0xf]
  %v87 = vld [vmem:[%s1 + $0x24] sm:$0xf]
  %v88 = vld [vmem:[%s1 + $0x28] sm:$0xf]
  %v89 = vld [vmem:[%s1 + $0x2c] sm:$0xf]
  %v90 = vld [vmem:[%s1 + $0x30] sm:$0xf]
  %v91 = vld [vmem:[%s1 + $0x34] sm:$0xf]
  %v92 = vld [vmem:[%s1 + $0x38] sm:$0xf]
  %v93 = vld [vmem:[%s1 + $0x3c] sm:$0xf]
  %v94 = vld [vmem:[%s1 + $0x40] sm:$0xf]
  %v95 = vld [vmem:[%s1 + $0x44] sm:$0xf]
  %v96 = vld [vmem:[%s1 + $0x48] sm:$0xf]
  %v97 = vld [vmem:[%s1 + $0x4c] sm:$0xf]
  %v98 = vld [vmem:[%s1 + $0x50] sm:$0xf]
  %v99 = vld [vmem:[%s1 + $0x54] sm:$0xf]
  %v100 = vld [vmem:[%s1 + $0x58] sm:$0xf]
  %v101 = vld [vmem:[%s1 + $0x5c] sm:$0xf]
  %v102 = vld [vmem:[%s1 + $0x60] sm:$0xf]
  %v103 = vld [vmem:[%s1 + $0x64] sm:$0xf]
  %v104 = vld [vmem:[%s1 + $0x68] sm:$0xf]
  %v105 = vld [vmem:[%s1 + $0x6c] sm:$0xf]
  %v106 = vld [vmem:[%s1 + $0x70] sm:$0xf]
  %v107 = vld [vmem:[%s1 + $0x74] sm:$0xf]
  %v108 = vld [vmem:[%s1 + $0x78] sm:$0xf]
  %v109 = vld [vmem:[%s1 + $0x7c] sm:$0xf]
  %v110 = vld [vmem:[%s1 + $0x80] sm:$0xf]
  %v111 = vld [vmem:[%s1 + $0x84] sm:$0xf]
  %v112 = vld [vmem:[%s1 + $0x88] sm:$0xf]
  %v113 = vld [vmem:[%s1 + $0x8c] sm:$0xf]
  %v114 = vld [vmem:[%s1 + $0x90] sm:$0xf]
  %v115 = vld [vmem:[%s1 + $0x94] sm:$0xf]
  %v116 = vld [vmem:[%s1 + $0x98] sm:$0xf]
  %v117 = vld [vmem:[%s1 + $0x9c] sm:$0xf]
  %v118 = vld [vmem:[%s1 + $0xa0] sm:$0xf]
  %v119 = vld [vmem:[%s1 + $0xa4] sm:$0xf]
  %v120 = vld [vmem:[%s1 + $0xa8] sm:$0xf]
  %v121 = vld [vmem:[%s1 + $0xac] sm:$0xf]
  %v122 = vld [vmem:[%s1 + $0xb0] sm:$0xf]
  %v123 = vld [vmem:[%s1 + $0xb4] sm:$0xf]
  %v124 = vld [vmem:[%s1 + $0xb8] sm:$0xf]
  %v125 = vld [vmem:[%s1 + $0xbc] sm:$0xf]
  %v126 = vld [vmem:[%s1 + $0xc0] sm:$0xf]
  %v127 = vld [vmem:[%s1 + $0xc4] sm:$0xf]
  %v128 = vld [vmem:[%s1 + $0xc8] sm:$0xf]
  %v129 = vld [vmem:[%s1 + $0xcc] sm:$0xf]
  %v130 = vld [vmem:[%s1 + $0xd0] sm:$0xf]
  %v131 = vld [vmem:[%s1 + $0xd4] sm:$0xf]
  %v132 = vld [vmem:[%s1 + $0xd8] sm:$0xf]
  %v133 = vld [vmem:[%s1 + $0xdc] sm:$0xf]
  %v134 = vld [vmem:[%s1 + $0xe0] sm:$0xf]
  %v135 = vld [vmem:[%s1 + $0xe4] sm:$0xf]
  %v136 = vld [vmem:[%s1 + $0xe8] sm:$0xf]
  %v137 = vld [vmem:[%s1 + $0xec] sm:$0xf]
  %v138 = vld [vmem:[%s1 + $0xf0] sm:$0xf]
  %v139 = vld [vmem:[%s1 + $0xf4] sm:$0xf]
  %v140 = vld [vmem:[%s1 + $0xf8] sm:$0xf]
  %v141 = vld [vmem:[%s1 + $0xfc] sm:$0xf]
  %v142 = vld [vmem:[%s1 + $0x100] sm:$0xf]
  %v143 = vld [vmem:[%s1 + $0x104] sm:$0xf]
  %v144 = vld [vmem:[%s1 + $0x108] sm:$0xf]
  %v145 = vld [vmem:[%s1 + $0x10c] sm:$0xf]
  %v146 = vld [vmem:[%s1 + $0x110] sm:$0xf]
  %v147 = vld [vmem:[%s1 + $0x114] sm:$0xf]
  %v148 = vld [vmem:[%s1 + $0x118] sm:$0xf]
  %v149 = vld [vmem:[%s1 + $0x11c] sm:$0xf]
  %v150 = vld [vmem:[%s2] sm:$0x1]
  %v152 = vlaneseq
  %v153 = vshrl.u32 %v152, 7
  %v154 = vsub.s32 0, %v153
  %v155 = vrot.slane %v150, %v154
  %v220 = vunpack.c.l.b16 %v15
  %v221 = vunpack.c.h.b16 %v15
  %v222 = vunpack.c.l.b16 %v16
  %v223 = vunpack.c.h.b16 %v16
  %v224 = vunpack.c.l.b16 %v17
  %v225 = vunpack.c.l.b16 %v18
  %v226 = vunpack.c.h.b16 %v18
  %v227 = vunpack.c.l.b16 %v19
  %v228 = vunpack.c.h.b16 %v19
  %v229 = vunpack.c.l.b16 %v20
  %v230 = vunpack.c.l.b16 %v21
  %v231 = vunpack.c.h.b16 %v21
  %v232 = vunpack.c.l.b16 %v22
  %v233 = vunpack.c.h.b16 %v22
  %v234 = vunpack.c.l.b16 %v23
  %v235 = vunpack.c.l.b16 %v24
  %v236 = vunpack.c.h.b16 %v24
  %v237 = vunpack.c.l.b16 %v25
  %v238 = vunpack.c.h.b16 %v25
  %v239 = vunpack.c.l.b16 %v26
  %v240 = vunpack.c.l.b16 %v27
  %v241 = vunpack.c.h.b16 %v27
  %v242 = vunpack.c.l.b16 %v28
  %v243 = vunpack.c.h.b16 %v28
  %v244 = vunpack.c.l.b16 %v29
  %v245 = vunpack.c.l.b16 %v30
  %v246 = vunpack.c.h.b16 %v30
  %v247 = vunpack.c.l.b16 %v31
  %v248 = vunpack.c.h.b16 %v31
  %v249 = vunpack.c.l.b16 %v32
  %v250 = vunpack.c.l.b16 %v33
  %v251 = vunpack.c.h.b16 %v33
  %v252 = vunpack.c.l.b16 %v34
  %v253 = vunpack.c.h.b16 %v34
  %v254 = vunpack.c.l.b16 %v35
  %v255 = vunpack.c.l.b16 %v36
  %v256 = vunpack.c.h.b16 %v36
  %v257 = vunpack.c.l.b16 %v37
  %v258 = vunpack.c.h.b16 %v37
  %v259 = vunpack.c.l.b16 %v38
  %v260 = vunpack.c.l.b16 %v39
  %v261 = vunpack.c.h.b16 %v39
  %v262 = vunpack.c.l.b16 %v40
  %v263 = vunpack.c.h.b16 %v40
  %v264 = vunpack.c.l.b16 %v41
  %v265 = vunpack.c.l.b16 %v42
  %v266 = vunpack.c.h.b16 %v42
  %v267 = vunpack.c.l.b16 %v43
  %v268 = vunpack.c.h.b16 %v43
  %v269 = vunpack.c.l.b16 %v44
  %v270 = vunpack.c.l.b16 %v45
  %v271 = vunpack.c.h.b16 %v45
  %v272 = vunpack.c.l.b16 %v46
  %v273 = vunpack.c.h.b16 %v46
  %v274 = vunpack.c.l.b16 %v47
  %v275 = vunpack.c.l.b16 %v48
  %v276 = vunpack.c.h.b16 %v48
  %v277 = vunpack.c.l.b16 %v49
  %v278 = vunpack.c.h.b16 %v49
  %v279 = vunpack.c.l.b16 %v50
  %v280 = vunpack.c.l.b16 %v51
  %v281 = vunpack.c.h.b16 %v51
  %v282 = vunpack.c.l.b16 %v52
  %v283 = vunpack.c.h.b16 %v52
  %v284 = vunpack.c.l.b16 %v53
  %v285 = vunpack.c.l.b16 %v54
  %v286 = vunpack.c.h.b16 %v54
  %v287 = vunpack.c.l.b16 %v55
  %v288 = vunpack.c.h.b16 %v55
  %v289 = vunpack.c.l.b16 %v56
  %v290 = vunpack.c.l.b16 %v57
  %v291 = vunpack.c.h.b16 %v57
  %v292 = vunpack.c.l.b16 %v58
  %v293 = vunpack.c.h.b16 %v58
  %v294 = vunpack.c.l.b16 %v59
  %v295 = vunpack.c.l.b16 %v60
  %v296 = vunpack.c.h.b16 %v60
  %v297 = vunpack.c.l.b16 %v61
  %v298 = vunpack.c.h.b16 %v61
  %v299 = vunpack.c.l.b16 %v62
  %v300 = vunpack.c.l.b16 %v63
  %v301 = vunpack.c.h.b16 %v63
  %v302 = vunpack.c.l.b16 %v64
  %v303 = vunpack.c.h.b16 %v64
  %v304 = vunpack.c.l.b16 %v65
  %v305 = vunpack.c.l.b16 %v66
  %v306 = vunpack.c.h.b16 %v66
  %v307 = vunpack.c.l.b16 %v67
  %v308 = vunpack.c.h.b16 %v67
  %v309 = vunpack.c.l.b16 %v68
  %v310 = vunpack.c.l.b16 %v69
  %v311 = vunpack.c.h.b16 %v69
  %v312 = vunpack.c.l.b16 %v70
  %v313 = vunpack.c.h.b16 %v70
  %v314 = vunpack.c.l.b16 %v71
  %v315 = vunpack.c.l.b16 %v72
  %v316 = vunpack.c.h.b16 %v72
  %v317 = vunpack.c.l.b16 %v73
  %v318 = vunpack.c.h.b16 %v73
  %v319 = vunpack.c.l.b16 %v74
  %v320 = vunpack.c.l.b16 %v75
  %v321 = vunpack.c.h.b16 %v75
  %v322 = vunpack.c.l.b16 %v76
  %v323 = vunpack.c.h.b16 %v76
  %v324 = vunpack.c.l.b16 %v77
  %v325 = vpack.c.b16 %v225, %v220
  %v326 = vpack.c.b16 %v226, %v221
  %v327 = vpack.c.b16 %v227, %v222
  %v328 = vpack.c.b16 %v228, %v223
  %v329 = vpack.c.b16 %v229, %v224
  %v330 = vpack.c.b16 %v235, %v230
  %v331 = vpack.c.b16 %v236, %v231
  %v332 = vpack.c.b16 %v237, %v232
  %v333 = vpack.c.b16 %v238, %v233
  %v334 = vpack.c.b16 %v239, %v234
  %v335 = vpack.c.b16 %v245, %v240
  %v336 = vpack.c.b16 %v246, %v241
  %v337 = vpack.c.b16 %v247, %v242
  %v338 = vpack.c.b16 %v248, %v243
  %v339 = vpack.c.b16 %v249, %v244
  %v340 = vpack.c.b16 %v255, %v250
  %v341 = vpack.c.b16 %v256, %v251
  %v342 = vpack.c.b16 %v257, %v252
  %v343 = vpack.c.b16 %v258, %v253
  %v344 = vpack.c.b16 %v259, %v254
  %v345 = vpack.c.b16 %v265, %v260
  %v346 = vpack.c.b16 %v266, %v261
  %v347 = vpack.c.b16 %v267, %v262
  %v348 = vpack.c.b16 %v268, %v263
  %v349 = vpack.c.b16 %v269, %v264
  %v350 = vpack.c.b16 %v275, %v270
  %v351 = vpack.c.b16 %v276, %v271
  %v352 = vpack.c.b16 %v277, %v272
  %v353 = vpack.c.b16 %v278, %v273
  %v354 = vpack.c.b16 %v279, %v274
  %v355 = vpack.c.b16 %v285, %v280
  %v356 = vpack.c.b16 %v286, %v281
  %v357 = vpack.c.b16 %v287, %v282
  %v358 = vpack.c.b16 %v288, %v283
  %v359 = vpack.c.b16 %v289, %v284
  %v360 = vpack.c.b16 %v295, %v290
  %v361 = vpack.c.b16 %v296, %v291
  %v362 = vpack.c.b16 %v297, %v292
  %v363 = vpack.c.b16 %v298, %v293
  %v364 = vpack.c.b16 %v299, %v294
  %v365 = vpack.c.b16 %v305, %v300
  %v366 = vpack.c.b16 %v306, %v301
  %v367 = vpack.c.b16 %v307, %v302
  %v368 = vpack.c.b16 %v308, %v303
  %v369 = vpack.c.b16 %v309, %v304
  %v370 = vpack.c.b16 %v315, %v310
  %v371 = vpack.c.b16 %v316, %v311
  %v372 = vpack.c.b16 %v317, %v312
  %v373 = vpack.c.b16 %v318, %v313
  %v374 = vpack.c.b16 %v319, %v314
  %v375 = vpack.c.b16 %v320, %v320
  %v376 = vpack.c.b16 %v321, %v321
  %v377 = vpack.c.b16 %v322, %v322
  %v378 = vpack.c.b16 %v323, %v323
  %v379 = vpack.c.b16 %v324, %v324
  %v496 = vunpack.c.l.b16 %v78
  %v497 = vunpack.c.l.b16 %v79
  %v498 = vunpack.c.l.b16 %v80
  %v499 = vunpack.c.l.b16 %v81
  %v500 = vunpack.c.l.b16 %v82
  %v501 = vunpack.c.l.b16 %v83
  %v502 = vunpack.c.l.b16 %v84
  %v503 = vunpack.c.l.b16 %v85
  %v504 = vunpack.c.l.b16 %v86
  %v505 = vunpack.c.l.b16 %v87
  %v506 = vunpack.c.l.b16 %v88
  %v507 = vunpack.c.l.b16 %v89
  %v508 = vunpack.c.l.b16 %v90
  %v509 = vunpack.c.l.b16 %v91
  %v510 = vunpack.c.l.b16 %v92
  %v511 = vunpack.c.l.b16 %v93
  %v512 = vunpack.c.l.b16 %v94
  %v513 = vunpack.c.l.b16 %v95
  %v514 = vunpack.c.l.b16 %v96
  %v515 = vunpack.c.l.b16 %v97
  %v516 = vunpack.c.l.b16 %v98
  %v517 = vunpack.c.l.b16 %v99
  %v518 = vunpack.c.l.b16 %v100
  %v519 = vunpack.c.l.b16 %v101
  %v520 = vunpack.c.l.b16 %v102
  %v521 = vunpack.c.l.b16 %v103
  %v522 = vunpack.c.l.b16 %v104
  %v523 = vunpack.c.l.b16 %v105
  %v524 = vunpack.c.l.b16 %v106
  %v525 = vunpack.c.l.b16 %v107
  %v526 = vunpack.c.l.b16 %v108
  %v527 = vunpack.c.l.b16 %v109
  %v528 = vunpack.c.l.b16 %v110
  %v529 = vunpack.c.l.b16 %v111
  %v530 = vunpack.c.l.b16 %v112
  %v531 = vunpack.c.l.b16 %v113
  %v532 = vunpack.c.l.b16 %v114
  %v533 = vunpack.c.l.b16 %v115
  %v534 = vunpack.c.l.b16 %v116
  %v535 = vunpack.c.l.b16 %v117
  %v536 = vunpack.c.l.b16 %v118
  %v537 = vunpack.c.l.b16 %v119
  %v538 = vunpack.c.l.b16 %v120
  %v539 = vunpack.c.l.b16 %v121
  %v540 = vunpack.c.l.b16 %v122
  %v541 = vunpack.c.l.b16 %v123
  %v542 = vunpack.c.l.b16 %v124
  %v543 = vunpack.c.l.b16 %v125
  %v544 = vunpack.c.l.b16 %v126
  %v545 = vunpack.c.l.b16 %v127
  %v546 = vunpack.c.l.b16 %v128
  %v547 = vunpack.c.l.b16 %v129
  %v548 = vunpack.c.l.b16 %v130
  %v549 = vunpack.c.l.b16 %v131
  %v550 = vunpack.c.l.b16 %v132
  %v551 = vunpack.c.l.b16 %v133
  %v552 = vunpack.c.l.b16 %v134
  %v553 = vunpack.c.l.b16 %v135
  %v554 = vunpack.c.l.b16 %v136
  %v555 = vunpack.c.l.b16 %v137
  %v556 = vunpack.c.l.b16 %v138
  %v557 = vunpack.c.l.b16 %v139
  %v558 = vunpack.c.l.b16 %v140
  %v559 = vunpack.c.l.b16 %v141
  %v560 = vunpack.c.l.b16 %v142
  %v561 = vunpack.c.l.b16 %v143
  %v562 = vunpack.c.l.b16 %v144
  %v563 = vunpack.c.l.b16 %v145
  %v564 = vunpack.c.l.b16 %v146
  %v565 = vunpack.c.l.b16 %v147
  %v566 = vunpack.c.l.b16 %v148
  %v567 = vunpack.c.l.b16 %v149
  %v568 = vpack.c.b16 %v497, %v496
  %v569 = vpack.c.b16 %v499, %v498
  %v570 = vpack.c.b16 %v501, %v500
  %v571 = vpack.c.b16 %v503, %v502
  %v572 = vpack.c.b16 %v505, %v504
  %v573 = vpack.c.b16 %v507, %v506
  %v574 = vpack.c.b16 %v509, %v508
  %v575 = vpack.c.b16 %v511, %v510
  %v576 = vpack.c.b16 %v513, %v512
  %v577 = vpack.c.b16 %v515, %v514
  %v578 = vpack.c.b16 %v517, %v516
  %v579 = vpack.c.b16 %v519, %v518
  %v580 = vpack.c.b16 %v521, %v520
  %v581 = vpack.c.b16 %v523, %v522
  %v582 = vpack.c.b16 %v525, %v524
  %v583 = vpack.c.b16 %v527, %v526
  %v584 = vpack.c.b16 %v529, %v528
  %v585 = vpack.c.b16 %v531, %v530
  %v586 = vpack.c.b16 %v533, %v532
  %v587 = vpack.c.b16 %v535, %v534
  %v588 = vpack.c.b16 %v537, %v536
  %v589 = vpack.c.b16 %v539, %v538
  %v590 = vpack.c.b16 %v541, %v540
  %v591 = vpack.c.b16 %v543, %v542
  %v592 = vpack.c.b16 %v545, %v544
  %v593 = vpack.c.b16 %v547, %v546
  %v594 = vpack.c.b16 %v549, %v548
  %v595 = vpack.c.b16 %v551, %v550
  %v596 = vpack.c.b16 %v553, %v552
  %v597 = vpack.c.b16 %v555, %v554
  %v598 = vpack.c.b16 %v557, %v556
  %v599 = vpack.c.b16 %v559, %v558
  %v600 = vpack.c.b16 %v561, %v560
  %v601 = vpack.c.b16 %v563, %v562
  %v602 = vpack.c.b16 %v565, %v564
  %v603 = vpack.c.b16 %v567, %v566
  %vm640 = vcmask 523264
  %v642 = vsel %vm640, %v329, 0
  %v645 = vsel %vm640, %v334, 0
  %v648 = vsel %vm640, %v339, 0
  %v651 = vsel %vm640, %v344, 0
  %v654 = vsel %vm640, %v349, 0
  %v657 = vsel %vm640, %v354, 0
  %v660 = vsel %vm640, %v359, 0
  %v663 = vsel %vm640, %v364, 0
  %v666 = vsel %vm640, %v369, 0
  %v669 = vsel %vm640, %v374, 0
  %v672 = vsel %vm640, %v379, 0
  %674 = vmatprep.subr.bf16.mxu0 0
  %675 = vmatpush1.bf16.msra.mxu0 %v568
  %676 = vmatprep.subr.bf16.mxu0 0
  %677 = vmatpush1.bf16.msra.mxu0 %v569
  %678 = vmatprep.subr.bf16.mxu0 0
  %679 = vmatpush1.bf16.msra.mxu0 %v570
  %680 = vmatprep.subr.bf16.mxu0 0
  %681 = vmatpush1.bf16.msra.mxu0 %v571
  %682 = vmatprep.subr.bf16.mxu0 0
  %683 = vmatpush1.bf16.msra.mxu0 %v572
  %684 = vmatprep.subr.bf16.mxu0 0
  %685 = vmatpush1.bf16.msra.mxu0 %v573
  %686 = vmatprep.subr.bf16.mxu0 0
  %687 = vmatpush1.bf16.msra.mxu0 %v574
  %688 = vmatprep.subr.bf16.mxu0 0
  %689 = vmatpush1.bf16.msra.mxu0 %v575
  %690 = vmatprep.subr.bf16.mxu0 0
  %691 = vmatpush1.bf16.msra.mxu0 %v576
  %692 = vmatprep.subr.bf16.mxu0 0
  %693 = vmatpush1.bf16.msra.mxu0 %v577
  %694 = vmatprep.subr.bf16.mxu0 0
  %695 = vmatpush1.bf16.msra.mxu0 %v578
  %696 = vmatprep.subr.bf16.mxu0 0
  %697 = vmatpush1.bf16.msra.mxu0 %v579
  %698 = vmatprep.subr.bf16.mxu0 0
  %699 = vmatpush1.bf16.msra.mxu0 %v580
  %700 = vmatprep.subr.bf16.mxu0 0
  %701 = vmatpush1.bf16.msra.mxu0 %v581
  %702 = vmatprep.subr.bf16.mxu0 0
  %703 = vmatpush1.bf16.msra.mxu0 %v582
  %704 = vmatprep.subr.bf16.mxu0 0
  %705 = vmatpush1.bf16.msra.mxu0 %v583
  %706 = vmatprep.mubr.bf16.mxu0 %v326
  %707 = vmatmul.mubr.bf16.gmra.mrb[0].mxu0 %v325
  %v708 = vpop.f32.mrb[0].mxu0
  %v709 = vadd.f32 %v155, %v708
  %v710 = vpop.f32.mrb[0].mxu0
  %v711 = vpop.f32.mrb[0].mxu0
  %v712 = vadd.f32 %v155, %v711
  %v713 = vpop.f32.mrb[0].mxu0
  %714 = vmatprep.mubr.bf16.mxu0 %v331
  %715 = vmatmul.mubr.bf16.gmra.mrb[0].mxu0 %v330
  %v716 = vpop.f32.mrb[0].mxu0
  %v717 = vadd.f32 %v155, %v716
  %v718 = vpop.f32.mrb[0].mxu0
  %v719 = vpop.f32.mrb[0].mxu0
  %v720 = vadd.f32 %v155, %v719
  %v721 = vpop.f32.mrb[0].mxu0
  %722 = vmatprep.mubr.bf16.mxu0 %v336
  %723 = vmatmul.mubr.bf16.gmra.mrb[0].mxu0 %v335
  %v724 = vpop.f32.mrb[0].mxu0
  %v725 = vadd.f32 %v155, %v724
  %v726 = vpop.f32.mrb[0].mxu0
  %v727 = vpop.f32.mrb[0].mxu0
  %v728 = vadd.f32 %v155, %v727
  %v729 = vpop.f32.mrb[0].mxu0
  %730 = vmatprep.mubr.bf16.mxu0 %v341
  %731 = vmatmul.mubr.bf16.gmra.mrb[0].mxu0 %v340
  %v732 = vpop.f32.mrb[0].mxu0
  %v733 = vadd.f32 %v155, %v732
  %v734 = vpop.f32.mrb[0].mxu0
  %v735 = vpop.f32.mrb[0].mxu0
  %v736 = vadd.f32 %v155, %v735
  %v737 = vpop.f32.mrb[0].mxu0
  %738 = vmatprep.mubr.bf16.mxu0 %v346
  %739 = vmatmul.mubr.bf16.gmra.mrb[0].mxu0 %v345
  %v740 = vpop.f32.mrb[0].mxu0
  %v741 = vadd.f32 %v155, %v740
  %v742 = vpop.f32.mrb[0].mxu0
  %v743 = vpop.f32.mrb[0].mxu0
  %v744 = vadd.f32 %v155, %v743
  %v745 = vpop.f32.mrb[0].mxu0
  %746 = vmatprep.mubr.bf16.mxu0 %v351
  %747 = vmatmul.mubr.bf16.gmra.mrb[0].mxu0 %v350
  %v748 = vpop.f32.mrb[0].mxu0
  %v749 = vadd.f32 %v155, %v748
  %v750 = vpop.f32.mrb[0].mxu0
  %v751 = vpop.f32.mrb[0].mxu0
  %v752 = vadd.f32 %v155, %v751
  %v753 = vpop.f32.mrb[0].mxu0
  %754 = vmatprep.mubr.bf16.mxu0 %v356
  %755 = vmatmul.mubr.bf16.gmra.mrb[0].mxu0 %v355
  %v756 = vpop.f32.mrb[0].mxu0
  %v757 = vadd.f32 %v155, %v756
  %v758 = vpop.f32.mrb[0].mxu0
  %v759 = vpop.f32.mrb[0].mxu0
  %v760 = vadd.f32 %v155, %v759
  %v761 = vpop.f32.mrb[0].mxu0
  %762 = vmatprep.mubr.bf16.mxu0 %v361
  %763 = vmatmul.mubr.bf16.gmra.mrb[0].mxu0 %v360
  %v764 = vpop.f32.mrb[0].mxu0
  %v765 = vadd.f32 %v155, %v764
  %v766 = vpop.f32.mrb[0].mxu0
  %v767 = vpop.f32.mrb[0].mxu0
  %v768 = vadd.f32 %v155, %v767
  %v769 = vpop.f32.mrb[0].mxu0
  %770 = vmatprep.mubr.bf16.mxu0 %v366
  %771 = vmatmul.mubr.bf16.gmra.mrb[0].mxu0 %v365
  %v772 = vpop.f32.mrb[0].mxu0
  %v773 = vadd.f32 %v155, %v772
  %v774 = vpop.f32.mrb[0].mxu0
  %v775 = vpop.f32.mrb[0].mxu0
  %v776 = vadd.f32 %v155, %v775
  %v777 = vpop.f32.mrb[0].mxu0
  %778 = vmatprep.mubr.bf16.mxu0 %v371
  %779 = vmatmul.mubr.bf16.gmra.mrb[0].mxu0 %v370
  %v780 = vpop.f32.mrb[0].mxu0
  %v781 = vadd.f32 %v155, %v780
  %v782 = vpop.f32.mrb[0].mxu0
  %v783 = vpop.f32.mrb[0].mxu0
  %v784 = vadd.f32 %v155, %v783
  %v785 = vpop.f32.mrb[0].mxu0
  %786 = vmatprep.mubr.bf16.mxu0 %v376
  %787 = vmatmul.mubr.bf16.gmra.mrb[0].mxu0 %v375
  %v788 = vpop.f32.mrb[0].mxu0
  %v789 = vadd.f32 %v155, %v788
  %v790 = vpop.f32.mrb[0].mxu0
  %v791 = vpop.f32.mrb[0].mxu0
  %v792 = vpop.f32.mrb[0].mxu0
  %793 = vdwg.mxu0
  %794 = vmatprep.subr.bf16.mxu0 0
  %795 = vmatpush1.bf16.msra.mxu0 %v584
  %796 = vmatprep.subr.bf16.mxu0 0
  %797 = vmatpush1.bf16.msra.mxu0 %v585
  %798 = vmatprep.subr.bf16.mxu0 0
  %799 = vmatpush1.bf16.msra.mxu0 %v586
  %800 = vmatprep.subr.bf16.mxu0 0
  %801 = vmatpush1.bf16.msra.mxu0 %v587
  %802 = vmatprep.subr.bf16.mxu0 0
  %803 = vmatpush1.bf16.msra.mxu0 %v588
  %804 = vmatprep.subr.bf16.mxu0 0
  %805 = vmatpush1.bf16.msra.mxu0 %v589
  %806 = vmatprep.subr.bf16.mxu0 0
  %807 = vmatpush1.bf16.msra.mxu0 %v590
  %808 = vmatprep.subr.bf16.mxu0 0
  %809 = vmatpush1.bf16.msra.mxu0 %v591
  %810 = vmatprep.subr.bf16.mxu0 0
  %811 = vmatpush1.bf16.msra.mxu0 %v592
  %812 = vmatprep.subr.bf16.mxu0 0
  %813 = vmatpush1.bf16.msra.mxu0 %v593
  %814 = vmatprep.subr.bf16.mxu0 0
  %815 = vmatpush1.bf16.msra.mxu0 %v594
  %816 = vmatprep.subr.bf16.mxu0 0
  %817 = vmatpush1.bf16.msra.mxu0 %v595
  %818 = vmatprep.subr.bf16.mxu0 0
  %819 = vmatpush1.bf16.msra.mxu0 %v596
  %820 = vmatprep.subr.bf16.mxu0 0
  %821 = vmatpush1.bf16.msra.mxu0 %v597
  %822 = vmatprep.subr.bf16.mxu0 0
  %823 = vmatpush1.bf16.msra.mxu0 %v598
  %824 = vmatprep.subr.bf16.mxu0 0
  %825 = vmatpush1.bf16.msra.mxu0 %v599
  %826 = vmatprep.mubr.bf16.mxu0 %v328
  %827 = vmatmul.mubr.bf16.gmra.mrb[0].mxu0 %v327
  %v828 = vpop.f32.mrb[0].mxu0
  %v829 = vadd.f32 %v709, %v828
  %v830 = vpop.f32.mrb[0].mxu0
  %v831 = vpop.f32.mrb[0].mxu0
  %v832 = vadd.f32 %v712, %v831
  %v833 = vpop.f32.mrb[0].mxu0
  %834 = vmatprep.mubr.bf16.mxu0 %v333
  %835 = vmatmul.mubr.bf16.gmra.mrb[0].mxu0 %v332
  %v836 = vpop.f32.mrb[0].mxu0
  %v837 = vadd.f32 %v717, %v836
  %v838 = vpop.f32.mrb[0].mxu0
  %v839 = vpop.f32.mrb[0].mxu0
  %v840 = vadd.f32 %v720, %v839
  %v841 = vpop.f32.mrb[0].mxu0
  %842 = vmatprep.mubr.bf16.mxu0 %v338
  %843 = vmatmul.mubr.bf16.gmra.mrb[0].mxu0 %v337
  %v844 = vpop.f32.mrb[0].mxu0
  %v845 = vadd.f32 %v725, %v844
  %v846 = vpop.f32.mrb[0].mxu0
  %v847 = vpop.f32.mrb[0].mxu0
  %v848 = vadd.f32 %v728, %v847
  %v849 = vpop.f32.mrb[0].mxu0
  %850 = vmatprep.mubr.bf16.mxu0 %v343
  %851 = vmatmul.mubr.bf16.gmra.mrb[0].mxu0 %v342
  %v852 = vpop.f32.mrb[0].mxu0
  %v853 = vadd.f32 %v733, %v852
  %v854 = vpop.f32.mrb[0].mxu0
  %v855 = vpop.f32.mrb[0].mxu0
  %v856 = vadd.f32 %v736, %v855
  %v857 = vpop.f32.mrb[0].mxu0
  %858 = vmatprep.mubr.bf16.mxu0 %v348
  %859 = vmatmul.mubr.bf16.gmra.mrb[0].mxu0 %v347
  %v860 = vpop.f32.mrb[0].mxu0
  %v861 = vadd.f32 %v741, %v860
  %v862 = vpop.f32.mrb[0].mxu0
  %v863 = vpop.f32.mrb[0].mxu0
  %v864 = vadd.f32 %v744, %v863
  %v865 = vpop.f32.mrb[0].mxu0
  %866 = vmatprep.mubr.bf16.mxu0 %v353
  %867 = vmatmul.mubr.bf16.gmra.mrb[0].mxu0 %v352
  %v868 = vpop.f32.mrb[0].mxu0
  %v869 = vadd.f32 %v749, %v868
  %v870 = vpop.f32.mrb[0].mxu0
  %v871 = vpop.f32.mrb[0].mxu0
  %v872 = vadd.f32 %v752, %v871
  %v873 = vpop.f32.mrb[0].mxu0
  %874 = vmatprep.mubr.bf16.mxu0 %v358
  %875 = vmatmul.mubr.bf16.gmra.mrb[0].mxu0 %v357
  %v876 = vpop.f32.mrb[0].mxu0
  %v877 = vadd.f32 %v757, %v876
  %v878 = vpop.f32.mrb[0].mxu0
  %v879 = vpop.f32.mrb[0].mxu0
  %v880 = vadd.f32 %v760, %v879
  %v881 = vpop.f32.mrb[0].mxu0
  %882 = vmatprep.mubr.bf16.mxu0 %v363
  %883 = vmatmul.mubr.bf16.gmra.mrb[0].mxu0 %v362
  %v884 = vpop.f32.mrb[0].mxu0
  %v885 = vadd.f32 %v765, %v884
  %v886 = vpop.f32.mrb[0].mxu0
  %v887 = vpop.f32.mrb[0].mxu0
  %v888 = vadd.f32 %v768, %v887
  %v889 = vpop.f32.mrb[0].mxu0
  %890 = vmatprep.mubr.bf16.mxu0 %v368
  %891 = vmatmul.mubr.bf16.gmra.mrb[0].mxu0 %v367
  %v892 = vpop.f32.mrb[0].mxu0
  %v893 = vadd.f32 %v773, %v892
  %v894 = vpop.f32.mrb[0].mxu0
  %v895 = vpop.f32.mrb[0].mxu0
  %v896 = vadd.f32 %v776, %v895
  %v897 = vpop.f32.mrb[0].mxu0
  %898 = vmatprep.mubr.bf16.mxu0 %v373
  %899 = vmatmul.mubr.bf16.gmra.mrb[0].mxu0 %v372
  %v900 = vpop.f32.mrb[0].mxu0
  %v901 = vadd.f32 %v781, %v900
  %v902 = vpop.f32.mrb[0].mxu0
  %v903 = vpop.f32.mrb[0].mxu0
  %v904 = vadd.f32 %v784, %v903
  %v905 = vpop.f32.mrb[0].mxu0
  %906 = vmatprep.mubr.bf16.mxu0 %v378
  %907 = vmatmul.mubr.bf16.gmra.mrb[0].mxu0 %v377
  %v908 = vpop.f32.mrb[0].mxu0
  %v909 = vadd.f32 %v789, %v908
  %v910 = vpop.f32.mrb[0].mxu0
  %v911 = vpop.f32.mrb[0].mxu0
  %v912 = vpop.f32.mrb[0].mxu0
  %913 = vdwg.mxu0
  %914 = vmatprep.subr.bf16.mxu0 0
  %915 = vmatpush1.bf16.msra.mxu0 %v600
  %916 = vmatprep.subr.bf16.mxu0 0
  %917 = vmatpush1.bf16.msra.mxu0 %v601
  %918 = vmatprep.subr.bf16.mxu0 0
  %919 = vmatpush1.bf16.msra.mxu0 %v602
  %920 = vmatprep.subr.bf16.mxu0 0
  %921 = vmatpush1.bf16.msra.mxu0 %v603
  %922 = vmatprep.subr.bf16.mxu0 0
  %923 = vmatpush1.bf16.msra.mxu0 0
  %924 = vmatprep.subr.bf16.mxu0 0
  %925 = vmatpush1.bf16.msra.mxu0 0
  %926 = vmatprep.subr.bf16.mxu0 0
  %927 = vmatpush1.bf16.msra.mxu0 0
  %928 = vmatprep.subr.bf16.mxu0 0
  %929 = vmatpush1.bf16.msra.mxu0 0
  %930 = vmatprep.subr.bf16.mxu0 0
  %931 = vmatpush1.bf16.msra.mxu0 0
  %932 = vmatprep.subr.bf16.mxu0 0
  %933 = vmatpush1.bf16.msra.mxu0 0
  %934 = vmatprep.subr.bf16.mxu0 0
  %935 = vmatpush1.bf16.msra.mxu0 0
  %936 = vmatprep.subr.bf16.mxu0 0
  %937 = vmatpush1.bf16.msra.mxu0 0
  %938 = vmatprep.subr.bf16.mxu0 0
  %939 = vmatpush1.bf16.msra.mxu0 0
  %940 = vmatprep.subr.bf16.mxu0 0
  %941 = vmatpush1.bf16.msra.mxu0 0
  %942 = vmatprep.subr.bf16.mxu0 0
  %943 = vmatpush1.bf16.msra.mxu0 0
  %944 = vmatprep.subr.bf16.mxu0 0
  %945 = vmatpush1.bf16.msra.mxu0 0
  %946 = vmatprep.mubr.bf16.mxu0 0
  %947 = vmatmul.mubr.bf16.gmra.mrb[0].mxu0 %v642
  %v948 = vpop.f32.mrb[0].mxu0
  %v949 = vadd.f32 %v829, %v948
  %v950 = vpop.f32.mrb[0].mxu0
  %v951 = vpop.f32.mrb[0].mxu0
  %v952 = vadd.f32 %v832, %v951
  %v953 = vpop.f32.mrb[0].mxu0
  %954 = vmatprep.mubr.bf16.mxu0 0
  %955 = vmatmul.mubr.bf16.gmra.mrb[0].mxu0 %v645
  %v956 = vpop.f32.mrb[0].mxu0
  %v957 = vadd.f32 %v837, %v956
  %v958 = vpop.f32.mrb[0].mxu0
  %v959 = vpop.f32.mrb[0].mxu0
  %v960 = vadd.f32 %v840, %v959
  %v961 = vpop.f32.mrb[0].mxu0
  %962 = vmatprep.mubr.bf16.mxu0 0
  %963 = vmatmul.mubr.bf16.gmra.mrb[0].mxu0 %v648
  %v964 = vpop.f32.mrb[0].mxu0
  %v965 = vadd.f32 %v845, %v964
  %v966 = vpop.f32.mrb[0].mxu0
  %v967 = vpop.f32.mrb[0].mxu0
  %v968 = vadd.f32 %v848, %v967
  %v969 = vpop.f32.mrb[0].mxu0
  %970 = vmatprep.mubr.bf16.mxu0 0
  %971 = vmatmul.mubr.bf16.gmra.mrb[0].mxu0 %v651
  %v972 = vpop.f32.mrb[0].mxu0
  %v973 = vadd.f32 %v853, %v972
  %v974 = vpop.f32.mrb[0].mxu0
  %v975 = vpop.f32.mrb[0].mxu0
  %v976 = vadd.f32 %v856, %v975
  %v977 = vpop.f32.mrb[0].mxu0
  %978 = vmatprep.mubr.bf16.mxu0 0
  %979 = vmatmul.mubr.bf16.gmra.mrb[0].mxu0 %v654
  %v980 = vpop.f32.mrb[0].mxu0
  %v981 = vadd.f32 %v861, %v980
  %v982 = vpop.f32.mrb[0].mxu0
  %v983 = vpop.f32.mrb[0].mxu0
  %v984 = vadd.f32 %v864, %v983
  %v985 = vpop.f32.mrb[0].mxu0
  %986 = vmatprep.mubr.bf16.mxu0 0
  %987 = vmatmul.mubr.bf16.gmra.mrb[0].mxu0 %v657
  %v988 = vpop.f32.mrb[0].mxu0
  %v989 = vadd.f32 %v869, %v988
  %v990 = vpop.f32.mrb[0].mxu0
  %v991 = vpop.f32.mrb[0].mxu0
  %v992 = vadd.f32 %v872, %v991
  %v993 = vpop.f32.mrb[0].mxu0
  %994 = vmatprep.mubr.bf16.mxu0 0
  %995 = vmatmul.mubr.bf16.gmra.mrb[0].mxu0 %v660
  %v996 = vpop.f32.mrb[0].mxu0
  %v997 = vadd.f32 %v877, %v996
  %v998 = vpop.f32.mrb[0].mxu0
  %v999 = vpop.f32.mrb[0].mxu0
  %v1000 = vadd.f32 %v880, %v999
  %v1001 = vpop.f32.mrb[0].mxu0
  %1002 = vmatprep.mubr.bf16.mxu0 0
  %1003 = vmatmul.mubr.bf16.gmra.mrb[0].mxu0 %v663
  %v1004 = vpop.f32.mrb[0].mxu0
  %v1005 = vadd.f32 %v885, %v1004
  %v1006 = vpop.f32.mrb[0].mxu0
  %v1007 = vpop.f32.mrb[0].mxu0
  %v1008 = vadd.f32 %v888, %v1007
  %v1009 = vpop.f32.mrb[0].mxu0
  %1010 = vmatprep.mubr.bf16.mxu0 0
  %1011 = vmatmul.mubr.bf16.gmra.mrb[0].mxu0 %v666
  %v1012 = vpop.f32.mrb[0].mxu0
  %v1013 = vadd.f32 %v893, %v1012
  %v1014 = vpop.f32.mrb[0].mxu0
  %v1015 = vpop.f32.mrb[0].mxu0
  %v1016 = vadd.f32 %v896, %v1015
  %v1017 = vpop.f32.mrb[0].mxu0
  %1018 = vmatprep.mubr.bf16.mxu0 0
  %1019 = vmatmul.mubr.bf16.gmra.mrb[0].mxu0 %v669
  %v1020 = vpop.f32.mrb[0].mxu0
  %v1021 = vadd.f32 %v901, %v1020
  %v1022 = vpop.f32.mrb[0].mxu0
  %v1023 = vpop.f32.mrb[0].mxu0
  %v1024 = vadd.f32 %v904, %v1023
  %v1025 = vpop.f32.mrb[0].mxu0
  %1026 = vmatprep.mubr.bf16.mxu0 0
  %1027 = vmatmul.mubr.bf16.gmra.mrb[0].mxu0 %v672
  %v1028 = vpop.f32.mrb[0].mxu0
  %v1029 = vadd.f32 %v909, %v1028
  %v1030 = vpop.f32.mrb[0].mxu0
  %v1031 = vpop.f32.mrb[0].mxu0
  %v1032 = vpop.f32.mrb[0].mxu0
  %1033 = vdwg.mxu0
  %v1034 = vmax.f32 %v949, 0.0
  %v1035 = vmax.f32 %v952, 0.0
  %v1036 = vmax.f32 %v957, 0.0
  %v1037 = vmax.f32 %v960, 0.0
  %v1038 = vmax.f32 %v965, 0.0
  %v1039 = vmax.f32 %v968, 0.0
  %v1040 = vmax.f32 %v973, 0.0
  %v1041 = vmax.f32 %v976, 0.0
  %v1042 = vmax.f32 %v981, 0.0
  %v1043 = vmax.f32 %v984, 0.0
  %v1044 = vmax.f32 %v989, 0.0
  %v1045 = vmax.f32 %v992, 0.0
  %v1046 = vmax.f32 %v997, 0.0
  %v1047 = vmax.f32 %v1000, 0.0
  %v1048 = vmax.f32 %v1005, 0.0
  %v1049 = vmax.f32 %v1008, 0.0
  %v1050 = vmax.f32 %v1013, 0.0
  %v1051 = vmax.f32 %v1016, 0.0
  %v1052 = vmax.f32 %v1021, 0.0
  %v1053 = vmax.f32 %v1024, 0.0
  %v1054 = vmax.f32 %v1029, 0.0
  %v1055 = vpack.c.bf16 %v1035, %v1034
  %v1056 = vpack.c.bf16 %v1037, %v1036
  %v1057 = vpack.c.bf16 %v1039, %v1038
  %v1058 = vpack.c.bf16 %v1041, %v1040
  %v1059 = vpack.c.bf16 %v1043, %v1042
  %v1060 = vpack.c.bf16 %v1045, %v1044
  %v1061 = vpack.c.bf16 %v1047, %v1046
  %v1062 = vpack.c.bf16 %v1049, %v1048
  %v1063 = vpack.c.bf16 %v1051, %v1050
  %v1064 = vpack.c.bf16 %v1053, %v1052
  %v1065 = vpack.c.bf16 %v1054, %v1054
  %v1077 = vunpack.c.l.b16 %v1055
  %v1078 = vunpack.c.h.b16 %v1055
  %v1079 = vunpack.c.l.b16 %v1056
  %v1080 = vunpack.c.h.b16 %v1056
  %v1081 = vunpack.c.l.b16 %v1057
  %v1082 = vunpack.c.h.b16 %v1057
  %v1083 = vunpack.c.l.b16 %v1058
  %v1084 = vunpack.c.h.b16 %v1058
  %v1085 = vunpack.c.l.b16 %v1059
  %v1086 = vunpack.c.h.b16 %v1059
  %v1087 = vunpack.c.l.b16 %v1060
  %v1088 = vunpack.c.h.b16 %v1060
  %v1089 = vunpack.c.l.b16 %v1061
  %v1090 = vunpack.c.h.b16 %v1061
  %v1091 = vunpack.c.l.b16 %v1062
  %v1092 = vunpack.c.h.b16 %v1062
  %v1093 = vunpack.c.l.b16 %v1063
  %v1094 = vunpack.c.h.b16 %v1063
  %v1095 = vunpack.c.l.b16 %v1064
  %v1096 = vunpack.c.h.b16 %v1064
  %v1097 = vunpack.c.l.b16 %v1065
  %v1098 = vpack.c.b16 %v1077, %v1077
  %v1099 = vpack.c.b16 %v1078, %v1078
  %v1100 = vpack.c.b16 %v1079, %v1079
  %v1101 = vpack.c.b16 %v1080, %v1080
  %v1102 = vpack.c.b16 %v1081, %v1081
  %v1103 = vpack.c.b16 %v1082, %v1082
  %v1104 = vpack.c.b16 %v1083, %v1083
  %v1105 = vpack.c.b16 %v1084, %v1084
  %v1106 = vpack.c.b16 %v1085, %v1085
  %v1107 = vpack.c.b16 %v1086, %v1086
  %v1108 = vpack.c.b16 %v1087, %v1087
  %v1109 = vpack.c.b16 %v1088, %v1088
  %v1110 = vpack.c.b16 %v1089, %v1089
  %v1111 = vpack.c.b16 %v1090, %v1090
  %v1112 = vpack.c.b16 %v1091, %v1091
  %v1113 = vpack.c.b16 %v1092, %v1092
  %v1114 = vpack.c.b16 %v1093, %v1093
  %v1115 = vpack.c.b16 %v1094, %v1094
  %v1116 = vpack.c.b16 %v1095, %v1095
  %v1117 = vpack.c.b16 %v1096, %v1096
  %v1118 = vpack.c.b16 %v1097, %v1097
  %1140 = vst [vmem:[%s3] sm:$0xf] %v1098
  %1141 = vst [vmem:[%s3 + $0x4] sm:$0xf] %v1099
  %1142 = vst [vmem:[%s3 + $0x8] sm:$0xf] %v1100
  %1143 = vst [vmem:[%s3 + $0xc] sm:$0xf] %v1101
  %1144 = vst [vmem:[%s3 + $0x10] sm:$0xf] %v1102
  %1145 = vst [vmem:[%s3 + $0x14] sm:$0xf] %v1103
  %1146 = vst [vmem:[%s3 + $0x18] sm:$0xf] %v1104
  %1147 = vst [vmem:[%s3 + $0x1c] sm:$0xf] %v1105
  %1148 = vst [vmem:[%s3 + $0x20] sm:$0xf] %v1106
  %1149 = vst [vmem:[%s3 + $0x24] sm:$0xf] %v1107
  %1150 = vst [vmem:[%s3 + $0x28] sm:$0xf] %v1108
  %1151 = vst [vmem:[%s3 + $0x2c] sm:$0xf] %v1109
  %1152 = vst [vmem:[%s3 + $0x30] sm:$0xf] %v1110
  %1153 = vst [vmem:[%s3 + $0x34] sm:$0xf] %v1111
  %1154 = vst [vmem:[%s3 + $0x38] sm:$0xf] %v1112
  %1155 = vst [vmem:[%s3 + $0x3c] sm:$0xf] %v1113
  %1156 = vst [vmem:[%s3 + $0x40] sm:$0xf] %v1114
  %1157 = vst [vmem:[%s3 + $0x44] sm:$0xf] %v1115
  %1158 = vst [vmem:[%s3 + $0x48] sm:$0xf] %v1116
  %1159 = vst [vmem:[%s3 + $0x4c] sm:$0xf] %v1117
  %1160 = vst [vmem:[%s3 + $0x50] sm:$0xf] %v1118
  // Predicated region
  $region14: #{cnn_forward.6} parent=0 // pred_check
    _
  $region15: #{cnn_forward.6} parent=0 // pred_check_branch
    %1162 = sbr.rel (0) target = $region17
  $region16: #{cnn_forward.6} parent=0 // pred_region
    _
  $region17: #{cnn_forward.6} parent=0 // pred_fallthru
    _
  // Predicated region
  $region18: #{cnn_forward.6} parent=0 // pred_check
    _
  $region19: #{cnn_forward.6} parent=0 // pred_check_branch
    %1164 = sbr.rel (0) target = $region21
  $region20: #{cnn_forward.6} parent=0 // pred_region
    _
  $region21: #{cnn_forward.6} parent=0 // pred_fallthru
    _

// kernel: cnn_forward.7
$region0: #{cnn_forward.7}
  #allocation0 [shape = 'u32[]', space=smem, size = 0x4, offset = 0x4, fixed_abs, tag = 'smem constant byte address 0x4 - core index']
  #allocation1 [shape = 'u32[144,128]{1,0:T(1,128)}', space=vmem, size = 0x12000, scoped, tag = 'internal scratch']
  #allocation2 [shape = 'f32[8,512]{1,0:T(8,128)}', space=vmem, size = 0x4000, scoped, tag = 'scratch operand']
  %s0 = inlined_call_operand.vmem [shape: bf16[8,5376], index: 0, kind: input, shape index: {}]
  %s1 = inlined_call_operand.vmem [shape: bf16[5376,512], index: 1, kind: input, shape index: {}]
  %s2 = inlined_call_operand.vmem [shape: f32[1,512], index: 2, kind: input, shape index: {}]
  %s3 = inlined_call_operand.vmem [shape: f32[512,128], index: 3, kind: input, shape index: {}]
  %s4 = inlined_call_operand.vmem [shape: f32[1,128], index: 4, kind: input, shape index: {}]
  %s5 = inlined_call_operand.vmem [shape: f32[8,128], index: 5, kind: output, shape index: {}]
  %s6 = sld [smem:[#allocation0]]
  $region61: #{cnn_forward.7} parent=0
    _
  %s8 = ssub.s32 1, %s6
  %s9 = scalar_select 0, %s8, %s6
  loop: start=0, step=1, limit=4
  $region2: #{cnn_forward.7} parent=0 // loop_pre_header
    _
  $region3: #{cnn_forward.7} parent=0 // loop_header
    %s11 = sphi 0, %s15
    %p12 = scmp.ge.s32.totalorder %s11, 4
    %s21 = sphi 0, %s23
    %s24 = sphi 0, %s21
    %s25 = sphi 0, %s24
    %s41 = sphi 0, %s25
    %s47 = sphi 0, %s49
    %s50 = sphi 0, %s47
    %s51 = sphi 0, %s50
    %s67 = sphi 0, %s51
    %s71 = sphi 0, %s71
    %s73 = sphi 0, %s71
    %s74 = sphi 0, %s73
    %s88 = sphi 0, %s74
    %s92 = sphi 0, %s92
    %s94 = sphi 0, %s92
    %s95 = sphi 0, %s94
    %s109 = sphi 0, %s95
    %s113 = sphi 0, %s113
    %s115 = sphi 0, %s113
    %s116 = sphi 0, %s115
    %s130 = sphi 0, %s116
    %s134 = sphi 0, %s134
    %s136 = sphi 0, %s134
    %s137 = sphi 0, %s136
    %s151 = sphi 0, %s137
  $region4: #{cnn_forward.7} parent=0 // loop_header_branch
    %14 = sbr.rel (%p12) target = $region8
  $region5: #{cnn_forward.7} parent=0 // loop_body
    %s16 = ssub.s32 %s11, 1
    %s17 = ssub.s32 %s11, 2
    %s18 = sadd.s32 %s11, 1
    %s19 = ssub.s32 %s11, %s18
    %p20 = scmp.eq.s32.totalorder %s19, 0
    %s22 = sadd.s32 %s21, 1
    %s23 = scalar_select %p20, %s21, %s22
    %p26 = pneg %p20
    %p27 = scmp.eq.s32.totalorder %s11, 1
    %p28 = por %p26, %p27
    %p29 = scmp.ne.s32.totalorder %s21, %s24
    %p30 = scmp.eq.s32.totalorder %s11, 0
    %p31 = por %p29, %p30
    %p32 = scmp.ne.s32.totalorder %s21, %s24
    %p33 = scmp.eq.s32.totalorder %s16, 1
    %p34 = por %p32, %p33
    %p35 = scmp.ne.s32.totalorder %s24, %s25
    %p36 = scmp.eq.s32.totalorder %s16, 0
    %p37 = por %p35, %p36
    %p38 = scmp.ne.s32.totalorder %s24, %s25
    %p39 = scmp.eq.s32.totalorder %s17, 1
    %p40 = por %p38, %p39
    %p42 = scmp.ne.s32.totalorder %s25, %s41
    %p43 = scmp.eq.s32.totalorder %s17, 0
    %p44 = por %p42, %p43
    %s45 = ssub.s32 %s11, %s18
    %p46 = scmp.eq.s32.totalorder %s45, 0
    %s48 = sadd.s32 %s47, 1
    %s49 = scalar_select %p46, %s47, %s48
    %p52 = pneg %p46
    %p53 = scmp.eq.s32.totalorder %s11, 1
    %p54 = por %p52, %p53
    %p55 = scmp.ne.s32.totalorder %s47, %s50
    %p56 = scmp.eq.s32.totalorder %s11, 0
    %p57 = por %p55, %p56
    %p58 = scmp.ne.s32.totalorder %s47, %s50
    %p59 = scmp.eq.s32.totalorder %s16, 1
    %p60 = por %p58, %p59
    %p61 = scmp.ne.s32.totalorder %s50, %s51
    %p62 = scmp.eq.s32.totalorder %s16, 0
    %p63 = por %p61, %p62
    %p64 = scmp.ne.s32.totalorder %s50, %s51
    %p65 = scmp.eq.s32.totalorder %s17, 1
    %p66 = por %p64, %p65
    %p68 = scmp.ne.s32.totalorder %s51, %s67
    %p69 = scmp.eq.s32.totalorder %s17, 0
    %p70 = por %p68, %p69
    %s72 = sadd.s32 %s71, 1
    %p75 = scmp.eq.s32.totalorder %s11, 1
    %p76 = scmp.ne.s32.totalorder %s71, %s73
    %p77 = scmp.eq.s32.totalorder %s11, 0
    %p78 = por %p76, %p77
    %p79 = scmp.ne.s32.totalorder %s71, %s73
    %p80 = scmp.eq.s32.totalorder %s16, 1
    %p81 = por %p79, %p80
    %p82 = scmp.ne.s32.totalorder %s73, %s74
    %p83 = scmp.eq.s32.totalorder %s16, 0
    %p84 = por %p82, %p83
    %p85 = scmp.ne.s32.totalorder %s73, %s74
    %p86 = scmp.eq.s32.totalorder %s17, 1
    %p87 = por %p85, %p86
    %p89 = scmp.ne.s32.totalorder %s74, %s88
    %p90 = scmp.eq.s32.totalorder %s17, 0
    %p91 = por %p89, %p90
    %s93 = sadd.s32 %s92, 1
    %p96 = scmp.eq.s32.totalorder %s11, 1
    %p97 = scmp.ne.s32.totalorder %s92, %s94
    %p98 = scmp.eq.s32.totalorder %s11, 0
    %p99 = por %p97, %p98
    %p100 = scmp.ne.s32.totalorder %s92, %s94
    %p101 = scmp.eq.s32.totalorder %s16, 1
    %p102 = por %p100, %p101
    %p103 = scmp.ne.s32.totalorder %s94, %s95
    %p104 = scmp.eq.s32.totalorder %s16, 0
    %p105 = por %p103, %p104
    %p106 = scmp.ne.s32.totalorder %s94, %s95
    %p107 = scmp.eq.s32.totalorder %s17, 1
    %p108 = por %p106, %p107
    %p110 = scmp.ne.s32.totalorder %s95, %s109
    %p111 = scmp.eq.s32.totalorder %s17, 0
    %p112 = por %p110, %p111
    %s114 = sadd.s32 %s113, 1
    %p117 = scmp.eq.s32.totalorder %s11, 1
    %p118 = scmp.ne.s32.totalorder %s113, %s115
    %p119 = scmp.eq.s32.totalorder %s11, 0
    %p120 = por %p118, %p119
    %p121 = scmp.ne.s32.totalorder %s113, %s115
    %p122 = scmp.eq.s32.totalorder %s16, 1
    %p123 = por %p121, %p122
    %p124 = scmp.ne.s32.totalorder %s115, %s116
    %p125 = scmp.eq.s32.totalorder %s16, 0
    %p126 = por %p124, %p125
    %p127 = scmp.ne.s32.totalorder %s115, %s116
    %p128 = scmp.eq.s32.totalorder %s17, 1
    %p129 = por %p127, %p128
    %p131 = scmp.ne.s32.totalorder %s116, %s130
    %p132 = scmp.eq.s32.totalorder %s17, 0
    %p133 = por %p131, %p132
    %s135 = sadd.s32 %s134, 1
    %p138 = scmp.eq.s32.totalorder %s11, 1
    %p139 = scmp.ne.s32.totalorder %s134, %s136
    %p140 = scmp.eq.s32.totalorder %s11, 0
    %p141 = por %p139, %p140
    %p142 = scmp.ne.s32.totalorder %s134, %s136
    %p143 = scmp.eq.s32.totalorder %s16, 1
    %p144 = por %p142, %p143
    %p145 = scmp.ne.s32.totalorder %s136, %s137
    %p146 = scmp.eq.s32.totalorder %s16, 0
    %p147 = por %p145, %p146
    %p148 = scmp.ne.s32.totalorder %s136, %s137
    %p149 = scmp.eq.s32.totalorder %s17, 1
    %p150 = por %p148, %p149
    %p152 = scmp.ne.s32.totalorder %s137, %s151
    %p153 = scmp.eq.s32.totalorder %s17, 0
    %p154 = por %p152, %p153
    %p155 = scmp.le.s32.totalorder 1, %s11
    %p156 = scmp.lt.s32.totalorder %s11, 3
    %p157 = pnand %p155, %p156
    %p158 = pneg %p157
    // Predicated region
    $region9: #{cnn_forward.7} parent=5 // pred_check
      _
    $region10: #{cnn_forward.7} parent=5 // pred_check_branch
      %160 = sbr.rel (%p157) target = $region12
    $region11: #{cnn_forward.7} parent=5 // pred_region
      %s161 = ssub.s32 %s11, 1
      // Predicated region
      $region13: #{cnn_forward.7} parent=11 // pred_check
        %p162 = pneg %p84
      $region14: #{cnn_forward.7} parent=11 // pred_check_branch
        %164 = sbr.rel (%p162) target = $region16
      $region15: #{cnn_forward.7} parent=11 // pred_region
        _
      $region16: #{cnn_forward.7} parent=11 // pred_fallthru
        _
      // Predicated region
      $region17: #{cnn_forward.7} parent=11 // pred_check
        %p165 = pneg %p105
      $region18: #{cnn_forward.7} parent=11 // pred_check_branch
        %167 = sbr.rel (%p165) target = $region20
      $region19: #{cnn_forward.7} parent=11 // pred_region
        _
      $region20: #{cnn_forward.7} parent=11 // pred_fallthru
        _
      // Predicated region
      $region21: #{cnn_forward.7} parent=11 // pred_check
        %p168 = pneg %p126
      $region22: #{cnn_forward.7} parent=11 // pred_check_branch
        %170 = sbr.rel (%p168) target = $region24
      $region23: #{cnn_forward.7} parent=11 // pred_region
        _
      $region24: #{cnn_forward.7} parent=11 // pred_fallthru
        _
    $region12: #{cnn_forward.7} parent=5 // pred_fallthru
      _
    %p171 = scmp.lt.s32.totalorder %s11, 2
    // Predicated region
    $region25: #{cnn_forward.7} parent=5 // pred_check
      %p172 = pneg %p171
    $region26: #{cnn_forward.7} parent=5 // pred_check_branch
      %174 = sbr.rel (%p172) target = $region28
    $region27: #{cnn_forward.7} parent=5 // pred_region
      // Predicated region
      $region29: #{cnn_forward.7} parent=27 // pred_check
        %p175 = pneg %p31
      $region30: #{cnn_forward.7} parent=27 // pred_check_branch
        %177 = sbr.rel (%p175) target = $region32
      $region31: #{cnn_forward.7} parent=27 // pred_region
        %s178 = smul.u32 21, %s11
        %p179 = scmp.lt.s32.totalorder %s178, 41
        %s180 = scalar_select %p179, %s178, 41
        %s181 = smul.addr %s180, 4
        %s182 = scalar_lea.vmem %s0, %s181
        %s183 = smul.u32 21, %s11
      $region32: #{cnn_forward.7} parent=27 // pred_fallthru
        _
      // Predicated region
      $region33: #{cnn_forward.7} parent=27 // pred_check
        %p184 = pneg %p57
      $region34: #{cnn_forward.7} parent=27 // pred_check_branch
        %186 = sbr.rel (%p184) target = $region36
      $region35: #{cnn_forward.7} parent=27 // pred_region
        %s187 = smul.u32 336, %s11
        %p188 = scmp.lt.s32.totalorder %s187, 671
        %s189 = scalar_select %p188, %s187, 671
        %s190 = smul.addr %s189, 4
        %s191 = smul.addr %s190, 4
        %s192 = scalar_lea.vmem %s1, %s191
        %s193 = smul.u32 336, %s11
      $region36: #{cnn_forward.7} parent=27 // pred_fallthru
        _
    $region28: #{cnn_forward.7} parent=5 // pred_fallthru
      _
    %p194 = scmp.le.s32.totalorder 1, %s11
    %p195 = scmp.lt.s32.totalorder %s11, 3
    %p196 = pnand %p194, %p195
    %p197 = pneg %p196
    // Predicated region
    $region37: #{cnn_forward.7} parent=5 // pred_check
      _
    $region38: #{cnn_forward.7} parent=5 // pred_check_branch
      %199 = sbr.rel (%p196) target = $region40
    $region39: #{cnn_forward.7} parent=5 // pred_region
      %s200 = ssub.s32 %s11, 1
      %s201 = smul.u32 21, %s16
      %p202 = scmp.lt.s32.totalorder %s201, 41
      %s203 = scalar_select %p202, %s201, 41
      %s204 = smul.addr %s203, 4
      %s205 = scalar_lea.vmem %s0, %s204
      %p206 = pneg %p37
      %p207 = pneg %p34
      %s208 = smul.u32 336, %s16
      %p209 = scmp.lt.s32.totalorder %s208, 671
      %s210 = scalar_select %p209, %s208, 671
      %s211 = smul.addr %s210, 4
      %s212 = smul.addr %s211, 4
      %s213 = scalar_lea.vmem %s1, %s212
      %p214 = pneg %p63
      %p215 = pneg %p60
      %p216 = pneg %p84
      %p217 = pneg %p81
      %p218 = pneg %p105
      %p219 = pneg %p102
      %p220 = pneg %p126
      %p221 = pneg %p123
      %p222 = pneg %p147
      %p223 = pneg %p144
      %s224 = smul.u32 21, %s16
      %p225 = scmp.lt.s32.totalorder %s224, 41
      %s226 = scalar_select %p225, %s224, 41
      %s227 = smul.addr %s226, 4
      %s228 = scalar_lea.vmem %s0, %s227
      %s229 = smul.u32 21, %s16
      %s230 = smul.u32 336, %s16
      %p231 = scmp.lt.s32.totalorder %s230, 671
      %s232 = scalar_select %p231, %s230, 671
      %s233 = smul.addr %s232, 4
      %s234 = smul.addr %s233, 4
      %s235 = scalar_lea.vmem %s1, %s234
      %s236 = smul.u32 336, %s16
      %p238 = scmp.eq.s32.totalorder %s16, 0
      // Predicated region
      $region41: #{cnn_forward.7} parent=39 // pred_check
        %p239 = pneg %p238
      $region42: #{cnn_forward.7} parent=39 // pred_check_branch
        %241 = sbr.rel (%p239) target = $region44
      $region43: #{cnn_forward.7} parent=39 // pred_region
        %242 = vst [vmem:[#allocation2] sm:$0xff] 0.0
        %243 = vst [vmem:[#allocation2 + $0x8] sm:$0xff] 0.0
        %244 = vst [vmem:[#allocation2 + $0x10] sm:$0xff] 0.0
        %245 = vst [vmem:[#allocation2 + $0x18] sm:$0xff] 0.0
      $region44: #{cnn_forward.7} parent=39 // pred_fallthru
        _
      %v246 = vld [vmem:[#allocation2] sm:$0xff]
      %v247 = vld [vmem:[#allocation2 + $0x8] sm:$0xff]
      %v248 = vld [vmem:[#allocation2 + $0x10] sm:$0xff]
      %v249 = vld [vmem:[#allocation2 + $0x18] sm:$0xff]
      %v250 = vld [vmem:[%s228] sm:$0xff]
      %v251 = vld [vmem:[%s228 + $0x8] sm:$0xff]
      %v252 = vld [vmem:[%s228 + $0x10] sm:$0xff]
      %v253 = vld [vmem:[%s228 + $0x18] sm:$0xff]
      %v254 = vld [vmem:[%s228 + $0x20] sm:$0xff]
      %v255 = vld [vmem:[%s228 + $0x28] sm:$0xff]
      %v256 = vld [vmem:[%s228 + $0x30] sm:$0xff]
      %v257 = vld [vmem:[%s228 + $0x38] sm:$0xff]
      %v258 = vld [vmem:[%s228 + $0x40] sm:$0xff]
      %v259 = vld [vmem:[%s228 + $0x48] sm:$0xff]
      %v260 = vld [vmem:[%s228 + $0x50] sm:$0xf]
      %v261 = vld [vmem:[%s235] sm:$0xff]
      %v262 = vld [vmem:[%s235 + $0x8] sm:$0xff]
      %v263 = vld [vmem:[%s235 + $0x10] sm:$0xff]
      %v264 = vld [vmem:[%s235 + $0x18] sm:$0xff]
      %v265 = vld [vmem:[%s235 + $0x20] sm:$0xff]
      %v266 = vld [vmem:[%s235 + $0x28] sm:$0xff]
      %v267 = vld [vmem:[%s235 + $0x30] sm:$0xff]
      %v268 = vld [vmem:[%s235 + $0x38] sm:$0xff]
      %v269 = vld [vmem:[%s235 + $0x40] sm:$0xff]
      %v270 = vld [vmem:[%s235 + $0x48] sm:$0xff]
      %v271 = vld [vmem:[%s235 + $0x50] sm:$0xff]
      %v272 = vld [vmem:[%s235 + $0x58] sm:$0xff]
      %v273 = vld [vmem:[%s235 + $0x60] sm:$0xff]
      %v274 = vld [vmem:[%s235 + $0x68] sm:$0xff]
      %v275 = vld [vmem:[%s235 + $0x70] sm:$0xff]
      %v276 = vld [vmem:[%s235 + $0x78] sm:$0xff]
      %v277 = vld [vmem:[%s235 + $0x80] sm:$0xff]
      %v278 = vld [vmem:[%s235 + $0x88] sm:$0xff]
      %v279 = vld [vmem:[%s235 + $0x90] sm:$0xff]
      %v280 = vld [vmem:[%s235 + $0x98] sm:$0xff]
      %v281 = vld [vmem:[%s235 + $0xa0] sm:$0xff]
      %v282 = vld [vmem:[%s235 + $0xa8] sm:$0xff]
      %v283 = vld [vmem:[%s235 + $0xb0] sm:$0xff]
      %v284 = vld [vmem:[%s235 + $0xb8] sm:$0xff]
      %v285 = vld [vmem:[%s235 + $0xc0] sm:$0xff]
      %v286 = vld [vmem:[%s235 + $0xc8] sm:$0xff]
      %v287 = vld [vmem:[%s235 + $0xd0] sm:$0xff]
      %v288 = vld [vmem:[%s235 + $0xd8] sm:$0xff]
      %v289 = vld [vmem:[%s235 + $0xe0] sm:$0xff]
      %v290 = vld [vmem:[%s235 + $0xe8] sm:$0xff]
      %v291 = vld [vmem:[%s235 + $0xf0] sm:$0xff]
      %v292 = vld [vmem:[%s235 + $0xf8] sm:$0xff]
      %v293 = vld [vmem:[%s235 + $0x100] sm:$0xff]
      %v294 = vld [vmem:[%s235 + $0x108] sm:$0xff]
      %v295 = vld [vmem:[%s235 + $0x110] sm:$0xff]
      %v296 = vld [vmem:[%s235 + $0x118] sm:$0xff]
      %v297 = vld [vmem:[%s235 + $0x120] sm:$0xff]
      %v298 = vld [vmem:[%s235 + $0x128] sm:$0xff]
      %v299 = vld [vmem:[%s235 + $0x130] sm:$0xff]
      %v300 = vld [vmem:[%s235 + $0x138] sm:$0xff]
      %v301 = vld [vmem:[%s235 + $0x140] sm:$0xff]
      %v302 = vld [vmem:[%s235 + $0x148] sm:$0xff]
      %v303 = vld [vmem:[%s235 + $0x150] sm:$0xff]
      %v304 = vld [vmem:[%s235 + $0x158] sm:$0xff]
      %v305 = vld [vmem:[%s235 + $0x160] sm:$0xff]
      %v306 = vld [vmem:[%s235 + $0x168] sm:$0xff]
      %v307 = vld [vmem:[%s235 + $0x170] sm:$0xff]
      %v308 = vld [vmem:[%s235 + $0x178] sm:$0xff]
      %v309 = vld [vmem:[%s235 + $0x180] sm:$0xff]
      %v310 = vld [vmem:[%s235 + $0x188] sm:$0xff]
      %v311 = vld [vmem:[%s235 + $0x190] sm:$0xff]
      %v312 = vld [vmem:[%s235 + $0x198] sm:$0xff]
      %v313 = vld [vmem:[%s235 + $0x1a0] sm:$0xff]
      %v314 = vld [vmem:[%s235 + $0x1a8] sm:$0xff]
      %v315 = vld [vmem:[%s235 + $0x1b0] sm:$0xff]
      %v316 = vld [vmem:[%s235 + $0x1b8] sm:$0xff]
      %v317 = vld [vmem:[%s235 + $0x1c0] sm:$0xff]
      %v318 = vld [vmem:[%s235 + $0x1c8] sm:$0xff]
      %v319 = vld [vmem:[%s235 + $0x1d0] sm:$0xff]
      %v320 = vld [vmem:[%s235 + $0x1d8] sm:$0xff]
      %v321 = vld [vmem:[%s235 + $0x1e0] sm:$0xff]
      %v322 = vld [vmem:[%s235 + $0x1e8] sm:$0xff]
      %v323 = vld [vmem:[%s235 + $0x1f0] sm:$0xff]
      %v324 = vld [vmem:[%s235 + $0x1f8] sm:$0xff]
      %v325 = vld [vmem:[%s235 + $0x200] sm:$0xff]
      %v326 = vld [vmem:[%s235 + $0x208] sm:$0xff]
      %v327 = vld [vmem:[%s235 + $0x210] sm:$0xff]
      %v328 = vld [vmem:[%s235 + $0x218] sm:$0xff]
      %v329 = vld [vmem:[%s235 + $0x220] sm:$0xff]
      %v330 = vld [vmem:[%s235 + $0x228] sm:$0xff]
      %v331 = vld [vmem:[%s235 + $0x230] sm:$0xff]
      %v332 = vld [vmem:[%s235 + $0x238] sm:$0xff]
      %v333 = vld [vmem:[%s235 + $0x240] sm:$0xff]
      %v334 = vld [vmem:[%s235 + $0x248] sm:$0xff]
      %v335 = vld [vmem:[%s235 + $0x250] sm:$0xff]
      %v336 = vld [vmem:[%s235 + $0x258] sm:$0xff]
      %v337 = vld [vmem:[%s235 + $0x260] sm:$0xff]
      %v338 = vld [vmem:[%s235 + $0x268] sm:$0xff]
      %v339 = vld [vmem:[%s235 + $0x270] sm:$0xff]
      %v340 = vld [vmem:[%s235 + $0x278] sm:$0xff]
      %v341 = vld [vmem:[%s235 + $0x280] sm:$0xff]
      %v342 = vld [vmem:[%s235 + $0x288] sm:$0xff]
      %v343 = vld [vmem:[%s235 + $0x290] sm:$0xff]
      %v344 = vld [vmem:[%s235 + $0x298] sm:$0xff]
      %v345 = vld [vmem:[%s235 + $0x2a0] sm:$0xff]
      %v346 = vld [vmem:[%s235 + $0x2a8] sm:$0xff]
      %v347 = vld [vmem:[%s235 + $0x2b0] sm:$0xff]
      %v348 = vld [vmem:[%s235 + $0x2b8] sm:$0xff]
      %v349 = vld [vmem:[%s235 + $0x2c0] sm:$0xff]
      %v350 = vld [vmem:[%s235 + $0x2c8] sm:$0xff]
      %v351 = vld [vmem:[%s235 + $0x2d0] sm:$0xff]
      %v352 = vld [vmem:[%s235 + $0x2d8] sm:$0xff]
      %v353 = vld [vmem:[%s235 + $0x2e0] sm:$0xff]
      %v354 = vld [vmem:[%s235 + $0x2e8] sm:$0xff]
      %v355 = vld [vmem:[%s235 + $0x2f0] sm:$0xff]
      %v356 = vld [vmem:[%s235 + $0x2f8] sm:$0xff]
      %v357 = vld [vmem:[%s235 + $0x300] sm:$0xff]
      %v358 = vld [vmem:[%s235 + $0x308] sm:$0xff]
      %v359 = vld [vmem:[%s235 + $0x310] sm:$0xff]
      %v360 = vld [vmem:[%s235 + $0x318] sm:$0xff]
      %v361 = vld [vmem:[%s235 + $0x320] sm:$0xff]
      %v362 = vld [vmem:[%s235 + $0x328] sm:$0xff]
      %v363 = vld [vmem:[%s235 + $0x330] sm:$0xff]
      %v364 = vld [vmem:[%s235 + $0x338] sm:$0xff]
      %v365 = vld [vmem:[%s235 + $0x340] sm:$0xff]
      %v366 = vld [vmem:[%s235 + $0x348] sm:$0xff]
      %v367 = vld [vmem:[%s235 + $0x350] sm:$0xff]
      %v368 = vld [vmem:[%s235 + $0x358] sm:$0xff]
      %v369 = vld [vmem:[%s235 + $0x360] sm:$0xff]
      %v370 = vld [vmem:[%s235 + $0x368] sm:$0xff]
      %v371 = vld [vmem:[%s235 + $0x370] sm:$0xff]
      %v372 = vld [vmem:[%s235 + $0x378] sm:$0xff]
      %v373 = vld [vmem:[%s235 + $0x380] sm:$0xff]
      %v374 = vld [vmem:[%s235 + $0x388] sm:$0xff]
      %v375 = vld [vmem:[%s235 + $0x390] sm:$0xff]
      %v376 = vld [vmem:[%s235 + $0x398] sm:$0xff]
      %v377 = vld [vmem:[%s235 + $0x3a0] sm:$0xff]
      %v378 = vld [vmem:[%s235 + $0x3a8] sm:$0xff]
      %v379 = vld [vmem:[%s235 + $0x3b0] sm:$0xff]
      %v380 = vld [vmem:[%s235 + $0x3b8] sm:$0xff]
      %v381 = vld [vmem:[%s235 + $0x3c0] sm:$0xff]
      %v382 = vld [vmem:[%s235 + $0x3c8] sm:$0xff]
      %v383 = vld [vmem:[%s235 + $0x3d0] sm:$0xff]
      %v384 = vld [vmem:[%s235 + $0x3d8] sm:$0xff]
      %v385 = vld [vmem:[%s235 + $0x3e0] sm:$0xff]
      %v386 = vld [vmem:[%s235 + $0x3e8] sm:$0xff]
      %v387 = vld [vmem:[%s235 + $0x3f0] sm:$0xff]
      %v388 = vld [vmem:[%s235 + $0x3f8] sm:$0xff]
      %v389 = vld [vmem:[%s235 + $0x400] sm:$0xff]
      %v390 = vld [vmem:[%s235 + $0x408] sm:$0xff]
      %v391 = vld [vmem:[%s235 + $0x410] sm:$0xff]
      %v392 = vld [vmem:[%s235 + $0x418] sm:$0xff]
      %v393 = vld [vmem:[%s235 + $0x420] sm:$0xff]
      %v394 = vld [vmem:[%s235 + $0x428] sm:$0xff]
      %v395 = vld [vmem:[%s235 + $0x430] sm:$0xff]
      %v396 = vld [vmem:[%s235 + $0x438] sm:$0xff]
      %v397 = vld [vmem:[%s235 + $0x440] sm:$0xff]
      %v398 = vld [vmem:[%s235 + $0x448] sm:$0xff]
      %v399 = vld [vmem:[%s235 + $0x450] sm:$0xff]
      %v400 = vld [vmem:[%s235 + $0x458] sm:$0xff]
      %v401 = vld [vmem:[%s235 + $0x460] sm:$0xff]
      %v402 = vld [vmem:[%s235 + $0x468] sm:$0xff]
      %v403 = vld [vmem:[%s235 + $0x470] sm:$0xff]
      %v404 = vld [vmem:[%s235 + $0x478] sm:$0xff]
      %v405 = vld [vmem:[%s235 + $0x480] sm:$0xff]
      %v406 = vld [vmem:[%s235 + $0x488] sm:$0xff]
      %v407 = vld [vmem:[%s235 + $0x490] sm:$0xff]
      %v408 = vld [vmem:[%s235 + $0x498] sm:$0xff]
      %v409 = vld [vmem:[%s235 + $0x4a0] sm:$0xff]
      %v410 = vld [vmem:[%s235 + $0x4a8] sm:$0xff]
      %v411 = vld [vmem:[%s235 + $0x4b0] sm:$0xff]
      %v412 = vld [vmem:[%s235 + $0x4b8] sm:$0xff]
      %v413 = vld [vmem:[%s235 + $0x4c0] sm:$0xff]
      %v414 = vld [vmem:[%s235 + $0x4c8] sm:$0xff]
      %v415 = vld [vmem:[%s235 + $0x4d0] sm:$0xff]
      %v416 = vld [vmem:[%s235 + $0x4d8] sm:$0xff]
      %v417 = vld [vmem:[%s235 + $0x4e0] sm:$0xff]
      %v418 = vld [vmem:[%s235 + $0x4e8] sm:$0xff]
      %v419 = vld [vmem:[%s235 + $0x4f0] sm:$0xff]
      %v420 = vld [vmem:[%s235 + $0x4f8] sm:$0xff]
      %v421 = vld [vmem:[%s235 + $0x500] sm:$0xff]
      %v422 = vld [vmem:[%s235 + $0x508] sm:$0xff]
      %v423 = vld [vmem:[%s235 + $0x510] sm:$0xff]
      %v424 = vld [vmem:[%s235 + $0x518] sm:$0xff]
      %v425 = vld [vmem:[%s235 + $0x520] sm:$0xff]
      %v426 = vld [vmem:[%s235 + $0x528] sm:$0xff]
      %v427 = vld [vmem:[%s235 + $0x530] sm:$0xff]
      %v428 = vld [vmem:[%s235 + $0x538] sm:$0xff]
      %v429 = vld [vmem:[%s235 + $0x540] sm:$0xff]
      %v430 = vld [vmem:[%s235 + $0x548] sm:$0xff]
      %v431 = vld [vmem:[%s235 + $0x550] sm:$0xff]
      %v432 = vld [vmem:[%s235 + $0x558] sm:$0xff]
      %v433 = vld [vmem:[%s235 + $0x560] sm:$0xff]
      %v434 = vld [vmem:[%s235 + $0x568] sm:$0xff]
      %v435 = vld [vmem:[%s235 + $0x570] sm:$0xff]
      %v436 = vld [vmem:[%s235 + $0x578] sm:$0xff]
      %v437 = vld [vmem:[%s235 + $0x580] sm:$0xff]
      %v438 = vld [vmem:[%s235 + $0x588] sm:$0xff]
      %v439 = vld [vmem:[%s235 + $0x590] sm:$0xff]
      %v440 = vld [vmem:[%s235 + $0x598] sm:$0xff]
      %v441 = vld [vmem:[%s235 + $0x5a0] sm:$0xff]
      %v442 = vld [vmem:[%s235 + $0x5a8] sm:$0xff]
      %v443 = vld [vmem:[%s235 + $0x5b0] sm:$0xff]
      %v444 = vld [vmem:[%s235 + $0x5b8] sm:$0xff]
      %v445 = vld [vmem:[%s235 + $0x5c0] sm:$0xff]
      %v446 = vld [vmem:[%s235 + $0x5c8] sm:$0xff]
      %v447 = vld [vmem:[%s235 + $0x5d0] sm:$0xff]
      %v448 = vld [vmem:[%s235 + $0x5d8] sm:$0xff]
      %v449 = vld [vmem:[%s235 + $0x5e0] sm:$0xff]
      %v450 = vld [vmem:[%s235 + $0x5e8] sm:$0xff]
      %v451 = vld [vmem:[%s235 + $0x5f0] sm:$0xff]
      %v452 = vld [vmem:[%s235 + $0x5f8] sm:$0xff]
      %v453 = vld [vmem:[%s235 + $0x600] sm:$0xff]
      %v454 = vld [vmem:[%s235 + $0x608] sm:$0xff]
      %v455 = vld [vmem:[%s235 + $0x610] sm:$0xff]
      %v456 = vld [vmem:[%s235 + $0x618] sm:$0xff]
      %v457 = vld [vmem:[%s235 + $0x620] sm:$0xff]
      %v458 = vld [vmem:[%s235 + $0x628] sm:$0xff]
      %v459 = vld [vmem:[%s235 + $0x630] sm:$0xff]
      %v460 = vld [vmem:[%s235 + $0x638] sm:$0xff]
      %v461 = vld [vmem:[%s235 + $0x640] sm:$0xff]
      %v462 = vld [vmem:[%s235 + $0x648] sm:$0xff]
      %v463 = vld [vmem:[%s235 + $0x650] sm:$0xff]
      %v464 = vld [vmem:[%s235 + $0x658] sm:$0xff]
      %v465 = vld [vmem:[%s235 + $0x660] sm:$0xff]
      %v466 = vld [vmem:[%s235 + $0x668] sm:$0xff]
      %v467 = vld [vmem:[%s235 + $0x670] sm:$0xff]
      %v468 = vld [vmem:[%s235 + $0x678] sm:$0xff]
      %v469 = vld [vmem:[%s235 + $0x680] sm:$0xff]
      %v470 = vld [vmem:[%s235 + $0x688] sm:$0xff]
      %v471 = vld [vmem:[%s235 + $0x690] sm:$0xff]
      %v472 = vld [vmem:[%s235 + $0x698] sm:$0xff]
      %v473 = vld [vmem:[%s235 + $0x6a0] sm:$0xff]
      %v474 = vld [vmem:[%s235 + $0x6a8] sm:$0xff]
      %v475 = vld [vmem:[%s235 + $0x6b0] sm:$0xff]
      %v476 = vld [vmem:[%s235 + $0x6b8] sm:$0xff]
      %v477 = vld [vmem:[%s235 + $0x6c0] sm:$0xff]
      %v478 = vld [vmem:[%s235 + $0x6c8] sm:$0xff]
      %v479 = vld [vmem:[%s235 + $0x6d0] sm:$0xff]
      %v480 = vld [vmem:[%s235 + $0x6d8] sm:$0xff]
      %v481 = vld [vmem:[%s235 + $0x6e0] sm:$0xff]
      %v482 = vld [vmem:[%s235 + $0x6e8] sm:$0xff]
      %v483 = vld [vmem:[%s235 + $0x6f0] sm:$0xff]
      %v484 = vld [vmem:[%s235 + $0x6f8] sm:$0xff]
      %v485 = vld [vmem:[%s235 + $0x700] sm:$0xff]
      %v486 = vld [vmem:[%s235 + $0x708] sm:$0xff]
      %v487 = vld [vmem:[%s235 + $0x710] sm:$0xff]
      %v488 = vld [vmem:[%s235 + $0x718] sm:$0xff]
      %v489 = vld [vmem:[%s235 + $0x720] sm:$0xff]
      %v490 = vld [vmem:[%s235 + $0x728] sm:$0xff]
      %v491 = vld [vmem:[%s235 + $0x730] sm:$0xff]
      %v492 = vld [vmem:[%s235 + $0x738] sm:$0xff]
      %v493 = vld [vmem:[%s235 + $0x740] sm:$0xff]
      %v494 = vld [vmem:[%s235 + $0x748] sm:$0xff]
      %v495 = vld [vmem:[%s235 + $0x750] sm:$0xff]
      %v496 = vld [vmem:[%s235 + $0x758] sm:$0xff]
      %v497 = vld [vmem:[%s235 + $0x760] sm:$0xff]
      %v498 = vld [vmem:[%s235 + $0x768] sm:$0xff]
      %v499 = vld [vmem:[%s235 + $0x770] sm:$0xff]
      %v500 = vld [vmem:[%s235 + $0x778] sm:$0xff]
      %v501 = vld [vmem:[%s235 + $0x780] sm:$0xff]
      %v502 = vld [vmem:[%s235 + $0x788] sm:$0xff]
      %v503 = vld [vmem:[%s235 + $0x790] sm:$0xff]
      %v504 = vld [vmem:[%s235 + $0x798] sm:$0xff]
      %v505 = vld [vmem:[%s235 + $0x7a0] sm:$0xff]
      %v506 = vld [vmem:[%s235 + $0x7a8] sm:$0xff]
      %v507 = vld [vmem:[%s235 + $0x7b0] sm:$0xff]
      %v508 = vld [vmem:[%s235 + $0x7b8] sm:$0xff]
      %v509 = vld [vmem:[%s235 + $0x7c0] sm:$0xff]
      %v510 = vld [vmem:[%s235 + $0x7c8] sm:$0xff]
      %v511 = vld [vmem:[%s235 + $0x7d0] sm:$0xff]
      %v512 = vld [vmem:[%s235 + $0x7d8] sm:$0xff]
      %v513 = vld [vmem:[%s235 + $0x7e0] sm:$0xff]
      %v514 = vld [vmem:[%s235 + $0x7e8] sm:$0xff]
      %v515 = vld [vmem:[%s235 + $0x7f0] sm:$0xff]
      %v516 = vld [vmem:[%s235 + $0x7f8] sm:$0xff]
      %v517 = vld [vmem:[%s235 + $0x800] sm:$0xff]
      %v518 = vld [vmem:[%s235 + $0x808] sm:$0xff]
      %v519 = vld [vmem:[%s235 + $0x810] sm:$0xff]
      %v520 = vld [vmem:[%s235 + $0x818] sm:$0xff]
      %v521 = vld [vmem:[%s235 + $0x820] sm:$0xff]
      %v522 = vld [vmem:[%s235 + $0x828] sm:$0xff]
      %v523 = vld [vmem:[%s235 + $0x830] sm:$0xff]
      %v524 = vld [vmem:[%s235 + $0x838] sm:$0xff]
      %v525 = vld [vmem:[%s235 + $0x840] sm:$0xff]
      %v526 = vld [vmem:[%s235 + $0x848] sm:$0xff]
      %v527 = vld [vmem:[%s235 + $0x850] sm:$0xff]
      %v528 = vld [vmem:[%s235 + $0x858] sm:$0xff]
      %v529 = vld [vmem:[%s235 + $0x860] sm:$0xff]
      %v530 = vld [vmem:[%s235 + $0x868] sm:$0xff]
      %v531 = vld [vmem:[%s235 + $0x870] sm:$0xff]
      %v532 = vld [vmem:[%s235 + $0x878] sm:$0xff]
      %v533 = vld [vmem:[%s235 + $0x880] sm:$0xff]
      %v534 = vld [vmem:[%s235 + $0x888] sm:$0xff]
      %v535 = vld [vmem:[%s235 + $0x890] sm:$0xff]
      %v536 = vld [vmem:[%s235 + $0x898] sm:$0xff]
      %v537 = vld [vmem:[%s235 + $0x8a0] sm:$0xff]
      %v538 = vld [vmem:[%s235 + $0x8a8] sm:$0xff]
      %v539 = vld [vmem:[%s235 + $0x8b0] sm:$0xff]
      %v540 = vld [vmem:[%s235 + $0x8b8] sm:$0xff]
      %v541 = vld [vmem:[%s235 + $0x8c0] sm:$0xff]
      %v542 = vld [vmem:[%s235 + $0x8c8] sm:$0xff]
      %v543 = vld [vmem:[%s235 + $0x8d0] sm:$0xff]
      %v544 = vld [vmem:[%s235 + $0x8d8] sm:$0xff]
      %v545 = vld [vmem:[%s235 + $0x8e0] sm:$0xff]
      %v546 = vld [vmem:[%s235 + $0x8e8] sm:$0xff]
      %v547 = vld [vmem:[%s235 + $0x8f0] sm:$0xff]
      %v548 = vld [vmem:[%s235 + $0x8f8] sm:$0xff]
      %v549 = vld [vmem:[%s235 + $0x900] sm:$0xff]
      %v550 = vld [vmem:[%s235 + $0x908] sm:$0xff]
      %v551 = vld [vmem:[%s235 + $0x910] sm:$0xff]
      %v552 = vld [vmem:[%s235 + $0x918] sm:$0xff]
      %v553 = vld [vmem:[%s235 + $0x920] sm:$0xff]
      %v554 = vld [vmem:[%s235 + $0x928] sm:$0xff]
      %v555 = vld [vmem:[%s235 + $0x930] sm:$0xff]
      %v556 = vld [vmem:[%s235 + $0x938] sm:$0xff]
      %v557 = vld [vmem:[%s235 + $0x940] sm:$0xff]
      %v558 = vld [vmem:[%s235 + $0x948] sm:$0xff]
      %v559 = vld [vmem:[%s235 + $0x950] sm:$0xff]
      %v560 = vld [vmem:[%s235 + $0x958] sm:$0xff]
      %v561 = vld [vmem:[%s235 + $0x960] sm:$0xff]
      %v562 = vld [vmem:[%s235 + $0x968] sm:$0xff]
      %v563 = vld [vmem:[%s235 + $0x970] sm:$0xff]
      %v564 = vld [vmem:[%s235 + $0x978] sm:$0xff]
      %v565 = vld [vmem:[%s235 + $0x980] sm:$0xff]
      %v566 = vld [vmem:[%s235 + $0x988] sm:$0xff]
      %v567 = vld [vmem:[%s235 + $0x990] sm:$0xff]
      %v568 = vld [vmem:[%s235 + $0x998] sm:$0xff]
      %v569 = vld [vmem:[%s235 + $0x9a0] sm:$0xff]
      %v570 = vld [vmem:[%s235 + $0x9a8] sm:$0xff]
      %v571 = vld [vmem:[%s235 + $0x9b0] sm:$0xff]
      %v572 = vld [vmem:[%s235 + $0x9b8] sm:$0xff]
      %v573 = vld [vmem:[%s235 + $0x9c0] sm:$0xff]
      %v574 = vld [vmem:[%s235 + $0x9c8] sm:$0xff]
      %v575 = vld [vmem:[%s235 + $0x9d0] sm:$0xff]
      %v576 = vld [vmem:[%s235 + $0x9d8] sm:$0xff]
      %v577 = vld [vmem:[%s235 + $0x9e0] sm:$0xff]
      %v578 = vld [vmem:[%s235 + $0x9e8] sm:$0xff]
      %v579 = vld [vmem:[%s235 + $0x9f0] sm:$0xff]
      %v580 = vld [vmem:[%s235 + $0x9f8] sm:$0xff]
      %v581 = vld [vmem:[%s235 + $0xa00] sm:$0xff]
      %v582 = vld [vmem:[%s235 + $0xa08] sm:$0xff]
      %v583 = vld [vmem:[%s235 + $0xa10] sm:$0xff]
      %v584 = vld [vmem:[%s235 + $0xa18] sm:$0xff]
      %v585 = vld [vmem:[%s235 + $0xa20] sm:$0xff]
      %v586 = vld [vmem:[%s235 + $0xa28] sm:$0xff]
      %v587 = vld [vmem:[%s235 + $0xa30] sm:$0xff]
      %v588 = vld [vmem:[%s235 + $0xa38] sm:$0xff]
      %v589 = vld [vmem:[%s235 + $0xa40] sm:$0xff]
      %v590 = vld [vmem:[%s235 + $0xa48] sm:$0xff]
      %v591 = vld [vmem:[%s235 + $0xa50] sm:$0xff]
      %v592 = vld [vmem:[%s235 + $0xa58] sm:$0xff]
      %v593 = vld [vmem:[%s235 + $0xa60] sm:$0xff]
      %v594 = vld [vmem:[%s235 + $0xa68] sm:$0xff]
      %v595 = vld [vmem:[%s235 + $0xa70] sm:$0xff]
      %v596 = vld [vmem:[%s235 + $0xa78] sm:$0xff]
      %v597 = vld [vmem:[%s235 + $0xa80] sm:$0xff]
      %v598 = vld [vmem:[%s235 + $0xa88] sm:$0xff]
      %v599 = vld [vmem:[%s235 + $0xa90] sm:$0xff]
      %v600 = vld [vmem:[%s235 + $0xa98] sm:$0xff]
      %v601 = vld [vmem:[%s235 + $0xaa0] sm:$0xff]
      %v602 = vld [vmem:[%s235 + $0xaa8] sm:$0xff]
      %v603 = vld [vmem:[%s235 + $0xab0] sm:$0xff]
      %v604 = vld [vmem:[%s235 + $0xab8] sm:$0xff]
      %v605 = vld [vmem:[%s235 + $0xac0] sm:$0xff]
      %v606 = vld [vmem:[%s235 + $0xac8] sm:$0xff]
      %v607 = vld [vmem:[%s235 + $0xad0] sm:$0xff]
      %v608 = vld [vmem:[%s235 + $0xad8] sm:$0xff]
      %v609 = vld [vmem:[%s235 + $0xae0] sm:$0xff]
      %v610 = vld [vmem:[%s235 + $0xae8] sm:$0xff]
      %v611 = vld [vmem:[%s235 + $0xaf0] sm:$0xff]
      %v612 = vld [vmem:[%s235 + $0xaf8] sm:$0xff]
      %v613 = vld [vmem:[%s235 + $0xb00] sm:$0xff]
      %v614 = vld [vmem:[%s235 + $0xb08] sm:$0xff]
      %v615 = vld [vmem:[%s235 + $0xb10] sm:$0xff]
      %v616 = vld [vmem:[%s235 + $0xb18] sm:$0xff]
      %v617 = vld [vmem:[%s235 + $0xb20] sm:$0xff]
      %v618 = vld [vmem:[%s235 + $0xb28] sm:$0xff]
      %v619 = vld [vmem:[%s235 + $0xb30] sm:$0xff]
      %v620 = vld [vmem:[%s235 + $0xb38] sm:$0xff]
      %v621 = vld [vmem:[%s235 + $0xb40] sm:$0xff]
      %v622 = vld [vmem:[%s235 + $0xb48] sm:$0xff]
      %v623 = vld [vmem:[%s235 + $0xb50] sm:$0xff]
      %v624 = vld [vmem:[%s235 + $0xb58] sm:$0xff]
      %v625 = vld [vmem:[%s235 + $0xb60] sm:$0xff]
      %v626 = vld [vmem:[%s235 + $0xb68] sm:$0xff]
      %v627 = vld [vmem:[%s235 + $0xb70] sm:$0xff]
      %v628 = vld [vmem:[%s235 + $0xb78] sm:$0xff]
      %v629 = vld [vmem:[%s235 + $0xb80] sm:$0xff]
      %v630 = vld [vmem:[%s235 + $0xb88] sm:$0xff]
      %v631 = vld [vmem:[%s235 + $0xb90] sm:$0xff]
      %v632 = vld [vmem:[%s235 + $0xb98] sm:$0xff]
      %v633 = vld [vmem:[%s235 + $0xba0] sm:$0xff]
      %v634 = vld [vmem:[%s235 + $0xba8] sm:$0xff]
      %v635 = vld [vmem:[%s235 + $0xbb0] sm:$0xff]
      %v636 = vld [vmem:[%s235 + $0xbb8] sm:$0xff]
      %v637 = vld [vmem:[%s235 + $0xbc0] sm:$0xff]
      %v638 = vld [vmem:[%s235 + $0xbc8] sm:$0xff]
      %v639 = vld [vmem:[%s235 + $0xbd0] sm:$0xff]
      %v640 = vld [vmem:[%s235 + $0xbd8] sm:$0xff]
      %v641 = vld [vmem:[%s235 + $0xbe0] sm:$0xff]
      %v642 = vld [vmem:[%s235 + $0xbe8] sm:$0xff]
      %v643 = vld [vmem:[%s235 + $0xbf0] sm:$0xff]
      %v644 = vld [vmem:[%s235 + $0xbf8] sm:$0xff]
      %v645 = vld [vmem:[%s235 + $0xc00] sm:$0xff]
      %v646 = vld [vmem:[%s235 + $0xc08] sm:$0xff]
      %v647 = vld [vmem:[%s235 + $0xc10] sm:$0xff]
      %v648 = vld [vmem:[%s235 + $0xc18] sm:$0xff]
      %v649 = vld [vmem:[%s235 + $0xc20] sm:$0xff]
      %v650 = vld [vmem:[%s235 + $0xc28] sm:$0xff]
      %v651 = vld [vmem:[%s235 + $0xc30] sm:$0xff]
      %v652 = vld [vmem:[%s235 + $0xc38] sm:$0xff]
      %v653 = vld [vmem:[%s235 + $0xc40] sm:$0xff]
      %v654 = vld [vmem:[%s235 + $0xc48] sm:$0xff]
      %v655 = vld [vmem:[%s235 + $0xc50] sm:$0xff]
      %v656 = vld [vmem:[%s235 + $0xc58] sm:$0xff]
      %v657 = vld [vmem:[%s235 + $0xc60] sm:$0xff]
      %v658 = vld [vmem:[%s235 + $0xc68] sm:$0xff]
      %v659 = vld [vmem:[%s235 + $0xc70] sm:$0xff]
      %v660 = vld [vmem:[%s235 + $0xc78] sm:$0xff]
      %v661 = vld [vmem:[%s235 + $0xc80] sm:$0xff]
      %v662 = vld [vmem:[%s235 + $0xc88] sm:$0xff]
      %v663 = vld [vmem:[%s235 + $0xc90] sm:$0xff]
      %v664 = vld [vmem:[%s235 + $0xc98] sm:$0xff]
      %v665 = vld [vmem:[%s235 + $0xca0] sm:$0xff]
      %v666 = vld [vmem:[%s235 + $0xca8] sm:$0xff]
      %v667 = vld [vmem:[%s235 + $0xcb0] sm:$0xff]
      %v668 = vld [vmem:[%s235 + $0xcb8] sm:$0xff]
      %v669 = vld [vmem:[%s235 + $0xcc0] sm:$0xff]
      %v670 = vld [vmem:[%s235 + $0xcc8] sm:$0xff]
      %v671 = vld [vmem:[%s235 + $0xcd0] sm:$0xff]
      %v672 = vld [vmem:[%s235 + $0xcd8] sm:$0xff]
      %v673 = vld [vmem:[%s235 + $0xce0] sm:$0xff]
      %v674 = vld [vmem:[%s235 + $0xce8] sm:$0xff]
      %v675 = vld [vmem:[%s235 + $0xcf0] sm:$0xff]
      %v676 = vld [vmem:[%s235 + $0xcf8] sm:$0xff]
      %v677 = vld [vmem:[%s235 + $0xd00] sm:$0xff]
      %v678 = vld [vmem:[%s235 + $0xd08] sm:$0xff]
      %v679 = vld [vmem:[%s235 + $0xd10] sm:$0xff]
      %v680 = vld [vmem:[%s235 + $0xd18] sm:$0xff]
      %v681 = vld [vmem:[%s235 + $0xd20] sm:$0xff]
      %v682 = vld [vmem:[%s235 + $0xd28] sm:$0xff]
      %v683 = vld [vmem:[%s235 + $0xd30] sm:$0xff]
      %v684 = vld [vmem:[%s235 + $0xd38] sm:$0xff]
      %v685 = vld [vmem:[%s235 + $0xd40] sm:$0xff]
      %v686 = vld [vmem:[%s235 + $0xd48] sm:$0xff]
      %v687 = vld [vmem:[%s235 + $0xd50] sm:$0xff]
      %v688 = vld [vmem:[%s235 + $0xd58] sm:$0xff]
      %v689 = vld [vmem:[%s235 + $0xd60] sm:$0xff]
      %v690 = vld [vmem:[%s235 + $0xd68] sm:$0xff]
      %v691 = vld [vmem:[%s235 + $0xd70] sm:$0xff]
      %v692 = vld [vmem:[%s235 + $0xd78] sm:$0xff]
      %v693 = vld [vmem:[%s235 + $0xd80] sm:$0xff]
      %v694 = vld [vmem:[%s235 + $0xd88] sm:$0xff]
      %v695 = vld [vmem:[%s235 + $0xd90] sm:$0xff]
      %v696 = vld [vmem:[%s235 + $0xd98] sm:$0xff]
      %v697 = vld [vmem:[%s235 + $0xda0] sm:$0xff]
      %v698 = vld [vmem:[%s235 + $0xda8] sm:$0xff]
      %v699 = vld [vmem:[%s235 + $0xdb0] sm:$0xff]
      %v700 = vld [vmem:[%s235 + $0xdb8] sm:$0xff]
      %v701 = vld [vmem:[%s235 + $0xdc0] sm:$0xff]
      %v702 = vld [vmem:[%s235 + $0xdc8] sm:$0xff]
      %v703 = vld [vmem:[%s235 + $0xdd0] sm:$0xff]
      %v704 = vld [vmem:[%s235 + $0xdd8] sm:$0xff]
      %v705 = vld [vmem:[%s235 + $0xde0] sm:$0xff]
      %v706 = vld [vmem:[%s235 + $0xde8] sm:$0xff]
      %v707 = vld [vmem:[%s235 + $0xdf0] sm:$0xff]
      %v708 = vld [vmem:[%s235 + $0xdf8] sm:$0xff]
      %v709 = vld [vmem:[%s235 + $0xe00] sm:$0xff]
      %v710 = vld [vmem:[%s235 + $0xe08] sm:$0xff]
      %v711 = vld [vmem:[%s235 + $0xe10] sm:$0xff]
      %v712 = vld [vmem:[%s235 + $0xe18] sm:$0xff]
      %v713 = vld [vmem:[%s235 + $0xe20] sm:$0xff]
      %v714 = vld [vmem:[%s235 + $0xe28] sm:$0xff]
      %v715 = vld [vmem:[%s235 + $0xe30] sm:$0xff]
      %v716 = vld [vmem:[%s235 + $0xe38] sm:$0xff]
      %v717 = vld [vmem:[%s235 + $0xe40] sm:$0xff]
      %v718 = vld [vmem:[%s235 + $0xe48] sm:$0xff]
      %v719 = vld [vmem:[%s235 + $0xe50] sm:$0xff]
      %v720 = vld [vmem:[%s235 + $0xe58] sm:$0xff]
      %v721 = vld [vmem:[%s235 + $0xe60] sm:$0xff]
      %v722 = vld [vmem:[%s235 + $0xe68] sm:$0xff]
      %v723 = vld [vmem:[%s235 + $0xe70] sm:$0xff]
      %v724 = vld [vmem:[%s235 + $0xe78] sm:$0xff]
      %v725 = vld [vmem:[%s235 + $0xe80] sm:$0xff]
      %v726 = vld [vmem:[%s235 + $0xe88] sm:$0xff]
      %v727 = vld [vmem:[%s235 + $0xe90] sm:$0xff]
      %v728 = vld [vmem:[%s235 + $0xe98] sm:$0xff]
      %v729 = vld [vmem:[%s235 + $0xea0] sm:$0xff]
      %v730 = vld [vmem:[%s235 + $0xea8] sm:$0xff]
      %v731 = vld [vmem:[%s235 + $0xeb0] sm:$0xff]
      %v732 = vld [vmem:[%s235 + $0xeb8] sm:$0xff]
      %v733 = vld [vmem:[%s235 + $0xec0] sm:$0xff]
      %v734 = vld [vmem:[%s235 + $0xec8] sm:$0xff]
      %v735 = vld [vmem:[%s235 + $0xed0] sm:$0xff]
      %v736 = vld [vmem:[%s235 + $0xed8] sm:$0xff]
      %v737 = vld [vmem:[%s235 + $0xee0] sm:$0xff]
      %v738 = vld [vmem:[%s235 + $0xee8] sm:$0xff]
      %v739 = vld [vmem:[%s235 + $0xef0] sm:$0xff]
      %v740 = vld [vmem:[%s235 + $0xef8] sm:$0xff]
      %v741 = vld [vmem:[%s235 + $0xf00] sm:$0xff]
      %v742 = vld [vmem:[%s235 + $0xf08] sm:$0xff]
      %v743 = vld [vmem:[%s235 + $0xf10] sm:$0xff]
      %v744 = vld [vmem:[%s235 + $0xf18] sm:$0xff]
      %v745 = vld [vmem:[%s235 + $0xf20] sm:$0xff]
      %v746 = vld [vmem:[%s235 + $0xf28] sm:$0xff]
      %v747 = vld [vmem:[%s235 + $0xf30] sm:$0xff]
      %v748 = vld [vmem:[%s235 + $0xf38] sm:$0xff]
      %v749 = vld [vmem:[%s235 + $0xf40] sm:$0xff]
      %v750 = vld [vmem:[%s235 + $0xf48] sm:$0xff]
      %v751 = vld [vmem:[%s235 + $0xf50] sm:$0xff]
      %v752 = vld [vmem:[%s235 + $0xf58] sm:$0xff]
      %v753 = vld [vmem:[%s235 + $0xf60] sm:$0xff]
      %v754 = vld [vmem:[%s235 + $0xf68] sm:$0xff]
      %v755 = vld [vmem:[%s235 + $0xf70] sm:$0xff]
      %v756 = vld [vmem:[%s235 + $0xf78] sm:$0xff]
      %v757 = vld [vmem:[%s235 + $0xf80] sm:$0xff]
      %v758 = vld [vmem:[%s235 + $0xf88] sm:$0xff]
      %v759 = vld [vmem:[%s235 + $0xf90] sm:$0xff]
      %v760 = vld [vmem:[%s235 + $0xf98] sm:$0xff]
      %v761 = vld [vmem:[%s235 + $0xfa0] sm:$0xff]
      %v762 = vld [vmem:[%s235 + $0xfa8] sm:$0xff]
      %v763 = vld [vmem:[%s235 + $0xfb0] sm:$0xff]
      %v764 = vld [vmem:[%s235 + $0xfb8] sm:$0xff]
      %v765 = vld [vmem:[%s235 + $0xfc0] sm:$0xff]
      %v766 = vld [vmem:[%s235 + $0xfc8] sm:$0xff]
      %v767 = vld [vmem:[%s235 + $0xfd0] sm:$0xff]
      %v768 = vld [vmem:[%s235 + $0xfd8] sm:$0xff]
      %v769 = vld [vmem:[%s235 + $0xfe0] sm:$0xff]
      %v770 = vld [vmem:[%s235 + $0xfe8] sm:$0xff]
      %v771 = vld [vmem:[%s235 + $0xff0] sm:$0xff]
      %v772 = vld [vmem:[%s235 + $0xff8] sm:$0xff]
      %v773 = vld [vmem:[%s235 + $0x1000] sm:$0xff]
      %v774 = vld [vmem:[%s235 + $0x1008] sm:$0xff]
      %v775 = vld [vmem:[%s235 + $0x1010] sm:$0xff]
      %v776 = vld [vmem:[%s235 + $0x1018] sm:$0xff]
      %v777 = vld [vmem:[%s235 + $0x1020] sm:$0xff]
      %v778 = vld [vmem:[%s235 + $0x1028] sm:$0xff]
      %v779 = vld [vmem:[%s235 + $0x1030] sm:$0xff]
      %v780 = vld [vmem:[%s235 + $0x1038] sm:$0xff]
      %v781 = vld [vmem:[%s235 + $0x1040] sm:$0xff]
      %v782 = vld [vmem:[%s235 + $0x1048] sm:$0xff]
      %v783 = vld [vmem:[%s235 + $0x1050] sm:$0xff]
      %v784 = vld [vmem:[%s235 + $0x1058] sm:$0xff]
      %v785 = vld [vmem:[%s235 + $0x1060] sm:$0xff]
      %v786 = vld [vmem:[%s235 + $0x1068] sm:$0xff]
      %v787 = vld [vmem:[%s235 + $0x1070] sm:$0xff]
      %v788 = vld [vmem:[%s235 + $0x1078] sm:$0xff]
      %v789 = vld [vmem:[%s235 + $0x1080] sm:$0xff]
      %v790 = vld [vmem:[%s235 + $0x1088] sm:$0xff]
      %v791 = vld [vmem:[%s235 + $0x1090] sm:$0xff]
      %v792 = vld [vmem:[%s235 + $0x1098] sm:$0xff]
      %v793 = vld [vmem:[%s235 + $0x10a0] sm:$0xff]
      %v794 = vld [vmem:[%s235 + $0x10a8] sm:$0xff]
      %v795 = vld [vmem:[%s235 + $0x10b0] sm:$0xff]
      %v796 = vld [vmem:[%s235 + $0x10b8] sm:$0xff]
      %v797 = vld [vmem:[%s235 + $0x10c0] sm:$0xff]
      %v798 = vld [vmem:[%s235 + $0x10c8] sm:$0xff]
      %v799 = vld [vmem:[%s235 + $0x10d0] sm:$0xff]
      %v800 = vld [vmem:[%s235 + $0x10d8] sm:$0xff]
      %v801 = vld [vmem:[%s235 + $0x10e0] sm:$0xff]
      %v802 = vld [vmem:[%s235 + $0x10e8] sm:$0xff]
      %v803 = vld [vmem:[%s235 + $0x10f0] sm:$0xff]
      %v804 = vld [vmem:[%s235 + $0x10f8] sm:$0xff]
      %v805 = vld [vmem:[%s235 + $0x1100] sm:$0xff]
      %v806 = vld [vmem:[%s235 + $0x1108] sm:$0xff]
      %v807 = vld [vmem:[%s235 + $0x1110] sm:$0xff]
      %v808 = vld [vmem:[%s235 + $0x1118] sm:$0xff]
      %v809 = vld [vmem:[%s235 + $0x1120] sm:$0xff]
      %v810 = vld [vmem:[%s235 + $0x1128] sm:$0xff]
      %v811 = vld [vmem:[%s235 + $0x1130] sm:$0xff]
      %v812 = vld [vmem:[%s235 + $0x1138] sm:$0xff]
      %v813 = vld [vmem:[%s235 + $0x1140] sm:$0xff]
      %v814 = vld [vmem:[%s235 + $0x1148] sm:$0xff]
      %v815 = vld [vmem:[%s235 + $0x1150] sm:$0xff]
      %v816 = vld [vmem:[%s235 + $0x1158] sm:$0xff]
      %v817 = vld [vmem:[%s235 + $0x1160] sm:$0xff]
      %v818 = vld [vmem:[%s235 + $0x1168] sm:$0xff]
      %v819 = vld [vmem:[%s235 + $0x1170] sm:$0xff]
      %v820 = vld [vmem:[%s235 + $0x1178] sm:$0xff]
      %v821 = vld [vmem:[%s235 + $0x1180] sm:$0xff]
      %v822 = vld [vmem:[%s235 + $0x1188] sm:$0xff]
      %v823 = vld [vmem:[%s235 + $0x1190] sm:$0xff]
      %v824 = vld [vmem:[%s235 + $0x1198] sm:$0xff]
      %v825 = vld [vmem:[%s235 + $0x11a0] sm:$0xff]
      %v826 = vld [vmem:[%s235 + $0x11a8] sm:$0xff]
      %v827 = vld [vmem:[%s235 + $0x11b0] sm:$0xff]
      %v828 = vld [vmem:[%s235 + $0x11b8] sm:$0xff]
      %v829 = vld [vmem:[%s235 + $0x11c0] sm:$0xff]
      %v830 = vld [vmem:[%s235 + $0x11c8] sm:$0xff]
      %v831 = vld [vmem:[%s235 + $0x11d0] sm:$0xff]
      %v832 = vld [vmem:[%s235 + $0x11d8] sm:$0xff]
      %v833 = vld [vmem:[%s235 + $0x11e0] sm:$0xff]
      %v834 = vld [vmem:[%s235 + $0x11e8] sm:$0xff]
      %v835 = vld [vmem:[%s235 + $0x11f0] sm:$0xff]
      %v836 = vld [vmem:[%s235 + $0x11f8] sm:$0xff]
      %v837 = vld [vmem:[%s235 + $0x1200] sm:$0xff]
      %v838 = vld [vmem:[%s235 + $0x1208] sm:$0xff]
      %v839 = vld [vmem:[%s235 + $0x1210] sm:$0xff]
      %v840 = vld [vmem:[%s235 + $0x1218] sm:$0xff]
      %v841 = vld [vmem:[%s235 + $0x1220] sm:$0xff]
      %v842 = vld [vmem:[%s235 + $0x1228] sm:$0xff]
      %v843 = vld [vmem:[%s235 + $0x1230] sm:$0xff]
      %v844 = vld [vmem:[%s235 + $0x1238] sm:$0xff]
      %v845 = vld [vmem:[%s235 + $0x1240] sm:$0xff]
      %v846 = vld [vmem:[%s235 + $0x1248] sm:$0xff]
      %v847 = vld [vmem:[%s235 + $0x1250] sm:$0xff]
      %v848 = vld [vmem:[%s235 + $0x1258] sm:$0xff]
      %v849 = vld [vmem:[%s235 + $0x1260] sm:$0xff]
      %v850 = vld [vmem:[%s235 + $0x1268] sm:$0xff]
      %v851 = vld [vmem:[%s235 + $0x1270] sm:$0xff]
      %v852 = vld [vmem:[%s235 + $0x1278] sm:$0xff]
      %v853 = vld [vmem:[%s235 + $0x1280] sm:$0xff]
      %v854 = vld [vmem:[%s235 + $0x1288] sm:$0xff]
      %v855 = vld [vmem:[%s235 + $0x1290] sm:$0xff]
      %v856 = vld [vmem:[%s235 + $0x1298] sm:$0xff]
      %v857 = vld [vmem:[%s235 + $0x12a0] sm:$0xff]
      %v858 = vld [vmem:[%s235 + $0x12a8] sm:$0xff]
      %v859 = vld [vmem:[%s235 + $0x12b0] sm:$0xff]
      %v860 = vld [vmem:[%s235 + $0x12b8] sm:$0xff]
      %v861 = vld [vmem:[%s235 + $0x12c0] sm:$0xff]
      %v862 = vld [vmem:[%s235 + $0x12c8] sm:$0xff]
      %v863 = vld [vmem:[%s235 + $0x12d0] sm:$0xff]
      %v864 = vld [vmem:[%s235 + $0x12d8] sm:$0xff]
      %v865 = vld [vmem:[%s235 + $0x12e0] sm:$0xff]
      %v866 = vld [vmem:[%s235 + $0x12e8] sm:$0xff]
      %v867 = vld [vmem:[%s235 + $0x12f0] sm:$0xff]
      %v868 = vld [vmem:[%s235 + $0x12f8] sm:$0xff]
      %v869 = vld [vmem:[%s235 + $0x1300] sm:$0xff]
      %v870 = vld [vmem:[%s235 + $0x1308] sm:$0xff]
      %v871 = vld [vmem:[%s235 + $0x1310] sm:$0xff]
      %v872 = vld [vmem:[%s235 + $0x1318] sm:$0xff]
      %v873 = vld [vmem:[%s235 + $0x1320] sm:$0xff]
      %v874 = vld [vmem:[%s235 + $0x1328] sm:$0xff]
      %v875 = vld [vmem:[%s235 + $0x1330] sm:$0xff]
      %v876 = vld [vmem:[%s235 + $0x1338] sm:$0xff]
      %v877 = vld [vmem:[%s235 + $0x1340] sm:$0xff]
      %v878 = vld [vmem:[%s235 + $0x1348] sm:$0xff]
      %v879 = vld [vmem:[%s235 + $0x1350] sm:$0xff]
      %v880 = vld [vmem:[%s235 + $0x1358] sm:$0xff]
      %v881 = vld [vmem:[%s235 + $0x1360] sm:$0xff]
      %v882 = vld [vmem:[%s235 + $0x1368] sm:$0xff]
      %v883 = vld [vmem:[%s235 + $0x1370] sm:$0xff]
      %v884 = vld [vmem:[%s235 + $0x1378] sm:$0xff]
      %v885 = vld [vmem:[%s235 + $0x1380] sm:$0xff]
      %v886 = vld [vmem:[%s235 + $0x1388] sm:$0xff]
      %v887 = vld [vmem:[%s235 + $0x1390] sm:$0xff]
      %v888 = vld [vmem:[%s235 + $0x1398] sm:$0xff]
      %v889 = vld [vmem:[%s235 + $0x13a0] sm:$0xff]
      %v890 = vld [vmem:[%s235 + $0x13a8] sm:$0xff]
      %v891 = vld [vmem:[%s235 + $0x13b0] sm:$0xff]
      %v892 = vld [vmem:[%s235 + $0x13b8] sm:$0xff]
      %v893 = vld [vmem:[%s235 + $0x13c0] sm:$0xff]
      %v894 = vld [vmem:[%s235 + $0x13c8] sm:$0xff]
      %v895 = vld [vmem:[%s235 + $0x13d0] sm:$0xff]
      %v896 = vld [vmem:[%s235 + $0x13d8] sm:$0xff]
      %v897 = vld [vmem:[%s235 + $0x13e0] sm:$0xff]
      %v898 = vld [vmem:[%s235 + $0x13e8] sm:$0xff]
      %v899 = vld [vmem:[%s235 + $0x13f0] sm:$0xff]
      %v900 = vld [vmem:[%s235 + $0x13f8] sm:$0xff]
      %v901 = vld [vmem:[%s235 + $0x1400] sm:$0xff]
      %v902 = vld [vmem:[%s235 + $0x1408] sm:$0xff]
      %v903 = vld [vmem:[%s235 + $0x1410] sm:$0xff]
      %v904 = vld [vmem:[%s235 + $0x1418] sm:$0xff]
      %v905 = vld [vmem:[%s235 + $0x1420] sm:$0xff]
      %v906 = vld [vmem:[%s235 + $0x1428] sm:$0xff]
      %v907 = vld [vmem:[%s235 + $0x1430] sm:$0xff]
      %v908 = vld [vmem:[%s235 + $0x1438] sm:$0xff]
      %v909 = vld [vmem:[%s235 + $0x1440] sm:$0xff]
      %v910 = vld [vmem:[%s235 + $0x1448] sm:$0xff]
      %v911 = vld [vmem:[%s235 + $0x1450] sm:$0xff]
      %v912 = vld [vmem:[%s235 + $0x1458] sm:$0xff]
      %v913 = vld [vmem:[%s235 + $0x1460] sm:$0xff]
      %v914 = vld [vmem:[%s235 + $0x1468] sm:$0xff]
      %v915 = vld [vmem:[%s235 + $0x1470] sm:$0xff]
      %v916 = vld [vmem:[%s235 + $0x1478] sm:$0xff]
      %v917 = vld [vmem:[%s235 + $0x1480] sm:$0xff]
      %v918 = vld [vmem:[%s235 + $0x1488] sm:$0xff]
      %v919 = vld [vmem:[%s235 + $0x1490] sm:$0xff]
      %v920 = vld [vmem:[%s235 + $0x1498] sm:$0xff]
      %v921 = vld [vmem:[%s235 + $0x14a0] sm:$0xff]
      %v922 = vld [vmem:[%s235 + $0x14a8] sm:$0xff]
      %v923 = vld [vmem:[%s235 + $0x14b0] sm:$0xff]
      %v924 = vld [vmem:[%s235 + $0x14b8] sm:$0xff]
      %v925 = vld [vmem:[%s235 + $0x14c0] sm:$0xff]
      %v926 = vld [vmem:[%s235 + $0x14c8] sm:$0xff]
      %v927 = vld [vmem:[%s235 + $0x14d0] sm:$0xff]
      %v928 = vld [vmem:[%s235 + $0x14d8] sm:$0xff]
      %v929 = vld [vmem:[%s235 + $0x14e0] sm:$0xff]
      %v930 = vld [vmem:[%s235 + $0x14e8] sm:$0xff]
      %v931 = vld [vmem:[%s235 + $0x14f0] sm:$0xff]
      %v932 = vld [vmem:[%s235 + $0x14f8] sm:$0xff]
      %v944 = vunpack.c.l.b16 %v250
      %v945 = vunpack.c.h.b16 %v250
      %v946 = vunpack.c.l.b16 %v251
      %v947 = vunpack.c.h.b16 %v251
      %v948 = vunpack.c.l.b16 %v252
      %v949 = vunpack.c.h.b16 %v252
      %v950 = vunpack.c.l.b16 %v253
      %v951 = vunpack.c.h.b16 %v253
      %v952 = vunpack.c.l.b16 %v254
      %v953 = vunpack.c.h.b16 %v254
      %v954 = vunpack.c.l.b16 %v255
      %v955 = vunpack.c.h.b16 %v255
      %v956 = vunpack.c.l.b16 %v256
      %v957 = vunpack.c.h.b16 %v256
      %v958 = vunpack.c.l.b16 %v257
      %v959 = vunpack.c.h.b16 %v257
      %v960 = vunpack.c.l.b16 %v258
      %v961 = vunpack.c.h.b16 %v258
      %v962 = vunpack.c.l.b16 %v259
      %v963 = vunpack.c.h.b16 %v259
      %v964 = vunpack.c.l.b16 %v260
      %v965 = vpack.c.b16 %v944, %v944
      %v966 = vpack.c.b16 %v945, %v945
      %v967 = vpack.c.b16 %v946, %v946
      %v968 = vpack.c.b16 %v947, %v947
      %v969 = vpack.c.b16 %v948, %v948
      %v970 = vpack.c.b16 %v949, %v949
      %v971 = vpack.c.b16 %v950, %v950
      %v972 = vpack.c.b16 %v951, %v951
      %v973 = vpack.c.b16 %v952, %v952
      %v974 = vpack.c.b16 %v953, %v953
      %v975 = vpack.c.b16 %v954, %v954
      %v976 = vpack.c.b16 %v955, %v955
      %v977 = vpack.c.b16 %v956, %v956
      %v978 = vpack.c.b16 %v957, %v957
      %v979 = vpack.c.b16 %v958, %v958
      %v980 = vpack.c.b16 %v959, %v959
      %v981 = vpack.c.b16 %v960, %v960
      %v982 = vpack.c.b16 %v961, %v961
      %v983 = vpack.c.b16 %v962, %v962
      %v984 = vpack.c.b16 %v963, %v963
      %v985 = vpack.c.b16 %v964, %v964
      %v1679 = vunpack.c.l.b16 %v261
      %v1680 = vunpack.c.h.b16 %v261
      %v1681 = vunpack.c.l.b16 %v262
      %v1682 = vunpack.c.h.b16 %v262
      %v1683 = vunpack.c.l.b16 %v263
      %v1684 = vunpack.c.h.b16 %v263
      %v1685 = vunpack.c.l.b16 %v264
      %v1686 = vunpack.c.h.b16 %v264
      %v1687 = vunpack.c.l.b16 %v265
      %v1688 = vunpack.c.h.b16 %v265
      %v1689 = vunpack.c.l.b16 %v266
      %v1690 = vunpack.c.h.b16 %v266
      %v1691 = vunpack.c.l.b16 %v267
      %v1692 = vunpack.c.h.b16 %v267
      %v1693 = vunpack.c.l.b16 %v268
      %v1694 = vunpack.c.h.b16 %v268
      %v1695 = vunpack.c.l.b16 %v269
      %v1696 = vunpack.c.h.b16 %v269
      %v1697 = vunpack.c.l.b16 %v270
      %v1698 = vunpack.c.h.b16 %v270
      %v1699 = vunpack.c.l.b16 %v271
      %v1700 = vunpack.c.h.b16 %v271
      %v1701 = vunpack.c.l.b16 %v272
      %v1702 = vunpack.c.h.b16 %v272
      %v1703 = vunpack.c.l.b16 %v273
      %v1704 = vunpack.c.h.b16 %v273
      %v1705 = vunpack.c.l.b16 %v274
      %v1706 = vunpack.c.h.b16 %v274
      %v1707 = vunpack.c.l.b16 %v275
      %v1708 = vunpack.c.h.b16 %v275
      %v1709 = vunpack.c.l.b16 %v276
      %v1710 = vunpack.c.h.b16 %v276
      %v1711 = vunpack.c.l.b16 %v277
      %v1712 = vunpack.c.h.b16 %v277
      %v1713 = vunpack.c.l.b16 %v278
      %v1714 = vunpack.c.h.b16 %v278
      %v1715 = vunpack.c.l.b16 %v279
      %v1716 = vunpack.c.h.b16 %v279
      %v1717 = vunpack.c.l.b16 %v280
      %v1718 = vunpack.c.h.b16 %v280
      %v1719 = vunpack.c.l.b16 %v281
      %v1720 = vunpack.c.h.b16 %v281
      %v1721 = vunpack.c.l.b16 %v282
      %v1722 = vunpack.c.h.b16 %v282
      %v1723 = vunpack.c.l.b16 %v283
      %v1724 = vunpack.c.h.b16 %v283
      %v1725 = vunpack.c.l.b16 %v284
      %v1726 = vunpack.c.h.b16 %v284
      %v1727 = vunpack.c.l.b16 %v285
      %v1728 = vunpack.c.h.b16 %v285
      %v1729 = vunpack.c.l.b16 %v286
      %v1730 = vunpack.c.h.b16 %v286
      %v1731 = vunpack.c.l.b16 %v287
      %v1732 = vunpack.c.h.b16 %v287
      %v1733 = vunpack.c.l.b16 %v288
      %v1734 = vunpack.c.h.b16 %v288
      %v1735 = vunpack.c.l.b16 %v289
      %v1736 = vunpack.c.h.b16 %v289
      %v1737 = vunpack.c.l.b16 %v290
      %v1738 = vunpack.c.h.b16 %v290
      %v1739 = vunpack.c.l.b16 %v291
      %v1740 = vunpack.c.h.b16 %v291
      %v1741 = vunpack.c.l.b16 %v292
      %v1742 = vunpack.c.h.b16 %v292
      %v1743 = vunpack.c.l.b16 %v293
      %v1744 = vunpack.c.h.b16 %v293
      %v1745 = vunpack.c.l.b16 %v294
      %v1746 = vunpack.c.h.b16 %v294
      %v1747 = vunpack.c.l.b16 %v295
      %v1748 = vunpack.c.h.b16 %v295
      %v1749 = vunpack.c.l.b16 %v296
      %v1750 = vunpack.c.h.b16 %v296
      %v1751 = vunpack.c.l.b16 %v297
      %v1752 = vunpack.c.h.b16 %v297
      %v1753 = vunpack.c.l.b16 %v298
      %v1754 = vunpack.c.h.b16 %v298
      %v1755 = vunpack.c.l.b16 %v299
      %v1756 = vunpack.c.h.b16 %v299
      %v1757 = vunpack.c.l.b16 %v300
      %v1758 = vunpack.c.h.b16 %v300
      %v1759 = vunpack.c.l.b16 %v301
      %v1760 = vunpack.c.h.b16 %v301
      %v1761 = vunpack.c.l.b16 %v302
      %v1762 = vunpack.c.h.b16 %v302
      %v1763 = vunpack.c.l.b16 %v303
      %v1764 = vunpack.c.h.b16 %v303
      %v1765 = vunpack.c.l.b16 %v304
      %v1766 = vunpack.c.h.b16 %v304
      %v1767 = vunpack.c.l.b16 %v305
      %v1768 = vunpack.c.h.b16 %v305
      %v1769 = vunpack.c.l.b16 %v306
      %v1770 = vunpack.c.h.b16 %v306
      %v1771 = vunpack.c.l.b16 %v307
      %v1772 = vunpack.c.h.b16 %v307
      %v1773 = vunpack.c.l.b16 %v308
      %v1774 = vunpack.c.h.b16 %v308
      %v1775 = vunpack.c.l.b16 %v309
      %v1776 = vunpack.c.h.b16 %v309
      %v1777 = vunpack.c.l.b16 %v310
      %v1778 = vunpack.c.h.b16 %v310
      %v1779 = vunpack.c.l.b16 %v311
      %v1780 = vunpack.c.h.b16 %v311
      %v1781 = vunpack.c.l.b16 %v312
      %v1782 = vunpack.c.h.b16 %v312
      %v1783 = vunpack.c.l.b16 %v313
      %v1784 = vunpack.c.h.b16 %v313
      %v1785 = vunpack.c.l.b16 %v314
      %v1786 = vunpack.c.h.b16 %v314
      %v1787 = vunpack.c.l.b16 %v315
      %v1788 = vunpack.c.h.b16 %v315
      %v1789 = vunpack.c.l.b16 %v316
      %v1790 = vunpack.c.h.b16 %v316
      %v1791 = vunpack.c.l.b16 %v317
      %v1792 = vunpack.c.h.b16 %v317
      %v1793 = vunpack.c.l.b16 %v318
      %v1794 = vunpack.c.h.b16 %v318
      %v1795 = vunpack.c.l.b16 %v319
      %v1796 = vunpack.c.h.b16 %v319
      %v1797 = vunpack.c.l.b16 %v320
      %v1798 = vunpack.c.h.b16 %v320
      %v1799 = vunpack.c.l.b16 %v321
      %v1800 = vunpack.c.h.b16 %v321
      %v1801 = vunpack.c.l.b16 %v322
      %v1802 = vunpack.c.h.b16 %v322
      %v1803 = vunpack.c.l.b16 %v323
      %v1804 = vunpack.c.h.b16 %v323
      %v1805 = vunpack.c.l.b16 %v324
      %v1806 = vunpack.c.h.b16 %v324
      %v1807 = vunpack.c.l.b16 %v325
      %v1808 = vunpack.c.h.b16 %v325
      %v1809 = vunpack.c.l.b16 %v326
      %v1810 = vunpack.c.h.b16 %v326
      %v1811 = vunpack.c.l.b16 %v327
      %v1812 = vunpack.c.h.b16 %v327
      %v1813 = vunpack.c.l.b16 %v328
      %v1814 = vunpack.c.h.b16 %v328
      %v1815 = vunpack.c.l.b16 %v329
      %v1816 = vunpack.c.h.b16 %v329
      %v1817 = vunpack.c.l.b16 %v330
      %v1818 = vunpack.c.h.b16 %v330
      %v1819 = vunpack.c.l.b16 %v331
      %v1820 = vunpack.c.h.b16 %v331
      %v1821 = vunpack.c.l.b16 %v332
      %v1822 = vunpack.c.h.b16 %v332
      %v1823 = vunpack.c.l.b16 %v333
      %v1824 = vunpack.c.h.b16 %v333
      %v1825 = vunpack.c.l.b16 %v334
      %v1826 = vunpack.c.h.b16 %v334
      %v1827 = vunpack.c.l.b16 %v335
      %v1828 = vunpack.c.h.b16 %v335
      %v1829 = vunpack.c.l.b16 %v336
      %v1830 = vunpack.c.h.b16 %v336
      %v1831 = vunpack.c.l.b16 %v337
      %v1832 = vunpack.c.h.b16 %v337
      %v1833 = vunpack.c.l.b16 %v338
      %v1834 = vunpack.c.h.b16 %v338
      %v1835 = vunpack.c.l.b16 %v339
      %v1836 = vunpack.c.h.b16 %v339
      %v1837 = vunpack.c.l.b16 %v340
      %v1838 = vunpack.c.h.b16 %v340
      %v1839 = vunpack.c.l.b16 %v341
      %v1840 = vunpack.c.h.b16 %v341
      %v1841 = vunpack.c.l.b16 %v342
      %v1842 = vunpack.c.h.b16 %v342
      %v1843 = vunpack.c.l.b16 %v343
      %v1844 = vunpack.c.h.b16 %v343
      %v1845 = vunpack.c.l.b16 %v344
      %v1846 = vunpack.c.h.b16 %v344
      %v1847 = vunpack.c.l.b16 %v345
      %v1848 = vunpack.c.h.b16 %v345
      %v1849 = vunpack.c.l.b16 %v346
      %v1850 = vunpack.c.h.b16 %v346
      %v1851 = vunpack.c.l.b16 %v347
      %v1852 = vunpack.c.h.b16 %v347
      %v1853 = vunpack.c.l.b16 %v348
      %v1854 = vunpack.c.h.b16 %v348
      %v1855 = vunpack.c.l.b16 %v349
      %v1856 = vunpack.c.h.b16 %v349
      %v1857 = vunpack.c.l.b16 %v350
      %v1858 = vunpack.c.h.b16 %v350
      %v1859 = vunpack.c.l.b16 %v351
      %v1860 = vunpack.c.h.b16 %v351
      %v1861 = vunpack.c.l.b16 %v352
      %v1862 = vunpack.c.h.b16 %v352
      %v1863 = vunpack.c.l.b16 %v353
      %v1864 = vunpack.c.h.b16 %v353
      %v1865 = vunpack.c.l.b16 %v354
      %v1866 = vunpack.c.h.b16 %v354
      %v1867 = vunpack.c.l.b16 %v355
      %v1868 = vunpack.c.h.b16 %v355
      %v1869 = vunpack.c.l.b16 %v356
      %v1870 = vunpack.c.h.b16 %v356
      %v1871 = vunpack.c.l.b16 %v357
      %v1872 = vunpack.c.h.b16 %v357
      %v1873 = vunpack.c.l.b16 %v358
      %v1874 = vunpack.c.h.b16 %v358
      %v1875 = vunpack.c.l.b16 %v359
      %v1876 = vunpack.c.h.b16 %v359
      %v1877 = vunpack.c.l.b16 %v360
      %v1878 = vunpack.c.h.b16 %v360
      %v1879 = vunpack.c.l.b16 %v361
      %v1880 = vunpack.c.h.b16 %v361
      %v1881 = vunpack.c.l.b16 %v362
      %v1882 = vunpack.c.h.b16 %v362
      %v1883 = vunpack.c.l.b16 %v363
      %v1884 = vunpack.c.h.b16 %v363
      %v1885 = vunpack.c.l.b16 %v364
      %v1886 = vunpack.c.h.b16 %v364
      %v1887 = vunpack.c.l.b16 %v365
      %v1888 = vunpack.c.h.b16 %v365
      %v1889 = vunpack.c.l.b16 %v366
      %v1890 = vunpack.c.h.b16 %v366
      %v1891 = vunpack.c.l.b16 %v367
      %v1892 = vunpack.c.h.b16 %v367
      %v1893 = vunpack.c.l.b16 %v368
      %v1894 = vunpack.c.h.b16 %v368
      %v1895 = vunpack.c.l.b16 %v369
      %v1896 = vunpack.c.h.b16 %v369
      %v1897 = vunpack.c.l.b16 %v370
      %v1898 = vunpack.c.h.b16 %v370
      %v1899 = vunpack.c.l.b16 %v371
      %v1900 = vunpack.c.h.b16 %v371
      %v1901 = vunpack.c.l.b16 %v372
      %v1902 = vunpack.c.h.b16 %v372
      %v1903 = vunpack.c.l.b16 %v373
      %v1904 = vunpack.c.h.b16 %v373
      %v1905 = vunpack.c.l.b16 %v374
      %v1906 = vunpack.c.h.b16 %v374
      %v1907 = vunpack.c.l.b16 %v375
      %v1908 = vunpack.c.h.b16 %v375
      %v1909 = vunpack.c.l.b16 %v376
      %v1910 = vunpack.c.h.b16 %v376
      %v1911 = vunpack.c.l.b16 %v377
      %v1912 = vunpack.c.h.b16 %v377
      %v1913 = vunpack.c.l.b16 %v378
      %v1914 = vunpack.c.h.b16 %v378
      %v1915 = vunpack.c.l.b16 %v379
      %v1916 = vunpack.c.h.b16 %v379
      %v1917 = vunpack.c.l.b16 %v380
      %v1918 = vunpack.c.h.b16 %v380
      %v1919 = vunpack.c.l.b16 %v381
      %v1920 = vunpack.c.h.b16 %v381
      %v1921 = vunpack.c.l.b16 %v382
      %v1922 = vunpack.c.h.b16 %v382
      %v1923 = vunpack.c.l.b16 %v383
      %v1924 = vunpack.c.h.b16 %v383
      %v1925 = vunpack.c.l.b16 %v384
      %v1926 = vunpack.c.h.b16 %v384
      %v1927 = vunpack.c.l.b16 %v385
      %v1928 = vunpack.c.h.b16 %v385
      %v1929 = vunpack.c.l.b16 %v386
      %v1930 = vunpack.c.h.b16 %v386
      %v1931 = vunpack.c.l.b16 %v387
      %v1932 = vunpack.c.h.b16 %v387
      %v1933 = vunpack.c.l.b16 %v388
      %v1934 = vunpack.c.h.b16 %v388
      %v1935 = vunpack.c.l.b16 %v389
      %v1936 = vunpack.c.h.b16 %v389
      %v1937 = vunpack.c.l.b16 %v390
      %v1938 = vunpack.c.h.b16 %v390
      %v1939 = vunpack.c.l.b16 %v391
      %v1940 = vunpack.c.h.b16 %v391
      %v1941 = vunpack.c.l.b16 %v392
      %v1942 = vunpack.c.h.b16 %v392
      %v1943 = vunpack.c.l.b16 %v393
      %v1944 = vunpack.c.h.b16 %v393
      %v1945 = vunpack.c.l.b16 %v394
      %v1946 = vunpack.c.h.b16 %v394
      %v1947 = vunpack.c.l.b16 %v395
      %v1948 = vunpack.c.h.b16 %v395
      %v1949 = vunpack.c.l.b16 %v396
      %v1950 = vunpack.c.h.b16 %v396
      %v1951 = vunpack.c.l.b16 %v397
      %v1952 = vunpack.c.h.b16 %v397
      %v1953 = vunpack.c.l.b16 %v398
      %v1954 = vunpack.c.h.b16 %v398
      %v1955 = vunpack.c.l.b16 %v399
      %v1956 = vunpack.c.h.b16 %v399
      %v1957 = vunpack.c.l.b16 %v400
      %v1958 = vunpack.c.h.b16 %v400
      %v1959 = vunpack.c.l.b16 %v401
      %v1960 = vunpack.c.h.b16 %v401
      %v1961 = vunpack.c.l.b16 %v402
      %v1962 = vunpack.c.h.b16 %v402
      %v1963 = vunpack.c.l.b16 %v403
      %v1964 = vunpack.c.h.b16 %v403
      %v1965 = vunpack.c.l.b16 %v404
      %v1966 = vunpack.c.h.b16 %v404
      %v1967 = vunpack.c.l.b16 %v405
      %v1968 = vunpack.c.h.b16 %v405
      %v1969 = vunpack.c.l.b16 %v406
      %v1970 = vunpack.c.h.b16 %v406
      %v1971 = vunpack.c.l.b16 %v407
      %v1972 = vunpack.c.h.b16 %v407
      %v1973 = vunpack.c.l.b16 %v408
      %v1974 = vunpack.c.h.b16 %v408
      %v1975 = vunpack.c.l.b16 %v409
      %v1976 = vunpack.c.h.b16 %v409
      %v1977 = vunpack.c.l.b16 %v410
      %v1978 = vunpack.c.h.b16 %v410
      %v1979 = vunpack.c.l.b16 %v411
      %v1980 = vunpack.c.h.b16 %v411
      %v1981 = vunpack.c.l.b16 %v412
      %v1982 = vunpack.c.h.b16 %v412
      %v1983 = vunpack.c.l.b16 %v413
      %v1984 = vunpack.c.h.b16 %v413
      %v1985 = vunpack.c.l.b16 %v414
      %v1986 = vunpack.c.h.b16 %v414
      %v1987 = vunpack.c.l.b16 %v415
      %v1988 = vunpack.c.h.b16 %v415
      %v1989 = vunpack.c.l.b16 %v416
      %v1990 = vunpack.c.h.b16 %v416
      %v1991 = vunpack.c.l.b16 %v417
      %v1992 = vunpack.c.h.b16 %v417
      %v1993 = vunpack.c.l.b16 %v418
      %v1994 = vunpack.c.h.b16 %v418
      %v1995 = vunpack.c.l.b16 %v419
      %v1996 = vunpack.c.h.b16 %v419
      %v1997 = vunpack.c.l.b16 %v420
      %v1998 = vunpack.c.h.b16 %v420
      %v1999 = vunpack.c.l.b16 %v421
      %v2000 = vunpack.c.h.b16 %v421
      %v2001 = vunpack.c.l.b16 %v422
      %v2002 = vunpack.c.h.b16 %v422
      %v2003 = vunpack.c.l.b16 %v423
      %v2004 = vunpack.c.h.b16 %v423
      %v2005 = vunpack.c.l.b16 %v424
      %v2006 = vunpack.c.h.b16 %v424
      %v2007 = vunpack.c.l.b16 %v425
      %v2008 = vunpack.c.h.b16 %v425
      %v2009 = vunpack.c.l.b16 %v426
      %v2010 = vunpack.c.h.b16 %v426
      %v2011 = vunpack.c.l.b16 %v427
      %v2012 = vunpack.c.h.b16 %v427
      %v2013 = vunpack.c.l.b16 %v428
      %v2014 = vunpack.c.h.b16 %v428
      %v2015 = vunpack.c.l.b16 %v429
      %v2016 = vunpack.c.h.b16 %v429
      %v2017 = vunpack.c.l.b16 %v430
      %v2018 = vunpack.c.h.b16 %v430
      %v2019 = vunpack.c.l.b16 %v431
      %v2020 = vunpack.c.h.b16 %v431
      %v2021 = vunpack.c.l.b16 %v432
      %v2022 = vunpack.c.h.b16 %v432
      %v2023 = vunpack.c.l.b16 %v433
      %v2024 = vunpack.c.h.b16 %v433
      %v2025 = vunpack.c.l.b16 %v434
      %v2026 = vunpack.c.h.b16 %v434
      %v2027 = vunpack.c.l.b16 %v435
      %v2028 = vunpack.c.h.b16 %v435
      %v2029 = vunpack.c.l.b16 %v436
      %v2030 = vunpack.c.h.b16 %v436
      %v2031 = vunpack.c.l.b16 %v437
      %v2032 = vunpack.c.h.b16 %v437
      %v2033 = vunpack.c.l.b16 %v438
      %v2034 = vunpack.c.h.b16 %v438
      %v2035 = vunpack.c.l.b16 %v439
      %v2036 = vunpack.c.h.b16 %v439
      %v2037 = vunpack.c.l.b16 %v440
      %v2038 = vunpack.c.h.b16 %v440
      %v2039 = vunpack.c.l.b16 %v441
      %v2040 = vunpack.c.h.b16 %v441
      %v2041 = vunpack.c.l.b16 %v442
      %v2042 = vunpack.c.h.b16 %v442
      %v2043 = vunpack.c.l.b16 %v443
      %v2044 = vunpack.c.h.b16 %v443
      %v2045 = vunpack.c.l.b16 %v444
      %v2046 = vunpack.c.h.b16 %v444
      %v2047 = vunpack.c.l.b16 %v445
      %v2048 = vunpack.c.h.b16 %v445
      %v2049 = vunpack.c.l.b16 %v446
      %v2050 = vunpack.c.h.b16 %v446
      %v2051 = vunpack.c.l.b16 %v447
      %v2052 = vunpack.c.h.b16 %v447
      %v2053 = vunpack.c.l.b16 %v448
      %v2054 = vunpack.c.h.b16 %v448
      %v2055 = vunpack.c.l.b16 %v449
      %v2056 = vunpack.c.h.b16 %v449
      %v2057 = vunpack.c.l.b16 %v450
      %v2058 = vunpack.c.h.b16 %v450
      %v2059 = vunpack.c.l.b16 %v451
      %v2060 = vunpack.c.h.b16 %v451
      %v2061 = vunpack.c.l.b16 %v452
      %v2062 = vunpack.c.h.b16 %v452
      %v2063 = vunpack.c.l.b16 %v453
      %v2064 = vunpack.c.h.b16 %v453
      %v2065 = vunpack.c.l.b16 %v454
      %v2066 = vunpack.c.h.b16 %v454
      %v2067 = vunpack.c.l.b16 %v455
      %v2068 = vunpack.c.h.b16 %v455
      %v2069 = vunpack.c.l.b16 %v456
      %v2070 = vunpack.c.h.b16 %v456
      %v2071 = vunpack.c.l.b16 %v457
      %v2072 = vunpack.c.h.b16 %v457
      %v2073 = vunpack.c.l.b16 %v458
      %v2074 = vunpack.c.h.b16 %v458
      %v2075 = vunpack.c.l.b16 %v459
      %v2076 = vunpack.c.h.b16 %v459
      %v2077 = vunpack.c.l.b16 %v460
      %v2078 = vunpack.c.h.b16 %v460
      %v2079 = vunpack.c.l.b16 %v461
      %v2080 = vunpack.c.h.b16 %v461
      %v2081 = vunpack.c.l.b16 %v462
      %v2082 = vunpack.c.h.b16 %v462
      %v2083 = vunpack.c.l.b16 %v463
      %v2084 = vunpack.c.h.b16 %v463
      %v2085 = vunpack.c.l.b16 %v464
      %v2086 = vunpack.c.h.b16 %v464
      %v2087 = vunpack.c.l.b16 %v465
      %v2088 = vunpack.c.h.b16 %v465
      %v2089 = vunpack.c.l.b16 %v466
      %v2090 = vunpack.c.h.b16 %v466
      %v2091 = vunpack.c.l.b16 %v467
      %v2092 = vunpack.c.h.b16 %v467
      %v2093 = vunpack.c.l.b16 %v468
      %v2094 = vunpack.c.h.b16 %v468
      %v2095 = vunpack.c.l.b16 %v469
      %v2096 = vunpack.c.h.b16 %v469
      %v2097 = vunpack.c.l.b16 %v470
      %v2098 = vunpack.c.h.b16 %v470
      %v2099 = vunpack.c.l.b16 %v471
      %v2100 = vunpack.c.h.b16 %v471
      %v2101 = vunpack.c.l.b16 %v472
      %v2102 = vunpack.c.h.b16 %v472
      %v2103 = vunpack.c.l.b16 %v473
      %v2104 = vunpack.c.h.b16 %v473
      %v2105 = vunpack.c.l.b16 %v474
      %v2106 = vunpack.c.h.b16 %v474
      %v2107 = vunpack.c.l.b16 %v475
      %v2108 = vunpack.c.h.b16 %v475
      %v2109 = vunpack.c.l.b16 %v476
      %v2110 = vunpack.c.h.b16 %v476
      %v2111 = vunpack.c.l.b16 %v477
      %v2112 = vunpack.c.h.b16 %v477
      %v2113 = vunpack.c.l.b16 %v478
      %v2114 = vunpack.c.h.b16 %v478
      %v2115 = vunpack.c.l.b16 %v479
      %v2116 = vunpack.c.h.b16 %v479
      %v2117 = vunpack.c.l.b16 %v480
      %v2118 = vunpack.c.h.b16 %v480
      %v2119 = vunpack.c.l.b16 %v481
      %v2120 = vunpack.c.h.b16 %v481
      %v2121 = vunpack.c.l.b16 %v482
      %v2122 = vunpack.c.h.b16 %v482
      %v2123 = vunpack.c.l.b16 %v483
      %v2124 = vunpack.c.h.b16 %v483
      %v2125 = vunpack.c.l.b16 %v484
      %v2126 = vunpack.c.h.b16 %v484
      %v2127 = vunpack.c.l.b16 %v485
      %v2128 = vunpack.c.h.b16 %v485
      %v2129 = vunpack.c.l.b16 %v486
      %v2130 = vunpack.c.h.b16 %v486
      %v2131 = vunpack.c.l.b16 %v487
      %v2132 = vunpack.c.h.b16 %v487
      %v2133 = vunpack.c.l.b16 %v488
      %v2134 = vunpack.c.h.b16 %v488
      %v2135 = vunpack.c.l.b16 %v489
      %v2136 = vunpack.c.h.b16 %v489
      %v2137 = vunpack.c.l.b16 %v490
      %v2138 = vunpack.c.h.b16 %v490
      %v2139 = vunpack.c.l.b16 %v491
      %v2140 = vunpack.c.h.b16 %v491
      %v2141 = vunpack.c.l.b16 %v492
      %v2142 = vunpack.c.h.b16 %v492
      %v2143 = vunpack.c.l.b16 %v493
      %v2144 = vunpack.c.h.b16 %v493
      %v2145 = vunpack.c.l.b16 %v494
      %v2146 = vunpack.c.h.b16 %v494
      %v2147 = vunpack.c.l.b16 %v495
      %v2148 = vunpack.c.h.b16 %v495
      %v2149 = vunpack.c.l.b16 %v496
      %v2150 = vunpack.c.h.b16 %v496
      %v2151 = vunpack.c.l.b16 %v497
      %v2152 = vunpack.c.h.b16 %v497
      %v2153 = vunpack.c.l.b16 %v498
      %v2154 = vunpack.c.h.b16 %v498
      %v2155 = vunpack.c.l.b16 %v499
      %v2156 = vunpack.c.h.b16 %v499
      %v2157 = vunpack.c.l.b16 %v500
      %v2158 = vunpack.c.h.b16 %v500
      %v2159 = vunpack.c.l.b16 %v501
      %v2160 = vunpack.c.h.b16 %v501
      %v2161 = vunpack.c.l.b16 %v502
      %v2162 = vunpack.c.h.b16 %v502
      %v2163 = vunpack.c.l.b16 %v503
      %v2164 = vunpack.c.h.b16 %v503
      %v2165 = vunpack.c.l.b16 %v504
      %v2166 = vunpack.c.h.b16 %v504
      %v2167 = vunpack.c.l.b16 %v505
      %v2168 = vunpack.c.h.b16 %v505
      %v2169 = vunpack.c.l.b16 %v506
      %v2170 = vunpack.c.h.b16 %v506
      %v2171 = vunpack.c.l.b16 %v507
      %v2172 = vunpack.c.h.b16 %v507
      %v2173 = vunpack.c.l.b16 %v508
      %v2174 = vunpack.c.h.b16 %v508
      %v2175 = vunpack.c.l.b16 %v509
      %v2176 = vunpack.c.h.b16 %v509
      %v2177 = vunpack.c.l.b16 %v510
      %v2178 = vunpack.c.h.b16 %v510
      %v2179 = vunpack.c.l.b16 %v511
      %v2180 = vunpack.c.h.b16 %v511
      %v2181 = vunpack.c.l.b16 %v512
      %v2182 = vunpack.c.h.b16 %v512
      %v2183 = vunpack.c.l.b16 %v513
      %v2184 = vunpack.c.h.b16 %v513
      %v2185 = vunpack.c.l.b16 %v514
      %v2186 = vunpack.c.h.b16 %v514
      %v2187 = vunpack.c.l.b16 %v515
      %v2188 = vunpack.c.h.b16 %v515
      %v2189 = vunpack.c.l.b16 %v516
      %v2190 = vunpack.c.h.b16 %v516
      %v2191 = vunpack.c.l.b16 %v517
      %v2192 = vunpack.c.h.b16 %v517
      %v2193 = vunpack.c.l.b16 %v518
      %v2194 = vunpack.c.h.b16 %v518
      %v2195 = vunpack.c.l.b16 %v519
      %v2196 = vunpack.c.h.b16 %v519
      %v2197 = vunpack.c.l.b16 %v520
      %v2198 = vunpack.c.h.b16 %v520
      %v2199 = vunpack.c.l.b16 %v521
      %v2200 = vunpack.c.h.b16 %v521
      %v2201 = vunpack.c.l.b16 %v522
      %v2202 = vunpack.c.h.b16 %v522
      %v2203 = vunpack.c.l.b16 %v523
      %v2204 = vunpack.c.h.b16 %v523
      %v2205 = vunpack.c.l.b16 %v524
      %v2206 = vunpack.c.h.b16 %v524
      %v2207 = vunpack.c.l.b16 %v525
      %v2208 = vunpack.c.h.b16 %v525
      %v2209 = vunpack.c.l.b16 %v526
      %v2210 = vunpack.c.h.b16 %v526
      %v2211 = vunpack.c.l.b16 %v527
      %v2212 = vunpack.c.h.b16 %v527
      %v2213 = vunpack.c.l.b16 %v528
      %v2214 = vunpack.c.h.b16 %v528
      %v2215 = vunpack.c.l.b16 %v529
      %v2216 = vunpack.c.h.b16 %v529
      %v2217 = vunpack.c.l.b16 %v530
      %v2218 = vunpack.c.h.b16 %v530
      %v2219 = vunpack.c.l.b16 %v531
      %v2220 = vunpack.c.h.b16 %v531
      %v2221 = vunpack.c.l.b16 %v532
      %v2222 = vunpack.c.h.b16 %v532
      %v2223 = vunpack.c.l.b16 %v533
      %v2224 = vunpack.c.h.b16 %v533
      %v2225 = vunpack.c.l.b16 %v534
      %v2226 = vunpack.c.h.b16 %v534
      %v2227 = vunpack.c.l.b16 %v535
      %v2228 = vunpack.c.h.b16 %v535
      %v2229 = vunpack.c.l.b16 %v536
      %v2230 = vunpack.c.h.b16 %v536
      %v2231 = vunpack.c.l.b16 %v537
      %v2232 = vunpack.c.h.b16 %v537
      %v2233 = vunpack.c.l.b16 %v538
      %v2234 = vunpack.c.h.b16 %v538
      %v2235 = vunpack.c.l.b16 %v539
      %v2236 = vunpack.c.h.b16 %v539
      %v2237 = vunpack.c.l.b16 %v540
      %v2238 = vunpack.c.h.b16 %v540
      %v2239 = vunpack.c.l.b16 %v541
      %v2240 = vunpack.c.h.b16 %v541
      %v2241 = vunpack.c.l.b16 %v542
      %v2242 = vunpack.c.h.b16 %v542
      %v2243 = vunpack.c.l.b16 %v543
      %v2244 = vunpack.c.h.b16 %v543
      %v2245 = vunpack.c.l.b16 %v544
      %v2246 = vunpack.c.h.b16 %v544
      %v2247 = vunpack.c.l.b16 %v545
      %v2248 = vunpack.c.h.b16 %v545
      %v2249 = vunpack.c.l.b16 %v546
      %v2250 = vunpack.c.h.b16 %v546
      %v2251 = vunpack.c.l.b16 %v547
      %v2252 = vunpack.c.h.b16 %v547
      %v2253 = vunpack.c.l.b16 %v548
      %v2254 = vunpack.c.h.b16 %v548
      %v2255 = vunpack.c.l.b16 %v549
      %v2256 = vunpack.c.h.b16 %v549
      %v2257 = vunpack.c.l.b16 %v550
      %v2258 = vunpack.c.h.b16 %v550
      %v2259 = vunpack.c.l.b16 %v551
      %v2260 = vunpack.c.h.b16 %v551
      %v2261 = vunpack.c.l.b16 %v552
      %v2262 = vunpack.c.h.b16 %v552
      %v2263 = vunpack.c.l.b16 %v553
      %v2264 = vunpack.c.h.b16 %v553
      %v2265 = vunpack.c.l.b16 %v554
      %v2266 = vunpack.c.h.b16 %v554
      %v2267 = vunpack.c.l.b16 %v555
      %v2268 = vunpack.c.h.b16 %v555
      %v2269 = vunpack.c.l.b16 %v556
      %v2270 = vunpack.c.h.b16 %v556
      %v2271 = vunpack.c.l.b16 %v557
      %v2272 = vunpack.c.h.b16 %v557
      %v2273 = vunpack.c.l.b16 %v558
      %v2274 = vunpack.c.h.b16 %v558
      %v2275 = vunpack.c.l.b16 %v559
      %v2276 = vunpack.c.h.b16 %v559
      %v2277 = vunpack.c.l.b16 %v560
      %v2278 = vunpack.c.h.b16 %v560
      %v2279 = vunpack.c.l.b16 %v561
      %v2280 = vunpack.c.h.b16 %v561
      %v2281 = vunpack.c.l.b16 %v562
      %v2282 = vunpack.c.h.b16 %v562
      %v2283 = vunpack.c.l.b16 %v563
      %v2284 = vunpack.c.h.b16 %v563
      %v2285 = vunpack.c.l.b16 %v564
      %v2286 = vunpack.c.h.b16 %v564
      %v2287 = vunpack.c.l.b16 %v565
      %v2288 = vunpack.c.h.b16 %v565
      %v2289 = vunpack.c.l.b16 %v566
      %v2290 = vunpack.c.h.b16 %v566
      %v2291 = vunpack.c.l.b16 %v567
      %v2292 = vunpack.c.h.b16 %v567
      %v2293 = vunpack.c.l.b16 %v568
      %v2294 = vunpack.c.h.b16 %v568
      %v2295 = vunpack.c.l.b16 %v569
      %v2296 = vunpack.c.h.b16 %v569
      %v2297 = vunpack.c.l.b16 %v570
      %v2298 = vunpack.c.h.b16 %v570
      %v2299 = vunpack.c.l.b16 %v571
      %v2300 = vunpack.c.h.b16 %v571
      %v2301 = vunpack.c.l.b16 %v572
      %v2302 = vunpack.c.h.b16 %v572
      %v2303 = vunpack.c.l.b16 %v573
      %v2304 = vunpack.c.h.b16 %v573
      %v2305 = vunpack.c.l.b16 %v574
      %v2306 = vunpack.c.h.b16 %v574
      %v2307 = vunpack.c.l.b16 %v575
      %v2308 = vunpack.c.h.b16 %v575
      %v2309 = vunpack.c.l.b16 %v576
      %v2310 = vunpack.c.h.b16 %v576
      %v2311 = vunpack.c.l.b16 %v577
      %v2312 = vunpack.c.h.b16 %v577
      %v2313 = vunpack.c.l.b16 %v578
      %v2314 = vunpack.c.h.b16 %v578
      %v2315 = vunpack.c.l.b16 %v579
      %v2316 = vunpack.c.h.b16 %v579
      %v2317 = vunpack.c.l.b16 %v580
      %v2318 = vunpack.c.h.b16 %v580
      %v2319 = vunpack.c.l.b16 %v581
      %v2320 = vunpack.c.h.b16 %v581
      %v2321 = vunpack.c.l.b16 %v582
      %v2322 = vunpack.c.h.b16 %v582
      %v2323 = vunpack.c.l.b16 %v583
      %v2324 = vunpack.c.h.b16 %v583
      %v2325 = vunpack.c.l.b16 %v584
      %v2326 = vunpack.c.h.b16 %v584
      %v2327 = vunpack.c.l.b16 %v585
      %v2328 = vunpack.c.h.b16 %v585
      %v2329 = vunpack.c.l.b16 %v586
      %v2330 = vunpack.c.h.b16 %v586
      %v2331 = vunpack.c.l.b16 %v587
      %v2332 = vunpack.c.h.b16 %v587
      %v2333 = vunpack.c.l.b16 %v588
      %v2334 = vunpack.c.h.b16 %v588
      %v2335 = vunpack.c.l.b16 %v589
      %v2336 = vunpack.c.h.b16 %v589
      %v2337 = vunpack.c.l.b16 %v590
      %v2338 = vunpack.c.h.b16 %v590
      %v2339 = vunpack.c.l.b16 %v591
      %v2340 = vunpack.c.h.b16 %v591
      %v2341 = vunpack.c.l.b16 %v592
      %v2342 = vunpack.c.h.b16 %v592
      %v2343 = vunpack.c.l.b16 %v593
      %v2344 = vunpack.c.h.b16 %v593
      %v2345 = vunpack.c.l.b16 %v594
      %v2346 = vunpack.c.h.b16 %v594
      %v2347 = vunpack.c.l.b16 %v595
      %v2348 = vunpack.c.h.b16 %v595
      %v2349 = vunpack.c.l.b16 %v596
      %v2350 = vunpack.c.h.b16 %v596
      %v2351 = vunpack.c.l.b16 %v597
      %v2352 = vunpack.c.h.b16 %v597
      %v2353 = vunpack.c.l.b16 %v598
      %v2354 = vunpack.c.h.b16 %v598
      %v2355 = vunpack.c.l.b16 %v599
      %v2356 = vunpack.c.h.b16 %v599
      %v2357 = vunpack.c.l.b16 %v600
      %v2358 = vunpack.c.h.b16 %v600
      %v2359 = vunpack.c.l.b16 %v601
      %v2360 = vunpack.c.h.b16 %v601
      %v2361 = vunpack.c.l.b16 %v602
      %v2362 = vunpack.c.h.b16 %v602
      %v2363 = vunpack.c.l.b16 %v603
      %v2364 = vunpack.c.h.b16 %v603
      %v2365 = vunpack.c.l.b16 %v604
      %v2366 = vunpack.c.h.b16 %v604
      %v2367 = vunpack.c.l.b16 %v605
      %v2368 = vunpack.c.h.b16 %v605
      %v2369 = vunpack.c.l.b16 %v606
      %v2370 = vunpack.c.h.b16 %v606
      %v2371 = vunpack.c.l.b16 %v607
      %v2372 = vunpack.c.h.b16 %v607
      %v2373 = vunpack.c.l.b16 %v608
      %v2374 = vunpack.c.h.b16 %v608
      %v2375 = vunpack.c.l.b16 %v609
      %v2376 = vunpack.c.h.b16 %v609
      %v2377 = vunpack.c.l.b16 %v610
      %v2378 = vunpack.c.h.b16 %v610
      %v2379 = vunpack.c.l.b16 %v611
      %v2380 = vunpack.c.h.b16 %v611
      %v2381 = vunpack.c.l.b16 %v612
      %v2382 = vunpack.c.h.b16 %v612
      %v2383 = vunpack.c.l.b16 %v613
      %v2384 = vunpack.c.h.b16 %v613
      %v2385 = vunpack.c.l.b16 %v614
      %v2386 = vunpack.c.h.b16 %v614
      %v2387 = vunpack.c.l.b16 %v615
      %v2388 = vunpack.c.h.b16 %v615
      %v2389 = vunpack.c.l.b16 %v616
      %v2390 = vunpack.c.h.b16 %v616
      %v2391 = vunpack.c.l.b16 %v617
      %v2392 = vunpack.c.h.b16 %v617
      %v2393 = vunpack.c.l.b16 %v618
      %v2394 = vunpack.c.h.b16 %v618
      %v2395 = vunpack.c.l.b16 %v619
      %v2396 = vunpack.c.h.b16 %v619
      %v2397 = vunpack.c.l.b16 %v620
      %v2398 = vunpack.c.h.b16 %v620
      %v2399 = vunpack.c.l.b16 %v621
      %v2400 = vunpack.c.h.b16 %v621
      %v2401 = vunpack.c.l.b16 %v622
      %v2402 = vunpack.c.h.b16 %v622
      %v2403 = vunpack.c.l.b16 %v623
      %v2404 = vunpack.c.h.b16 %v623
      %v2405 = vunpack.c.l.b16 %v624
      %v2406 = vunpack.c.h.b16 %v624
      %v2407 = vunpack.c.l.b16 %v625
      %v2408 = vunpack.c.h.b16 %v625
      %v2409 = vunpack.c.l.b16 %v626
      %v2410 = vunpack.c.h.b16 %v626
      %v2411 = vunpack.c.l.b16 %v627
      %v2412 = vunpack.c.h.b16 %v627
      %v2413 = vunpack.c.l.b16 %v628
      %v2414 = vunpack.c.h.b16 %v628
      %v2415 = vunpack.c.l.b16 %v629
      %v2416 = vunpack.c.h.b16 %v629
      %v2417 = vunpack.c.l.b16 %v630
      %v2418 = vunpack.c.h.b16 %v630
      %v2419 = vunpack.c.l.b16 %v631
      %v2420 = vunpack.c.h.b16 %v631
      %v2421 = vunpack.c.l.b16 %v632
      %v2422 = vunpack.c.h.b16 %v632
      %v2423 = vunpack.c.l.b16 %v633
      %v2424 = vunpack.c.h.b16 %v633
      %v2425 = vunpack.c.l.b16 %v634
      %v2426 = vunpack.c.h.b16 %v634
      %v2427 = vunpack.c.l.b16 %v635
      %v2428 = vunpack.c.h.b16 %v635
      %v2429 = vunpack.c.l.b16 %v636
      %v2430 = vunpack.c.h.b16 %v636
      %v2431 = vunpack.c.l.b16 %v637
      %v2432 = vunpack.c.h.b16 %v637
      %v2433 = vunpack.c.l.b16 %v638
      %v2434 = vunpack.c.h.b16 %v638
      %v2435 = vunpack.c.l.b16 %v639
      %v2436 = vunpack.c.h.b16 %v639
      %v2437 = vunpack.c.l.b16 %v640
      %v2438 = vunpack.c.h.b16 %v640
      %v2439 = vunpack.c.l.b16 %v641
      %v2440 = vunpack.c.h.b16 %v641
      %v2441 = vunpack.c.l.b16 %v642
      %v2442 = vunpack.c.h.b16 %v642
      %v2443 = vunpack.c.l.b16 %v643
      %v2444 = vunpack.c.h.b16 %v643
      %v2445 = vunpack.c.l.b16 %v644
      %v2446 = vunpack.c.h.b16 %v644
      %v2447 = vunpack.c.l.b16 %v645
      %v2448 = vunpack.c.h.b16 %v645
      %v2449 = vunpack.c.l.b16 %v646
      %v2450 = vunpack.c.h.b16 %v646
      %v2451 = vunpack.c.l.b16 %v647
      %v2452 = vunpack.c.h.b16 %v647
      %v2453 = vunpack.c.l.b16 %v648
      %v2454 = vunpack.c.h.b16 %v648
      %v2455 = vunpack.c.l.b16 %v649
      %v2456 = vunpack.c.h.b16 %v649
      %v2457 = vunpack.c.l.b16 %v650
      %v2458 = vunpack.c.h.b16 %v650
      %v2459 = vunpack.c.l.b16 %v651
      %v2460 = vunpack.c.h.b16 %v651
      %v2461 = vunpack.c.l.b16 %v652
      %v2462 = vunpack.c.h.b16 %v652
      %v2463 = vunpack.c.l.b16 %v653
      %v2464 = vunpack.c.h.b16 %v653
      %v2465 = vunpack.c.l.b16 %v654
      %v2466 = vunpack.c.h.b16 %v654
      %v2467 = vunpack.c.l.b16 %v655
      %v2468 = vunpack.c.h.b16 %v655
      %v2469 = vunpack.c.l.b16 %v656
      %v2470 = vunpack.c.h.b16 %v656
      %v2471 = vunpack.c.l.b16 %v657
      %v2472 = vunpack.c.h.b16 %v657
      %v2473 = vunpack.c.l.b16 %v658
      %v2474 = vunpack.c.h.b16 %v658
      %v2475 = vunpack.c.l.b16 %v659
      %v2476 = vunpack.c.h.b16 %v659
      %v2477 = vunpack.c.l.b16 %v660
      %v2478 = vunpack.c.h.b16 %v660
      %v2479 = vunpack.c.l.b16 %v661
      %v2480 = vunpack.c.h.b16 %v661
      %v2481 = vunpack.c.l.b16 %v662
      %v2482 = vunpack.c.h.b16 %v662
      %v2483 = vunpack.c.l.b16 %v663
      %v2484 = vunpack.c.h.b16 %v663
      %v2485 = vunpack.c.l.b16 %v664
      %v2486 = vunpack.c.h.b16 %v664
      %v2487 = vunpack.c.l.b16 %v665
      %v2488 = vunpack.c.h.b16 %v665
      %v2489 = vunpack.c.l.b16 %v666
      %v2490 = vunpack.c.h.b16 %v666
      %v2491 = vunpack.c.l.b16 %v667
      %v2492 = vunpack.c.h.b16 %v667
      %v2493 = vunpack.c.l.b16 %v668
      %v2494 = vunpack.c.h.b16 %v668
      %v2495 = vunpack.c.l.b16 %v669
      %v2496 = vunpack.c.h.b16 %v669
      %v2497 = vunpack.c.l.b16 %v670
      %v2498 = vunpack.c.h.b16 %v670
      %v2499 = vunpack.c.l.b16 %v671
      %v2500 = vunpack.c.h.b16 %v671
      %v2501 = vunpack.c.l.b16 %v672
      %v2502 = vunpack.c.h.b16 %v672
      %v2503 = vunpack.c.l.b16 %v673
      %v2504 = vunpack.c.h.b16 %v673
      %v2505 = vunpack.c.l.b16 %v674
      %v2506 = vunpack.c.h.b16 %v674
      %v2507 = vunpack.c.l.b16 %v675
      %v2508 = vunpack.c.h.b16 %v675
      %v2509 = vunpack.c.l.b16 %v676
      %v2510 = vunpack.c.h.b16 %v676
      %v2511 = vunpack.c.l.b16 %v677
      %v2512 = vunpack.c.h.b16 %v677
      %v2513 = vunpack.c.l.b16 %v678
      %v2514 = vunpack.c.h.b16 %v678
      %v2515 = vunpack.c.l.b16 %v679
      %v2516 = vunpack.c.h.b16 %v679
      %v2517 = vunpack.c.l.b16 %v680
      %v2518 = vunpack.c.h.b16 %v680
      %v2519 = vunpack.c.l.b16 %v681
      %v2520 = vunpack.c.h.b16 %v681
      %v2521 = vunpack.c.l.b16 %v682
      %v2522 = vunpack.c.h.b16 %v682
      %v2523 = vunpack.c.l.b16 %v683
      %v2524 = vunpack.c.h.b16 %v683
      %v2525 = vunpack.c.l.b16 %v684
      %v2526 = vunpack.c.h.b16 %v684
      %v2527 = vunpack.c.l.b16 %v685
      %v2528 = vunpack.c.h.b16 %v685
      %v2529 = vunpack.c.l.b16 %v686
      %v2530 = vunpack.c.h.b16 %v686
      %v2531 = vunpack.c.l.b16 %v687
      %v2532 = vunpack.c.h.b16 %v687
      %v2533 = vunpack.c.l.b16 %v688
      %v2534 = vunpack.c.h.b16 %v688
      %v2535 = vunpack.c.l.b16 %v689
      %v2536 = vunpack.c.h.b16 %v689
      %v2537 = vunpack.c.l.b16 %v690
      %v2538 = vunpack.c.h.b16 %v690
      %v2539 = vunpack.c.l.b16 %v691
      %v2540 = vunpack.c.h.b16 %v691
      %v2541 = vunpack.c.l.b16 %v692
      %v2542 = vunpack.c.h.b16 %v692
      %v2543 = vunpack.c.l.b16 %v693
      %v2544 = vunpack.c.h.b16 %v693
      %v2545 = vunpack.c.l.b16 %v694
      %v2546 = vunpack.c.h.b16 %v694
      %v2547 = vunpack.c.l.b16 %v695
      %v2548 = vunpack.c.h.b16 %v695
      %v2549 = vunpack.c.l.b16 %v696
      %v2550 = vunpack.c.h.b16 %v696
      %v2551 = vunpack.c.l.b16 %v697
      %v2552 = vunpack.c.h.b16 %v697
      %v2553 = vunpack.c.l.b16 %v698
      %v2554 = vunpack.c.h.b16 %v698
      %v2555 = vunpack.c.l.b16 %v699
      %v2556 = vunpack.c.h.b16 %v699
      %v2557 = vunpack.c.l.b16 %v700
      %v2558 = vunpack.c.h.b16 %v700
      %v2559 = vunpack.c.l.b16 %v701
      %v2560 = vunpack.c.h.b16 %v701
      %v2561 = vunpack.c.l.b16 %v702
      %v2562 = vunpack.c.h.b16 %v702
      %v2563 = vunpack.c.l.b16 %v703
      %v2564 = vunpack.c.h.b16 %v703
      %v2565 = vunpack.c.l.b16 %v704
      %v2566 = vunpack.c.h.b16 %v704
      %v2567 = vunpack.c.l.b16 %v705
      %v2568 = vunpack.c.h.b16 %v705
      %v2569 = vunpack.c.l.b16 %v706
      %v2570 = vunpack.c.h.b16 %v706
      %v2571 = vunpack.c.l.b16 %v707
      %v2572 = vunpack.c.h.b16 %v707
      %v2573 = vunpack.c.l.b16 %v708
      %v2574 = vunpack.c.h.b16 %v708
      %v2575 = vunpack.c.l.b16 %v709
      %v2576 = vunpack.c.h.b16 %v709
      %v2577 = vunpack.c.l.b16 %v710
      %v2578 = vunpack.c.h.b16 %v710
      %v2579 = vunpack.c.l.b16 %v711
      %v2580 = vunpack.c.h.b16 %v711
      %v2581 = vunpack.c.l.b16 %v712
      %v2582 = vunpack.c.h.b16 %v712
      %v2583 = vunpack.c.l.b16 %v713
      %v2584 = vunpack.c.h.b16 %v713
      %v2585 = vunpack.c.l.b16 %v714
      %v2586 = vunpack.c.h.b16 %v714
      %v2587 = vunpack.c.l.b16 %v715
      %v2588 = vunpack.c.h.b16 %v715
      %v2589 = vunpack.c.l.b16 %v716
      %v2590 = vunpack.c.h.b16 %v716
      %v2591 = vunpack.c.l.b16 %v717
      %v2592 = vunpack.c.h.b16 %v717
      %v2593 = vunpack.c.l.b16 %v718
      %v2594 = vunpack.c.h.b16 %v718
      %v2595 = vunpack.c.l.b16 %v719
      %v2596 = vunpack.c.h.b16 %v719
      %v2597 = vunpack.c.l.b16 %v720
      %v2598 = vunpack.c.h.b16 %v720
      %v2599 = vunpack.c.l.b16 %v721
      %v2600 = vunpack.c.h.b16 %v721
      %v2601 = vunpack.c.l.b16 %v722
      %v2602 = vunpack.c.h.b16 %v722
      %v2603 = vunpack.c.l.b16 %v723
      %v2604 = vunpack.c.h.b16 %v723
      %v2605 = vunpack.c.l.b16 %v724
      %v2606 = vunpack.c.h.b16 %v724
      %v2607 = vunpack.c.l.b16 %v725
      %v2608 = vunpack.c.h.b16 %v725
      %v2609 = vunpack.c.l.b16 %v726
      %v2610 = vunpack.c.h.b16 %v726
      %v2611 = vunpack.c.l.b16 %v727
      %v2612 = vunpack.c.h.b16 %v727
      %v2613 = vunpack.c.l.b16 %v728
      %v2614 = vunpack.c.h.b16 %v728
      %v2615 = vunpack.c.l.b16 %v729
      %v2616 = vunpack.c.h.b16 %v729
      %v2617 = vunpack.c.l.b16 %v730
      %v2618 = vunpack.c.h.b16 %v730
      %v2619 = vunpack.c.l.b16 %v731
      %v2620 = vunpack.c.h.b16 %v731
      %v2621 = vunpack.c.l.b16 %v732
      %v2622 = vunpack.c.h.b16 %v732
      %v2623 = vunpack.c.l.b16 %v733
      %v2624 = vunpack.c.h.b16 %v733
      %v2625 = vunpack.c.l.b16 %v734
      %v2626 = vunpack.c.h.b16 %v734
      %v2627 = vunpack.c.l.b16 %v735
      %v2628 = vunpack.c.h.b16 %v735
      %v2629 = vunpack.c.l.b16 %v736
      %v2630 = vunpack.c.h.b16 %v736
      %v2631 = vunpack.c.l.b16 %v737
      %v2632 = vunpack.c.h.b16 %v737
      %v2633 = vunpack.c.l.b16 %v738
      %v2634 = vunpack.c.h.b16 %v738
      %v2635 = vunpack.c.l.b16 %v739
      %v2636 = vunpack.c.h.b16 %v739
      %v2637 = vunpack.c.l.b16 %v740
      %v2638 = vunpack.c.h.b16 %v740
      %v2639 = vunpack.c.l.b16 %v741
      %v2640 = vunpack.c.h.b16 %v741
      %v2641 = vunpack.c.l.b16 %v742
      %v2642 = vunpack.c.h.b16 %v742
      %v2643 = vunpack.c.l.b16 %v743
      %v2644 = vunpack.c.h.b16 %v743
      %v2645 = vunpack.c.l.b16 %v744
      %v2646 = vunpack.c.h.b16 %v744
      %v2647 = vunpack.c.l.b16 %v745
      %v2648 = vunpack.c.h.b16 %v745
      %v2649 = vunpack.c.l.b16 %v746
      %v2650 = vunpack.c.h.b16 %v746
      %v2651 = vunpack.c.l.b16 %v747
      %v2652 = vunpack.c.h.b16 %v747
      %v2653 = vunpack.c.l.b16 %v748
      %v2654 = vunpack.c.h.b16 %v748
      %v2655 = vunpack.c.l.b16 %v749
      %v2656 = vunpack.c.h.b16 %v749
      %v2657 = vunpack.c.l.b16 %v750
      %v2658 = vunpack.c.h.b16 %v750
      %v2659 = vunpack.c.l.b16 %v751
      %v2660 = vunpack.c.h.b16 %v751
      %v2661 = vunpack.c.l.b16 %v752
      %v2662 = vunpack.c.h.b16 %v752
      %v2663 = vunpack.c.l.b16 %v753
      %v2664 = vunpack.c.h.b16 %v753
      %v2665 = vunpack.c.l.b16 %v754
      %v2666 = vunpack.c.h.b16 %v754
      %v2667 = vunpack.c.l.b16 %v755
      %v2668 = vunpack.c.h.b16 %v755
      %v2669 = vunpack.c.l.b16 %v756
      %v2670 = vunpack.c.h.b16 %v756
      %v2671 = vunpack.c.l.b16 %v757
      %v2672 = vunpack.c.h.b16 %v757
      %v2673 = vunpack.c.l.b16 %v758
      %v2674 = vunpack.c.h.b16 %v758
      %v2675 = vunpack.c.l.b16 %v759
      %v2676 = vunpack.c.h.b16 %v759
      %v2677 = vunpack.c.l.b16 %v760
      %v2678 = vunpack.c.h.b16 %v760
      %v2679 = vunpack.c.l.b16 %v761
      %v2680 = vunpack.c.h.b16 %v761
      %v2681 = vunpack.c.l.b16 %v762
      %v2682 = vunpack.c.h.b16 %v762
      %v2683 = vunpack.c.l.b16 %v763
      %v2684 = vunpack.c.h.b16 %v763
      %v2685 = vunpack.c.l.b16 %v764
      %v2686 = vunpack.c.h.b16 %v764
      %v2687 = vunpack.c.l.b16 %v765
      %v2688 = vunpack.c.h.b16 %v765
      %v2689 = vunpack.c.l.b16 %v766
      %v2690 = vunpack.c.h.b16 %v766
      %v2691 = vunpack.c.l.b16 %v767
      %v2692 = vunpack.c.h.b16 %v767
      %v2693 = vunpack.c.l.b16 %v768
      %v2694 = vunpack.c.h.b16 %v768
      %v2695 = vunpack.c.l.b16 %v769
      %v2696 = vunpack.c.h.b16 %v769
      %v2697 = vunpack.c.l.b16 %v770
      %v2698 = vunpack.c.h.b16 %v770
      %v2699 = vunpack.c.l.b16 %v771
      %v2700 = vunpack.c.h.b16 %v771
      %v2701 = vunpack.c.l.b16 %v772
      %v2702 = vunpack.c.h.b16 %v772
      %v2703 = vunpack.c.l.b16 %v773
      %v2704 = vunpack.c.h.b16 %v773
      %v2705 = vunpack.c.l.b16 %v774
      %v2706 = vunpack.c.h.b16 %v774
      %v2707 = vunpack.c.l.b16 %v775
      %v2708 = vunpack.c.h.b16 %v775
      %v2709 = vunpack.c.l.b16 %v776
      %v2710 = vunpack.c.h.b16 %v776
      %v2711 = vunpack.c.l.b16 %v777
      %v2712 = vunpack.c.h.b16 %v777
      %v2713 = vunpack.c.l.b16 %v778
      %v2714 = vunpack.c.h.b16 %v778
      %v2715 = vunpack.c.l.b16 %v779
      %v2716 = vunpack.c.h.b16 %v779
      %v2717 = vunpack.c.l.b16 %v780
      %v2718 = vunpack.c.h.b16 %v780
      %v2719 = vunpack.c.l.b16 %v781
      %v2720 = vunpack.c.h.b16 %v781
      %v2721 = vunpack.c.l.b16 %v782
      %v2722 = vunpack.c.h.b16 %v782
      %v2723 = vunpack.c.l.b16 %v783
      %v2724 = vunpack.c.h.b16 %v783
      %v2725 = vunpack.c.l.b16 %v784
      %v2726 = vunpack.c.h.b16 %v784
      %v2727 = vunpack.c.l.b16 %v785
      %v2728 = vunpack.c.h.b16 %v785
      %v2729 = vunpack.c.l.b16 %v786
      %v2730 = vunpack.c.h.b16 %v786
      %v2731 = vunpack.c.l.b16 %v787
      %v2732 = vunpack.c.h.b16 %v787
      %v2733 = vunpack.c.l.b16 %v788
      %v2734 = vunpack.c.h.b16 %v788
      %v2735 = vunpack.c.l.b16 %v789
      %v2736 = vunpack.c.h.b16 %v789
      %v2737 = vunpack.c.l.b16 %v790
      %v2738 = vunpack.c.h.b16 %v790
      %v2739 = vunpack.c.l.b16 %v791
      %v2740 = vunpack.c.h.b16 %v791
      %v2741 = vunpack.c.l.b16 %v792
      %v2742 = vunpack.c.h.b16 %v792
      %v2743 = vunpack.c.l.b16 %v793
      %v2744 = vunpack.c.h.b16 %v793
      %v2745 = vunpack.c.l.b16 %v794
      %v2746 = vunpack.c.h.b16 %v794
      %v2747 = vunpack.c.l.b16 %v795
      %v2748 = vunpack.c.h.b16 %v795
      %v2749 = vunpack.c.l.b16 %v796
      %v2750 = vunpack.c.h.b16 %v796
      %v2751 = vunpack.c.l.b16 %v797
      %v2752 = vunpack.c.h.b16 %v797
      %v2753 = vunpack.c.l.b16 %v798
      %v2754 = vunpack.c.h.b16 %v798
      %v2755 = vunpack.c.l.b16 %v799
      %v2756 = vunpack.c.h.b16 %v799
      %v2757 = vunpack.c.l.b16 %v800
      %v2758 = vunpack.c.h.b16 %v800
      %v2759 = vunpack.c.l.b16 %v801
      %v2760 = vunpack.c.h.b16 %v801
      %v2761 = vunpack.c.l.b16 %v802
      %v2762 = vunpack.c.h.b16 %v802
      %v2763 = vunpack.c.l.b16 %v803
      %v2764 = vunpack.c.h.b16 %v803
      %v2765 = vunpack.c.l.b16 %v804
      %v2766 = vunpack.c.h.b16 %v804
      %v2767 = vunpack.c.l.b16 %v805
      %v2768 = vunpack.c.h.b16 %v805
      %v2769 = vunpack.c.l.b16 %v806
      %v2770 = vunpack.c.h.b16 %v806
      %v2771 = vunpack.c.l.b16 %v807
      %v2772 = vunpack.c.h.b16 %v807
      %v2773 = vunpack.c.l.b16 %v808
      %v2774 = vunpack.c.h.b16 %v808
      %v2775 = vunpack.c.l.b16 %v809
      %v2776 = vunpack.c.h.b16 %v809
      %v2777 = vunpack.c.l.b16 %v810
      %v2778 = vunpack.c.h.b16 %v810
      %v2779 = vunpack.c.l.b16 %v811
      %v2780 = vunpack.c.h.b16 %v811
      %v2781 = vunpack.c.l.b16 %v812
      %v2782 = vunpack.c.h.b16 %v812
      %v2783 = vunpack.c.l.b16 %v813
      %v2784 = vunpack.c.h.b16 %v813
      %v2785 = vunpack.c.l.b16 %v814
      %v2786 = vunpack.c.h.b16 %v814
      %v2787 = vunpack.c.l.b16 %v815
      %v2788 = vunpack.c.h.b16 %v815
      %v2789 = vunpack.c.l.b16 %v816
      %v2790 = vunpack.c.h.b16 %v816
      %v2791 = vunpack.c.l.b16 %v817
      %v2792 = vunpack.c.h.b16 %v817
      %v2793 = vunpack.c.l.b16 %v818
      %v2794 = vunpack.c.h.b16 %v818
      %v2795 = vunpack.c.l.b16 %v819
      %v2796 = vunpack.c.h.b16 %v819
      %v2797 = vunpack.c.l.b16 %v820
      %v2798 = vunpack.c.h.b16 %v820
      %v2799 = vunpack.c.l.b16 %v821
      %v2800 = vunpack.c.h.b16 %v821
      %v2801 = vunpack.c.l.b16 %v822
      %v2802 = vunpack.c.h.b16 %v822
      %v2803 = vunpack.c.l.b16 %v823
      %v2804 = vunpack.c.h.b16 %v823
      %v2805 = vunpack.c.l.b16 %v824
      %v2806 = vunpack.c.h.b16 %v824
      %v2807 = vunpack.c.l.b16 %v825
      %v2808 = vunpack.c.h.b16 %v825
      %v2809 = vunpack.c.l.b16 %v826
      %v2810 = vunpack.c.h.b16 %v826
      %v2811 = vunpack.c.l.b16 %v827
      %v2812 = vunpack.c.h.b16 %v827
      %v2813 = vunpack.c.l.b16 %v828
      %v2814 = vunpack.c.h.b16 %v828
      %v2815 = vunpack.c.l.b16 %v829
      %v2816 = vunpack.c.h.b16 %v829
      %v2817 = vunpack.c.l.b16 %v830
      %v2818 = vunpack.c.h.b16 %v830
      %v2819 = vunpack.c.l.b16 %v831
      %v2820 = vunpack.c.h.b16 %v831
      %v2821 = vunpack.c.l.b16 %v832
      %v2822 = vunpack.c.h.b16 %v832
      %v2823 = vunpack.c.l.b16 %v833
      %v2824 = vunpack.c.h.b16 %v833
      %v2825 = vunpack.c.l.b16 %v834
      %v2826 = vunpack.c.h.b16 %v834
      %v2827 = vunpack.c.l.b16 %v835
      %v2828 = vunpack.c.h.b16 %v835
      %v2829 = vunpack.c.l.b16 %v836
      %v2830 = vunpack.c.h.b16 %v836
      %v2831 = vunpack.c.l.b16 %v837
      %v2832 = vunpack.c.h.b16 %v837
      %v2833 = vunpack.c.l.b16 %v838
      %v2834 = vunpack.c.h.b16 %v838
      %v2835 = vunpack.c.l.b16 %v839
      %v2836 = vunpack.c.h.b16 %v839
      %v2837 = vunpack.c.l.b16 %v840
      %v2838 = vunpack.c.h.b16 %v840
      %v2839 = vunpack.c.l.b16 %v841
      %v2840 = vunpack.c.h.b16 %v841
      %v2841 = vunpack.c.l.b16 %v842
      %v2842 = vunpack.c.h.b16 %v842
      %v2843 = vunpack.c.l.b16 %v843
      %v2844 = vunpack.c.h.b16 %v843
      %v2845 = vunpack.c.l.b16 %v844
      %v2846 = vunpack.c.h.b16 %v844
      %v2847 = vunpack.c.l.b16 %v845
      %v2848 = vunpack.c.h.b16 %v845
      %v2849 = vunpack.c.l.b16 %v846
      %v2850 = vunpack.c.h.b16 %v846
      %v2851 = vunpack.c.l.b16 %v847
      %v2852 = vunpack.c.h.b16 %v847
      %v2853 = vunpack.c.l.b16 %v848
      %v2854 = vunpack.c.h.b16 %v848
      %v2855 = vunpack.c.l.b16 %v849
      %v2856 = vunpack.c.h.b16 %v849
      %v2857 = vunpack.c.l.b16 %v850
      %v2858 = vunpack.c.h.b16 %v850
      %v2859 = vunpack.c.l.b16 %v851
      %v2860 = vunpack.c.h.b16 %v851
      %v2861 = vunpack.c.l.b16 %v852
      %v2862 = vunpack.c.h.b16 %v852
      %v2863 = vunpack.c.l.b16 %v853
      %v2864 = vunpack.c.h.b16 %v853
      %v2865 = vunpack.c.l.b16 %v854
      %v2866 = vunpack.c.h.b16 %v854
      %v2867 = vunpack.c.l.b16 %v855
      %v2868 = vunpack.c.h.b16 %v855
      %v2869 = vunpack.c.l.b16 %v856
      %v2870 = vunpack.c.h.b16 %v856
      %v2871 = vunpack.c.l.b16 %v857
      %v2872 = vunpack.c.h.b16 %v857
      %v2873 = vunpack.c.l.b16 %v858
      %v2874 = vunpack.c.h.b16 %v858
      %v2875 = vunpack.c.l.b16 %v859
      %v2876 = vunpack.c.h.b16 %v859
      %v2877 = vunpack.c.l.b16 %v860
      %v2878 = vunpack.c.h.b16 %v860
      %v2879 = vunpack.c.l.b16 %v861
      %v2880 = vunpack.c.h.b16 %v861
      %v2881 = vunpack.c.l.b16 %v862
      %v2882 = vunpack.c.h.b16 %v862
      %v2883 = vunpack.c.l.b16 %v863
      %v2884 = vunpack.c.h.b16 %v863
      %v2885 = vunpack.c.l.b16 %v864
      %v2886 = vunpack.c.h.b16 %v864
      %v2887 = vunpack.c.l.b16 %v865
      %v2888 = vunpack.c.h.b16 %v865
      %v2889 = vunpack.c.l.b16 %v866
      %v2890 = vunpack.c.h.b16 %v866
      %v2891 = vunpack.c.l.b16 %v867
      %v2892 = vunpack.c.h.b16 %v867
      %v2893 = vunpack.c.l.b16 %v868
      %v2894 = vunpack.c.h.b16 %v868
      %v2895 = vunpack.c.l.b16 %v869
      %v2896 = vunpack.c.h.b16 %v869
      %v2897 = vunpack.c.l.b16 %v870
      %v2898 = vunpack.c.h.b16 %v870
      %v2899 = vunpack.c.l.b16 %v871
      %v2900 = vunpack.c.h.b16 %v871
      %v2901 = vunpack.c.l.b16 %v872
      %v2902 = vunpack.c.h.b16 %v872
      %v2903 = vunpack.c.l.b16 %v873
      %v2904 = vunpack.c.h.b16 %v873
      %v2905 = vunpack.c.l.b16 %v874
      %v2906 = vunpack.c.h.b16 %v874
      %v2907 = vunpack.c.l.b16 %v875
      %v2908 = vunpack.c.h.b16 %v875
      %v2909 = vunpack.c.l.b16 %v876
      %v2910 = vunpack.c.h.b16 %v876
      %v2911 = vunpack.c.l.b16 %v877
      %v2912 = vunpack.c.h.b16 %v877
      %v2913 = vunpack.c.l.b16 %v878
      %v2914 = vunpack.c.h.b16 %v878
      %v2915 = vunpack.c.l.b16 %v879
      %v2916 = vunpack.c.h.b16 %v879
      %v2917 = vunpack.c.l.b16 %v880
      %v2918 = vunpack.c.h.b16 %v880
      %v2919 = vunpack.c.l.b16 %v881
      %v2920 = vunpack.c.h.b16 %v881
      %v2921 = vunpack.c.l.b16 %v882
      %v2922 = vunpack.c.h.b16 %v882
      %v2923 = vunpack.c.l.b16 %v883
      %v2924 = vunpack.c.h.b16 %v883
      %v2925 = vunpack.c.l.b16 %v884
      %v2926 = vunpack.c.h.b16 %v884
      %v2927 = vunpack.c.l.b16 %v885
      %v2928 = vunpack.c.h.b16 %v885
      %v2929 = vunpack.c.l.b16 %v886
      %v2930 = vunpack.c.h.b16 %v886
      %v2931 = vunpack.c.l.b16 %v887
      %v2932 = vunpack.c.h.b16 %v887
      %v2933 = vunpack.c.l.b16 %v888
      %v2934 = vunpack.c.h.b16 %v888
      %v2935 = vunpack.c.l.b16 %v889
      %v2936 = vunpack.c.h.b16 %v889
      %v2937 = vunpack.c.l.b16 %v890
      %v2938 = vunpack.c.h.b16 %v890
      %v2939 = vunpack.c.l.b16 %v891
      %v2940 = vunpack.c.h.b16 %v891
      %v2941 = vunpack.c.l.b16 %v892
      %v2942 = vunpack.c.h.b16 %v892
      %v2943 = vunpack.c.l.b16 %v893
      %v2944 = vunpack.c.h.b16 %v893
      %v2945 = vunpack.c.l.b16 %v894
      %v2946 = vunpack.c.h.b16 %v894
      %v2947 = vunpack.c.l.b16 %v895
      %v2948 = vunpack.c.h.b16 %v895
      %v2949 = vunpack.c.l.b16 %v896
      %v2950 = vunpack.c.h.b16 %v896
      %v2951 = vunpack.c.l.b16 %v897
      %v2952 = vunpack.c.h.b16 %v897
      %v2953 = vunpack.c.l.b16 %v898
      %v2954 = vunpack.c.h.b16 %v898
      %v2955 = vunpack.c.l.b16 %v899
      %v2956 = vunpack.c.h.b16 %v899
      %v2957 = vunpack.c.l.b16 %v900
      %v2958 = vunpack.c.h.b16 %v900
      %v2959 = vunpack.c.l.b16 %v901
      %v2960 = vunpack.c.h.b16 %v901
      %v2961 = vunpack.c.l.b16 %v902
      %v2962 = vunpack.c.h.b16 %v902
      %v2963 = vunpack.c.l.b16 %v903
      %v2964 = vunpack.c.h.b16 %v903
      %v2965 = vunpack.c.l.b16 %v904
      %v2966 = vunpack.c.h.b16 %v904
      %v2967 = vunpack.c.l.b16 %v905
      %v2968 = vunpack.c.h.b16 %v905
      %v2969 = vunpack.c.l.b16 %v906
      %v2970 = vunpack.c.h.b16 %v906
      %v2971 = vunpack.c.l.b16 %v907
      %v2972 = vunpack.c.h.b16 %v907
      %v2973 = vunpack.c.l.b16 %v908
      %v2974 = vunpack.c.h.b16 %v908
      %v2975 = vunpack.c.l.b16 %v909
      %v2976 = vunpack.c.h.b16 %v909
      %v2977 = vunpack.c.l.b16 %v910
      %v2978 = vunpack.c.h.b16 %v910
      %v2979 = vunpack.c.l.b16 %v911
      %v2980 = vunpack.c.h.b16 %v911
      %v2981 = vunpack.c.l.b16 %v912
      %v2982 = vunpack.c.h.b16 %v912
      %v2983 = vunpack.c.l.b16 %v913
      %v2984 = vunpack.c.h.b16 %v913
      %v2985 = vunpack.c.l.b16 %v914
      %v2986 = vunpack.c.h.b16 %v914
      %v2987 = vunpack.c.l.b16 %v915
      %v2988 = vunpack.c.h.b16 %v915
      %v2989 = vunpack.c.l.b16 %v916
      %v2990 = vunpack.c.h.b16 %v916
      %v2991 = vunpack.c.l.b16 %v917
      %v2992 = vunpack.c.h.b16 %v917
      %v2993 = vunpack.c.l.b16 %v918
      %v2994 = vunpack.c.h.b16 %v918
      %v2995 = vunpack.c.l.b16 %v919
      %v2996 = vunpack.c.h.b16 %v919
      %v2997 = vunpack.c.l.b16 %v920
      %v2998 = vunpack.c.h.b16 %v920
      %v2999 = vunpack.c.l.b16 %v921
      %v3000 = vunpack.c.h.b16 %v921
      %v3001 = vunpack.c.l.b16 %v922
      %v3002 = vunpack.c.h.b16 %v922
      %v3003 = vunpack.c.l.b16 %v923
      %v3004 = vunpack.c.h.b16 %v923
      %v3005 = vunpack.c.l.b16 %v924
      %v3006 = vunpack.c.h.b16 %v924
      %v3007 = vunpack.c.l.b16 %v925
      %v3008 = vunpack.c.h.b16 %v925
      %v3009 = vunpack.c.l.b16 %v926
      %v3010 = vunpack.c.h.b16 %v926
      %v3011 = vunpack.c.l.b16 %v927
      %v3012 = vunpack.c.h.b16 %v927
      %v3013 = vunpack.c.l.b16 %v928
      %v3014 = vunpack.c.h.b16 %v928
      %v3015 = vunpack.c.l.b16 %v929
      %v3016 = vunpack.c.h.b16 %v929
      %v3017 = vunpack.c.l.b16 %v930
      %v3018 = vunpack.c.h.b16 %v930
      %v3019 = vunpack.c.l.b16 %v931
      %v3020 = vunpack.c.h.b16 %v931
      %v3021 = vunpack.c.l.b16 %v932
      %v3022 = vunpack.c.h.b16 %v932
      %v3023 = vpack.c.b16 %v1683, %v1679
      %v3024 = vpack.c.b16 %v1684, %v1680
      %v3025 = vpack.c.b16 %v1685, %v1681
      %v3026 = vpack.c.b16 %v1686, %v1682
      %v3027 = vpack.c.b16 %v1691, %v1687
      %v3028 = vpack.c.b16 %v1692, %v1688
      %v3029 = vpack.c.b16 %v1693, %v1689
      %v3030 = vpack.c.b16 %v1694, %v1690
      %v3031 = vpack.c.b16 %v1699, %v1695
      %v3032 = vpack.c.b16 %v1700, %v1696
      %v3033 = vpack.c.b16 %v1701, %v1697
      %v3034 = vpack.c.b16 %v1702, %v1698
      %v3035 = vpack.c.b16 %v1707, %v1703
      %v3036 = vpack.c.b16 %v1708, %v1704
      %v3037 = vpack.c.b16 %v1709, %v1705
      %v3038 = vpack.c.b16 %v1710, %v1706
      %v3039 = vpack.c.b16 %v1715, %v1711
      %v3040 = vpack.c.b16 %v1716, %v1712
      %v3041 = vpack.c.b16 %v1717, %v1713
      %v3042 = vpack.c.b16 %v1718, %v1714
      %v3043 = vpack.c.b16 %v1723, %v1719
      %v3044 = vpack.c.b16 %v1724, %v1720
      %v3045 = vpack.c.b16 %v1725, %v1721
      %v3046 = vpack.c.b16 %v1726, %v1722
      %v3047 = vpack.c.b16 %v1731, %v1727
      %v3048 = vpack.c.b16 %v1732, %v1728
      %v3049 = vpack.c.b16 %v1733, %v1729
      %v3050 = vpack.c.b16 %v1734, %v1730
      %v3051 = vpack.c.b16 %v1739, %v1735
      %v3052 = vpack.c.b16 %v1740, %v1736
      %v3053 = vpack.c.b16 %v1741, %v1737
      %v3054 = vpack.c.b16 %v1742, %v1738
      %v3055 = vpack.c.b16 %v1747, %v1743
      %v3056 = vpack.c.b16 %v1748, %v1744
      %v3057 = vpack.c.b16 %v1749, %v1745
      %v3058 = vpack.c.b16 %v1750, %v1746
      %v3059 = vpack.c.b16 %v1755, %v1751
      %v3060 = vpack.c.b16 %v1756, %v1752
      %v3061 = vpack.c.b16 %v1757, %v1753
      %v3062 = vpack.c.b16 %v1758, %v1754
      %v3063 = vpack.c.b16 %v1763, %v1759
      %v3064 = vpack.c.b16 %v1764, %v1760
      %v3065 = vpack.c.b16 %v1765, %v1761
      %v3066 = vpack.c.b16 %v1766, %v1762
      %v3067 = vpack.c.b16 %v1771, %v1767
      %v3068 = vpack.c.b16 %v1772, %v1768
      %v3069 = vpack.c.b16 %v1773, %v1769
      %v3070 = vpack.c.b16 %v1774, %v1770
      %v3071 = vpack.c.b16 %v1779, %v1775
      %v3072 = vpack.c.b16 %v1780, %v1776
      %v3073 = vpack.c.b16 %v1781, %v1777
      %v3074 = vpack.c.b16 %v1782, %v1778
      %v3075 = vpack.c.b16 %v1787, %v1783
      %v3076 = vpack.c.b16 %v1788, %v1784
      %v3077 = vpack.c.b16 %v1789, %v1785
      %v3078 = vpack.c.b16 %v1790, %v1786
      %v3079 = vpack.c.b16 %v1795, %v1791
      %v3080 = vpack.c.b16 %v1796, %v1792
      %v3081 = vpack.c.b16 %v1797, %v1793
      %v3082 = vpack.c.b16 %v1798, %v1794
      %v3083 = vpack.c.b16 %v1803, %v1799
      %v3084 = vpack.c.b16 %v1804, %v1800
      %v3085 = vpack.c.b16 %v1805, %v1801
      %v3086 = vpack.c.b16 %v1806, %v1802
      %v3087 = vpack.c.b16 %v1811, %v1807
      %v3088 = vpack.c.b16 %v1812, %v1808
      %v3089 = vpack.c.b16 %v1813, %v1809
      %v3090 = vpack.c.b16 %v1814, %v1810
      %v3091 = vpack.c.b16 %v1819, %v1815
      %v3092 = vpack.c.b16 %v1820, %v1816
      %v3093 = vpack.c.b16 %v1821, %v1817
      %v3094 = vpack.c.b16 %v1822, %v1818
      %v3095 = vpack.c.b16 %v1827, %v1823
      %v3096 = vpack.c.b16 %v1828, %v1824
      %v3097 = vpack.c.b16 %v1829, %v1825
      %v3098 = vpack.c.b16 %v1830, %v1826
      %v3099 = vpack.c.b16 %v1835, %v1831
      %v3100 = vpack.c.b16 %v1836, %v1832
      %v3101 = vpack.c.b16 %v1837, %v1833
      %v3102 = vpack.c.b16 %v1838, %v1834
      %v3103 = vpack.c.b16 %v1843, %v1839
      %v3104 = vpack.c.b16 %v1844, %v1840
      %v3105 = vpack.c.b16 %v1845, %v1841
      %v3106 = vpack.c.b16 %v1846, %v1842
      %v3107 = vpack.c.b16 %v1851, %v1847
      %v3108 = vpack.c.b16 %v1852, %v1848
      %v3109 = vpack.c.b16 %v1853, %v1849
      %v3110 = vpack.c.b16 %v1854, %v1850
      %v3111 = vpack.c.b16 %v1859, %v1855
      %v3112 = vpack.c.b16 %v1860, %v1856
      %v3113 = vpack.c.b16 %v1861, %v1857
      %v3114 = vpack.c.b16 %v1862, %v1858
      %v3115 = vpack.c.b16 %v1867, %v1863
      %v3116 = vpack.c.b16 %v1868, %v1864
      %v3117 = vpack.c.b16 %v1869, %v1865
      %v3118 = vpack.c.b16 %v1870, %v1866
      %v3119 = vpack.c.b16 %v1875, %v1871
      %v3120 = vpack.c.b16 %v1876, %v1872
      %v3121 = vpack.c.b16 %v1877, %v1873
      %v3122 = vpack.c.b16 %v1878, %v1874
      %v3123 = vpack.c.b16 %v1883, %v1879
      %v3124 = vpack.c.b16 %v1884, %v1880
      %v3125 = vpack.c.b16 %v1885, %v1881
      %v3126 = vpack.c.b16 %v1886, %v1882
      %v3127 = vpack.c.b16 %v1891, %v1887
      %v3128 = vpack.c.b16 %v1892, %v1888
      %v3129 = vpack.c.b16 %v1893, %v1889
      %v3130 = vpack.c.b16 %v1894, %v1890
      %v3131 = vpack.c.b16 %v1899, %v1895
      %v3132 = vpack.c.b16 %v1900, %v1896
      %v3133 = vpack.c.b16 %v1901, %v1897
      %v3134 = vpack.c.b16 %v1902, %v1898
      %v3135 = vpack.c.b16 %v1907, %v1903
      %v3136 = vpack.c.b16 %v1908, %v1904
      %v3137 = vpack.c.b16 %v1909, %v1905
      %v3138 = vpack.c.b16 %v1910, %v1906
      %v3139 = vpack.c.b16 %v1915, %v1911
      %v3140 = vpack.c.b16 %v1916, %v1912
      %v3141 = vpack.c.b16 %v1917, %v1913
      %v3142 = vpack.c.b16 %v1918, %v1914
      %v3143 = vpack.c.b16 %v1923, %v1919
      %v3144 = vpack.c.b16 %v1924, %v1920
      %v3145 = vpack.c.b16 %v1925, %v1921
      %v3146 = vpack.c.b16 %v1926, %v1922
      %v3147 = vpack.c.b16 %v1931, %v1927
      %v3148 = vpack.c.b16 %v1932, %v1928
      %v3149 = vpack.c.b16 %v1933, %v1929
      %v3150 = vpack.c.b16 %v1934, %v1930
      %v3151 = vpack.c.b16 %v1939, %v1935
      %v3152 = vpack.c.b16 %v1940, %v1936
      %v3153 = vpack.c.b16 %v1941, %v1937
      %v3154 = vpack.c.b16 %v1942, %v1938
      %v3155 = vpack.c.b16 %v1947, %v1943
      %v3156 = vpack.c.b16 %v1948, %v1944
      %v3157 = vpack.c.b16 %v1949, %v1945
      %v3158 = vpack.c.b16 %v1950, %v1946
      %v3159 = vpack.c.b16 %v1955, %v1951
      %v3160 = vpack.c.b16 %v1956, %v1952
      %v3161 = vpack.c.b16 %v1957, %v1953
      %v3162 = vpack.c.b16 %v1958, %v1954
      %v3163 = vpack.c.b16 %v1963, %v1959
      %v3164 = vpack.c.b16 %v1964, %v1960
      %v3165 = vpack.c.b16 %v1965, %v1961
      %v3166 = vpack.c.b16 %v1966, %v1962
      %v3167 = vpack.c.b16 %v1971, %v1967
      %v3168 = vpack.c.b16 %v1972, %v1968
      %v3169 = vpack.c.b16 %v1973, %v1969
      %v3170 = vpack.c.b16 %v1974, %v1970
      %v3171 = vpack.c.b16 %v1979, %v1975
      %v3172 = vpack.c.b16 %v1980, %v1976
      %v3173 = vpack.c.b16 %v1981, %v1977
      %v3174 = vpack.c.b16 %v1982, %v1978
      %v3175 = vpack.c.b16 %v1987, %v1983
      %v3176 = vpack.c.b16 %v1988, %v1984
      %v3177 = vpack.c.b16 %v1989, %v1985
      %v3178 = vpack.c.b16 %v1990, %v1986
      %v3179 = vpack.c.b16 %v1995, %v1991
      %v3180 = vpack.c.b16 %v1996, %v1992
      %v3181 = vpack.c.b16 %v1997, %v1993
      %v3182 = vpack.c.b16 %v1998, %v1994
      %v3183 = vpack.c.b16 %v2003, %v1999
      %v3184 = vpack.c.b16 %v2004, %v2000
      %v3185 = vpack.c.b16 %v2005, %v2001
      %v3186 = vpack.c.b16 %v2006, %v2002
      %v3187 = vpack.c.b16 %v2011, %v2007
      %v3188 = vpack.c.b16 %v2012, %v2008
      %v3189 = vpack.c.b16 %v2013, %v2009
      %v3190 = vpack.c.b16 %v2014, %v2010
      %v3191 = vpack.c.b16 %v2019, %v2015
      %v3192 = vpack.c.b16 %v2020, %v2016
      %v3193 = vpack.c.b16 %v2021, %v2017
      %v3194 = vpack.c.b16 %v2022, %v2018
      %v3195 = vpack.c.b16 %v2027, %v2023
      %v3196 = vpack.c.b16 %v2028, %v2024
      %v3197 = vpack.c.b16 %v2029, %v2025
      %v3198 = vpack.c.b16 %v2030, %v2026
      %v3199 = vpack.c.b16 %v2035, %v2031
      %v3200 = vpack.c.b16 %v2036, %v2032
      %v3201 = vpack.c.b16 %v2037, %v2033
      %v3202 = vpack.c.b16 %v2038, %v2034
      %v3203 = vpack.c.b16 %v2043, %v2039
      %v3204 = vpack.c.b16 %v2044, %v2040
      %v3205 = vpack.c.b16 %v2045, %v2041
      %v3206 = vpack.c.b16 %v2046, %v2042
      %v3207 = vpack.c.b16 %v2051, %v2047
      %v3208 = vpack.c.b16 %v2052, %v2048
      %v3209 = vpack.c.b16 %v2053, %v2049
      %v3210 = vpack.c.b16 %v2054, %v2050
      %v3211 = vpack.c.b16 %v2059, %v2055
      %v3212 = vpack.c.b16 %v2060, %v2056
      %v3213 = vpack.c.b16 %v2061, %v2057
      %v3214 = vpack.c.b16 %v2062, %v2058
      %v3215 = vpack.c.b16 %v2067, %v2063
      %v3216 = vpack.c.b16 %v2068, %v2064
      %v3217 = vpack.c.b16 %v2069, %v2065
      %v3218 = vpack.c.b16 %v2070, %v2066
      %v3219 = vpack.c.b16 %v2075, %v2071
      %v3220 = vpack.c.b16 %v2076, %v2072
      %v3221 = vpack.c.b16 %v2077, %v2073
      %v3222 = vpack.c.b16 %v2078, %v2074
      %v3223 = vpack.c.b16 %v2083, %v2079
      %v3224 = vpack.c.b16 %v2084, %v2080
      %v3225 = vpack.c.b16 %v2085, %v2081
      %v3226 = vpack.c.b16 %v2086, %v2082
      %v3227 = vpack.c.b16 %v2091, %v2087
      %v3228 = vpack.c.b16 %v2092, %v2088
      %v3229 = vpack.c.b16 %v2093, %v2089
      %v3230 = vpack.c.b16 %v2094, %v2090
      %v3231 = vpack.c.b16 %v2099, %v2095
      %v3232 = vpack.c.b16 %v2100, %v2096
      %v3233 = vpack.c.b16 %v2101, %v2097
      %v3234 = vpack.c.b16 %v2102, %v2098
      %v3235 = vpack.c.b16 %v2107, %v2103
      %v3236 = vpack.c.b16 %v2108, %v2104
      %v3237 = vpack.c.b16 %v2109, %v2105
      %v3238 = vpack.c.b16 %v2110, %v2106
      %v3239 = vpack.c.b16 %v2115, %v2111
      %v3240 = vpack.c.b16 %v2116, %v2112
      %v3241 = vpack.c.b16 %v2117, %v2113
      %v3242 = vpack.c.b16 %v2118, %v2114
      %v3243 = vpack.c.b16 %v2123, %v2119
      %v3244 = vpack.c.b16 %v2124, %v2120
      %v3245 = vpack.c.b16 %v2125, %v2121
      %v3246 = vpack.c.b16 %v2126, %v2122
      %v3247 = vpack.c.b16 %v2131, %v2127
      %v3248 = vpack.c.b16 %v2132, %v2128
      %v3249 = vpack.c.b16 %v2133, %v2129
      %v3250 = vpack.c.b16 %v2134, %v2130
      %v3251 = vpack.c.b16 %v2139, %v2135
      %v3252 = vpack.c.b16 %v2140, %v2136
      %v3253 = vpack.c.b16 %v2141, %v2137
      %v3254 = vpack.c.b16 %v2142, %v2138
      %v3255 = vpack.c.b16 %v2147, %v2143
      %v3256 = vpack.c.b16 %v2148, %v2144
      %v3257 = vpack.c.b16 %v2149, %v2145
      %v3258 = vpack.c.b16 %v2150, %v2146
      %v3259 = vpack.c.b16 %v2155, %v2151
      %v3260 = vpack.c.b16 %v2156, %v2152
      %v3261 = vpack.c.b16 %v2157, %v2153
      %v3262 = vpack.c.b16 %v2158, %v2154
      %v3263 = vpack.c.b16 %v2163, %v2159
      %v3264 = vpack.c.b16 %v2164, %v2160
      %v3265 = vpack.c.b16 %v2165, %v2161
      %v3266 = vpack.c.b16 %v2166, %v2162
      %v3267 = vpack.c.b16 %v2171, %v2167
      %v3268 = vpack.c.b16 %v2172, %v2168
      %v3269 = vpack.c.b16 %v2173, %v2169
      %v3270 = vpack.c.b16 %v2174, %v2170
      %v3271 = vpack.c.b16 %v2179, %v2175
      %v3272 = vpack.c.b16 %v2180, %v2176
      %v3273 = vpack.c.b16 %v2181, %v2177
      %v3274 = vpack.c.b16 %v2182, %v2178
      %v3275 = vpack.c.b16 %v2187, %v2183
      %v3276 = vpack.c.b16 %v2188, %v2184
      %v3277 = vpack.c.b16 %v2189, %v2185
      %v3278 = vpack.c.b16 %v2190, %v2186
      %v3279 = vpack.c.b16 %v2195, %v2191
      %v3280 = vpack.c.b16 %v2196, %v2192
      %v3281 = vpack.c.b16 %v2197, %v2193
      %v3282 = vpack.c.b16 %v2198, %v2194
      %v3283 = vpack.c.b16 %v2203, %v2199
      %v3284 = vpack.c.b16 %v2204, %v2200
      %v3285 = vpack.c.b16 %v2205, %v2201
      %v3286 = vpack.c.b16 %v2206, %v2202
      %v3287 = vpack.c.b16 %v2211, %v2207
      %v3288 = vpack.c.b16 %v2212, %v2208
      %v3289 = vpack.c.b16 %v2213, %v2209
      %v3290 = vpack.c.b16 %v2214, %v2210
      %v3291 = vpack.c.b16 %v2219, %v2215
      %v3292 = vpack.c.b16 %v2220, %v2216
      %v3293 = vpack.c.b16 %v2221, %v2217
      %v3294 = vpack.c.b16 %v2222, %v2218
      %v3295 = vpack.c.b16 %v2227, %v2223
      %v3296 = vpack.c.b16 %v2228, %v2224
      %v3297 = vpack.c.b16 %v2229, %v2225
      %v3298 = vpack.c.b16 %v2230, %v2226
      %v3299 = vpack.c.b16 %v2235, %v2231
      %v3300 = vpack.c.b16 %v2236, %v2232
      %v3301 = vpack.c.b16 %v2237, %v2233
      %v3302 = vpack.c.b16 %v2238, %v2234
      %v3303 = vpack.c.b16 %v2243, %v2239
      %v3304 = vpack.c.b16 %v2244, %v2240
      %v3305 = vpack.c.b16 %v2245, %v2241
      %v3306 = vpack.c.b16 %v2246, %v2242
      %v3307 = vpack.c.b16 %v2251, %v2247
      %v3308 = vpack.c.b16 %v2252, %v2248
      %v3309 = vpack.c.b16 %v2253, %v2249
      %v3310 = vpack.c.b16 %v2254, %v2250
      %v3311 = vpack.c.b16 %v2259, %v2255
      %v3312 = vpack.c.b16 %v2260, %v2256
      %v3313 = vpack.c.b16 %v2261, %v2257
      %v3314 = vpack.c.b16 %v2262, %v2258
      %v3315 = vpack.c.b16 %v2267, %v2263
      %v3316 = vpack.c.b16 %v2268, %v2264
      %v3317 = vpack.c.b16 %v2269, %v2265
      %v3318 = vpack.c.b16 %v2270, %v2266
      %v3319 = vpack.c.b16 %v2275, %v2271
      %v3320 = vpack.c.b16 %v2276, %v2272
      %v3321 = vpack.c.b16 %v2277, %v2273
      %v3322 = vpack.c.b16 %v2278, %v2274
      %v3323 = vpack.c.b16 %v2283, %v2279
      %v3324 = vpack.c.b16 %v2284, %v2280
      %v3325 = vpack.c.b16 %v2285, %v2281
      %v3326 = vpack.c.b16 %v2286, %v2282
      %v3327 = vpack.c.b16 %v2291, %v2287
      %v3328 = vpack.c.b16 %v2292, %v2288
      %v3329 = vpack.c.b16 %v2293, %v2289
      %v3330 = vpack.c.b16 %v2294, %v2290
      %v3331 = vpack.c.b16 %v2299, %v2295
      %v3332 = vpack.c.b16 %v2300, %v2296
      %v3333 = vpack.c.b16 %v2301, %v2297
      %v3334 = vpack.c.b16 %v2302, %v2298
      %v3335 = vpack.c.b16 %v2307, %v2303
      %v3336 = vpack.c.b16 %v2308, %v2304
      %v3337 = vpack.c.b16 %v2309, %v2305
      %v3338 = vpack.c.b16 %v2310, %v2306
      %v3339 = vpack.c.b16 %v2315, %v2311
      %v3340 = vpack.c.b16 %v2316, %v2312
      %v3341 = vpack.c.b16 %v2317, %v2313
      %v3342 = vpack.c.b16 %v2318, %v2314
      %v3343 = vpack.c.b16 %v2323, %v2319
      %v3344 = vpack.c.b16 %v2324, %v2320
      %v3345 = vpack.c.b16 %v2325, %v2321
      %v3346 = vpack.c.b16 %v2326, %v2322
      %v3347 = vpack.c.b16 %v2331, %v2327
      %v3348 = vpack.c.b16 %v2332, %v2328
      %v3349 = vpack.c.b16 %v2333, %v2329
      %v3350 = vpack.c.b16 %v2334, %v2330
      %v3351 = vpack.c.b16 %v2339, %v2335
      %v3352 = vpack.c.b16 %v2340, %v2336
      %v3353 = vpack.c.b16 %v2341, %v2337
      %v3354 = vpack.c.b16 %v2342, %v2338
      %v3355 = vpack.c.b16 %v2347, %v2343
      %v3356 = vpack.c.b16 %v2348, %v2344
      %v3357 = vpack.c.b16 %v2349, %v2345
      %v3358 = vpack.c.b16 %v2350, %v2346
      %v3359 = vpack.c.b16 %v2355, %v2351
      %v3360 = vpack.c.b16 %v2356, %v2352
      %v3361 = vpack.c.b16 %v2357, %v2353
      %v3362 = vpack.c.b16 %v2358, %v2354
      %v3363 = vpack.c.b16 %v2363, %v2359
      %v3364 = vpack.c.b16 %v2364, %v2360
      %v3365 = vpack.c.b16 %v2365, %v2361
      %v3366 = vpack.c.b16 %v2366, %v2362
      %v3367 = vpack.c.b16 %v2371, %v2367
      %v3368 = vpack.c.b16 %v2372, %v2368
      %v3369 = vpack.c.b16 %v2373, %v2369
      %v3370 = vpack.c.b16 %v2374, %v2370
      %v3371 = vpack.c.b16 %v2379, %v2375
      %v3372 = vpack.c.b16 %v2380, %v2376
      %v3373 = vpack.c.b16 %v2381, %v2377
      %v3374 = vpack.c.b16 %v2382, %v2378
      %v3375 = vpack.c.b16 %v2387, %v2383
      %v3376 = vpack.c.b16 %v2388, %v2384
      %v3377 = vpack.c.b16 %v2389, %v2385
      %v3378 = vpack.c.b16 %v2390, %v2386
      %v3379 = vpack.c.b16 %v2395, %v2391
      %v3380 = vpack.c.b16 %v2396, %v2392
      %v3381 = vpack.c.b16 %v2397, %v2393
      %v3382 = vpack.c.b16 %v2398, %v2394
      %v3383 = vpack.c.b16 %v2403, %v2399
      %v3384 = vpack.c.b16 %v2404, %v2400
      %v3385 = vpack.c.b16 %v2405, %v2401
      %v3386 = vpack.c.b16 %v2406, %v2402
      %v3387 = vpack.c.b16 %v2411, %v2407
      %v3388 = vpack.c.b16 %v2412, %v2408
      %v3389 = vpack.c.b16 %v2413, %v2409
      %v3390 = vpack.c.b16 %v2414, %v2410
      %v3391 = vpack.c.b16 %v2419, %v2415
      %v3392 = vpack.c.b16 %v2420, %v2416
      %v3393 = vpack.c.b16 %v2421, %v2417
      %v3394 = vpack.c.b16 %v2422, %v2418
      %v3395 = vpack.c.b16 %v2427, %v2423
      %v3396 = vpack.c.b16 %v2428, %v2424
      %v3397 = vpack.c.b16 %v2429, %v2425
      %v3398 = vpack.c.b16 %v2430, %v2426
      %v3399 = vpack.c.b16 %v2435, %v2431
      %v3400 = vpack.c.b16 %v2436, %v2432
      %v3401 = vpack.c.b16 %v2437, %v2433
      %v3402 = vpack.c.b16 %v2438, %v2434
      %v3403 = vpack.c.b16 %v2443, %v2439
      %v3404 = vpack.c.b16 %v2444, %v2440
      %v3405 = vpack.c.b16 %v2445, %v2441
      %v3406 = vpack.c.b16 %v2446, %v2442
      %v3407 = vpack.c.b16 %v2451, %v2447
      %v3408 = vpack.c.b16 %v2452, %v2448
      %v3409 = vpack.c.b16 %v2453, %v2449
      %v3410 = vpack.c.b16 %v2454, %v2450
      %v3411 = vpack.c.b16 %v2459, %v2455
      %v3412 = vpack.c.b16 %v2460, %v2456
      %v3413 = vpack.c.b16 %v2461, %v2457
      %v3414 = vpack.c.b16 %v2462, %v2458
      %v3415 = vpack.c.b16 %v2467, %v2463
      %v3416 = vpack.c.b16 %v2468, %v2464
      %v3417 = vpack.c.b16 %v2469, %v2465
      %v3418 = vpack.c.b16 %v2470, %v2466
      %v3419 = vpack.c.b16 %v2475, %v2471
      %v3420 = vpack.c.b16 %v2476, %v2472
      %v3421 = vpack.c.b16 %v2477, %v2473
      %v3422 = vpack.c.b16 %v2478, %v2474
      %v3423 = vpack.c.b16 %v2483, %v2479
      %v3424 = vpack.c.b16 %v2484, %v2480
      %v3425 = vpack.c.b16 %v2485, %v2481
      %v3426 = vpack.c.b16 %v2486, %v2482
      %v3427 = vpack.c.b16 %v2491, %v2487
      %v3428 = vpack.c.b16 %v2492, %v2488
      %v3429 = vpack.c.b16 %v2493, %v2489
      %v3430 = vpack.c.b16 %v2494, %v2490
      %v3431 = vpack.c.b16 %v2499, %v2495
      %v3432 = vpack.c.b16 %v2500, %v2496
      %v3433 = vpack.c.b16 %v2501, %v2497
      %v3434 = vpack.c.b16 %v2502, %v2498
      %v3435 = vpack.c.b16 %v2507, %v2503
      %v3436 = vpack.c.b16 %v2508, %v2504
      %v3437 = vpack.c.b16 %v2509, %v2505
      %v3438 = vpack.c.b16 %v2510, %v2506
      %v3439 = vpack.c.b16 %v2515, %v2511
      %v3440 = vpack.c.b16 %v2516, %v2512
      %v3441 = vpack.c.b16 %v2517, %v2513
      %v3442 = vpack.c.b16 %v2518, %v2514
      %v3443 = vpack.c.b16 %v2523, %v2519
      %v3444 = vpack.c.b16 %v2524, %v2520
      %v3445 = vpack.c.b16 %v2525, %v2521
      %v3446 = vpack.c.b16 %v2526, %v2522
      %v3447 = vpack.c.b16 %v2531, %v2527
      %v3448 = vpack.c.b16 %v2532, %v2528
      %v3449 = vpack.c.b16 %v2533, %v2529
      %v3450 = vpack.c.b16 %v2534, %v2530
      %v3451 = vpack.c.b16 %v2539, %v2535
      %v3452 = vpack.c.b16 %v2540, %v2536
      %v3453 = vpack.c.b16 %v2541, %v2537
      %v3454 = vpack.c.b16 %v2542, %v2538
      %v3455 = vpack.c.b16 %v2547, %v2543
      %v3456 = vpack.c.b16 %v2548, %v2544
      %v3457 = vpack.c.b16 %v2549, %v2545
      %v3458 = vpack.c.b16 %v2550, %v2546
      %v3459 = vpack.c.b16 %v2555, %v2551
      %v3460 = vpack.c.b16 %v2556, %v2552
      %v3461 = vpack.c.b16 %v2557, %v2553
      %v3462 = vpack.c.b16 %v2558, %v2554
      %v3463 = vpack.c.b16 %v2563, %v2559
      %v3464 = vpack.c.b16 %v2564, %v2560
      %v3465 = vpack.c.b16 %v2565, %v2561
      %v3466 = vpack.c.b16 %v2566, %v2562
      %v3467 = vpack.c.b16 %v2571, %v2567
      %v3468 = vpack.c.b16 %v2572, %v2568
      %v3469 = vpack.c.b16 %v2573, %v2569
      %v3470 = vpack.c.b16 %v2574, %v2570
      %v3471 = vpack.c.b16 %v2579, %v2575
      %v3472 = vpack.c.b16 %v2580, %v2576
      %v3473 = vpack.c.b16 %v2581, %v2577
      %v3474 = vpack.c.b16 %v2582, %v2578
      %v3475 = vpack.c.b16 %v2587, %v2583
      %v3476 = vpack.c.b16 %v2588, %v2584
      %v3477 = vpack.c.b16 %v2589, %v2585
      %v3478 = vpack.c.b16 %v2590, %v2586
      %v3479 = vpack.c.b16 %v2595, %v2591
      %v3480 = vpack.c.b16 %v2596, %v2592
      %v3481 = vpack.c.b16 %v2597, %v2593
      %v3482 = vpack.c.b16 %v2598, %v2594
      %v3483 = vpack.c.b16 %v2603, %v2599
      %v3484 = vpack.c.b16 %v2604, %v2600
      %v3485 = vpack.c.b16 %v2605, %v2601
      %v3486 = vpack.c.b16 %v2606, %v2602
      %v3487 = vpack.c.b16 %v2611, %v2607
      %v3488 = vpack.c.b16 %v2612, %v2608
      %v3489 = vpack.c.b16 %v2613, %v2609
      %v3490 = vpack.c.b16 %v2614, %v2610
      %v3491 = vpack.c.b16 %v2619, %v2615
      %v3492 = vpack.c.b16 %v2620, %v2616
      %v3493 = vpack.c.b16 %v2621, %v2617
      %v3494 = vpack.c.b16 %v2622, %v2618
      %v3495 = vpack.c.b16 %v2627, %v2623
      %v3496 = vpack.c.b16 %v2628, %v2624
      %v3497 = vpack.c.b16 %v2629, %v2625
      %v3498 = vpack.c.b16 %v2630, %v2626
      %v3499 = vpack.c.b16 %v2635, %v2631
      %v3500 = vpack.c.b16 %v2636, %v2632
      %v3501 = vpack.c.b16 %v2637, %v2633
      %v3502 = vpack.c.b16 %v2638, %v2634
      %v3503 = vpack.c.b16 %v2643, %v2639
      %v3504 = vpack.c.b16 %v2644, %v2640
      %v3505 = vpack.c.b16 %v2645, %v2641
      %v3506 = vpack.c.b16 %v2646, %v2642
      %v3507 = vpack.c.b16 %v2651, %v2647
      %v3508 = vpack.c.b16 %v2652, %v2648
      %v3509 = vpack.c.b16 %v2653, %v2649
      %v3510 = vpack.c.b16 %v2654, %v2650
      %v3511 = vpack.c.b16 %v2659, %v2655
      %v3512 = vpack.c.b16 %v2660, %v2656
      %v3513 = vpack.c.b16 %v2661, %v2657
      %v3514 = vpack.c.b16 %v2662, %v2658
      %v3515 = vpack.c.b16 %v2667, %v2663
      %v3516 = vpack.c.b16 %v2668, %v2664
      %v3517 = vpack.c.b16 %v2669, %v2665
      %v3518 = vpack.c.b16 %v2670, %v2666
      %v3519 = vpack.c.b16 %v2675, %v2671
      %v3520 = vpack.c.b16 %v2676, %v2672
      %v3521 = vpack.c.b16 %v2677, %v2673
      %v3522 = vpack.c.b16 %v2678, %v2674
      %v3523 = vpack.c.b16 %v2683, %v2679
      %v3524 = vpack.c.b16 %v2684, %v2680
      %v3525 = vpack.c.b16 %v2685, %v2681
      %v3526 = vpack.c.b16 %v2686, %v2682
      %v3527 = vpack.c.b16 %v2691, %v2687
      %v3528 = vpack.c.b16 %v2692, %v2688
      %v3529 = vpack.c.b16 %v2693, %v2689
      %v3530 = vpack.c.b16 %v2694, %v2690
      %v3531 = vpack.c.b16 %v2699, %v2695
      %v3532 = vpack.c.b16 %v2700, %v2696
      %v3533 = vpack.c.b16 %v2701, %v2697
      %v3534 = vpack.c.b16 %v2702, %v2698
      %v3535 = vpack.c.b16 %v2707, %v2703
      %v3536 = vpack.c.b16 %v2708, %v2704
      %v3537 = vpack.c.b16 %v2709, %v2705
      %v3538 = vpack.c.b16 %v2710, %v2706
      %v3539 = vpack.c.b16 %v2715, %v2711
      %v3540 = vpack.c.b16 %v2716, %v2712
      %v3541 = vpack.c.b16 %v2717, %v2713
      %v3542 = vpack.c.b16 %v2718, %v2714
      %v3543 = vpack.c.b16 %v2723, %v2719
      %v3544 = vpack.c.b16 %v2724, %v2720
      %v3545 = vpack.c.b16 %v2725, %v2721
      %v3546 = vpack.c.b16 %v2726, %v2722
      %v3547 = vpack.c.b16 %v2731, %v2727
      %v3548 = vpack.c.b16 %v2732, %v2728
      %v3549 = vpack.c.b16 %v2733, %v2729
      %v3550 = vpack.c.b16 %v2734, %v2730
      %v3551 = vpack.c.b16 %v2739, %v2735
      %v3552 = vpack.c.b16 %v2740, %v2736
      %v3553 = vpack.c.b16 %v2741, %v2737
      %v3554 = vpack.c.b16 %v2742, %v2738
      %v3555 = vpack.c.b16 %v2747, %v2743
      %v3556 = vpack.c.b16 %v2748, %v2744
      %v3557 = vpack.c.b16 %v2749, %v2745
      %v3558 = vpack.c.b16 %v2750, %v2746
      %v3559 = vpack.c.b16 %v2755, %v2751
      %v3560 = vpack.c.b16 %v2756, %v2752
      %v3561 = vpack.c.b16 %v2757, %v2753
      %v3562 = vpack.c.b16 %v2758, %v2754
      %v3563 = vpack.c.b16 %v2763, %v2759
      %v3564 = vpack.c.b16 %v2764, %v2760
      %v3565 = vpack.c.b16 %v2765, %v2761
      %v3566 = vpack.c.b16 %v2766, %v2762
      %v3567 = vpack.c.b16 %v2771, %v2767
      %v3568 = vpack.c.b16 %v2772, %v2768
      %v3569 = vpack.c.b16 %v2773, %v2769
      %v3570 = vpack.c.b16 %v2774, %v2770
      %v3571 = vpack.c.b16 %v2779, %v2775
      %v3572 = vpack.c.b16 %v2780, %v2776
      %v3573 = vpack.c.b16 %v2781, %v2777
      %v3574 = vpack.c.b16 %v2782, %v2778
      %v3575 = vpack.c.b16 %v2787, %v2783
      %v3576 = vpack.c.b16 %v2788, %v2784
      %v3577 = vpack.c.b16 %v2789, %v2785
      %v3578 = vpack.c.b16 %v2790, %v2786
      %v3579 = vpack.c.b16 %v2795, %v2791
      %v3580 = vpack.c.b16 %v2796, %v2792
      %v3581 = vpack.c.b16 %v2797, %v2793
      %v3582 = vpack.c.b16 %v2798, %v2794
      %v3583 = vpack.c.b16 %v2803, %v2799
      %v3584 = vpack.c.b16 %v2804, %v2800
      %v3585 = vpack.c.b16 %v2805, %v2801
      %v3586 = vpack.c.b16 %v2806, %v2802
      %v3587 = vpack.c.b16 %v2811, %v2807
      %v3588 = vpack.c.b16 %v2812, %v2808
      %v3589 = vpack.c.b16 %v2813, %v2809
      %v3590 = vpack.c.b16 %v2814, %v2810
      %v3591 = vpack.c.b16 %v2819, %v2815
      %v3592 = vpack.c.b16 %v2820, %v2816
      %v3593 = vpack.c.b16 %v2821, %v2817
      %v3594 = vpack.c.b16 %v2822, %v2818
      %v3595 = vpack.c.b16 %v2827, %v2823
      %v3596 = vpack.c.b16 %v2828, %v2824
      %v3597 = vpack.c.b16 %v2829, %v2825
      %v3598 = vpack.c.b16 %v2830, %v2826
      %v3599 = vpack.c.b16 %v2835, %v2831
      %v3600 = vpack.c.b16 %v2836, %v2832
      %v3601 = vpack.c.b16 %v2837, %v2833
      %v3602 = vpack.c.b16 %v2838, %v2834
      %v3603 = vpack.c.b16 %v2843, %v2839
      %v3604 = vpack.c.b16 %v2844, %v2840
      %v3605 = vpack.c.b16 %v2845, %v2841
      %v3606 = vpack.c.b16 %v2846, %v2842
      %v3607 = vpack.c.b16 %v2851, %v2847
      %v3608 = vpack.c.b16 %v2852, %v2848
      %v3609 = vpack.c.b16 %v2853, %v2849
      %v3610 = vpack.c.b16 %v2854, %v2850
      %v3611 = vpack.c.b16 %v2859, %v2855
      %v3612 = vpack.c.b16 %v2860, %v2856
      %v3613 = vpack.c.b16 %v2861, %v2857
      %v3614 = vpack.c.b16 %v2862, %v2858
      %v3615 = vpack.c.b16 %v2867, %v2863
      %v3616 = vpack.c.b16 %v2868, %v2864
      %v3617 = vpack.c.b16 %v2869, %v2865
      %v3618 = vpack.c.b16 %v2870, %v2866
      %v3619 = vpack.c.b16 %v2875, %v2871
      %v3620 = vpack.c.b16 %v2876, %v2872
      %v3621 = vpack.c.b16 %v2877, %v2873
      %v3622 = vpack.c.b16 %v2878, %v2874
      %v3623 = vpack.c.b16 %v2883, %v2879
      %v3624 = vpack.c.b16 %v2884, %v2880
      %v3625 = vpack.c.b16 %v2885, %v2881
      %v3626 = vpack.c.b16 %v2886, %v2882
      %v3627 = vpack.c.b16 %v2891, %v2887
      %v3628 = vpack.c.b16 %v2892, %v2888
      %v3629 = vpack.c.b16 %v2893, %v2889
      %v3630 = vpack.c.b16 %v2894, %v2890
      %v3631 = vpack.c.b16 %v2899, %v2895
      %v3632 = vpack.c.b16 %v2900, %v2896
      %v3633 = vpack.c.b16 %v2901, %v2897
      %v3634 = vpack.c.b16 %v2902, %v2898
      %v3635 = vpack.c.b16 %v2907, %v2903
      %v3636 = vpack.c.b16 %v2908, %v2904
      %v3637 = vpack.c.b16 %v2909, %v2905
      %v3638 = vpack.c.b16 %v2910, %v2906
      %v3639 = vpack.c.b16 %v2915, %v2911
      %v3640 = vpack.c.b16 %v2916, %v2912
      %v3641 = vpack.c.b16 %v2917, %v2913
      %v3642 = vpack.c.b16 %v2918, %v2914
      %v3643 = vpack.c.b16 %v2923, %v2919
      %v3644 = vpack.c.b16 %v2924, %v2920
      %v3645 = vpack.c.b16 %v2925, %v2921
      %v3646 = vpack.c.b16 %v2926, %v2922
      %v3647 = vpack.c.b16 %v2931, %v2927
      %v3648 = vpack.c.b16 %v2932, %v2928
      %v3649 = vpack.c.b16 %v2933, %v2929
      %v3650 = vpack.c.b16 %v2934, %v2930
      %v3651 = vpack.c.b16 %v2939, %v2935
      %v3652 = vpack.c.b16 %v2940, %v2936
      %v3653 = vpack.c.b16 %v2941, %v2937
      %v3654 = vpack.c.b16 %v2942, %v2938
      %v3655 = vpack.c.b16 %v2947, %v2943
      %v3656 = vpack.c.b16 %v2948, %v2944
      %v3657 = vpack.c.b16 %v2949, %v2945
      %v3658 = vpack.c.b16 %v2950, %v2946
      %v3659 = vpack.c.b16 %v2955, %v2951
      %v3660 = vpack.c.b16 %v2956, %v2952
      %v3661 = vpack.c.b16 %v2957, %v2953
      %v3662 = vpack.c.b16 %v2958, %v2954
      %v3663 = vpack.c.b16 %v2963, %v2959
      %v3664 = vpack.c.b16 %v2964, %v2960
      %v3665 = vpack.c.b16 %v2965, %v2961
      %v3666 = vpack.c.b16 %v2966, %v2962
      %v3667 = vpack.c.b16 %v2971, %v2967
      %v3668 = vpack.c.b16 %v2972, %v2968
      %v3669 = vpack.c.b16 %v2973, %v2969
      %v3670 = vpack.c.b16 %v2974, %v2970
      %v3671 = vpack.c.b16 %v2979, %v2975
      %v3672 = vpack.c.b16 %v2980, %v2976
      %v3673 = vpack.c.b16 %v2981, %v2977
      %v3674 = vpack.c.b16 %v2982, %v2978
      %v3675 = vpack.c.b16 %v2987, %v2983
      %v3676 = vpack.c.b16 %v2988, %v2984
      %v3677 = vpack.c.b16 %v2989, %v2985
      %v3678 = vpack.c.b16 %v2990, %v2986
      %v3679 = vpack.c.b16 %v2995, %v2991
      %v3680 = vpack.c.b16 %v2996, %v2992
      %v3681 = vpack.c.b16 %v2997, %v2993
      %v3682 = vpack.c.b16 %v2998, %v2994
      %v3683 = vpack.c.b16 %v3003, %v2999
      %v3684 = vpack.c.b16 %v3004, %v3000
      %v3685 = vpack.c.b16 %v3005, %v3001
      %v3686 = vpack.c.b16 %v3006, %v3002
      %v3687 = vpack.c.b16 %v3011, %v3007
      %v3688 = vpack.c.b16 %v3012, %v3008
      %v3689 = vpack.c.b16 %v3013, %v3009
      %v3690 = vpack.c.b16 %v3014, %v3010
      %v3691 = vpack.c.b16 %v3019, %v3015
      %v3692 = vpack.c.b16 %v3020, %v3016
      %v3693 = vpack.c.b16 %v3021, %v3017
      %v3694 = vpack.c.b16 %v3022, %v3018
      %4367 = vmatprep.subr.bf16.mxu0 %v3024
      %4368 = vmatpush1.bf16.msra.mxu0 %v3023
      %4369 = vmatprep.subr.bf16.mxu0 %v3028
      %4370 = vmatpush1.bf16.msra.mxu0 %v3027
      %4371 = vmatprep.subr.bf16.mxu0 %v3032
      %4372 = vmatpush1.bf16.msra.mxu0 %v3031
      %4373 = vmatprep.subr.bf16.mxu0 %v3036
      %4374 = vmatpush1.bf16.msra.mxu0 %v3035
      %4375 = vmatprep.subr.bf16.mxu0 %v3040
      %4376 = vmatpush1.bf16.msra.mxu0 %v3039
      %4377 = vmatprep.subr.bf16.mxu0 %v3044
      %4378 = vmatpush1.bf16.msra.mxu0 %v3043
      %4379 = vmatprep.subr.bf16.mxu0 %v3048
      %4380 = vmatpush1.bf16.msra.mxu0 %v3047
      %4381 = vmatprep.subr.bf16.mxu0 %v3052
      %4382 = vmatpush1.bf16.msra.mxu0 %v3051
      %4383 = vmatprep.subr.bf16.mxu0 %v3056
      %4384 = vmatpush1.bf16.msra.mxu0 %v3055
      %4385 = vmatprep.subr.bf16.mxu0 %v3060
      %4386 = vmatpush1.bf16.msra.mxu0 %v3059
      %4387 = vmatprep.subr.bf16.mxu0 %v3064
      %4388 = vmatpush1.bf16.msra.mxu0 %v3063
      %4389 = vmatprep.subr.bf16.mxu0 %v3068
      %4390 = vmatpush1.bf16.msra.mxu0 %v3067
      %4391 = vmatprep.subr.bf16.mxu0 %v3072
      %4392 = vmatpush1.bf16.msra.mxu0 %v3071
      %4393 = vmatprep.subr.bf16.mxu0 %v3076
      %4394 = vmatpush1.bf16.msra.mxu0 %v3075
      %4395 = vmatprep.subr.bf16.mxu0 %v3080
      %4396 = vmatpush1.bf16.msra.mxu0 %v3079
      %4397 = vmatprep.subr.bf16.mxu0 %v3084
      %4398 = vmatpush1.bf16.msra.mxu0 %v3083
      %4399 = vmatprep.mubr.bf16.mxu0 %v966
      %4400 = vmatmul.mubr.bf16.gmra.mrb[0].mxu0 %v965
      %v4401 = vpop.f32.mrb[0].mxu0
      %v4402 = vadd.f32 0.0, %v4401
      %v4403 = vpop.f32.mrb[0].mxu0
      %v4404 = vadd.f32 0.0, %v4403
      %v4405 = vpop.f32.mrb[0].mxu0
      %v4406 = vpop.f32.mrb[0].mxu0
      %4407 = vdwg.mxu0
      %4408 = vmatprep.subr.bf16.mxu0 %v3088
      %4409 = vmatpush1.bf16.msra.mxu0 %v3087
      %4410 = vmatprep.subr.bf16.mxu0 %v3092
      %4411 = vmatpush1.bf16.msra.mxu0 %v3091
      %4412 = vmatprep.subr.bf16.mxu0 %v3096
      %4413 = vmatpush1.bf16.msra.mxu0 %v3095
      %4414 = vmatprep.subr.bf16.mxu0 %v3100
      %4415 = vmatpush1.bf16.msra.mxu0 %v3099
      %4416 = vmatprep.subr.bf16.mxu0 %v3104
      %4417 = vmatpush1.bf16.msra.mxu0 %v3103
      %4418 = vmatprep.subr.bf16.mxu0 %v3108
      %4419 = vmatpush1.bf16.msra.mxu0 %v3107
      %4420 = vmatprep.subr.bf16.mxu0 %v3112
      %4421 = vmatpush1.bf16.msra.mxu0 %v3111
      %4422 = vmatprep.subr.bf16.mxu0 %v3116
      %4423 = vmatpush1.bf16.msra.mxu0 %v3115
      %4424 = vmatprep.subr.bf16.mxu0 %v3120
      %4425 = vmatpush1.bf16.msra.mxu0 %v3119
      %4426 = vmatprep.subr.bf16.mxu0 %v3124
      %4427 = vmatpush1.bf16.msra.mxu0 %v3123
      %4428 = vmatprep.subr.bf16.mxu0 %v3128
      %4429 = vmatpush1.bf16.msra.mxu0 %v3127
      %4430 = vmatprep.subr.bf16.mxu0 %v3132
      %4431 = vmatpush1.bf16.msra.mxu0 %v3131
      %4432 = vmatprep.subr.bf16.mxu0 %v3136
      %4433 = vmatpush1.bf16.msra.mxu0 %v3135
      %4434 = vmatprep.subr.bf16.mxu0 %v3140
      %4435 = vmatpush1.bf16.msra.mxu0 %v3139
      %4436 = vmatprep.subr.bf16.mxu0 %v3144
      %4437 = vmatpush1.bf16.msra.mxu0 %v3143
      %4438 = vmatprep.subr.bf16.mxu0 %v3148
      %4439 = vmatpush1.bf16.msra.mxu0 %v3147
      %4440 = vmatprep.mubr.bf16.mxu0 %v968
      %4441 = vmatmul.mubr.bf16.gmra.mrb[0].mxu0 %v967
      %v4442 = vpop.f32.mrb[0].mxu0
      %v4443 = vadd.f32 %v4402, %v4442
      %v4444 = vpop.f32.mrb[0].mxu0
      %v4445 = vadd.f32 %v4404, %v4444
      %v4446 = vpop.f32.mrb[0].mxu0
      %v4447 = vpop.f32.mrb[0].mxu0
      %4448 = vdwg.mxu0
      %4449 = vmatprep.subr.bf16.mxu0 %v3152
      %4450 = vmatpush1.bf16.msra.mxu0 %v3151
      %4451 = vmatprep.subr.bf16.mxu0 %v3156
      %4452 = vmatpush1.bf16.msra.mxu0 %v3155
      %4453 = vmatprep.subr.bf16.mxu0 %v3160
      %4454 = vmatpush1.bf16.msra.mxu0 %v3159
      %4455 = vmatprep.subr.bf16.mxu0 %v3164
      %4456 = vmatpush1.bf16.msra.mxu0 %v3163
      %4457 = vmatprep.subr.bf16.mxu0 %v3168
      %4458 = vmatpush1.bf16.msra.mxu0 %v3167
      %4459 = vmatprep.subr.bf16.mxu0 %v3172
      %4460 = vmatpush1.bf16.msra.mxu0 %v3171
      %4461 = vmatprep.subr.bf16.mxu0 %v3176
      %4462 = vmatpush1.bf16.msra.mxu0 %v3175
      %4463 = vmatprep.subr.bf16.mxu0 %v3180
      %4464 = vmatpush1.bf16.msra.mxu0 %v3179
      %4465 = vmatprep.subr.bf16.mxu0 %v3184
      %4466 = vmatpush1.bf16.msra.mxu0 %v3183
      %4467 = vmatprep.subr.bf16.mxu0 %v3188
      %4468 = vmatpush1.bf16.msra.mxu0 %v3187
      %4469 = vmatprep.subr.bf16.mxu0 %v3192
      %4470 = vmatpush1.bf16.msra.mxu0 %v3191
      %4471 = vmatprep.subr.bf16.mxu0 %v3196
      %4472 = vmatpush1.bf16.msra.mxu0 %v3195
      %4473 = vmatprep.subr.bf16.mxu0 %v3200
      %4474 = vmatpush1.bf16.msra.mxu0 %v3199
      %4475 = vmatprep.subr.bf16.mxu0 %v3204
      %4476 = vmatpush1.bf16.msra.mxu0 %v3203
      %4477 = vmatprep.subr.bf16.mxu0 %v3208
      %4478 = vmatpush1.bf16.msra.mxu0 %v3207
      %4479 = vmatprep.subr.bf16.mxu0 %v3212
      %4480 = vmatpush1.bf16.msra.mxu0 %v3211
      %4481 = vmatprep.mubr.bf16.mxu0 %v970
      %4482 = vmatmul.mubr.bf16.gmra.mrb[0].mxu0 %v969
      %v4483 = vpop.f32.mrb[0].mxu0
      %v4484 = vadd.f32 %v4443, %v4483
      %v4485 = vpop.f32.mrb[0].mxu0
      %v4486 = vadd.f32 %v4445, %v4485
      %v4487 = vpop.f32.mrb[0].mxu0
      %v4488 = vpop.f32.mrb[0].mxu0
      %4489 = vdwg.mxu0
      %4490 = vmatprep.subr.bf16.mxu0 %v3216
      %4491 = vmatpush1.bf16.msra.mxu0 %v3215
      %4492 = vmatprep.subr.bf16.mxu0 %v3220
      %4493 = vmatpush1.bf16.msra.mxu0 %v3219
      %4494 = vmatprep.subr.bf16.mxu0 %v3224
      %4495 = vmatpush1.bf16.msra.mxu0 %v3223
      %4496 = vmatprep.subr.bf16.mxu0 %v3228
      %4497 = vmatpush1.bf16.msra.mxu0 %v3227
      %4498 = vmatprep.subr.bf16.mxu0 %v3232
      %4499 = vmatpush1.bf16.msra.mxu0 %v3231
      %4500 = vmatprep.subr.bf16.mxu0 %v3236
      %4501 = vmatpush1.bf16.msra.mxu0 %v3235
      %4502 = vmatprep.subr.bf16.mxu0 %v3240
      %4503 = vmatpush1.bf16.msra.mxu0 %v3239
      %4504 = vmatprep.subr.bf16.mxu0 %v3244
      %4505 = vmatpush1.bf16.msra.mxu0 %v3243
      %4506 = vmatprep.subr.bf16.mxu0 %v3248
      %4507 = vmatpush1.bf16.msra.mxu0 %v3247
      %4508 = vmatprep.subr.bf16.mxu0 %v3252
      %4509 = vmatpush1.bf16.msra.mxu0 %v3251
      %4510 = vmatprep.subr.bf16.mxu0 %v3256
      %4511 = vmatpush1.bf16.msra.mxu0 %v3255
      %4512 = vmatprep.subr.bf16.mxu0 %v3260
      %4513 = vmatpush1.bf16.msra.mxu0 %v3259
      %4514 = vmatprep.subr.bf16.mxu0 %v3264
      %4515 = vmatpush1.bf16.msra.mxu0 %v3263
      %4516 = vmatprep.subr.bf16.mxu0 %v3268
      %4517 = vmatpush1.bf16.msra.mxu0 %v3267
      %4518 = vmatprep.subr.bf16.mxu0 %v3272
      %4519 = vmatpush1.bf16.msra.mxu0 %v3271
      %4520 = vmatprep.subr.bf16.mxu0 %v3276
      %4521 = vmatpush1.bf16.msra.mxu0 %v3275
      %4522 = vmatprep.mubr.bf16.mxu0 %v972
      %4523 = vmatmul.mubr.bf16.gmra.mrb[0].mxu0 %v971
      %v4524 = vpop.f32.mrb[0].mxu0
      %v4525 = vadd.f32 %v4484, %v4524
      %v4526 = vpop.f32.mrb[0].mxu0
      %v4527 = vadd.f32 %v4486, %v4526
      %v4528 = vpop.f32.mrb[0].mxu0
      %v4529 = vpop.f32.mrb[0].mxu0
      %4530 = vdwg.mxu0
      %4531 = vmatprep.subr.bf16.mxu0 %v3280
      %4532 = vmatpush1.bf16.msra.mxu0 %v3279
      %4533 = vmatprep.subr.bf16.mxu0 %v3284
      %4534 = vmatpush1.bf16.msra.mxu0 %v3283
      %4535 = vmatprep.subr.bf16.mxu0 %v3288
      %4536 = vmatpush1.bf16.msra.mxu0 %v3287
      %4537 = vmatprep.subr.bf16.mxu0 %v3292
      %4538 = vmatpush1.bf16.msra.mxu0 %v3291
      %4539 = vmatprep.subr.bf16.mxu0 %v3296
      %4540 = vmatpush1.bf16.msra.mxu0 %v3295
      %4541 = vmatprep.subr.bf16.mxu0 %v3300
      %4542 = vmatpush1.bf16.msra.mxu0 %v3299
      %4543 = vmatprep.subr.bf16.mxu0 %v3304
      %4544 = vmatpush1.bf16.msra.mxu0 %v3303
      %4545 = vmatprep.subr.bf16.mxu0 %v3308
      %4546 = vmatpush1.bf16.msra.mxu0 %v3307
      %4547 = vmatprep.subr.bf16.mxu0 %v3312
      %4548 = vmatpush1.bf16.msra.mxu0 %v3311
      %4549 = vmatprep.subr.bf16.mxu0 %v3316
      %4550 = vmatpush1.bf16.msra.mxu0 %v3315
      %4551 = vmatprep.subr.bf16.mxu0 %v3320
      %4552 = vmatpush1.bf16.msra.mxu0 %v3319
      %4553 = vmatprep.subr.bf16.mxu0 %v3324
      %4554 = vmatpush1.bf16.msra.mxu0 %v3323
      %4555 = vmatprep.subr.bf16.mxu0 %v3328
      %4556 = vmatpush1.bf16.msra.mxu0 %v3327
      %4557 = vmatprep.subr.bf16.mxu0 %v3332
      %4558 = vmatpush1.bf16.msra.mxu0 %v3331
      %4559 = vmatprep.subr.bf16.mxu0 %v3336
      %4560 = vmatpush1.bf16.msra.mxu0 %v3335
      %4561 = vmatprep.subr.bf16.mxu0 %v3340
      %4562 = vmatpush1.bf16.msra.mxu0 %v3339
      %4563 = vmatprep.mubr.bf16.mxu0 %v974
      %4564 = vmatmul.mubr.bf16.gmra.mrb[0].mxu0 %v973
      %v4565 = vpop.f32.mrb[0].mxu0
      %v4566 = vadd.f32 %v4525, %v4565
      %v4567 = vpop.f32.mrb[0].mxu0
      %v4568 = vadd.f32 %v4527, %v4567
      %v4569 = vpop.f32.mrb[0].mxu0
      %v4570 = vpop.f32.mrb[0].mxu0
      %4571 = vdwg.mxu0
      %4572 = vmatprep.subr.bf16.mxu0 %v3344
      %4573 = vmatpush1.bf16.msra.mxu0 %v3343
      %4574 = vmatprep.subr.bf16.mxu0 %v3348
      %4575 = vmatpush1.bf16.msra.mxu0 %v3347
      %4576 = vmatprep.subr.bf16.mxu0 %v3352
      %4577 = vmatpush1.bf16.msra.mxu0 %v3351
      %4578 = vmatprep.subr.bf16.mxu0 %v3356
      %4579 = vmatpush1.bf16.msra.mxu0 %v3355
      %4580 = vmatprep.subr.bf16.mxu0 %v3360
      %4581 = vmatpush1.bf16.msra.mxu0 %v3359
      %4582 = vmatprep.subr.bf16.mxu0 %v3364
      %4583 = vmatpush1.bf16.msra.mxu0 %v3363
      %4584 = vmatprep.subr.bf16.mxu0 %v3368
      %4585 = vmatpush1.bf16.msra.mxu0 %v3367
      %4586 = vmatprep.subr.bf16.mxu0 %v3372
      %4587 = vmatpush1.bf16.msra.mxu0 %v3371
      %4588 = vmatprep.subr.bf16.mxu0 %v3376
      %4589 = vmatpush1.bf16.msra.mxu0 %v3375
      %4590 = vmatprep.subr.bf16.mxu0 %v3380
      %4591 = vmatpush1.bf16.msra.mxu0 %v3379
      %4592 = vmatprep.subr.bf16.mxu0 %v3384
      %4593 = vmatpush1.bf16.msra.mxu0 %v3383
      %4594 = vmatprep.subr.bf16.mxu0 %v3388
      %4595 = vmatpush1.bf16.msra.mxu0 %v3387
      %4596 = vmatprep.subr.bf16.mxu0 %v3392
      %4597 = vmatpush1.bf16.msra.mxu0 %v3391
      %4598 = vmatprep.subr.bf16.mxu0 %v3396
      %4599 = vmatpush1.bf16.msra.mxu0 %v3395
      %4600 = vmatprep.subr.bf16.mxu0 %v3400
      %4601 = vmatpush1.bf16.msra.mxu0 %v3399
      %4602 = vmatprep.subr.bf16.mxu0 %v3404
      %4603 = vmatpush1.bf16.msra.mxu0 %v3403
      %4604 = vmatprep.mubr.bf16.mxu0 %v976
      %4605 = vmatmul.mubr.bf16.gmra.mrb[0].mxu0 %v975
      %v4606 = vpop.f32.mrb[0].mxu0
      %v4607 = vadd.f32 %v4566, %v4606
      %v4608 = vpop.f32.mrb[0].mxu0
      %v4609 = vadd.f32 %v4568, %v4608
      %v4610 = vpop.f32.mrb[0].mxu0
      %v4611 = vpop.f32.mrb[0].mxu0
      %4612 = vdwg.mxu0
      %4613 = vmatprep.subr.bf16.mxu0 %v3408
      %4614 = vmatpush1.bf16.msra.mxu0 %v3407
      %4615 = vmatprep.subr.bf16.mxu0 %v3412
      %4616 = vmatpush1.bf16.msra.mxu0 %v3411
      %4617 = vmatprep.subr.bf16.mxu0 %v3416
      %4618 = vmatpush1.bf16.msra.mxu0 %v3415
      %4619 = vmatprep.subr.bf16.mxu0 %v3420
      %4620 = vmatpush1.bf16.msra.mxu0 %v3419
      %4621 = vmatprep.subr.bf16.mxu0 %v3424
      %4622 = vmatpush1.bf16.msra.mxu0 %v3423
      %4623 = vmatprep.subr.bf16.mxu0 %v3428
      %4624 = vmatpush1.bf16.msra.mxu0 %v3427
      %4625 = vmatprep.subr.bf16.mxu0 %v3432
      %4626 = vmatpush1.bf16.msra.mxu0 %v3431
      %4627 = vmatprep.subr.bf16.mxu0 %v3436
      %4628 = vmatpush1.bf16.msra.mxu0 %v3435
      %4629 = vmatprep.subr.bf16.mxu0 %v3440
      %4630 = vmatpush1.bf16.msra.mxu0 %v3439
      %4631 = vmatprep.subr.bf16.mxu0 %v3444
      %4632 = vmatpush1.bf16.msra.mxu0 %v3443
      %4633 = vmatprep.subr.bf16.mxu0 %v3448
      %4634 = vmatpush1.bf16.msra.mxu0 %v3447
      %4635 = vmatprep.subr.bf16.mxu0 %v3452
      %4636 = vmatpush1.bf16.msra.mxu0 %v3451
      %4637 = vmatprep.subr.bf16.mxu0 %v3456
      %4638 = vmatpush1.bf16.msra.mxu0 %v3455
      %4639 = vmatprep.subr.bf16.mxu0 %v3460
      %4640 = vmatpush1.bf16.msra.mxu0 %v3459
      %4641 = vmatprep.subr.bf16.mxu0 %v3464
      %4642 = vmatpush1.bf16.msra.mxu0 %v3463
      %4643 = vmatprep.subr.bf16.mxu0 %v3468
      %4644 = vmatpush1.bf16.msra.mxu0 %v3467
      %4645 = vmatprep.mubr.bf16.mxu0 %v978
      %4646 = vmatmul.mubr.bf16.gmra.mrb[0].mxu0 %v977
      %v4647 = vpop.f32.mrb[0].mxu0
      %v4648 = vadd.f32 %v4607, %v4647
      %v4649 = vpop.f32.mrb[0].mxu0
      %v4650 = vadd.f32 %v4609, %v4649
      %v4651 = vpop.f32.mrb[0].mxu0
      %v4652 = vpop.f32.mrb[0].mxu0
      %4653 = vdwg.mxu0
      %4654 = vmatprep.subr.bf16.mxu0 %v3472
      %4655 = vmatpush1.bf16.msra.mxu0 %v3471
      %4656 = vmatprep.subr.bf16.mxu0 %v3476
      %4657 = vmatpush1.bf16.msra.mxu0 %v3475
      %4658 = vmatprep.subr.bf16.mxu0 %v3480
      %4659 = vmatpush1.bf16.msra.mxu0 %v3479
      %4660 = vmatprep.subr.bf16.mxu0 %v3484
      %4661 = vmatpush1.bf16.msra.mxu0 %v3483
      %4662 = vmatprep.subr.bf16.mxu0 %v3488
      %4663 = vmatpush1.bf16.msra.mxu0 %v3487
      %4664 = vmatprep.subr.bf16.mxu0 %v3492
      %4665 = vmatpush1.bf16.msra.mxu0 %v3491
      %4666 = vmatprep.subr.bf16.mxu0 %v3496
      %4667 = vmatpush1.bf16.msra.mxu0 %v3495
      %4668 = vmatprep.subr.bf16.mxu0 %v3500
      %4669 = vmatpush1.bf16.msra.mxu0 %v3499
      %4670 = vmatprep.subr.bf16.mxu0 %v3504
      %4671 = vmatpush1.bf16.msra.mxu0 %v3503
      %4672 = vmatprep.subr.bf16.mxu0 %v3508
      %4673 = vmatpush1.bf16.msra.mxu0 %v3507
      %4674 = vmatprep.subr.bf16.mxu0 %v3512
      %4675 = vmatpush1.bf16.msra.mxu0 %v3511
      %4676 = vmatprep.subr.bf16.mxu0 %v3516
      %4677 = vmatpush1.bf16.msra.mxu0 %v3515
      %4678 = vmatprep.subr.bf16.mxu0 %v3520
      %4679 = vmatpush1.bf16.msra.mxu0 %v3519
      %4680 = vmatprep.subr.bf16.mxu0 %v3524
      %4681 = vmatpush1.bf16.msra.mxu0 %v3523
      %4682 = vmatprep.subr.bf16.mxu0 %v3528
      %4683 = vmatpush1.bf16.msra.mxu0 %v3527
      %4684 = vmatprep.subr.bf16.mxu0 %v3532
      %4685 = vmatpush1.bf16.msra.mxu0 %v3531
      %4686 = vmatprep.mubr.bf16.mxu0 %v980
      %4687 = vmatmul.mubr.bf16.gmra.mrb[0].mxu0 %v979
      %v4688 = vpop.f32.mrb[0].mxu0
      %v4689 = vadd.f32 %v4648, %v4688
      %v4690 = vpop.f32.mrb[0].mxu0
      %v4691 = vadd.f32 %v4650, %v4690
      %v4692 = vpop.f32.mrb[0].mxu0
      %v4693 = vpop.f32.mrb[0].mxu0
      %4694 = vdwg.mxu0
      %4695 = vmatprep.subr.bf16.mxu0 %v3536
      %4696 = vmatpush1.bf16.msra.mxu0 %v3535
      %4697 = vmatprep.subr.bf16.mxu0 %v3540
      %4698 = vmatpush1.bf16.msra.mxu0 %v3539
      %4699 = vmatprep.subr.bf16.mxu0 %v3544
      %4700 = vmatpush1.bf16.msra.mxu0 %v3543
      %4701 = vmatprep.subr.bf16.mxu0 %v3548
      %4702 = vmatpush1.bf16.msra.mxu0 %v3547
      %4703 = vmatprep.subr.bf16.mxu0 %v3552
      %4704 = vmatpush1.bf16.msra.mxu0 %v3551
      %4705 = vmatprep.subr.bf16.mxu0 %v3556
      %4706 = vmatpush1.bf16.msra.mxu0 %v3555
      %4707 = vmatprep.subr.bf16.mxu0 %v3560
      %4708 = vmatpush1.bf16.msra.mxu0 %v3559
      %4709 = vmatprep.subr.bf16.mxu0 %v3564
      %4710 = vmatpush1.bf16.msra.mxu0 %v3563
      %4711 = vmatprep.subr.bf16.mxu0 %v3568
      %4712 = vmatpush1.bf16.msra.mxu0 %v3567
      %4713 = vmatprep.subr.bf16.mxu0 %v3572
      %4714 = vmatpush1.bf16.msra.mxu0 %v3571
      %4715 = vmatprep.subr.bf16.mxu0 %v3576
      %4716 = vmatpush1.bf16.msra.mxu0 %v3575
      %4717 = vmatprep.subr.bf16.mxu0 %v3580
      %4718 = vmatpush1.bf16.msra.mxu0 %v3579
      %4719 = vmatprep.subr.bf16.mxu0 %v3584
      %4720 = vmatpush1.bf16.msra.mxu0 %v3583
      %4721 = vmatprep.subr.bf16.mxu0 %v3588
      %4722 = vmatpush1.bf16.msra.mxu0 %v3587
      %4723 = vmatprep.subr.bf16.mxu0 %v3592
      %4724 = vmatpush1.bf16.msra.mxu0 %v3591
      %4725 = vmatprep.subr.bf16.mxu0 %v3596
      %4726 = vmatpush1.bf16.msra.mxu0 %v3595
      %4727 = vmatprep.mubr.bf16.mxu0 %v982
      %4728 = vmatmul.mubr.bf16.gmra.mrb[0].mxu0 %v981
      %v4729 = vpop.f32.mrb[0].mxu0
      %v4730 = vadd.f32 %v4689, %v4729
      %v4731 = vpop.f32.mrb[0].mxu0
      %v4732 = vadd.f32 %v4691, %v4731
      %v4733 = vpop.f32.mrb[0].mxu0
      %v4734 = vpop.f32.mrb[0].mxu0
      %4735 = vdwg.mxu0
      %4736 = vmatprep.subr.bf16.mxu0 %v3600
      %4737 = vmatpush1.bf16.msra.mxu0 %v3599
      %4738 = vmatprep.subr.bf16.mxu0 %v3604
      %4739 = vmatpush1.bf16.msra.mxu0 %v3603
      %4740 = vmatprep.subr.bf16.mxu0 %v3608
      %4741 = vmatpush1.bf16.msra.mxu0 %v3607
      %4742 = vmatprep.subr.bf16.mxu0 %v3612
      %4743 = vmatpush1.bf16.msra.mxu0 %v3611
      %4744 = vmatprep.subr.bf16.mxu0 %v3616
      %4745 = vmatpush1.bf16.msra.mxu0 %v3615
      %4746 = vmatprep.subr.bf16.mxu0 %v3620
      %4747 = vmatpush1.bf16.msra.mxu0 %v3619
      %4748 = vmatprep.subr.bf16.mxu0 %v3624
      %4749 = vmatpush1.bf16.msra.mxu0 %v3623
      %4750 = vmatprep.subr.bf16.mxu0 %v3628
      %4751 = vmatpush1.bf16.msra.mxu0 %v3627
      %4752 = vmatprep.subr.bf16.mxu0 %v3632
      %4753 = vmatpush1.bf16.msra.mxu0 %v3631
      %4754 = vmatprep.subr.bf16.mxu0 %v3636
      %4755 = vmatpush1.bf16.msra.mxu0 %v3635
      %4756 = vmatprep.subr.bf16.mxu0 %v3640
      %4757 = vmatpush1.bf16.msra.mxu0 %v3639
      %4758 = vmatprep.subr.bf16.mxu0 %v3644
      %4759 = vmatpush1.bf16.msra.mxu0 %v3643
      %4760 = vmatprep.subr.bf16.mxu0 %v3648
      %4761 = vmatpush1.bf16.msra.mxu0 %v3647
      %4762 = vmatprep.subr.bf16.mxu0 %v3652
      %4763 = vmatpush1.bf16.msra.mxu0 %v3651
      %4764 = vmatprep.subr.bf16.mxu0 %v3656
      %4765 = vmatpush1.bf16.msra.mxu0 %v3655
      %4766 = vmatprep.subr.bf16.mxu0 %v3660
      %4767 = vmatpush1.bf16.msra.mxu0 %v3659
      %4768 = vmatprep.mubr.bf16.mxu0 %v984
      %4769 = vmatmul.mubr.bf16.gmra.mrb[0].mxu0 %v983
      %v4770 = vpop.f32.mrb[0].mxu0
      %v4771 = vadd.f32 %v4730, %v4770
      %v4772 = vpop.f32.mrb[0].mxu0
      %v4773 = vadd.f32 %v4732, %v4772
      %v4774 = vpop.f32.mrb[0].mxu0
      %v4775 = vpop.f32.mrb[0].mxu0
      %4776 = vdwg.mxu0
      %4777 = vmatprep.subr.bf16.mxu0 %v3664
      %4778 = vmatpush1.bf16.msra.mxu0 %v3663
      %4779 = vmatprep.subr.bf16.mxu0 %v3668
      %4780 = vmatpush1.bf16.msra.mxu0 %v3667
      %4781 = vmatprep.subr.bf16.mxu0 %v3672
      %4782 = vmatpush1.bf16.msra.mxu0 %v3671
      %4783 = vmatprep.subr.bf16.mxu0 %v3676
      %4784 = vmatpush1.bf16.msra.mxu0 %v3675
      %4785 = vmatprep.subr.bf16.mxu0 %v3680
      %4786 = vmatpush1.bf16.msra.mxu0 %v3679
      %4787 = vmatprep.subr.bf16.mxu0 %v3684
      %4788 = vmatpush1.bf16.msra.mxu0 %v3683
      %4789 = vmatprep.subr.bf16.mxu0 %v3688
      %4790 = vmatpush1.bf16.msra.mxu0 %v3687
      %4791 = vmatprep.subr.bf16.mxu0 %v3692
      %4792 = vmatpush1.bf16.msra.mxu0 %v3691
      %4793 = vmatprep.subr.bf16.mxu0 0
      %4794 = vmatpush1.bf16.msra.mxu0 0
      %4795 = vmatprep.subr.bf16.mxu0 0
      %4796 = vmatpush1.bf16.msra.mxu0 0
      %4797 = vmatprep.subr.bf16.mxu0 0
      %4798 = vmatpush1.bf16.msra.mxu0 0
      %4799 = vmatprep.subr.bf16.mxu0 0
      %4800 = vmatpush1.bf16.msra.mxu0 0
      %4801 = vmatprep.subr.bf16.mxu0 0
      %4802 = vmatpush1.bf16.msra.mxu0 0
      %4803 = vmatprep.subr.bf16.mxu0 0
      %4804 = vmatpush1.bf16.msra.mxu0 0
      %4805 = vmatprep.subr.bf16.mxu0 0
      %4806 = vmatpush1.bf16.msra.mxu0 0
      %4807 = vmatprep.subr.bf16.mxu0 0
      %4808 = vmatpush1.bf16.msra.mxu0 0
      %4809 = vmatprep.mubr.bf16.mxu0 0
      %4810 = vmatmul.mubr.bf16.gmra.mrb[0].mxu0 %v985
      %v4811 = vpop.f32.mrb[0].mxu0
      %v4812 = vadd.f32 %v4771, %v4811
      %v4813 = vpop.f32.mrb[0].mxu0
      %v4814 = vadd.f32 %v4773, %v4813
      %v4815 = vpop.f32.mrb[0].mxu0
      %v4816 = vpop.f32.mrb[0].mxu0
      %4817 = vdwg.mxu0
      %4818 = vmatprep.subr.bf16.mxu0 %v3026
      %4819 = vmatpush1.bf16.msra.mxu0 %v3025
      %4820 = vmatprep.subr.bf16.mxu0 %v3030
      %4821 = vmatpush1.bf16.msra.mxu0 %v3029
      %4822 = vmatprep.subr.bf16.mxu0 %v3034
      %4823 = vmatpush1.bf16.msra.mxu0 %v3033
      %4824 = vmatprep.subr.bf16.mxu0 %v3038
      %4825 = vmatpush1.bf16.msra.mxu0 %v3037
      %4826 = vmatprep.subr.bf16.mxu0 %v3042
      %4827 = vmatpush1.bf16.msra.mxu0 %v3041
      %4828 = vmatprep.subr.bf16.mxu0 %v3046
      %4829 = vmatpush1.bf16.msra.mxu0 %v3045
      %4830 = vmatprep.subr.bf16.mxu0 %v3050
      %4831 = vmatpush1.bf16.msra.mxu0 %v3049
      %4832 = vmatprep.subr.bf16.mxu0 %v3054
      %4833 = vmatpush1.bf16.msra.mxu0 %v3053
      %4834 = vmatprep.subr.bf16.mxu0 %v3058
      %4835 = vmatpush1.bf16.msra.mxu0 %v3057
      %4836 = vmatprep.subr.bf16.mxu0 %v3062
      %4837 = vmatpush1.bf16.msra.mxu0 %v3061
      %4838 = vmatprep.subr.bf16.mxu0 %v3066
      %4839 = vmatpush1.bf16.msra.mxu0 %v3065
      %4840 = vmatprep.subr.bf16.mxu0 %v3070
      %4841 = vmatpush1.bf16.msra.mxu0 %v3069
      %4842 = vmatprep.subr.bf16.mxu0 %v3074
      %4843 = vmatpush1.bf16.msra.mxu0 %v3073
      %4844 = vmatprep.subr.bf16.mxu0 %v3078
      %4845 = vmatpush1.bf16.msra.mxu0 %v3077
      %4846 = vmatprep.subr.bf16.mxu0 %v3082
      %4847 = vmatpush1.bf16.msra.mxu0 %v3081
      %4848 = vmatprep.subr.bf16.mxu0 %v3086
      %4849 = vmatpush1.bf16.msra.mxu0 %v3085
      %4850 = vmatprep.mubr.bf16.mxu0 %v966
      %4851 = vmatmul.mubr.bf16.gmra.mrb[0].mxu0 %v965
      %v4852 = vpop.f32.mrb[0].mxu0
      %v4853 = vadd.f32 0.0, %v4852
      %v4854 = vpop.f32.mrb[0].mxu0
      %v4855 = vadd.f32 0.0, %v4854
      %v4856 = vpop.f32.mrb[0].mxu0
      %v4857 = vpop.f32.mrb[0].mxu0
      %4858 = vdwg.mxu0
      %4859 = vmatprep.subr.bf16.mxu0 %v3090
      %4860 = vmatpush1.bf16.msra.mxu0 %v3089
      %4861 = vmatprep.subr.bf16.mxu0 %v3094
      %4862 = vmatpush1.bf16.msra.mxu0 %v3093
      %4863 = vmatprep.subr.bf16.mxu0 %v3098
      %4864 = vmatpush1.bf16.msra.mxu0 %v3097
      %4865 = vmatprep.subr.bf16.mxu0 %v3102
      %4866 = vmatpush1.bf16.msra.mxu0 %v3101
      %4867 = vmatprep.subr.bf16.mxu0 %v3106
      %4868 = vmatpush1.bf16.msra.mxu0 %v3105
      %4869 = vmatprep.subr.bf16.mxu0 %v3110
      %4870 = vmatpush1.bf16.msra.mxu0 %v3109
      %4871 = vmatprep.subr.bf16.mxu0 %v3114
      %4872 = vmatpush1.bf16.msra.mxu0 %v3113
      %4873 = vmatprep.subr.bf16.mxu0 %v3118
      %4874 = vmatpush1.bf16.msra.mxu0 %v3117
      %4875 = vmatprep.subr.bf16.mxu0 %v3122
      %4876 = vmatpush1.bf16.msra.mxu0 %v3121
      %4877 = vmatprep.subr.bf16.mxu0 %v3126
      %4878 = vmatpush1.bf16.msra.mxu0 %v3125
      %4879 = vmatprep.subr.bf16.mxu0 %v3130
      %4880 = vmatpush1.bf16.msra.mxu0 %v3129
      %4881 = vmatprep.subr.bf16.mxu0 %v3134
      %4882 = vmatpush1.bf16.msra.mxu0 %v3133
      %4883 = vmatprep.subr.bf16.mxu0 %v3138
      %4884 = vmatpush1.bf16.msra.mxu0 %v3137
      %4885 = vmatprep.subr.bf16.mxu0 %v3142
      %4886 = vmatpush1.bf16.msra.mxu0 %v3141
      %4887 = vmatprep.subr.bf16.mxu0 %v3146
      %4888 = vmatpush1.bf16.msra.mxu0 %v3145
      %4889 = vmatprep.subr.bf16.mxu0 %v3150
      %4890 = vmatpush1.bf16.msra.mxu0 %v3149
      %4891 = vmatprep.mubr.bf16.mxu0 %v968
      %4892 = vmatmul.mubr.bf16.gmra.mrb[0].mxu0 %v967
      %v4893 = vpop.f32.mrb[0].mxu0
      %v4894 = vadd.f32 %v4853, %v4893
      %v4895 = vpop.f32.mrb[0].mxu0
      %v4896 = vadd.f32 %v4855, %v4895
      %v4897 = vpop.f32.mrb[0].mxu0
      %v4898 = vpop.f32.mrb[0].mxu0
      %4899 = vdwg.mxu0
      %4900 = vmatprep.subr.bf16.mxu0 %v3154
      %4901 = vmatpush1.bf16.msra.mxu0 %v3153
      %4902 = vmatprep.subr.bf16.mxu0 %v3158
      %4903 = vmatpush1.bf16.msra.mxu0 %v3157
      %4904 = vmatprep.subr.bf16.mxu0 %v3162
      %4905 = vmatpush1.bf16.msra.mxu0 %v3161
      %4906 = vmatprep.subr.bf16.mxu0 %v3166
      %4907 = vmatpush1.bf16.msra.mxu0 %v3165
      %4908 = vmatprep.subr.bf16.mxu0 %v3170
      %4909 = vmatpush1.bf16.msra.mxu0 %v3169
      %4910 = vmatprep.subr.bf16.mxu0 %v3174
      %4911 = vmatpush1.bf16.msra.mxu0 %v3173
      %4912 = vmatprep.subr.bf16.mxu0 %v3178
      %4913 = vmatpush1.bf16.msra.mxu0 %v3177
      %4914 = vmatprep.subr.bf16.mxu0 %v3182
      %4915 = vmatpush1.bf16.msra.mxu0 %v3181
      %4916 = vmatprep.subr.bf16.mxu0 %v3186
      %4917 = vmatpush1.bf16.msra.mxu0 %v3185
      %4918 = vmatprep.subr.bf16.mxu0 %v3190
      %4919 = vmatpush1.bf16.msra.mxu0 %v3189
      %4920 = vmatprep.subr.bf16.mxu0 %v3194
      %4921 = vmatpush1.bf16.msra.mxu0 %v3193
      %4922 = vmatprep.subr.bf16.mxu0 %v3198
      %4923 = vmatpush1.bf16.msra.mxu0 %v3197
      %4924 = vmatprep.subr.bf16.mxu0 %v3202
      %4925 = vmatpush1.bf16.msra.mxu0 %v3201
      %4926 = vmatprep.subr.bf16.mxu0 %v3206
      %4927 = vmatpush1.bf16.msra.mxu0 %v3205
      %4928 = vmatprep.subr.bf16.mxu0 %v3210
      %4929 = vmatpush1.bf16.msra.mxu0 %v3209
      %4930 = vmatprep.subr.bf16.mxu0 %v3214
      %4931 = vmatpush1.bf16.msra.mxu0 %v3213
      %4932 = vmatprep.mubr.bf16.mxu0 %v970
      %4933 = vmatmul.mubr.bf16.gmra.mrb[0].mxu0 %v969
      %v4934 = vpop.f32.mrb[0].mxu0
      %v4935 = vadd.f32 %v4894, %v4934
      %v4936 = vpop.f32.mrb[0].mxu0
      %v4937 = vadd.f32 %v4896, %v4936
      %v4938 = vpop.f32.mrb[0].mxu0
      %v4939 = vpop.f32.mrb[0].mxu0
      %4940 = vdwg.mxu0
      %4941 = vmatprep.subr.bf16.mxu0 %v3218
      %4942 = vmatpush1.bf16.msra.mxu0 %v3217
      %4943 = vmatprep.subr.bf16.mxu0 %v3222
      %4944 = vmatpush1.bf16.msra.mxu0 %v3221
      %4945 = vmatprep.subr.bf16.mxu0 %v3226
      %4946 = vmatpush1.bf16.msra.mxu0 %v3225
      %4947 = vmatprep.subr.bf16.mxu0 %v3230
      %4948 = vmatpush1.bf16.msra.mxu0 %v3229
      %4949 = vmatprep.subr.bf16.mxu0 %v3234
      %4950 = vmatpush1.bf16.msra.mxu0 %v3233
      %4951 = vmatprep.subr.bf16.mxu0 %v3238
      %4952 = vmatpush1.bf16.msra.mxu0 %v3237
      %4953 = vmatprep.subr.bf16.mxu0 %v3242
      %4954 = vmatpush1.bf16.msra.mxu0 %v3241
      %4955 = vmatprep.subr.bf16.mxu0 %v3246
      %4956 = vmatpush1.bf16.msra.mxu0 %v3245
      %4957 = vmatprep.subr.bf16.mxu0 %v3250
      %4958 = vmatpush1.bf16.msra.mxu0 %v3249
      %4959 = vmatprep.subr.bf16.mxu0 %v3254
      %4960 = vmatpush1.bf16.msra.mxu0 %v3253
      %4961 = vmatprep.subr.bf16.mxu0 %v3258
      %4962 = vmatpush1.bf16.msra.mxu0 %v3257
      %4963 = vmatprep.subr.bf16.mxu0 %v3262
      %4964 = vmatpush1.bf16.msra.mxu0 %v3261
      %4965 = vmatprep.subr.bf16.mxu0 %v3266
      %4966 = vmatpush1.bf16.msra.mxu0 %v3265
      %4967 = vmatprep.subr.bf16.mxu0 %v3270
      %4968 = vmatpush1.bf16.msra.mxu0 %v3269
      %4969 = vmatprep.subr.bf16.mxu0 %v3274
      %4970 = vmatpush1.bf16.msra.mxu0 %v3273
      %4971 = vmatprep.subr.bf16.mxu0 %v3278
      %4972 = vmatpush1.bf16.msra.mxu0 %v3277
      %4973 = vmatprep.mubr.bf16.mxu0 %v972
      %4974 = vmatmul.mubr.bf16.gmra.mrb[0].mxu0 %v971
      %v4975 = vpop.f32.mrb[0].mxu0
      %v4976 = vadd.f32 %v4935, %v4975
      %v4977 = vpop.f32.mrb[0].mxu0
      %v4978 = vadd.f32 %v4937, %v4977
      %v4979 = vpop.f32.mrb[0].mxu0
      %v4980 = vpop.f32.mrb[0].mxu0
      %4981 = vdwg.mxu0
      %4982 = vmatprep.subr.bf16.mxu0 %v3282
      %4983 = vmatpush1.bf16.msra.mxu0 %v3281
      %4984 = vmatprep.subr.bf16.mxu0 %v3286
      %4985 = vmatpush1.bf16.msra.mxu0 %v3285
      %4986 = vmatprep.subr.bf16.mxu0 %v3290
      %4987 = vmatpush1.bf16.msra.mxu0 %v3289
      %4988 = vmatprep.subr.bf16.mxu0 %v3294
      %4989 = vmatpush1.bf16.msra.mxu0 %v3293
      %4990 = vmatprep.subr.bf16.mxu0 %v3298
      %4991 = vmatpush1.bf16.msra.mxu0 %v3297
      %4992 = vmatprep.subr.bf16.mxu0 %v3302
      %4993 = vmatpush1.bf16.msra.mxu0 %v3301
      %4994 = vmatprep.subr.bf16.mxu0 %v3306
      %4995 = vmatpush1.bf16.msra.mxu0 %v3305
      %4996 = vmatprep.subr.bf16.mxu0 %v3310
      %4997 = vmatpush1.bf16.msra.mxu0 %v3309
      %4998 = vmatprep.subr.bf16.mxu0 %v3314
      %4999 = vmatpush1.bf16.msra.mxu0 %v3313
      %5000 = vmatprep.subr.bf16.mxu0 %v3318
      %5001 = vmatpush1.bf16.msra.mxu0 %v3317
      %5002 = vmatprep.subr.bf16.mxu0 %v3322
      %5003 = vmatpush1.bf16.msra.mxu0 %v3321
      %5004 = vmatprep.subr.bf16.mxu0 %v3326
      %5005 = vmatpush1.bf16.msra.mxu0 %v3325
      %5006 = vmatprep.subr.bf16.mxu0 %v3330
      %5007 = vmatpush1.bf16.msra.mxu0 %v3329
      %5008 = vmatprep.subr.bf16.mxu0 %v3334
      %5009 = vmatpush1.bf16.msra.mxu0 %v3333
      %5010 = vmatprep.subr.bf16.mxu0 %v3338
      %5011 = vmatpush1.bf16.msra.mxu0 %v3337
      %5012 = vmatprep.subr.bf16.mxu0 %v3342
      %5013 = vmatpush1.bf16.msra.mxu0 %v3341
      %5014 = vmatprep.mubr.bf16.mxu0 %v974
      %5015 = vmatmul.mubr.bf16.gmra.mrb[0].mxu0 %v973
      %v5016 = vpop.f32.mrb[0].mxu0
      %v5017 = vadd.f32 %v4976, %v5016
      %v5018 = vpop.f32.mrb[0].mxu0
      %v5019 = vadd.f32 %v4978, %v5018
      %v5020 = vpop.f32.mrb[0].mxu0
      %v5021 = vpop.f32.mrb[0].mxu0
      %5022 = vdwg.mxu0
      %5023 = vmatprep.subr.bf16.mxu0 %v3346
      %5024 = vmatpush1.bf16.msra.mxu0 %v3345
      %5025 = vmatprep.subr.bf16.mxu0 %v3350
      %5026 = vmatpush1.bf16.msra.mxu0 %v3349
      %5027 = vmatprep.subr.bf16.mxu0 %v3354
      %5028 = vmatpush1.bf16.msra.mxu0 %v3353
      %5029 = vmatprep.subr.bf16.mxu0 %v3358
      %5030 = vmatpush1.bf16.msra.mxu0 %v3357
      %5031 = vmatprep.subr.bf16.mxu0 %v3362
      %5032 = vmatpush1.bf16.msra.mxu0 %v3361
      %5033 = vmatprep.subr.bf16.mxu0 %v3366
      %5034 = vmatpush1.bf16.msra.mxu0 %v3365
      %5035 = vmatprep.subr.bf16.mxu0 %v3370
      %5036 = vmatpush1.bf16.msra.mxu0 %v3369
      %5037 = vmatprep.subr.bf16.mxu0 %v3374
      %5038 = vmatpush1.bf16.msra.mxu0 %v3373
      %5039 = vmatprep.subr.bf16.mxu0 %v3378
      %5040 = vmatpush1.bf16.msra.mxu0 %v3377
      %5041 = vmatprep.subr.bf16.mxu0 %v3382
      %5042 = vmatpush1.bf16.msra.mxu0 %v3381
      %5043 = vmatprep.subr.bf16.mxu0 %v3386
      %5044 = vmatpush1.bf16.msra.mxu0 %v3385
      %5045 = vmatprep.subr.bf16.mxu0 %v3390
      %5046 = vmatpush1.bf16.msra.mxu0 %v3389
      %5047 = vmatprep.subr.bf16.mxu0 %v3394
      %5048 = vmatpush1.bf16.msra.mxu0 %v3393
      %5049 = vmatprep.subr.bf16.mxu0 %v3398
      %5050 = vmatpush1.bf16.msra.mxu0 %v3397
      %5051 = vmatprep.subr.bf16.mxu0 %v3402
      %5052 = vmatpush1.bf16.msra.mxu0 %v3401
      %5053 = vmatprep.subr.bf16.mxu0 %v3406
      %5054 = vmatpush1.bf16.msra.mxu0 %v3405
      %5055 = vmatprep.mubr.bf16.mxu0 %v976
      %5056 = vmatmul.mubr.bf16.gmra.mrb[0].mxu0 %v975
      %v5057 = vpop.f32.mrb[0].mxu0
      %v5058 = vadd.f32 %v5017, %v5057
      %v5059 = vpop.f32.mrb[0].mxu0
      %v5060 = vadd.f32 %v5019, %v5059
      %v5061 = vpop.f32.mrb[0].mxu0
      %v5062 = vpop.f32.mrb[0].mxu0
      %5063 = vdwg.mxu0
      %5064 = vmatprep.subr.bf16.mxu0 %v3410
      %5065 = vmatpush1.bf16.msra.mxu0 %v3409
      %5066 = vmatprep.subr.bf16.mxu0 %v3414
      %5067 = vmatpush1.bf16.msra.mxu0 %v3413
      %5068 = vmatprep.subr.bf16.mxu0 %v3418
      %5069 = vmatpush1.bf16.msra.mxu0 %v3417
      %5070 = vmatprep.subr.bf16.mxu0 %v3422
      %5071 = vmatpush1.bf16.msra.mxu0 %v3421
      %5072 = vmatprep.subr.bf16.mxu0 %v3426
      %5073 = vmatpush1.bf16.msra.mxu0 %v3425
      %5074 = vmatprep.subr.bf16.mxu0 %v3430
      %5075 = vmatpush1.bf16.msra.mxu0 %v3429
      %5076 = vmatprep.subr.bf16.mxu0 %v3434
      %5077 = vmatpush1.bf16.msra.mxu0 %v3433
      %5078 = vmatprep.subr.bf16.mxu0 %v3438
      %5079 = vmatpush1.bf16.msra.mxu0 %v3437
      %5080 = vmatprep.subr.bf16.mxu0 %v3442
      %5081 = vmatpush1.bf16.msra.mxu0 %v3441
      %5082 = vmatprep.subr.bf16.mxu0 %v3446
      %5083 = vmatpush1.bf16.msra.mxu0 %v3445
      %5084 = vmatprep.subr.bf16.mxu0 %v3450
      %5085 = vmatpush1.bf16.msra.mxu0 %v3449
      %5086 = vmatprep.subr.bf16.mxu0 %v3454
      %5087 = vmatpush1.bf16.msra.mxu0 %v3453
      %5088 = vmatprep.subr.bf16.mxu0 %v3458
      %5089 = vmatpush1.bf16.msra.mxu0 %v3457
      %5090 = vmatprep.subr.bf16.mxu0 %v3462
      %5091 = vmatpush1.bf16.msra.mxu0 %v3461
      %5092 = vmatprep.subr.bf16.mxu0 %v3466
      %5093 = vmatpush1.bf16.msra.mxu0 %v3465
      %5094 = vmatprep.subr.bf16.mxu0 %v3470
      %5095 = vmatpush1.bf16.msra.mxu0 %v3469
      %5096 = vmatprep.mubr.bf16.mxu0 %v978
      %5097 = vmatmul.mubr.bf16.gmra.mrb[0].mxu0 %v977
      %v5098 = vpop.f32.mrb[0].mxu0
      %v5099 = vadd.f32 %v5058, %v5098
      %v5100 = vpop.f32.mrb[0].mxu0
      %v5101 = vadd.f32 %v5060, %v5100
      %v5102 = vpop.f32.mrb[0].mxu0
      %v5103 = vpop.f32.mrb[0].mxu0
      %5104 = vdwg.mxu0
      %5105 = vmatprep.subr.bf16.mxu0 %v3474
      %5106 = vmatpush1.bf16.msra.mxu0 %v3473
      %5107 = vmatprep.subr.bf16.mxu0 %v3478
      %5108 = vmatpush1.bf16.msra.mxu0 %v3477
      %5109 = vmatprep.subr.bf16.mxu0 %v3482
      %5110 = vmatpush1.bf16.msra.mxu0 %v3481
      %5111 = vmatprep.subr.bf16.mxu0 %v3486
      %5112 = vmatpush1.bf16.msra.mxu0 %v3485
      %5113 = vmatprep.subr.bf16.mxu0 %v3490
      %5114 = vmatpush1.bf16.msra.mxu0 %v3489
      %5115 = vmatprep.subr.bf16.mxu0 %v3494
      %5116 = vmatpush1.bf16.msra.mxu0 %v3493
      %5117 = vmatprep.subr.bf16.mxu0 %v3498
      %5118 = vmatpush1.bf16.msra.mxu0 %v3497
      %5119 = vmatprep.subr.bf16.mxu0 %v3502
      %5120 = vmatpush1.bf16.msra.mxu0 %v3501
      %5121 = vmatprep.subr.bf16.mxu0 %v3506
      %5122 = vmatpush1.bf16.msra.mxu0 %v3505
      %5123 = vmatprep.subr.bf16.mxu0 %v3510
      %5124 = vmatpush1.bf16.msra.mxu0 %v3509
      %5125 = vmatprep.subr.bf16.mxu0 %v3514
      %5126 = vmatpush1.bf16.msra.mxu0 %v3513
      %5127 = vmatprep.subr.bf16.mxu0 %v3518
      %5128 = vmatpush1.bf16.msra.mxu0 %v3517
      %5129 = vmatprep.subr.bf16.mxu0 %v3522
      %5130 = vmatpush1.bf16.msra.mxu0 %v3521
      %5131 = vmatprep.subr.bf16.mxu0 %v3526
      %5132 = vmatpush1.bf16.msra.mxu0 %v3525
      %5133 = vmatprep.subr.bf16.mxu0 %v3530
      %5134 = vmatpush1.bf16.msra.mxu0 %v3529
      %5135 = vmatprep.subr.bf16.mxu0 %v3534
      %5136 = vmatpush1.bf16.msra.mxu0 %v3533
      %5137 = vmatprep.mubr.bf16.mxu0 %v980
      %5138 = vmatmul.mubr.bf16.gmra.mrb[0].mxu0 %v979
      %v5139 = vpop.f32.mrb[0].mxu0
      %v5140 = vadd.f32 %v5099, %v5139
      %v5141 = vpop.f32.mrb[0].mxu0
      %v5142 = vadd.f32 %v5101, %v5141
      %v5143 = vpop.f32.mrb[0].mxu0
      %v5144 = vpop.f32.mrb[0].mxu0
      %5145 = vdwg.mxu0
      %5146 = vmatprep.subr.bf16.mxu0 %v3538
      %5147 = vmatpush1.bf16.msra.mxu0 %v3537
      %5148 = vmatprep.subr.bf16.mxu0 %v3542
      %5149 = vmatpush1.bf16.msra.mxu0 %v3541
      %5150 = vmatprep.subr.bf16.mxu0 %v3546
      %5151 = vmatpush1.bf16.msra.mxu0 %v3545
      %5152 = vmatprep.subr.bf16.mxu0 %v3550
      %5153 = vmatpush1.bf16.msra.mxu0 %v3549
      %5154 = vmatprep.subr.bf16.mxu0 %v3554
      %5155 = vmatpush1.bf16.msra.mxu0 %v3553
      %5156 = vmatprep.subr.bf16.mxu0 %v3558
      %5157 = vmatpush1.bf16.msra.mxu0 %v3557
      %5158 = vmatprep.subr.bf16.mxu0 %v3562
      %5159 = vmatpush1.bf16.msra.mxu0 %v3561
      %5160 = vmatprep.subr.bf16.mxu0 %v3566
      %5161 = vmatpush1.bf16.msra.mxu0 %v3565
      %5162 = vmatprep.subr.bf16.mxu0 %v3570
      %5163 = vmatpush1.bf16.msra.mxu0 %v3569
      %5164 = vmatprep.subr.bf16.mxu0 %v3574
      %5165 = vmatpush1.bf16.msra.mxu0 %v3573
      %5166 = vmatprep.subr.bf16.mxu0 %v3578
      %5167 = vmatpush1.bf16.msra.mxu0 %v3577
      %5168 = vmatprep.subr.bf16.mxu0 %v3582
      %5169 = vmatpush1.bf16.msra.mxu0 %v3581
      %5170 = vmatprep.subr.bf16.mxu0 %v3586
      %5171 = vmatpush1.bf16.msra.mxu0 %v3585
      %5172 = vmatprep.subr.bf16.mxu0 %v3590
      %5173 = vmatpush1.bf16.msra.mxu0 %v3589
      %5174 = vmatprep.subr.bf16.mxu0 %v3594
      %5175 = vmatpush1.bf16.msra.mxu0 %v3593
      %5176 = vmatprep.subr.bf16.mxu0 %v3598
      %5177 = vmatpush1.bf16.msra.mxu0 %v3597
      %5178 = vmatprep.mubr.bf16.mxu0 %v982
      %5179 = vmatmul.mubr.bf16.gmra.mrb[0].mxu0 %v981
      %v5180 = vpop.f32.mrb[0].mxu0
      %v5181 = vadd.f32 %v5140, %v5180
      %v5182 = vpop.f32.mrb[0].mxu0
      %v5183 = vadd.f32 %v5142, %v5182
      %v5184 = vpop.f32.mrb[0].mxu0
      %v5185 = vpop.f32.mrb[0].mxu0
      %5186 = vdwg.mxu0
      %5187 = vmatprep.subr.bf16.mxu0 %v3602
      %5188 = vmatpush1.bf16.msra.mxu0 %v3601
      %5189 = vmatprep.subr.bf16.mxu0 %v3606
      %5190 = vmatpush1.bf16.msra.mxu0 %v3605
      %5191 = vmatprep.subr.bf16.mxu0 %v3610
      %5192 = vmatpush1.bf16.msra.mxu0 %v3609
      %5193 = vmatprep.subr.bf16.mxu0 %v3614
      %5194 = vmatpush1.bf16.msra.mxu0 %v3613
      %5195 = vmatprep.subr.bf16.mxu0 %v3618
      %5196 = vmatpush1.bf16.msra.mxu0 %v3617
      %5197 = vmatprep.subr.bf16.mxu0 %v3622
      %5198 = vmatpush1.bf16.msra.mxu0 %v3621
      %5199 = vmatprep.subr.bf16.mxu0 %v3626
      %5200 = vmatpush1.bf16.msra.mxu0 %v3625
      %5201 = vmatprep.subr.bf16.mxu0 %v3630
      %5202 = vmatpush1.bf16.msra.mxu0 %v3629
      %5203 = vmatprep.subr.bf16.mxu0 %v3634
      %5204 = vmatpush1.bf16.msra.mxu0 %v3633
      %5205 = vmatprep.subr.bf16.mxu0 %v3638
      %5206 = vmatpush1.bf16.msra.mxu0 %v3637
      %5207 = vmatprep.subr.bf16.mxu0 %v3642
      %5208 = vmatpush1.bf16.msra.mxu0 %v3641
      %5209 = vmatprep.subr.bf16.mxu0 %v3646
      %5210 = vmatpush1.bf16.msra.mxu0 %v3645
      %5211 = vmatprep.subr.bf16.mxu0 %v3650
      %5212 = vmatpush1.bf16.msra.mxu0 %v3649
      %5213 = vmatprep.subr.bf16.mxu0 %v3654
      %5214 = vmatpush1.bf16.msra.mxu0 %v3653
      %5215 = vmatprep.subr.bf16.mxu0 %v3658
      %5216 = vmatpush1.bf16.msra.mxu0 %v3657
      %5217 = vmatprep.subr.bf16.mxu0 %v3662
      %5218 = vmatpush1.bf16.msra.mxu0 %v3661
      %5219 = vmatprep.mubr.bf16.mxu0 %v984
      %5220 = vmatmul.mubr.bf16.gmra.mrb[0].mxu0 %v983
      %v5221 = vpop.f32.mrb[0].mxu0
      %v5222 = vadd.f32 %v5181, %v5221
      %v5223 = vpop.f32.mrb[0].mxu0
      %v5224 = vadd.f32 %v5183, %v5223
      %v5225 = vpop.f32.mrb[0].mxu0
      %v5226 = vpop.f32.mrb[0].mxu0
      %5227 = vdwg.mxu0
      %5228 = vmatprep.subr.bf16.mxu0 %v3666
      %5229 = vmatpush1.bf16.msra.mxu0 %v3665
      %5230 = vmatprep.subr.bf16.mxu0 %v3670
      %5231 = vmatpush1.bf16.msra.mxu0 %v3669
      %5232 = vmatprep.subr.bf16.mxu0 %v3674
      %5233 = vmatpush1.bf16.msra.mxu0 %v3673
      %5234 = vmatprep.subr.bf16.mxu0 %v3678
      %5235 = vmatpush1.bf16.msra.mxu0 %v3677
      %5236 = vmatprep.subr.bf16.mxu0 %v3682
      %5237 = vmatpush1.bf16.msra.mxu0 %v3681
      %5238 = vmatprep.subr.bf16.mxu0 %v3686
      %5239 = vmatpush1.bf16.msra.mxu0 %v3685
      %5240 = vmatprep.subr.bf16.mxu0 %v3690
      %5241 = vmatpush1.bf16.msra.mxu0 %v3689
      %5242 = vmatprep.subr.bf16.mxu0 %v3694
      %5243 = vmatpush1.bf16.msra.mxu0 %v3693
      %5244 = vmatprep.subr.bf16.mxu0 0
      %5245 = vmatpush1.bf16.msra.mxu0 0
      %5246 = vmatprep.subr.bf16.mxu0 0
      %5247 = vmatpush1.bf16.msra.mxu0 0
      %5248 = vmatprep.subr.bf16.mxu0 0
      %5249 = vmatpush1.bf16.msra.mxu0 0
      %5250 = vmatprep.subr.bf16.mxu0 0
      %5251 = vmatpush1.bf16.msra.mxu0 0
      %5252 = vmatprep.subr.bf16.mxu0 0
      %5253 = vmatpush1.bf16.msra.mxu0 0
      %5254 = vmatprep.subr.bf16.mxu0 0
      %5255 = vmatpush1.bf16.msra.mxu0 0
      %5256 = vmatprep.subr.bf16.mxu0 0
      %5257 = vmatpush1.bf16.msra.mxu0 0
      %5258 = vmatprep.subr.bf16.mxu0 0
      %5259 = vmatpush1.bf16.msra.mxu0 0
      %5260 = vmatprep.mubr.bf16.mxu0 0
      %5261 = vmatmul.mubr.bf16.gmra.mrb[0].mxu0 %v985
      %v5262 = vpop.f32.mrb[0].mxu0
      %v5263 = vadd.f32 %v5222, %v5262
      %v5264 = vpop.f32.mrb[0].mxu0
      %v5265 = vadd.f32 %v5224, %v5264
      %v5266 = vpop.f32.mrb[0].mxu0
      %v5267 = vpop.f32.mrb[0].mxu0
      %5268 = vdwg.mxu0
      %v5269 = vadd.f32 %v246, %v4812
      %v5270 = vadd.f32 %v247, %v4814
      %v5271 = vadd.f32 %v248, %v5263
      %v5272 = vadd.f32 %v249, %v5265
      %5273 = vst [vmem:[#allocation2] sm:$0xff] %v5269
      %5274 = vst [vmem:[#allocation2 + $0x8] sm:$0xff] %v5270
      %5275 = vst [vmem:[#allocation2 + $0x10] sm:$0xff] %v5271
      %5276 = vst [vmem:[#allocation2 + $0x18] sm:$0xff] %v5272
      %p5277 = scmp.eq.s32.totalorder %s16, 1
      // Predicated region
      $region45: #{cnn_forward.7} parent=39 // pred_check
        %p5278 = pneg %p5277
      $region46: #{cnn_forward.7} parent=39 // pred_check_branch
        %5280 = sbr.rel (%p5278) target = $region48
      $region47: #{cnn_forward.7} parent=39 // pred_region
        %v5281 = vld [vmem:[#allocation2] sm:$0xff]
        %v5282 = vld [vmem:[#allocation2 + $0x8] sm:$0xff]
        %v5283 = vld [vmem:[#allocation2 + $0x10] sm:$0xff]
        %v5284 = vld [vmem:[#allocation2 + $0x18] sm:$0xff]
        %v5285 = vld [vmem:[%s2] sm:$0xf]
        %v5287 = vlaneseq
        %v5288 = vshrl.u32 %v5287, 7
        %v5289 = vsub.s32 0, %v5288
        %v5290 = vrot.slane %v5285, %v5289
        %v5291 = vlaneseq
        %v5292 = vshrl.u32 %v5291, 7
        %v5293 = vsub.s32 1, %v5292
        %v5294 = vrot.slane %v5285, %v5293
        %v5295 = vlaneseq
        %v5296 = vshrl.u32 %v5295, 7
        %v5297 = vsub.s32 2, %v5296
        %v5298 = vrot.slane %v5285, %v5297
        %v5299 = vlaneseq
        %v5300 = vshrl.u32 %v5299, 7
        %v5301 = vsub.s32 3, %v5300
        %v5302 = vrot.slane %v5285, %v5301
        %v5307 = vadd.f32 %v5281, %v5290
        %v5308 = vadd.f32 %v5282, %v5294
        %v5309 = vadd.f32 %v5283, %v5298
        %v5310 = vadd.f32 %v5284, %v5302
        %v5311 = vmax.f32 %v5307, 0.0
        %v5312 = vmax.f32 %v5308, 0.0
        %v5313 = vmax.f32 %v5309, 0.0
        %v5314 = vmax.f32 %v5310, 0.0
        %v5315 = vld [vmem:[%s3] sm:$0xff]
        %v5316 = vld [vmem:[%s3 + $0x8] sm:$0xff]
        %v5317 = vld [vmem:[%s3 + $0x10] sm:$0xff]
        %v5318 = vld [vmem:[%s3 + $0x18] sm:$0xff]
        %v5319 = vld [vmem:[%s3 + $0x20] sm:$0xff]
        %v5320 = vld [vmem:[%s3 + $0x28] sm:$0xff]
        %v5321 = vld [vmem:[%s3 + $0x30] sm:$0xff]
        %v5322 = vld [vmem:[%s3 + $0x38] sm:$0xff]
        %v5323 = vld [vmem:[%s3 + $0x40] sm:$0xff]
        %v5324 = vld [vmem:[%s3 + $0x48] sm:$0xff]
        %v5325 = vld [vmem:[%s3 + $0x50] sm:$0xff]
        %v5326 = vld [vmem:[%s3 + $0x58] sm:$0xff]
        %v5327 = vld [vmem:[%s3 + $0x60] sm:$0xff]
        %v5328 = vld [vmem:[%s3 + $0x68] sm:$0xff]
        %v5329 = vld [vmem:[%s3 + $0x70] sm:$0xff]
        %v5330 = vld [vmem:[%s3 + $0x78] sm:$0xff]
        %v5331 = vld [vmem:[%s3 + $0x80] sm:$0xff]
        %v5332 = vld [vmem:[%s3 + $0x88] sm:$0xff]
        %v5333 = vld [vmem:[%s3 + $0x90] sm:$0xff]
        %v5334 = vld [vmem:[%s3 + $0x98] sm:$0xff]
        %v5335 = vld [vmem:[%s3 + $0xa0] sm:$0xff]
        %v5336 = vld [vmem:[%s3 + $0xa8] sm:$0xff]
        %v5337 = vld [vmem:[%s3 + $0xb0] sm:$0xff]
        %v5338 = vld [vmem:[%s3 + $0xb8] sm:$0xff]
        %v5339 = vld [vmem:[%s3 + $0xc0] sm:$0xff]
        %v5340 = vld [vmem:[%s3 + $0xc8] sm:$0xff]
        %v5341 = vld [vmem:[%s3 + $0xd0] sm:$0xff]
        %v5342 = vld [vmem:[%s3 + $0xd8] sm:$0xff]
        %v5343 = vld [vmem:[%s3 + $0xe0] sm:$0xff]
        %v5344 = vld [vmem:[%s3 + $0xe8] sm:$0xff]
        %v5345 = vld [vmem:[%s3 + $0xf0] sm:$0xff]
        %v5346 = vld [vmem:[%s3 + $0xf8] sm:$0xff]
        %v5347 = vld [vmem:[%s3 + $0x100] sm:$0xff]
        %v5348 = vld [vmem:[%s3 + $0x108] sm:$0xff]
        %v5349 = vld [vmem:[%s3 + $0x110] sm:$0xff]
        %v5350 = vld [vmem:[%s3 + $0x118] sm:$0xff]
        %v5351 = vld [vmem:[%s3 + $0x120] sm:$0xff]
        %v5352 = vld [vmem:[%s3 + $0x128] sm:$0xff]
        %v5353 = vld [vmem:[%s3 + $0x130] sm:$0xff]
        %v5354 = vld [vmem:[%s3 + $0x138] sm:$0xff]
        %v5355 = vld [vmem:[%s3 + $0x140] sm:$0xff]
        %v5356 = vld [vmem:[%s3 + $0x148] sm:$0xff]
        %v5357 = vld [vmem:[%s3 + $0x150] sm:$0xff]
        %v5358 = vld [vmem:[%s3 + $0x158] sm:$0xff]
        %v5359 = vld [vmem:[%s3 + $0x160] sm:$0xff]
        %v5360 = vld [vmem:[%s3 + $0x168] sm:$0xff]
        %v5361 = vld [vmem:[%s3 + $0x170] sm:$0xff]
        %v5362 = vld [vmem:[%s3 + $0x178] sm:$0xff]
        %v5363 = vld [vmem:[%s3 + $0x180] sm:$0xff]
        %v5364 = vld [vmem:[%s3 + $0x188] sm:$0xff]
        %v5365 = vld [vmem:[%s3 + $0x190] sm:$0xff]
        %v5366 = vld [vmem:[%s3 + $0x198] sm:$0xff]
        %v5367 = vld [vmem:[%s3 + $0x1a0] sm:$0xff]
        %v5368 = vld [vmem:[%s3 + $0x1a8] sm:$0xff]
        %v5369 = vld [vmem:[%s3 + $0x1b0] sm:$0xff]
        %v5370 = vld [vmem:[%s3 + $0x1b8] sm:$0xff]
        %v5371 = vld [vmem:[%s3 + $0x1c0] sm:$0xff]
        %v5372 = vld [vmem:[%s3 + $0x1c8] sm:$0xff]
        %v5373 = vld [vmem:[%s3 + $0x1d0] sm:$0xff]
        %v5374 = vld [vmem:[%s3 + $0x1d8] sm:$0xff]
        %v5375 = vld [vmem:[%s3 + $0x1e0] sm:$0xff]
        %v5376 = vld [vmem:[%s3 + $0x1e8] sm:$0xff]
        %v5377 = vld [vmem:[%s3 + $0x1f0] sm:$0xff]
        %v5378 = vld [vmem:[%s3 + $0x1f8] sm:$0xff]
        %v5379 = vld [vmem:[%s4] sm:$0x1]
        %v5381 = vlaneseq
        %v5382 = vshrl.u32 %v5381, 7
        %v5383 = vsub.s32 0, %v5382
        %v5384 = vrot.slane %v5379, %v5383
        %5386 = vmatprep.subr.mxu0 0.0
        %5387 = vmatpush1.msra.mxu0 %v5315
        %5388 = vmatprep.subr.mxu0 0.0
        %5389 = vmatpush1.msra.mxu0 %v5316
        %5390 = vmatprep.subr.mxu0 0.0
        %5391 = vmatpush1.msra.mxu0 %v5317
        %5392 = vmatprep.subr.mxu0 0.0
        %5393 = vmatpush1.msra.mxu0 %v5318
        %5394 = vmatprep.subr.mxu0 0.0
        %5395 = vmatpush1.msra.mxu0 %v5319
        %5396 = vmatprep.subr.mxu0 0.0
        %5397 = vmatpush1.msra.mxu0 %v5320
        %5398 = vmatprep.subr.mxu0 0.0
        %5399 = vmatpush1.msra.mxu0 %v5321
        %5400 = vmatprep.subr.mxu0 0.0
        %5401 = vmatpush1.msra.mxu0 %v5322
        %5402 = vmatprep.subr.mxu0 0.0
        %5403 = vmatpush1.msra.mxu0 %v5323
        %5404 = vmatprep.subr.mxu0 0.0
        %5405 = vmatpush1.msra.mxu0 %v5324
        %5406 = vmatprep.subr.mxu0 0.0
        %5407 = vmatpush1.msra.mxu0 %v5325
        %5408 = vmatprep.subr.mxu0 0.0
        %5409 = vmatpush1.msra.mxu0 %v5326
        %5410 = vmatprep.subr.mxu0 0.0
        %5411 = vmatpush1.msra.mxu0 %v5327
        %5412 = vmatprep.subr.mxu0 0.0
        %5413 = vmatpush1.msra.mxu0 %v5328
        %5414 = vmatprep.subr.mxu0 0.0
        %5415 = vmatpush1.msra.mxu0 %v5329
        %5416 = vmatprep.subr.mxu0 0.0
        %5417 = vmatpush1.msra.mxu0 %v5330
        %5418 = vmatprep.subr.mxu0 0.0
        %5419 = vmatpush1.msra.mxu0 %v5331
        %5420 = vmatprep.subr.mxu0 0.0
        %5421 = vmatpush1.msra.mxu0 %v5332
        %5422 = vmatprep.subr.mxu0 0.0
        %5423 = vmatpush1.msra.mxu0 %v5333
        %5424 = vmatprep.subr.mxu0 0.0
        %5425 = vmatpush1.msra.mxu0 %v5334
        %5426 = vmatprep.subr.mxu0 0.0
        %5427 = vmatpush1.msra.mxu0 %v5335
        %5428 = vmatprep.subr.mxu0 0.0
        %5429 = vmatpush1.msra.mxu0 %v5336
        %5430 = vmatprep.subr.mxu0 0.0
        %5431 = vmatpush1.msra.mxu0 %v5337
        %5432 = vmatprep.subr.mxu0 0.0
        %5433 = vmatpush1.msra.mxu0 %v5338
        %5434 = vmatprep.subr.mxu0 0.0
        %5435 = vmatpush1.msra.mxu0 %v5339
        %5436 = vmatprep.subr.mxu0 0.0
        %5437 = vmatpush1.msra.mxu0 %v5340
        %5438 = vmatprep.subr.mxu0 0.0
        %5439 = vmatpush1.msra.mxu0 %v5341
        %5440 = vmatprep.subr.mxu0 0.0
        %5441 = vmatpush1.msra.mxu0 %v5342
        %5442 = vmatprep.subr.mxu0 0.0
        %5443 = vmatpush1.msra.mxu0 %v5343
        %5444 = vmatprep.subr.mxu0 0.0
        %5445 = vmatpush1.msra.mxu0 %v5344
        %5446 = vmatprep.subr.mxu0 0.0
        %5447 = vmatpush1.msra.mxu0 %v5345
        %5448 = vmatprep.subr.mxu0 0.0
        %5449 = vmatpush1.msra.mxu0 %v5346
        %5450 = vmatprep.mubr.f32.mxu0 %v5312
        %5451 = vmatmul.mubr.f32.gmra.mrb[0].mxu0 %v5311
        %v5452 = vpop.f32.mrb[0].mxu0
        %v5453 = vadd.f32 %v5384, %v5452
        %v5454 = vpop.f32.mrb[0].mxu0
        %5455 = vdwg.mxu0
        %5456 = vmatprep.subr.mxu0 0.0
        %5457 = vmatpush1.msra.mxu0 %v5347
        %5458 = vmatprep.subr.mxu0 0.0
        %5459 = vmatpush1.msra.mxu0 %v5348
        %5460 = vmatprep.subr.mxu0 0.0
        %5461 = vmatpush1.msra.mxu0 %v5349
        %5462 = vmatprep.subr.mxu0 0.0
        %5463 = vmatpush1.msra.mxu0 %v5350
        %5464 = vmatprep.subr.mxu0 0.0
        %5465 = vmatpush1.msra.mxu0 %v5351
        %5466 = vmatprep.subr.mxu0 0.0
        %5467 = vmatpush1.msra.mxu0 %v5352
        %5468 = vmatprep.subr.mxu0 0.0
        %5469 = vmatpush1.msra.mxu0 %v5353
        %5470 = vmatprep.subr.mxu0 0.0
        %5471 = vmatpush1.msra.mxu0 %v5354
        %5472 = vmatprep.subr.mxu0 0.0
        %5473 = vmatpush1.msra.mxu0 %v5355
        %5474 = vmatprep.subr.mxu0 0.0
        %5475 = vmatpush1.msra.mxu0 %v5356
        %5476 = vmatprep.subr.mxu0 0.0
        %5477 = vmatpush1.msra.mxu0 %v5357
        %5478 = vmatprep.subr.mxu0 0.0
        %5479 = vmatpush1.msra.mxu0 %v5358
        %5480 = vmatprep.subr.mxu0 0.0
        %5481 = vmatpush1.msra.mxu0 %v5359
        %5482 = vmatprep.subr.mxu0 0.0
        %5483 = vmatpush1.msra.mxu0 %v5360
        %5484 = vmatprep.subr.mxu0 0.0
        %5485 = vmatpush1.msra.mxu0 %v5361
        %5486 = vmatprep.subr.mxu0 0.0
        %5487 = vmatpush1.msra.mxu0 %v5362
        %5488 = vmatprep.subr.mxu0 0.0
        %5489 = vmatpush1.msra.mxu0 %v5363
        %5490 = vmatprep.subr.mxu0 0.0
        %5491 = vmatpush1.msra.mxu0 %v5364
        %5492 = vmatprep.subr.mxu0 0.0
        %5493 = vmatpush1.msra.mxu0 %v5365
        %5494 = vmatprep.subr.mxu0 0.0
        %5495 = vmatpush1.msra.mxu0 %v5366
        %5496 = vmatprep.subr.mxu0 0.0
        %5497 = vmatpush1.msra.mxu0 %v5367
        %5498 = vmatprep.subr.mxu0 0.0
        %5499 = vmatpush1.msra.mxu0 %v5368
        %5500 = vmatprep.subr.mxu0 0.0
        %5501 = vmatpush1.msra.mxu0 %v5369
        %5502 = vmatprep.subr.mxu0 0.0
        %5503 = vmatpush1.msra.mxu0 %v5370
        %5504 = vmatprep.subr.mxu0 0.0
        %5505 = vmatpush1.msra.mxu0 %v5371
        %5506 = vmatprep.subr.mxu0 0.0
        %5507 = vmatpush1.msra.mxu0 %v5372
        %5508 = vmatprep.subr.mxu0 0.0
        %5509 = vmatpush1.msra.mxu0 %v5373
        %5510 = vmatprep.subr.mxu0 0.0
        %5511 = vmatpush1.msra.mxu0 %v5374
        %5512 = vmatprep.subr.mxu0 0.0
        %5513 = vmatpush1.msra.mxu0 %v5375
        %5514 = vmatprep.subr.mxu0 0.0
        %5515 = vmatpush1.msra.mxu0 %v5376
        %5516 = vmatprep.subr.mxu0 0.0
        %5517 = vmatpush1.msra.mxu0 %v5377
        %5518 = vmatprep.subr.mxu0 0.0
        %5519 = vmatpush1.msra.mxu0 %v5378
        %5520 = vmatprep.mubr.f32.mxu0 %v5314
        %5521 = vmatmul.mubr.f32.gmra.mrb[0].mxu0 %v5313
        %v5522 = vpop.f32.mrb[0].mxu0
        %v5523 = vadd.f32 %v5453, %v5522
        %v5524 = vpop.f32.mrb[0].mxu0
        %5525 = vdwg.mxu0
        %5526 = vst [vmem:[%s5] sm:$0xff] %v5523
      $region48: #{cnn_forward.7} parent=39 // pred_fallthru
        _
      // Predicated region
      $region49: #{cnn_forward.7} parent=39 // pred_check
        %p5527 = pneg %p144
      $region50: #{cnn_forward.7} parent=39 // pred_check_branch
        %5529 = sbr.rel (%p5527) target = $region52
      $region51: #{cnn_forward.7} parent=39 // pred_region
        _
      $region52: #{cnn_forward.7} parent=39 // pred_fallthru
        _
      // Predicated region
      $region53: #{cnn_forward.7} parent=39 // pred_check
        %p5530 = pneg %p144
      $region54: #{cnn_forward.7} parent=39 // pred_check_branch
        %5532 = sbr.rel (%p5530) target = $region56
      $region55: #{cnn_forward.7} parent=39 // pred_region
        _
      $region56: #{cnn_forward.7} parent=39 // pred_fallthru
        _
    $region40: #{cnn_forward.7} parent=5 // pred_fallthru
      _
    %p5533 = scmp.le.s32.totalorder 2, %s11
    // Predicated region
    $region57: #{cnn_forward.7} parent=5 // pred_check
      %p5534 = pneg %p5533
    $region58: #{cnn_forward.7} parent=5 // pred_check_branch
      %5536 = sbr.rel (%p5534) target = $region60
    $region59: #{cnn_forward.7} parent=5 // pred_region
      %s5537 = ssub.s32 %s11, 2
    $region60: #{cnn_forward.7} parent=5 // pred_fallthru
      _
  $region6: #{cnn_forward.7} parent=0 // loop_footer
    %s15 = sadd.s32 1, %s11
  $region7: #{cnn_forward.7} parent=0 // loop_footer_branch
    %10 = sbr.rel target = $region3
  $region8: #{cnn_forward.7} parent=0 // loop_exit
    _

</llo_original>
